<compile_context>
chip_gen: v7x
topology: tpu7x:2x2x1
jax: 0.10.0
libtpu: 0.0.40
codegen_flags: <defaults>
</compile_context>

<pallas_src>
import math
from functools import partial

import jax
import jax.numpy as jnp
from jax.experimental import pallas as pl
from jax.experimental.pallas import tpu as pltpu

NEG_SLOPE = 0.01   # nn.LeakyReLU default
LN_EPS = 1e-5      # nn.LayerNorm default


# --------------------------- in-kernel helpers ------------------------------

def _ln(x, ln):
    """LayerNorm over the last dim. ln is a (2, d) [gamma; beta] tile."""
    g = ln[0:1, :]
    b = ln[1:2, :]
    mu = jnp.mean(x, axis=-1, keepdims=True)
    xc = x - mu
    var = jnp.mean(xc * xc, axis=-1, keepdims=True)
    return xc * jax.lax.rsqrt(var + LN_EPS) * g + b


def _add_ln(x, res, ln):
    """Post-norm residual: LayerNorm(x + residual)."""
    return _ln(x + res, ln)


def _mha(xq, xkv, wq, wk, wv, bq, bk, bv, wo, bo, nhead, dh):
    """Multi-head attention (no mask, eval mode).

    Weight refs hold per-head 2-D tiles for the current layer:
      wq/wk/wv: (1, H, d, dh),  bq/bk/bv: (1, H, 1, dh),
      wo: (1, H, dh, d),        bo: (1, 1, d).
    The output projection is folded into a per-head accumulation
    (sum_h ctx_h @ Wo_h == concat_h(ctx_h) @ Wo).
    """
    scale = 1.0 / math.sqrt(dh)          # dh is a static Python int
    acc = None
    for h in range(nhead):               # static unroll; nhead is small
        qh = jnp.dot(xq, wq[0, h], preferred_element_type=jnp.float32) + bq[0, h]
        kh = jnp.dot(xkv, wk[0, h], preferred_element_type=jnp.float32) + bk[0, h]
        vh = jnp.dot(xkv, wv[0, h], preferred_element_type=jnp.float32) + bv[0, h]
        # scores: contract on the last (head) dim of both -> no explicit .T
        s = jax.lax.dot_general(qh * scale, kh, (((1,), (1,)), ((), ())),
                                preferred_element_type=jnp.float32)
        m = jnp.max(s, axis=-1, keepdims=True)
        p = jnp.exp(s - m)
        p = p * pl.reciprocal(jnp.sum(p, axis=-1, keepdims=True), approx=True)
        ctx = jnp.dot(p, vh, preferred_element_type=jnp.float32)
        part = jnp.dot(ctx, wo[0, h], preferred_element_type=jnp.float32)
        acc = part if acc is None else acc + part
    return acc + bo[0]


# ------------------------------ fused kernels --------------------------------

def _encoder_stack_kernel(x_ref, wq, wk, wv, bq, bk, bv, wo, bo, ln1,
                          f1w, f1b, f2w, f2b, ln2, nrm,
                          o_ref, x_vmem, *, nhead, dh):
    layer = pl.program_id(0)

    @pl.when(layer == 0)
    def _():
        x_vmem[...] = x_ref[...]

    x = x_vmem[...]
    # self-attention + add & norm (post-norm)
    a = _mha(x, x, wq, wk, wv, bq, bk, bv, wo, bo, nhead, dh)
    x = _add_ln(a, x, ln1[0])
    # feed-forward (ReLU) + add & norm
    hdn = jnp.maximum(
        jnp.dot(x, f1w[0], preferred_element_type=jnp.float32) + f1b[0], 0.0)
    f = jnp.dot(hdn, f2w[0], preferred_element_type=jnp.float32) + f2b[0]
    x = _add_ln(f, x, ln2[0])
    x_vmem[...] = x

    # final encoder LayerNorm; only the last layer writes the HBM output.
    @pl.when(layer == pl.num_programs(0) - 1)
    def _():
        o_ref[...] = _ln(x, nrm[...])


def _decoder_stack_kernel(y_ref, mem_ref,
                          s_wq, s_wk, s_wv, s_bq, s_bk, s_bv, s_wo, s_bo, ln1,
                          c_wq, c_wk, c_wv, c_bq, c_bk, c_bv, c_wo, c_bo, ln2,
                          f1w, f1b, f2w, f2b, ln3, nrm,
                          c1w, c1b, c2w, c2b,
                          o_ref, y_vmem, *, nhead, dh):
    layer = pl.program_id(0)

    @pl.when(layer == 0)
    def _():
        y_vmem[...] = y_ref[...]

    y = y_vmem[...]
    mem = mem_ref[...]
    # self-attention (mask is all-False for n_pad=0) + add & norm
    a = _mha(y, y, s_wq, s_wk, s_wv, s_bq, s_bk, s_bv, s_wo, s_bo, nhead, dh)
    y = _add_ln(a, y, ln1[0])
    # cross-attention over encoder memory + add & norm
    a = _mha(y, mem, c_wq, c_wk, c_wv, c_bq, c_bk, c_bv, c_wo, c_bo, nhead, dh)
    y = _add_ln(a, y, ln2[0])
    # feed-forward (ReLU) + add & norm
    hdn = jnp.maximum(
        jnp.dot(y, f1w[0], preferred_element_type=jnp.float32) + f1b[0], 0.0)
    f = jnp.dot(hdn, f2w[0], preferred_element_type=jnp.float32) + f2b[0]
    y = _add_ln(f, y, ln3[0])
    y_vmem[...] = y

    # last layer: final decoder LayerNorm + prediction head; single HBM output.
    @pl.when(layer == pl.num_programs(0) - 1)
    def _():
        z = _ln(y, nrm[...])
        h1 = jnp.dot(z, c1w[...], preferred_element_type=jnp.float32) + c1b[...]
        h1 = jnp.where(h1 >= 0.0, h1, NEG_SLOPE * h1)          # LeakyReLU
        o_ref[...] = (jnp.dot(h1, c2w[...], preferred_element_type=jnp.float32)
                      + c2b[...])


# ------------------------------- wrappers ------------------------------------

def _const_spec(shape):
    nd = len(shape)
    return pl.BlockSpec(shape, lambda i, _nd=nd: (0,) * _nd)


def _layered_spec(shape):
    nd = len(shape)
    return pl.BlockSpec(shape, lambda i, _nd=nd: (i,) + (0,) * (_nd - 1))


def _attn_specs(H, d, dh):
    return [
        _layered_spec((1, H, d, dh)), _layered_spec((1, H, d, dh)),
        _layered_spec((1, H, d, dh)),
        _layered_spec((1, H, 1, dh)), _layered_spec((1, H, 1, dh)),
        _layered_spec((1, H, 1, dh)),
        _layered_spec((1, H, dh, d)), _layered_spec((1, 1, d)),
    ]


def _attn_args(a):
    return [a["wq"], a["wk"], a["wv"], a["bq"], a["bk"], a["bv"], a["wo"], a["bo"]]


def encoder_stack(x, enc, enc_norm, nhead):
    S, d = x.shape
    L, H, _, dh = enc["wq"].shape
    dff = enc["f1w"].shape[2]

    in_specs = (
        [_const_spec((S, d))]
        + _attn_specs(H, d, dh)
        + [_layered_spec((1, 2, d)),
           _layered_spec((1, d, dff)), _layered_spec((1, 1, dff)),
           _layered_spec((1, dff, d)), _layered_spec((1, 1, d)),
           _layered_spec((1, 2, d)),
           _const_spec((2, d))]
    )
    args = ([x] + _attn_args(enc)
            + [enc["ln1"], enc["f1w"], enc["f1b"], enc["f2w"], enc["f2b"],
               enc["ln2"], enc_norm])
    return pl.pallas_call(
        partial(_encoder_stack_kernel, nhead=nhead, dh=dh),
        out_shape=jax.ShapeDtypeStruct((S, d), jnp.float32),
        grid=(L,),
        in_specs=in_specs,
        out_specs=_const_spec((S, d)),
        scratch_shapes=[pltpu.VMEM((S, d), jnp.float32)],
        compiler_params=pltpu.CompilerParams(
            dimension_semantics=("arbitrary",),      # layers are sequential
            vmem_limit_bytes=8 * 1024 * 1024),
    )(*args)


def decoder_stack(y, mem, dec, dec_norm, head, nhead):
    Sl, d = y.shape
    Sp, _ = mem.shape
    L, H, _, dh = dec["sa"]["wq"].shape
    dff = dec["f1w"].shape[2]
    d2 = head["c1_w"].shape[1]

    in_specs = (
        [_const_spec((Sl, d)), _const_spec((Sp, d))]
        + _attn_specs(H, d, dh) + [_layered_spec((1, 2, d))]
        + _attn_specs(H, d, dh) + [_layered_spec((1, 2, d))]
        + [_layered_spec((1, d, dff)), _layered_spec((1, 1, dff)),
           _layered_spec((1, dff, d)), _layered_spec((1, 1, d)),
           _layered_spec((1, 2, d)),
           _const_spec((2, d)),
           _const_spec((d, d2)), _const_spec((1, d2)),
           _const_spec((d2, 3)), _const_spec((1, 3))]
    )
    args = ([y, mem]
            + _attn_args(dec["sa"]) + [dec["ln1"]]
            + _attn_args(dec["ca"]) + [dec["ln2"]]
            + [dec["f1w"], dec["f1b"], dec["f2w"], dec["f2b"], dec["ln3"],
               dec_norm, head["c1_w"], head["c1_b"], head["c2_w"], head["c2_b"]])
    return pl.pallas_call(
        partial(_decoder_stack_kernel, nhead=nhead, dh=dh),
        out_shape=jax.ShapeDtypeStruct((Sl, 3), jnp.float32),
        grid=(L,),
        in_specs=in_specs,
        out_specs=_const_spec((Sl, 3)),
        scratch_shapes=[pltpu.VMEM((Sl, d), jnp.float32)],
        compiler_params=pltpu.CompilerParams(
            dimension_semantics=("arbitrary",),
            vmem_limit_bytes=8 * 1024 * 1024),
    )(*args)


def d3g_pair_transformer_px_forward(params, features_pro, coords_pro,
                                    features_lig, coords_lig, *, nhead):
    assert coords_pro.shape[1] == 3 and coords_lig.shape[1] == 3
    # mix_pe_feature with n_padding=0 == concat; dropout in eval == identity.
    pe_pro = jnp.concatenate([features_pro, coords_pro], axis=1).astype(jnp.float32)
    pe_lig = jnp.concatenate([features_lig, coords_lig], axis=1).astype(jnp.float32)

    mem = encoder_stack(pe_pro, params["enc"], params["enc_norm"], nhead)
    pred = decoder_stack(pe_lig, mem, params["dec"], params["dec_norm"],
                         params["head"], nhead)
    return pred


# ---------------------------- parameter init ---------------------------------

def _winit(key, shape):
    return jax.random.normal(key, shape, jnp.float32) * 0.02


def _attn_params(key, L, d, nhead):
    dh = d // nhead
    ks = jax.random.split(key, 4)
    return dict(
        wq=_winit(ks[0], (L, nhead, d, dh)),
        wk=_winit(ks[1], (L, nhead, d, dh)),
        wv=_winit(ks[2], (L, nhead, d, dh)),
        bq=jnp.zeros((L, nhead, 1, dh), jnp.float32),
        bk=jnp.zeros((L, nhead, 1, dh), jnp.float32),
        bv=jnp.zeros((L, nhead, 1, dh), jnp.float32),
        wo=_winit(ks[3], (L, nhead, dh, d)),
        bo=jnp.zeros((L, 1, d), jnp.float32),
    )


def _ln_stack(L, d):   # (L, 2, d): [gamma; beta] per layer
    return jnp.stack([jnp.ones((L, d), jnp.float32),
                      jnp.zeros((L, d), jnp.float32)], axis=1)


def _ln_single(d):     # (2, d)
    return jnp.stack([jnp.ones((d,), jnp.float32),
                      jnp.zeros((d,), jnp.float32)], axis=0)


def init_params(key, d_model, nhead, d_ff, n_enc=6, n_dec=6):
    keys = jax.random.split(key, 9)
    enc = dict(
        **_attn_params(keys[0], n_enc, d_model, nhead),
        ln1=_ln_stack(n_enc, d_model),
        f1w=_winit(keys[1], (n_enc, d_model, d_ff)),
        f1b=jnp.zeros((n_enc, 1, d_ff), jnp.float32),
        f2w=_winit(keys[2], (n_enc, d_ff, d_model)),
        f2b=jnp.zeros((n_enc, 1, d_model), jnp.float32),
        ln2=_ln_stack(n_enc, d_model),
    )
    dec = dict(
        sa=_attn_params(keys[3], n_dec, d_model, nhead),
        ca=_attn_params(keys[4], n_dec, d_model, nhead),
        ln1=_ln_stack(n_dec, d_model),
        ln2=_ln_stack(n_dec, d_model),
        ln3=_ln_stack(n_dec, d_model),
        f1w=_winit(keys[5], (n_dec, d_model, d_ff)),
        f1b=jnp.zeros((n_dec, 1, d_ff), jnp.float32),
        f2w=_winit(keys[6], (n_dec, d_ff, d_model)),
        f2b=jnp.zeros((n_dec, 1, d_model), jnp.float32),
    )
    head = dict(
        c1_w=_winit(keys[7], (d_model, 2 * d_model)),
        c1_b=jnp.zeros((1, 2 * d_model), jnp.float32),
        c2_w=_winit(keys[8], (2 * d_model, 3)),
        c2_b=jnp.zeros((1, 3), jnp.float32),
    )
    return dict(enc=enc, enc_norm=_ln_single(d_model),
                dec=dec, dec_norm=_ln_single(d_model), head=head)


# --------------------------------- main ---------------------------------------

if __name__ == "__main__":
    # Small config: d_model=32 (29 feature cols + 3 coord cols), nhead=4
    # (the PyTorch default nhead=5 does not divide 32), ff=64, 6+6 layers.
    d_model, nhead, d_ff = 32, 4, 64
    S_pro, S_lig = 16, 8

    key = jax.random.PRNGKey(0)
    k_par, k_fp, k_cp, k_fl, k_cl = jax.random.split(key, 5)
    params = init_params(k_par, d_model, nhead, d_ff, n_enc=6, n_dec=6)

    features_pro = jax.random.normal(k_fp, (S_pro, d_model - 3), jnp.float32)
    coords_pro = jax.random.normal(k_cp, (S_pro, 3), jnp.float32)
    features_lig = jax.random.normal(k_fl, (S_lig, d_model - 3), jnp.float32)
    coords_lig = jax.random.normal(k_cl, (S_lig, 3), jnp.float32)

    fwd = jax.jit(d3g_pair_transformer_px_forward, static_argnames=("nhead",))
    pred = fwd(params, features_pro, coords_pro, features_lig, coords_lig,
               nhead=nhead)
    pred = jax.block_until_ready(pred)
    assert pred.shape == (S_lig, 3)
    assert bool(jnp.all(jnp.isfinite(pred)))
    print("KERNEL_OK")
</pallas_src>

<mosaic_0001>
module attributes {stable_mosaic.version = 11 : i64} {
  func.func @_encoder_stack_kernel(%arg0: i32, %arg1: memref<16x32xf32, #tpu.memory_space<vmem>>, %arg2: memref<1x4x32x8xf32, #tpu.memory_space<vmem>>, %arg3: memref<1x4x32x8xf32, #tpu.memory_space<vmem>>, %arg4: memref<1x4x32x8xf32, #tpu.memory_space<vmem>>, %arg5: memref<1x4x1x8xf32, #tpu.memory_space<vmem>>, %arg6: memref<1x4x1x8xf32, #tpu.memory_space<vmem>>, %arg7: memref<1x4x1x8xf32, #tpu.memory_space<vmem>>, %arg8: memref<1x4x8x32xf32, #tpu.memory_space<vmem>>, %arg9: memref<1x1x32xf32, #tpu.memory_space<vmem>>, %arg10: memref<1x2x32xf32, #tpu.memory_space<vmem>>, %arg11: memref<1x32x64xf32, #tpu.memory_space<vmem>>, %arg12: memref<1x1x64xf32, #tpu.memory_space<vmem>>, %arg13: memref<1x64x32xf32, #tpu.memory_space<vmem>>, %arg14: memref<1x1x32xf32, #tpu.memory_space<vmem>>, %arg15: memref<1x2x32xf32, #tpu.memory_space<vmem>>, %arg16: memref<2x32xf32, #tpu.memory_space<vmem>>, %arg17: memref<16x32xf32, #tpu.memory_space<vmem>>, %arg18: memref<16x32xf32, #tpu.memory_space<vmem>>) attributes {dimension_semantics = [#tpu.dimension_semantics<arbitrary>], iteration_bounds = array<i64: 6>, scalar_prefetch = 0 : i64, scratch_operands = 1 : i64, tpu.core_type = #tpu.core_type<tc>, window_params = [{pipeline_mode = #tpu.pipeline_mode<synchronous>, transform_indices = @transform_0, window_bounds = array<i64: 16, 32>}, {transform_indices = @transform_1, window_bounds = array<i64: 1, 4, 32, 8>}, {transform_indices = @transform_2, window_bounds = array<i64: 1, 4, 32, 8>}, {transform_indices = @transform_3, window_bounds = array<i64: 1, 4, 32, 8>}, {transform_indices = @transform_4, window_bounds = array<i64: 1, 4, 1, 8>}, {transform_indices = @transform_5, window_bounds = array<i64: 1, 4, 1, 8>}, {transform_indices = @transform_6, window_bounds = array<i64: 1, 4, 1, 8>}, {transform_indices = @transform_7, window_bounds = array<i64: 1, 4, 8, 32>}, {transform_indices = @transform_8, window_bounds = array<i64: 1, 1, 32>}, {transform_indices = @transform_9, window_bounds = array<i64: 1, 2, 32>}, {transform_indices = @transform_10, window_bounds = array<i64: 1, 32, 64>}, {transform_indices = @transform_11, window_bounds = array<i64: 1, 1, 64>}, {transform_indices = @transform_12, window_bounds = array<i64: 1, 64, 32>}, {transform_indices = @transform_13, window_bounds = array<i64: 1, 1, 32>}, {transform_indices = @transform_14, window_bounds = array<i64: 1, 2, 32>}, {pipeline_mode = #tpu.pipeline_mode<synchronous>, transform_indices = @transform_15, window_bounds = array<i64: 2, 32>}, {pipeline_mode = #tpu.pipeline_mode<synchronous>, transform_indices = @transform_16, window_bounds = array<i64: 16, 32>}]} {
    %c0_i32 = arith.constant 0 : i32
    %0 = arith.cmpi eq, %arg0, %c0_i32 : i32
    %1 = arith.extui %0 : i1 to i32
    %c0_i32_0 = arith.constant 0 : i32
    %2 = arith.cmpi ne, %1, %c0_i32_0 : i32
    scf.if %2 {
      %c0_183 = arith.constant 0 : index
      %c0_184 = arith.constant 0 : index
      %233 = vector.load %arg1[%c0_183, %c0_184] : memref<16x32xf32, #tpu.memory_space<vmem>>, vector<16x32xf32>
      %c0_185 = arith.constant 0 : index
      %c0_186 = arith.constant 0 : index
      %234 = vector.load %arg18[%c0_185, %c0_186] : memref<16x32xf32, #tpu.memory_space<vmem>>, vector<16x32xf32>
      tpu.vector_store %arg18[%c0_185, %c0_186], %233 {strides = array<i32>} : memref<16x32xf32, #tpu.memory_space<vmem>>, vector<16x32xf32>,
    } else {
    }
    %c0 = arith.constant 0 : index
    %c0_1 = arith.constant 0 : index
    %3 = vector.load %arg18[%c0, %c0_1] : memref<16x32xf32, #tpu.memory_space<vmem>>, vector<16x32xf32>
    %c0_2 = arith.constant 0 : index
    %c0_3 = arith.constant 0 : index
    %c0_4 = arith.constant 0 : index
    %c0_5 = arith.constant 0 : index
    %4 = vector.load %arg2[%c0_2, %c0_3, %c0_4, %c0_5] : memref<1x4x32x8xf32, #tpu.memory_space<vmem>>, vector<1x1x32x8xf32>
    %5 = vector.shape_cast %4 : vector<1x1x32x8xf32> to vector<32x8xf32>
    %cst = arith.constant dense<0.000000e+00> : vector<16x8xf32>
    %6 = tpu.matmul %3, %5, %cst {dimension_numbers = #tpu.dot_dimension_numbers<[1], [0], [0], [1], [0, 0, 1, 1], [], []>} : vector<16x32xf32>, vector<32x8xf32>, vector<16x8xf32> -> vector<16x8xf32>
    %c0_6 = arith.constant 0 : index
    %c0_7 = arith.constant 0 : index
    %c0_8 = arith.constant 0 : index
    %c0_9 = arith.constant 0 : index
    %7 = vector.load %arg5[%c0_6, %c0_7, %c0_8, %c0_9] : memref<1x4x1x8xf32, #tpu.memory_space<vmem>>, vector<1x1x1x8xf32>
    %8 = vector.shape_cast %7 : vector<1x1x1x8xf32> to vector<1x8xf32>
    %9 = vector.broadcast %8 : vector<1x8xf32> to vector<16x8xf32>
    %10 = arith.addf %6, %9 : vector<16x8xf32>
    %c0_10 = arith.constant 0 : index
    %c0_11 = arith.constant 0 : index
    %c0_12 = arith.constant 0 : index
    %c0_13 = arith.constant 0 : index
    %11 = vector.load %arg3[%c0_10, %c0_11, %c0_12, %c0_13] : memref<1x4x32x8xf32, #tpu.memory_space<vmem>>, vector<1x1x32x8xf32>
    %12 = vector.shape_cast %11 : vector<1x1x32x8xf32> to vector<32x8xf32>
    %cst_14 = arith.constant dense<0.000000e+00> : vector<16x8xf32>
    %13 = tpu.matmul %3, %12, %cst_14 {dimension_numbers = #tpu.dot_dimension_numbers<[1], [0], [0], [1], [0, 0, 1, 1], [], []>} : vector<16x32xf32>, vector<32x8xf32>, vector<16x8xf32> -> vector<16x8xf32>
    %c0_15 = arith.constant 0 : index
    %c0_16 = arith.constant 0 : index
    %c0_17 = arith.constant 0 : index
    %c0_18 = arith.constant 0 : index
    %14 = vector.load %arg6[%c0_15, %c0_16, %c0_17, %c0_18] : memref<1x4x1x8xf32, #tpu.memory_space<vmem>>, vector<1x1x1x8xf32>
    %15 = vector.shape_cast %14 : vector<1x1x1x8xf32> to vector<1x8xf32>
    %16 = vector.broadcast %15 : vector<1x8xf32> to vector<16x8xf32>
    %17 = arith.addf %13, %16 : vector<16x8xf32>
    %c0_19 = arith.constant 0 : index
    %c0_20 = arith.constant 0 : index
    %c0_21 = arith.constant 0 : index
    %c0_22 = arith.constant 0 : index
    %18 = vector.load %arg4[%c0_19, %c0_20, %c0_21, %c0_22] : memref<1x4x32x8xf32, #tpu.memory_space<vmem>>, vector<1x1x32x8xf32>
    %19 = vector.shape_cast %18 : vector<1x1x32x8xf32> to vector<32x8xf32>
    %cst_23 = arith.constant dense<0.000000e+00> : vector<16x8xf32>
    %20 = tpu.matmul %3, %19, %cst_23 {dimension_numbers = #tpu.dot_dimension_numbers<[1], [0], [0], [1], [0, 0, 1, 1], [], []>} : vector<16x32xf32>, vector<32x8xf32>, vector<16x8xf32> -> vector<16x8xf32>
    %c0_24 = arith.constant 0 : index
    %c0_25 = arith.constant 0 : index
    %c0_26 = arith.constant 0 : index
    %c0_27 = arith.constant 0 : index
    %21 = vector.load %arg7[%c0_24, %c0_25, %c0_26, %c0_27] : memref<1x4x1x8xf32, #tpu.memory_space<vmem>>, vector<1x1x1x8xf32>
    %22 = vector.shape_cast %21 : vector<1x1x1x8xf32> to vector<1x8xf32>
    %23 = vector.broadcast %22 : vector<1x8xf32> to vector<16x8xf32>
    %24 = arith.addf %20, %23 : vector<16x8xf32>
    %cst_28 = arith.constant 0.353553385 : f32
    %25 = vector.broadcast %cst_28 : f32 to vector<16x8xf32>
    %26 = arith.mulf %10, %25 : vector<16x8xf32>
    %cst_29 = arith.constant dense<0.000000e+00> : vector<16x16xf32>
    %27 = tpu.matmul %26, %17, %cst_29 {dimension_numbers = #tpu.dot_dimension_numbers<[1], [1], [0], [0], [0, 0, 1, 0], [], []>} : vector<16x8xf32>, vector<16x8xf32>, vector<16x16xf32> -> vector<16x16xf32>
    %cst_30 = arith.constant dense<0xFF800000> : vector<16xf32>
    %28 = vector.multi_reduction <maximumf>, %27, %cst_30 [1] : vector<16x16xf32> to vector<16xf32>
    %29 = vector.shape_cast %28 : vector<16xf32> to vector<16x1xf32>
    %30 = vector.broadcast %29 : vector<16x1xf32> to vector<16x16xf32>
    %31 = arith.subf %27, %30 : vector<16x16xf32>
    %32 = math.exp %31 : vector<16x16xf32>
    %cst_31 = arith.constant dense<0.000000e+00> : vector<16xf32>
    %33 = vector.multi_reduction <add>, %32, %cst_31 [1] : vector<16x16xf32> to vector<16xf32>
    %34 = vector.shape_cast %33 : vector<16xf32> to vector<16x1xf32>
    %35 = tpu.reciprocal %34 {approx = true} : vector<16x1xf32> -> vector<16x1xf32>
    %36 = vector.broadcast %35 : vector<16x1xf32> to vector<16x16xf32>
    %37 = arith.mulf %32, %36 : vector<16x16xf32>
    %cst_32 = arith.constant dense<0.000000e+00> : vector<16x8xf32>
    %38 = tpu.matmul %37, %24, %cst_32 {dimension_numbers = #tpu.dot_dimension_numbers<[1], [0], [0], [1], [0, 0, 1, 1], [], []>} : vector<16x16xf32>, vector<16x8xf32>, vector<16x8xf32> -> vector<16x8xf32>
    %c0_33 = arith.constant 0 : index
    %c0_34 = arith.constant 0 : index
    %c0_35 = arith.constant 0 : index
    %c0_36 = arith.constant 0 : index
    %39 = vector.load %arg8[%c0_33, %c0_34, %c0_35, %c0_36] : memref<1x4x8x32xf32, #tpu.memory_space<vmem>>, vector<1x1x8x32xf32>
    %40 = vector.shape_cast %39 : vector<1x1x8x32xf32> to vector<8x32xf32>
    %cst_37 = arith.constant dense<0.000000e+00> : vector<16x32xf32>
    %41 = tpu.matmul %38, %40, %cst_37 {dimension_numbers = #tpu.dot_dimension_numbers<[1], [0], [0], [1], [0, 0, 1, 1], [], []>} : vector<16x8xf32>, vector<8x32xf32>, vector<16x32xf32> -> vector<16x32xf32>
    %c0_38 = arith.constant 0 : index
    %c1 = arith.constant 1 : index
    %c0_39 = arith.constant 0 : index
    %c0_40 = arith.constant 0 : index
    %42 = vector.load %arg2[%c0_38, %c1, %c0_39, %c0_40] : memref<1x4x32x8xf32, #tpu.memory_space<vmem>>, vector<1x1x32x8xf32>
    %43 = vector.shape_cast %42 : vector<1x1x32x8xf32> to vector<32x8xf32>
    %cst_41 = arith.constant dense<0.000000e+00> : vector<16x8xf32>
    %44 = tpu.matmul %3, %43, %cst_41 {dimension_numbers = #tpu.dot_dimension_numbers<[1], [0], [0], [1], [0, 0, 1, 1], [], []>} : vector<16x32xf32>, vector<32x8xf32>, vector<16x8xf32> -> vector<16x8xf32>
    %c0_42 = arith.constant 0 : index
    %c1_43 = arith.constant 1 : index
    %c0_44 = arith.constant 0 : index
    %c0_45 = arith.constant 0 : index
    %45 = vector.load %arg5[%c0_42, %c1_43, %c0_44, %c0_45] : memref<1x4x1x8xf32, #tpu.memory_space<vmem>>, vector<1x1x1x8xf32>
    %46 = vector.shape_cast %45 : vector<1x1x1x8xf32> to vector<1x8xf32>
    %47 = vector.broadcast %46 : vector<1x8xf32> to vector<16x8xf32>
    %48 = arith.addf %44, %47 : vector<16x8xf32>
    %c0_46 = arith.constant 0 : index
    %c1_47 = arith.constant 1 : index
    %c0_48 = arith.constant 0 : index
    %c0_49 = arith.constant 0 : index
    %49 = vector.load %arg3[%c0_46, %c1_47, %c0_48, %c0_49] : memref<1x4x32x8xf32, #tpu.memory_space<vmem>>, vector<1x1x32x8xf32>
    %50 = vector.shape_cast %49 : vector<1x1x32x8xf32> to vector<32x8xf32>
    %cst_50 = arith.constant dense<0.000000e+00> : vector<16x8xf32>
    %51 = tpu.matmul %3, %50, %cst_50 {dimension_numbers = #tpu.dot_dimension_numbers<[1], [0], [0], [1], [0, 0, 1, 1], [], []>} : vector<16x32xf32>, vector<32x8xf32>, vector<16x8xf32> -> vector<16x8xf32>
    %c0_51 = arith.constant 0 : index
    %c1_52 = arith.constant 1 : index
    %c0_53 = arith.constant 0 : index
    %c0_54 = arith.constant 0 : index
    %52 = vector.load %arg6[%c0_51, %c1_52, %c0_53, %c0_54] : memref<1x4x1x8xf32, #tpu.memory_space<vmem>>, vector<1x1x1x8xf32>
    %53 = vector.shape_cast %52 : vector<1x1x1x8xf32> to vector<1x8xf32>
    %54 = vector.broadcast %53 : vector<1x8xf32> to vector<16x8xf32>
    %55 = arith.addf %51, %54 : vector<16x8xf32>
    %c0_55 = arith.constant 0 : index
    %c1_56 = arith.constant 1 : index
    %c0_57 = arith.constant 0 : index
    %c0_58 = arith.constant 0 : index
    %56 = vector.load %arg4[%c0_55, %c1_56, %c0_57, %c0_58] : memref<1x4x32x8xf32, #tpu.memory_space<vmem>>, vector<1x1x32x8xf32>
    %57 = vector.shape_cast %56 : vector<1x1x32x8xf32> to vector<32x8xf32>
    %cst_59 = arith.constant dense<0.000000e+00> : vector<16x8xf32>
    %58 = tpu.matmul %3, %57, %cst_59 {dimension_numbers = #tpu.dot_dimension_numbers<[1], [0], [0], [1], [0, 0, 1, 1], [], []>} : vector<16x32xf32>, vector<32x8xf32>, vector<16x8xf32> -> vector<16x8xf32>
    %c0_60 = arith.constant 0 : index
    %c1_61 = arith.constant 1 : index
    %c0_62 = arith.constant 0 : index
    %c0_63 = arith.constant 0 : index
    %59 = vector.load %arg7[%c0_60, %c1_61, %c0_62, %c0_63] : memref<1x4x1x8xf32, #tpu.memory_space<vmem>>, vector<1x1x1x8xf32>
    %60 = vector.shape_cast %59 : vector<1x1x1x8xf32> to vector<1x8xf32>
    %61 = vector.broadcast %60 : vector<1x8xf32> to vector<16x8xf32>
    %62 = arith.addf %58, %61 : vector<16x8xf32>
    %cst_64 = arith.constant 0.353553385 : f32
    %63 = vector.broadcast %cst_64 : f32 to vector<16x8xf32>
    %64 = arith.mulf %48, %63 : vector<16x8xf32>
    %cst_65 = arith.constant dense<0.000000e+00> : vector<16x16xf32>
    %65 = tpu.matmul %64, %55, %cst_65 {dimension_numbers = #tpu.dot_dimension_numbers<[1], [1], [0], [0], [0, 0, 1, 0], [], []>} : vector<16x8xf32>, vector<16x8xf32>, vector<16x16xf32> -> vector<16x16xf32>
    %cst_66 = arith.constant dense<0xFF800000> : vector<16xf32>
    %66 = vector.multi_reduction <maximumf>, %65, %cst_66 [1] : vector<16x16xf32> to vector<16xf32>
    %67 = vector.shape_cast %66 : vector<16xf32> to vector<16x1xf32>
    %68 = vector.broadcast %67 : vector<16x1xf32> to vector<16x16xf32>
    %69 = arith.subf %65, %68 : vector<16x16xf32>
    %70 = math.exp %69 : vector<16x16xf32>
    %cst_67 = arith.constant dense<0.000000e+00> : vector<16xf32>
    %71 = vector.multi_reduction <add>, %70, %cst_67 [1] : vector<16x16xf32> to vector<16xf32>
    %72 = vector.shape_cast %71 : vector<16xf32> to vector<16x1xf32>
    %73 = tpu.reciprocal %72 {approx = true} : vector<16x1xf32> -> vector<16x1xf32>
    %74 = vector.broadcast %73 : vector<16x1xf32> to vector<16x16xf32>
    %75 = arith.mulf %70, %74 : vector<16x16xf32>
    %cst_68 = arith.constant dense<0.000000e+00> : vector<16x8xf32>
    %76 = tpu.matmul %75, %62, %cst_68 {dimension_numbers = #tpu.dot_dimension_numbers<[1], [0], [0], [1], [0, 0, 1, 1], [], []>} : vector<16x16xf32>, vector<16x8xf32>, vector<16x8xf32> -> vector<16x8xf32>
    %c0_69 = arith.constant 0 : index
    %c1_70 = arith.constant 1 : index
    %c0_71 = arith.constant 0 : index
    %c0_72 = arith.constant 0 : index
    %77 = vector.load %arg8[%c0_69, %c1_70, %c0_71, %c0_72] : memref<1x4x8x32xf32, #tpu.memory_space<vmem>>, vector<1x1x8x32xf32>
    %78 = vector.shape_cast %77 : vector<1x1x8x32xf32> to vector<8x32xf32>
    %cst_73 = arith.constant dense<0.000000e+00> : vector<16x32xf32>
    %79 = tpu.matmul %76, %78, %cst_73 {dimension_numbers = #tpu.dot_dimension_numbers<[1], [0], [0], [1], [0, 0, 1, 1], [], []>} : vector<16x8xf32>, vector<8x32xf32>, vector<16x32xf32> -> vector<16x32xf32>
    %80 = arith.addf %41, %79 : vector<16x32xf32>
    %c0_74 = arith.constant 0 : index
    %c2 = arith.constant 2 : index
    %c0_75 = arith.constant 0 : index
    %c0_76 = arith.constant 0 : index
    %81 = vector.load %arg2[%c0_74, %c2, %c0_75, %c0_76] : memref<1x4x32x8xf32, #tpu.memory_space<vmem>>, vector<1x1x32x8xf32>
    %82 = vector.shape_cast %81 : vector<1x1x32x8xf32> to vector<32x8xf32>
    %cst_77 = arith.constant dense<0.000000e+00> : vector<16x8xf32>
    %83 = tpu.matmul %3, %82, %cst_77 {dimension_numbers = #tpu.dot_dimension_numbers<[1], [0], [0], [1], [0, 0, 1, 1], [], []>} : vector<16x32xf32>, vector<32x8xf32>, vector<16x8xf32> -> vector<16x8xf32>
    %c0_78 = arith.constant 0 : index
    %c2_79 = arith.constant 2 : index
    %c0_80 = arith.constant 0 : index
    %c0_81 = arith.constant 0 : index
    %84 = vector.load %arg5[%c0_78, %c2_79, %c0_80, %c0_81] : memref<1x4x1x8xf32, #tpu.memory_space<vmem>>, vector<1x1x1x8xf32>
    %85 = vector.shape_cast %84 : vector<1x1x1x8xf32> to vector<1x8xf32>
    %86 = vector.broadcast %85 : vector<1x8xf32> to vector<16x8xf32>
    %87 = arith.addf %83, %86 : vector<16x8xf32>
    %c0_82 = arith.constant 0 : index
    %c2_83 = arith.constant 2 : index
    %c0_84 = arith.constant 0 : index
    %c0_85 = arith.constant 0 : index
    %88 = vector.load %arg3[%c0_82, %c2_83, %c0_84, %c0_85] : memref<1x4x32x8xf32, #tpu.memory_space<vmem>>, vector<1x1x32x8xf32>
    %89 = vector.shape_cast %88 : vector<1x1x32x8xf32> to vector<32x8xf32>
    %cst_86 = arith.constant dense<0.000000e+00> : vector<16x8xf32>
    %90 = tpu.matmul %3, %89, %cst_86 {dimension_numbers = #tpu.dot_dimension_numbers<[1], [0], [0], [1], [0, 0, 1, 1], [], []>} : vector<16x32xf32>, vector<32x8xf32>, vector<16x8xf32> -> vector<16x8xf32>
    %c0_87 = arith.constant 0 : index
    %c2_88 = arith.constant 2 : index
    %c0_89 = arith.constant 0 : index
    %c0_90 = arith.constant 0 : index
    %91 = vector.load %arg6[%c0_87, %c2_88, %c0_89, %c0_90] : memref<1x4x1x8xf32, #tpu.memory_space<vmem>>, vector<1x1x1x8xf32>
    %92 = vector.shape_cast %91 : vector<1x1x1x8xf32> to vector<1x8xf32>
    %93 = vector.broadcast %92 : vector<1x8xf32> to vector<16x8xf32>
    %94 = arith.addf %90, %93 : vector<16x8xf32>
    %c0_91 = arith.constant 0 : index
    %c2_92 = arith.constant 2 : index
    %c0_93 = arith.constant 0 : index
    %c0_94 = arith.constant 0 : index
    %95 = vector.load %arg4[%c0_91, %c2_92, %c0_93, %c0_94] : memref<1x4x32x8xf32, #tpu.memory_space<vmem>>, vector<1x1x32x8xf32>
    %96 = vector.shape_cast %95 : vector<1x1x32x8xf32> to vector<32x8xf32>
    %cst_95 = arith.constant dense<0.000000e+00> : vector<16x8xf32>
    %97 = tpu.matmul %3, %96, %cst_95 {dimension_numbers = #tpu.dot_dimension_numbers<[1], [0], [0], [1], [0, 0, 1, 1], [], []>} : vector<16x32xf32>, vector<32x8xf32>, vector<16x8xf32> -> vector<16x8xf32>
    %c0_96 = arith.constant 0 : index
    %c2_97 = arith.constant 2 : index
    %c0_98 = arith.constant 0 : index
    %c0_99 = arith.constant 0 : index
    %98 = vector.load %arg7[%c0_96, %c2_97, %c0_98, %c0_99] : memref<1x4x1x8xf32, #tpu.memory_space<vmem>>, vector<1x1x1x8xf32>
    %99 = vector.shape_cast %98 : vector<1x1x1x8xf32> to vector<1x8xf32>
    %100 = vector.broadcast %99 : vector<1x8xf32> to vector<16x8xf32>
    %101 = arith.addf %97, %100 : vector<16x8xf32>
    %cst_100 = arith.constant 0.353553385 : f32
    %102 = vector.broadcast %cst_100 : f32 to vector<16x8xf32>
    %103 = arith.mulf %87, %102 : vector<16x8xf32>
    %cst_101 = arith.constant dense<0.000000e+00> : vector<16x16xf32>
    %104 = tpu.matmul %103, %94, %cst_101 {dimension_numbers = #tpu.dot_dimension_numbers<[1], [1], [0], [0], [0, 0, 1, 0], [], []>} : vector<16x8xf32>, vector<16x8xf32>, vector<16x16xf32> -> vector<16x16xf32>
    %cst_102 = arith.constant dense<0xFF800000> : vector<16xf32>
    %105 = vector.multi_reduction <maximumf>, %104, %cst_102 [1] : vector<16x16xf32> to vector<16xf32>
    %106 = vector.shape_cast %105 : vector<16xf32> to vector<16x1xf32>
    %107 = vector.broadcast %106 : vector<16x1xf32> to vector<16x16xf32>
    %108 = arith.subf %104, %107 : vector<16x16xf32>
    %109 = math.exp %108 : vector<16x16xf32>
    %cst_103 = arith.constant dense<0.000000e+00> : vector<16xf32>
    %110 = vector.multi_reduction <add>, %109, %cst_103 [1] : vector<16x16xf32> to vector<16xf32>
    %111 = vector.shape_cast %110 : vector<16xf32> to vector<16x1xf32>
    %112 = tpu.reciprocal %111 {approx = true} : vector<16x1xf32> -> vector<16x1xf32>
    %113 = vector.broadcast %112 : vector<16x1xf32> to vector<16x16xf32>
    %114 = arith.mulf %109, %113 : vector<16x16xf32>
    %cst_104 = arith.constant dense<0.000000e+00> : vector<16x8xf32>
    %115 = tpu.matmul %114, %101, %cst_104 {dimension_numbers = #tpu.dot_dimension_numbers<[1], [0], [0], [1], [0, 0, 1, 1], [], []>} : vector<16x16xf32>, vector<16x8xf32>, vector<16x8xf32> -> vector<16x8xf32>
    %c0_105 = arith.constant 0 : index
    %c2_106 = arith.constant 2 : index
    %c0_107 = arith.constant 0 : index
    %c0_108 = arith.constant 0 : index
    %116 = vector.load %arg8[%c0_105, %c2_106, %c0_107, %c0_108] : memref<1x4x8x32xf32, #tpu.memory_space<vmem>>, vector<1x1x8x32xf32>
    %117 = vector.shape_cast %116 : vector<1x1x8x32xf32> to vector<8x32xf32>
    %cst_109 = arith.constant dense<0.000000e+00> : vector<16x32xf32>
    %118 = tpu.matmul %115, %117, %cst_109 {dimension_numbers = #tpu.dot_dimension_numbers<[1], [0], [0], [1], [0, 0, 1, 1], [], []>} : vector<16x8xf32>, vector<8x32xf32>, vector<16x32xf32> -> vector<16x32xf32>
    %119 = arith.addf %80, %118 : vector<16x32xf32>
    %c0_110 = arith.constant 0 : index
    %c3 = arith.constant 3 : index
    %c0_111 = arith.constant 0 : index
    %c0_112 = arith.constant 0 : index
    %120 = vector.load %arg2[%c0_110, %c3, %c0_111, %c0_112] : memref<1x4x32x8xf32, #tpu.memory_space<vmem>>, vector<1x1x32x8xf32>
    %121 = vector.shape_cast %120 : vector<1x1x32x8xf32> to vector<32x8xf32>
    %cst_113 = arith.constant dense<0.000000e+00> : vector<16x8xf32>
    %122 = tpu.matmul %3, %121, %cst_113 {dimension_numbers = #tpu.dot_dimension_numbers<[1], [0], [0], [1], [0, 0, 1, 1], [], []>} : vector<16x32xf32>, vector<32x8xf32>, vector<16x8xf32> -> vector<16x8xf32>
    %c0_114 = arith.constant 0 : index
    %c3_115 = arith.constant 3 : index
    %c0_116 = arith.constant 0 : index
    %c0_117 = arith.constant 0 : index
    %123 = vector.load %arg5[%c0_114, %c3_115, %c0_116, %c0_117] : memref<1x4x1x8xf32, #tpu.memory_space<vmem>>, vector<1x1x1x8xf32>
    %124 = vector.shape_cast %123 : vector<1x1x1x8xf32> to vector<1x8xf32>
    %125 = vector.broadcast %124 : vector<1x8xf32> to vector<16x8xf32>
    %126 = arith.addf %122, %125 : vector<16x8xf32>
    %c0_118 = arith.constant 0 : index
    %c3_119 = arith.constant 3 : index
    %c0_120 = arith.constant 0 : index
    %c0_121 = arith.constant 0 : index
    %127 = vector.load %arg3[%c0_118, %c3_119, %c0_120, %c0_121] : memref<1x4x32x8xf32, #tpu.memory_space<vmem>>, vector<1x1x32x8xf32>
    %128 = vector.shape_cast %127 : vector<1x1x32x8xf32> to vector<32x8xf32>
    %cst_122 = arith.constant dense<0.000000e+00> : vector<16x8xf32>
    %129 = tpu.matmul %3, %128, %cst_122 {dimension_numbers = #tpu.dot_dimension_numbers<[1], [0], [0], [1], [0, 0, 1, 1], [], []>} : vector<16x32xf32>, vector<32x8xf32>, vector<16x8xf32> -> vector<16x8xf32>
    %c0_123 = arith.constant 0 : index
    %c3_124 = arith.constant 3 : index
    %c0_125 = arith.constant 0 : index
    %c0_126 = arith.constant 0 : index
    %130 = vector.load %arg6[%c0_123, %c3_124, %c0_125, %c0_126] : memref<1x4x1x8xf32, #tpu.memory_space<vmem>>, vector<1x1x1x8xf32>
    %131 = vector.shape_cast %130 : vector<1x1x1x8xf32> to vector<1x8xf32>
    %132 = vector.broadcast %131 : vector<1x8xf32> to vector<16x8xf32>
    %133 = arith.addf %129, %132 : vector<16x8xf32>
    %c0_127 = arith.constant 0 : index
    %c3_128 = arith.constant 3 : index
    %c0_129 = arith.constant 0 : index
    %c0_130 = arith.constant 0 : index
    %134 = vector.load %arg4[%c0_127, %c3_128, %c0_129, %c0_130] : memref<1x4x32x8xf32, #tpu.memory_space<vmem>>, vector<1x1x32x8xf32>
    %135 = vector.shape_cast %134 : vector<1x1x32x8xf32> to vector<32x8xf32>
    %cst_131 = arith.constant dense<0.000000e+00> : vector<16x8xf32>
    %136 = tpu.matmul %3, %135, %cst_131 {dimension_numbers = #tpu.dot_dimension_numbers<[1], [0], [0], [1], [0, 0, 1, 1], [], []>} : vector<16x32xf32>, vector<32x8xf32>, vector<16x8xf32> -> vector<16x8xf32>
    %c0_132 = arith.constant 0 : index
    %c3_133 = arith.constant 3 : index
    %c0_134 = arith.constant 0 : index
    %c0_135 = arith.constant 0 : index
    %137 = vector.load %arg7[%c0_132, %c3_133, %c0_134, %c0_135] : memref<1x4x1x8xf32, #tpu.memory_space<vmem>>, vector<1x1x1x8xf32>
    %138 = vector.shape_cast %137 : vector<1x1x1x8xf32> to vector<1x8xf32>
    %139 = vector.broadcast %138 : vector<1x8xf32> to vector<16x8xf32>
    %140 = arith.addf %136, %139 : vector<16x8xf32>
    %cst_136 = arith.constant 0.353553385 : f32
    %141 = vector.broadcast %cst_136 : f32 to vector<16x8xf32>
    %142 = arith.mulf %126, %141 : vector<16x8xf32>
    %cst_137 = arith.constant dense<0.000000e+00> : vector<16x16xf32>
    %143 = tpu.matmul %142, %133, %cst_137 {dimension_numbers = #tpu.dot_dimension_numbers<[1], [1], [0], [0], [0, 0, 1, 0], [], []>} : vector<16x8xf32>, vector<16x8xf32>, vector<16x16xf32> -> vector<16x16xf32>
    %cst_138 = arith.constant dense<0xFF800000> : vector<16xf32>
    %144 = vector.multi_reduction <maximumf>, %143, %cst_138 [1] : vector<16x16xf32> to vector<16xf32>
    %145 = vector.shape_cast %144 : vector<16xf32> to vector<16x1xf32>
    %146 = vector.broadcast %145 : vector<16x1xf32> to vector<16x16xf32>
    %147 = arith.subf %143, %146 : vector<16x16xf32>
    %148 = math.exp %147 : vector<16x16xf32>
    %cst_139 = arith.constant dense<0.000000e+00> : vector<16xf32>
    %149 = vector.multi_reduction <add>, %148, %cst_139 [1] : vector<16x16xf32> to vector<16xf32>
    %150 = vector.shape_cast %149 : vector<16xf32> to vector<16x1xf32>
    %151 = tpu.reciprocal %150 {approx = true} : vector<16x1xf32> -> vector<16x1xf32>
    %152 = vector.broadcast %151 : vector<16x1xf32> to vector<16x16xf32>
    %153 = arith.mulf %148, %152 : vector<16x16xf32>
    %cst_140 = arith.constant dense<0.000000e+00> : vector<16x8xf32>
    %154 = tpu.matmul %153, %140, %cst_140 {dimension_numbers = #tpu.dot_dimension_numbers<[1], [0], [0], [1], [0, 0, 1, 1], [], []>} : vector<16x16xf32>, vector<16x8xf32>, vector<16x8xf32> -> vector<16x8xf32>
    %c0_141 = arith.constant 0 : index
    %c3_142 = arith.constant 3 : index
    %c0_143 = arith.constant 0 : index
    %c0_144 = arith.constant 0 : index
    %155 = vector.load %arg8[%c0_141, %c3_142, %c0_143, %c0_144] : memref<1x4x8x32xf32, #tpu.memory_space<vmem>>, vector<1x1x8x32xf32>
    %156 = vector.shape_cast %155 : vector<1x1x8x32xf32> to vector<8x32xf32>
    %cst_145 = arith.constant dense<0.000000e+00> : vector<16x32xf32>
    %157 = tpu.matmul %154, %156, %cst_145 {dimension_numbers = #tpu.dot_dimension_numbers<[1], [0], [0], [1], [0, 0, 1, 1], [], []>} : vector<16x8xf32>, vector<8x32xf32>, vector<16x32xf32> -> vector<16x32xf32>
    %158 = arith.addf %119, %157 : vector<16x32xf32>
    %c0_146 = arith.constant 0 : index
    %c0_147 = arith.constant 0 : index
    %c0_148 = arith.constant 0 : index
    %159 = vector.load %arg9[%c0_146, %c0_147, %c0_148] : memref<1x1x32xf32, #tpu.memory_space<vmem>>, vector<1x1x32xf32>
    %160 = vector.shape_cast %159 : vector<1x1x32xf32> to vector<1x32xf32>
    %161 = vector.broadcast %160 : vector<1x32xf32> to vector<16x32xf32>
    %162 = arith.addf %158, %161 : vector<16x32xf32>
    %c0_149 = arith.constant 0 : index
    %c0_150 = arith.constant 0 : index
    %c0_151 = arith.constant 0 : index
    %163 = vector.load %arg10[%c0_149, %c0_150, %c0_151] : memref<1x2x32xf32, #tpu.memory_space<vmem>>, vector<1x2x32xf32>
    %164 = vector.shape_cast %163 : vector<1x2x32xf32> to vector<2x32xf32>
    %165 = arith.addf %162, %3 : vector<16x32xf32>
    %166 = vector.extract_strided_slice %164 {offsets = [0, 0], sizes = [1, 32], strides = [1, 1]} : vector<2x32xf32> to vector<1x32xf32>
    %167 = vector.extract_strided_slice %164 {offsets = [1, 0], sizes = [1, 32], strides = [1, 1]} : vector<2x32xf32> to vector<1x32xf32>
    %cst_152 = arith.constant dense<0.000000e+00> : vector<16xf32>
    %168 = vector.multi_reduction <add>, %165, %cst_152 [1] : vector<16x32xf32> to vector<16xf32>
    %169 = vector.shape_cast %168 : vector<16xf32> to vector<16x1xf32>
    %cst_153 = arith.constant 3.200000e+01 : f32
    %170 = vector.broadcast %cst_153 : f32 to vector<16x1xf32>
    %171 = arith.divf %169, %170 : vector<16x1xf32>
    %172 = vector.broadcast %171 : vector<16x1xf32> to vector<16x32xf32>
    %173 = arith.subf %165, %172 : vector<16x32xf32>
    %174 = arith.mulf %173, %173 : vector<16x32xf32>
    %cst_154 = arith.constant dense<0.000000e+00> : vector<16xf32>
    %175 = vector.multi_reduction <add>, %174, %cst_154 [1] : vector<16x32xf32> to vector<16xf32>
    %176 = vector.shape_cast %175 : vector<16xf32> to vector<16x1xf32>
    %cst_155 = arith.constant 3.200000e+01 : f32
    %177 = vector.broadcast %cst_155 : f32 to vector<16x1xf32>
    %178 = arith.divf %176, %177 : vector<16x1xf32>
    %cst_156 = arith.constant 9.99999974E-6 : f32
    %179 = vector.broadcast %cst_156 : f32 to vector<16x1xf32>
    %180 = arith.addf %178, %179 : vector<16x1xf32>
    %181 = math.rsqrt %180 : vector<16x1xf32>
    %182 = vector.broadcast %181 : vector<16x1xf32> to vector<16x32xf32>
    %183 = arith.mulf %173, %182 : vector<16x32xf32>
    %184 = vector.broadcast %166 : vector<1x32xf32> to vector<16x32xf32>
    %185 = arith.mulf %183, %184 : vector<16x32xf32>
    %186 = vector.broadcast %167 : vector<1x32xf32> to vector<16x32xf32>
    %187 = arith.addf %185, %186 : vector<16x32xf32>
    %c0_157 = arith.constant 0 : index
    %c0_158 = arith.constant 0 : index
    %c0_159 = arith.constant 0 : index
    %188 = vector.load %arg11[%c0_157, %c0_158, %c0_159] : memref<1x32x64xf32, #tpu.memory_space<vmem>>, vector<1x32x64xf32>
    %189 = vector.shape_cast %188 : vector<1x32x64xf32> to vector<32x64xf32>
    %cst_160 = arith.constant dense<0.000000e+00> : vector<16x64xf32>
    %190 = tpu.matmul %187, %189, %cst_160 {dimension_numbers = #tpu.dot_dimension_numbers<[1], [0], [0], [1], [0, 0, 1, 1], [], []>} : vector<16x32xf32>, vector<32x64xf32>, vector<16x64xf32> -> vector<16x64xf32>
    %c0_161 = arith.constant 0 : index
    %c0_162 = arith.constant 0 : index
    %c0_163 = arith.constant 0 : index
    %191 = vector.load %arg12[%c0_161, %c0_162, %c0_163] : memref<1x1x64xf32, #tpu.memory_space<vmem>>, vector<1x1x64xf32>
    %192 = vector.shape_cast %191 : vector<1x1x64xf32> to vector<1x64xf32>
    %193 = vector.broadcast %192 : vector<1x64xf32> to vector<16x64xf32>
    %194 = arith.addf %190, %193 : vector<16x64xf32>
    %cst_164 = arith.constant 0.000000e+00 : f32
    %195 = vector.broadcast %cst_164 : f32 to vector<16x64xf32>
    %196 = arith.maximumf %194, %195 : vector<16x64xf32>
    %c0_165 = arith.constant 0 : index
    %c0_166 = arith.constant 0 : index
    %c0_167 = arith.constant 0 : index
    %197 = vector.load %arg13[%c0_165, %c0_166, %c0_167] : memref<1x64x32xf32, #tpu.memory_space<vmem>>, vector<1x64x32xf32>
    %198 = vector.shape_cast %197 : vector<1x64x32xf32> to vector<64x32xf32>
    %cst_168 = arith.constant dense<0.000000e+00> : vector<16x32xf32>
    %199 = tpu.matmul %196, %198, %cst_168 {dimension_numbers = #tpu.dot_dimension_numbers<[1], [0], [0], [1], [0, 0, 1, 1], [], []>} : vector<16x64xf32>, vector<64x32xf32>, vector<16x32xf32> -> vector<16x32xf32>
    %c0_169 = arith.constant 0 : index
    %c0_170 = arith.constant 0 : index
    %c0_171 = arith.constant 0 : index
    %200 = vector.load %arg14[%c0_169, %c0_170, %c0_171] : memref<1x1x32xf32, #tpu.memory_space<vmem>>, vector<1x1x32xf32>
    %201 = vector.shape_cast %200 : vector<1x1x32xf32> to vector<1x32xf32>
    %202 = vector.broadcast %201 : vector<1x32xf32> to vector<16x32xf32>
    %203 = arith.addf %199, %202 : vector<16x32xf32>
    %c0_172 = arith.constant 0 : index
    %c0_173 = arith.constant 0 : index
    %c0_174 = arith.constant 0 : index
    %204 = vector.load %arg15[%c0_172, %c0_173, %c0_174] : memref<1x2x32xf32, #tpu.memory_space<vmem>>, vector<1x2x32xf32>
    %205 = vector.shape_cast %204 : vector<1x2x32xf32> to vector<2x32xf32>
    %206 = arith.addf %203, %187 : vector<16x32xf32>
    %207 = vector.extract_strided_slice %205 {offsets = [0, 0], sizes = [1, 32], strides = [1, 1]} : vector<2x32xf32> to vector<1x32xf32>
    %208 = vector.extract_strided_slice %205 {offsets = [1, 0], sizes = [1, 32], strides = [1, 1]} : vector<2x32xf32> to vector<1x32xf32>
    %cst_175 = arith.constant dense<0.000000e+00> : vector<16xf32>
    %209 = vector.multi_reduction <add>, %206, %cst_175 [1] : vector<16x32xf32> to vector<16xf32>
    %210 = vector.shape_cast %209 : vector<16xf32> to vector<16x1xf32>
    %cst_176 = arith.constant 3.200000e+01 : f32
    %211 = vector.broadcast %cst_176 : f32 to vector<16x1xf32>
    %212 = arith.divf %210, %211 : vector<16x1xf32>
    %213 = vector.broadcast %212 : vector<16x1xf32> to vector<16x32xf32>
    %214 = arith.subf %206, %213 : vector<16x32xf32>
    %215 = arith.mulf %214, %214 : vector<16x32xf32>
    %cst_177 = arith.constant dense<0.000000e+00> : vector<16xf32>
    %216 = vector.multi_reduction <add>, %215, %cst_177 [1] : vector<16x32xf32> to vector<16xf32>
    %217 = vector.shape_cast %216 : vector<16xf32> to vector<16x1xf32>
    %cst_178 = arith.constant 3.200000e+01 : f32
    %218 = vector.broadcast %cst_178 : f32 to vector<16x1xf32>
    %219 = arith.divf %217, %218 : vector<16x1xf32>
    %cst_179 = arith.constant 9.99999974E-6 : f32
    %220 = vector.broadcast %cst_179 : f32 to vector<16x1xf32>
    %221 = arith.addf %219, %220 : vector<16x1xf32>
    %222 = math.rsqrt %221 : vector<16x1xf32>
    %223 = vector.broadcast %222 : vector<16x1xf32> to vector<16x32xf32>
    %224 = arith.mulf %214, %223 : vector<16x32xf32>
    %225 = vector.broadcast %207 : vector<1x32xf32> to vector<16x32xf32>
    %226 = arith.mulf %224, %225 : vector<16x32xf32>
    %227 = vector.broadcast %208 : vector<1x32xf32> to vector<16x32xf32>
    %228 = arith.addf %226, %227 : vector<16x32xf32>
    %c0_180 = arith.constant 0 : index
    %c0_181 = arith.constant 0 : index
    %229 = vector.load %arg18[%c0_180, %c0_181] : memref<16x32xf32, #tpu.memory_space<vmem>>, vector<16x32xf32>
    tpu.vector_store %arg18[%c0_180, %c0_181], %228 {strides = array<i32>} : memref<16x32xf32, #tpu.memory_space<vmem>>, vector<16x32xf32>,
    %c5_i32 = arith.constant 5 : i32
    %230 = arith.cmpi eq, %arg0, %c5_i32 : i32
    %231 = arith.extui %230 : i1 to i32
    %c0_i32_182 = arith.constant 0 : i32
    %232 = arith.cmpi ne, %231, %c0_i32_182 : i32
    scf.if %232 {
      %c0_183 = arith.constant 0 : index
      %c0_184 = arith.constant 0 : index
      %233 = vector.load %arg16[%c0_183, %c0_184] : memref<2x32xf32, #tpu.memory_space<vmem>>, vector<2x32xf32>
      %234 = vector.extract_strided_slice %233 {offsets = [0, 0], sizes = [1, 32], strides = [1, 1]} : vector<2x32xf32> to vector<1x32xf32>
      %235 = vector.extract_strided_slice %233 {offsets = [1, 0], sizes = [1, 32], strides = [1, 1]} : vector<2x32xf32> to vector<1x32xf32>
      %cst_185 = arith.constant dense<0.000000e+00> : vector<16xf32>
      %236 = vector.multi_reduction <add>, %228, %cst_185 [1] : vector<16x32xf32> to vector<16xf32>
      %237 = vector.shape_cast %236 : vector<16xf32> to vector<16x1xf32>
      %cst_186 = arith.constant 3.200000e+01 : f32
      %238 = vector.broadcast %cst_186 : f32 to vector<16x1xf32>
      %239 = arith.divf %237, %238 : vector<16x1xf32>
      %240 = vector.broadcast %239 : vector<16x1xf32> to vector<16x32xf32>
      %241 = arith.subf %228, %240 : vector<16x32xf32>
      %242 = arith.mulf %241, %241 : vector<16x32xf32>
      %cst_187 = arith.constant dense<0.000000e+00> : vector<16xf32>
      %243 = vector.multi_reduction <add>, %242, %cst_187 [1] : vector<16x32xf32> to vector<16xf32>
      %244 = vector.shape_cast %243 : vector<16xf32> to vector<16x1xf32>
      %cst_188 = arith.constant 3.200000e+01 : f32
      %245 = vector.broadcast %cst_188 : f32 to vector<16x1xf32>
      %246 = arith.divf %244, %245 : vector<16x1xf32>
      %cst_189 = arith.constant 9.99999974E-6 : f32
      %247 = vector.broadcast %cst_189 : f32 to vector<16x1xf32>
      %248 = arith.addf %246, %247 : vector<16x1xf32>
      %249 = math.rsqrt %248 : vector<16x1xf32>
      %250 = vector.broadcast %249 : vector<16x1xf32> to vector<16x32xf32>
      %251 = arith.mulf %241, %250 : vector<16x32xf32>
      %252 = vector.broadcast %234 : vector<1x32xf32> to vector<16x32xf32>
      %253 = arith.mulf %251, %252 : vector<16x32xf32>
      %254 = vector.broadcast %235 : vector<1x32xf32> to vector<16x32xf32>
      %255 = arith.addf %253, %254 : vector<16x32xf32>
      %c0_190 = arith.constant 0 : index
      %c0_191 = arith.constant 0 : index
      %256 = vector.load %arg17[%c0_190, %c0_191] : memref<16x32xf32, #tpu.memory_space<vmem>>, vector<16x32xf32>
      tpu.vector_store %arg17[%c0_190, %c0_191], %255 {strides = array<i32>} : memref<16x32xf32, #tpu.memory_space<vmem>>, vector<16x32xf32>,
    } else {
    }
    return
  }
  func.func @transform_0(%arg0: i32) -> (i32, i32) {
    %c0_i32 = arith.constant 0 : i32
    %c0_i32_0 = arith.constant 0 : i32
    %c0_i32_1 = arith.constant 0 : i32
    return %c0_i32, %c0_i32_0 : i32, i32
  }
  func.func @transform_1(%arg0: i32) -> (i32, i32, i32, i32) {
    %c0_i32 = arith.constant 0 : i32
    %c0_i32_0 = arith.constant 0 : i32
    %c0_i32_1 = arith.constant 0 : i32
    %c0_i32_2 = arith.constant 0 : i32
    return %arg0, %c0_i32, %c0_i32_0, %c0_i32_1 : i32, i32, i32, i32
  }
  func.func @transform_2(%arg0: i32) -> (i32, i32, i32, i32) {
    %c0_i32 = arith.constant 0 : i32
    %c0_i32_0 = arith.constant 0 : i32
    %c0_i32_1 = arith.constant 0 : i32
    %c0_i32_2 = arith.constant 0 : i32
    return %arg0, %c0_i32, %c0_i32_0, %c0_i32_1 : i32, i32, i32, i32
  }
  func.func @transform_3(%arg0: i32) -> (i32, i32, i32, i32) {
    %c0_i32 = arith.constant 0 : i32
    %c0_i32_0 = arith.constant 0 : i32
    %c0_i32_1 = arith.constant 0 : i32
    %c0_i32_2 = arith.constant 0 : i32
    return %arg0, %c0_i32, %c0_i32_0, %c0_i32_1 : i32, i32, i32, i32
  }
  func.func @transform_4(%arg0: i32) -> (i32, i32, i32, i32) {
    %c0_i32 = arith.constant 0 : i32
    %c0_i32_0 = arith.constant 0 : i32
    %c0_i32_1 = arith.constant 0 : i32
    %c0_i32_2 = arith.constant 0 : i32
    return %arg0, %c0_i32, %c0_i32_0, %c0_i32_1 : i32, i32, i32, i32
  }
  func.func @transform_5(%arg0: i32) -> (i32, i32, i32, i32) {
    %c0_i32 = arith.constant 0 : i32
    %c0_i32_0 = arith.constant 0 : i32
    %c0_i32_1 = arith.constant 0 : i32
    %c0_i32_2 = arith.constant 0 : i32
    return %arg0, %c0_i32, %c0_i32_0, %c0_i32_1 : i32, i32, i32, i32
  }
  func.func @transform_6(%arg0: i32) -> (i32, i32, i32, i32) {
    %c0_i32 = arith.constant 0 : i32
    %c0_i32_0 = arith.constant 0 : i32
    %c0_i32_1 = arith.constant 0 : i32
    %c0_i32_2 = arith.constant 0 : i32
    return %arg0, %c0_i32, %c0_i32_0, %c0_i32_1 : i32, i32, i32, i32
  }
  func.func @transform_7(%arg0: i32) -> (i32, i32, i32, i32) {
    %c0_i32 = arith.constant 0 : i32
    %c0_i32_0 = arith.constant 0 : i32
    %c0_i32_1 = arith.constant 0 : i32
    %c0_i32_2 = arith.constant 0 : i32
    return %arg0, %c0_i32, %c0_i32_0, %c0_i32_1 : i32, i32, i32, i32
  }
  func.func @transform_8(%arg0: i32) -> (i32, i32, i32) {
    %c0_i32 = arith.constant 0 : i32
    %c0_i32_0 = arith.constant 0 : i32
    %c0_i32_1 = arith.constant 0 : i32
    return %arg0, %c0_i32, %c0_i32_0 : i32, i32, i32
  }
  func.func @transform_9(%arg0: i32) -> (i32, i32, i32) {
    %c0_i32 = arith.constant 0 : i32
    %c0_i32_0 = arith.constant 0 : i32
    %c0_i32_1 = arith.constant 0 : i32
    return %arg0, %c0_i32, %c0_i32_0 : i32, i32, i32
  }
  func.func @transform_10(%arg0: i32) -> (i32, i32, i32) {
    %c0_i32 = arith.constant 0 : i32
    %c0_i32_0 = arith.constant 0 : i32
    %c0_i32_1 = arith.constant 0 : i32
    return %arg0, %c0_i32, %c0_i32_0 : i32, i32, i32
  }
  func.func @transform_11(%arg0: i32) -> (i32, i32, i32) {
    %c0_i32 = arith.constant 0 : i32
    %c0_i32_0 = arith.constant 0 : i32
    %c0_i32_1 = arith.constant 0 : i32
    return %arg0, %c0_i32, %c0_i32_0 : i32, i32, i32
  }
  func.func @transform_12(%arg0: i32) -> (i32, i32, i32) {
    %c0_i32 = arith.constant 0 : i32
    %c0_i32_0 = arith.constant 0 : i32
    %c0_i32_1 = arith.constant 0 : i32
    return %arg0, %c0_i32, %c0_i32_0 : i32, i32, i32
  }
  func.func @transform_13(%arg0: i32) -> (i32, i32, i32) {
    %c0_i32 = arith.constant 0 : i32
    %c0_i32_0 = arith.constant 0 : i32
    %c0_i32_1 = arith.constant 0 : i32
    return %arg0, %c0_i32, %c0_i32_0 : i32, i32, i32
  }
  func.func @transform_14(%arg0: i32) -> (i32, i32, i32) {
    %c0_i32 = arith.constant 0 : i32
    %c0_i32_0 = arith.constant 0 : i32
    %c0_i32_1 = arith.constant 0 : i32
    return %arg0, %c0_i32, %c0_i32_0 : i32, i32, i32
  }
  func.func @transform_15(%arg0: i32) -> (i32, i32) {
    %c0_i32 = arith.constant 0 : i32
    %c0_i32_0 = arith.constant 0 : i32
    %c0_i32_1 = arith.constant 0 : i32
    return %c0_i32, %c0_i32_0 : i32, i32
  }
  func.func @transform_16(%arg0: i32) -> (i32, i32) {
    %c0_i32 = arith.constant 0 : i32
    %c0_i32_0 = arith.constant 0 : i32
    %c0_i32_1 = arith.constant 0 : i32
    return %c0_i32, %c0_i32_0 : i32, i32
  }
}

module attributes {stable_mosaic.version = 11 : i64} {
  func.func @_decoder_stack_kernel(%arg0: i32, %arg1: memref<8x32xf32, #tpu.memory_space<vmem>>, %arg2: memref<16x32xf32, #tpu.memory_space<vmem>>, %arg3: memref<1x4x32x8xf32, #tpu.memory_space<vmem>>, %arg4: memref<1x4x32x8xf32, #tpu.memory_space<vmem>>, %arg5: memref<1x4x32x8xf32, #tpu.memory_space<vmem>>, %arg6: memref<1x4x1x8xf32, #tpu.memory_space<vmem>>, %arg7: memref<1x4x1x8xf32, #tpu.memory_space<vmem>>, %arg8: memref<1x4x1x8xf32, #tpu.memory_space<vmem>>, %arg9: memref<1x4x8x32xf32, #tpu.memory_space<vmem>>, %arg10: memref<1x1x32xf32, #tpu.memory_space<vmem>>, %arg11: memref<1x2x32xf32, #tpu.memory_space<vmem>>, %arg12: memref<1x4x32x8xf32, #tpu.memory_space<vmem>>, %arg13: memref<1x4x32x8xf32, #tpu.memory_space<vmem>>, %arg14: memref<1x4x32x8xf32, #tpu.memory_space<vmem>>, %arg15: memref<1x4x1x8xf32, #tpu.memory_space<vmem>>, %arg16: memref<1x4x1x8xf32, #tpu.memory_space<vmem>>, %arg17: memref<1x4x1x8xf32, #tpu.memory_space<vmem>>, %arg18: memref<1x4x8x32xf32, #tpu.memory_space<vmem>>, %arg19: memref<1x1x32xf32, #tpu.memory_space<vmem>>, %arg20: memref<1x2x32xf32, #tpu.memory_space<vmem>>, %arg21: memref<1x32x64xf32, #tpu.memory_space<vmem>>, %arg22: memref<1x1x64xf32, #tpu.memory_space<vmem>>, %arg23: memref<1x64x32xf32, #tpu.memory_space<vmem>>, %arg24: memref<1x1x32xf32, #tpu.memory_space<vmem>>, %arg25: memref<1x2x32xf32, #tpu.memory_space<vmem>>, %arg26: memref<2x32xf32, #tpu.memory_space<vmem>>, %arg27: memref<32x64xf32, #tpu.memory_space<vmem>>, %arg28: memref<1x64xf32, #tpu.memory_space<vmem>>, %arg29: memref<64x3xf32, #tpu.memory_space<vmem>>, %arg30: memref<1x3xf32, #tpu.memory_space<vmem>>, %arg31: memref<8x3xf32, #tpu.memory_space<vmem>>, %arg32: memref<8x32xf32, #tpu.memory_space<vmem>>) attributes {dimension_semantics = [#tpu.dimension_semantics<arbitrary>], iteration_bounds = array<i64: 6>, scalar_prefetch = 0 : i64, scratch_operands = 1 : i64, tpu.core_type = #tpu.core_type<tc>, window_params = [{pipeline_mode = #tpu.pipeline_mode<synchronous>, transform_indices = @transform_0, window_bounds = array<i64: 8, 32>}, {pipeline_mode = #tpu.pipeline_mode<synchronous>, transform_indices = @transform_1, window_bounds = array<i64: 16, 32>}, {transform_indices = @transform_2, window_bounds = array<i64: 1, 4, 32, 8>}, {transform_indices = @transform_3, window_bounds = array<i64: 1, 4, 32, 8>}, {transform_indices = @transform_4, window_bounds = array<i64: 1, 4, 32, 8>}, {transform_indices = @transform_5, window_bounds = array<i64: 1, 4, 1, 8>}, {transform_indices = @transform_6, window_bounds = array<i64: 1, 4, 1, 8>}, {transform_indices = @transform_7, window_bounds = array<i64: 1, 4, 1, 8>}, {transform_indices = @transform_8, window_bounds = array<i64: 1, 4, 8, 32>}, {transform_indices = @transform_9, window_bounds = array<i64: 1, 1, 32>}, {transform_indices = @transform_10, window_bounds = array<i64: 1, 2, 32>}, {transform_indices = @transform_11, window_bounds = array<i64: 1, 4, 32, 8>}, {transform_indices = @transform_12, window_bounds = array<i64: 1, 4, 32, 8>}, {transform_indices = @transform_13, window_bounds = array<i64: 1, 4, 32, 8>}, {transform_indices = @transform_14, window_bounds = array<i64: 1, 4, 1, 8>}, {transform_indices = @transform_15, window_bounds = array<i64: 1, 4, 1, 8>}, {transform_indices = @transform_16, window_bounds = array<i64: 1, 4, 1, 8>}, {transform_indices = @transform_17, window_bounds = array<i64: 1, 4, 8, 32>}, {transform_indices = @transform_18, window_bounds = array<i64: 1, 1, 32>}, {transform_indices = @transform_19, window_bounds = array<i64: 1, 2, 32>}, {transform_indices = @transform_20, window_bounds = array<i64: 1, 32, 64>}, {transform_indices = @transform_21, window_bounds = array<i64: 1, 1, 64>}, {transform_indices = @transform_22, window_bounds = array<i64: 1, 64, 32>}, {transform_indices = @transform_23, window_bounds = array<i64: 1, 1, 32>}, {transform_indices = @transform_24, window_bounds = array<i64: 1, 2, 32>}, {pipeline_mode = #tpu.pipeline_mode<synchronous>, transform_indices = @transform_25, window_bounds = array<i64: 2, 32>}, {pipeline_mode = #tpu.pipeline_mode<synchronous>, transform_indices = @transform_26, window_bounds = array<i64: 32, 64>}, {pipeline_mode = #tpu.pipeline_mode<synchronous>, transform_indices = @transform_27, window_bounds = array<i64: 1, 64>}, {pipeline_mode = #tpu.pipeline_mode<synchronous>, transform_indices = @transform_28, window_bounds = array<i64: 64, 3>}, {pipeline_mode = #tpu.pipeline_mode<synchronous>, transform_indices = @transform_29, window_bounds = array<i64: 1, 3>}, {pipeline_mode = #tpu.pipeline_mode<synchronous>, transform_indices = @transform_30, window_bounds = array<i64: 8, 3>}]} {
    %c0_i32 = arith.constant 0 : i32
    %0 = arith.cmpi eq, %arg0, %c0_i32 : i32
    %1 = arith.extui %0 : i1 to i32
    %c0_i32_0 = arith.constant 0 : i32
    %2 = arith.cmpi ne, %1, %c0_i32_0 : i32
    scf.if %2 {
      %c0_344 = arith.constant 0 : index
      %c0_345 = arith.constant 0 : index
      %418 = vector.load %arg1[%c0_344, %c0_345] : memref<8x32xf32, #tpu.memory_space<vmem>>, vector<8x32xf32>
      %c0_346 = arith.constant 0 : index
      %c0_347 = arith.constant 0 : index
      %419 = vector.load %arg32[%c0_346, %c0_347] : memref<8x32xf32, #tpu.memory_space<vmem>>, vector<8x32xf32>
      tpu.vector_store %arg32[%c0_346, %c0_347], %418 {strides = array<i32>} : memref<8x32xf32, #tpu.memory_space<vmem>>, vector<8x32xf32>,
    } else {
    }
    %c0 = arith.constant 0 : index
    %c0_1 = arith.constant 0 : index
    %3 = vector.load %arg32[%c0, %c0_1] : memref<8x32xf32, #tpu.memory_space<vmem>>, vector<8x32xf32>
    %c0_2 = arith.constant 0 : index
    %c0_3 = arith.constant 0 : index
    %4 = vector.load %arg2[%c0_2, %c0_3] : memref<16x32xf32, #tpu.memory_space<vmem>>, vector<16x32xf32>
    %c0_4 = arith.constant 0 : index
    %c0_5 = arith.constant 0 : index
    %c0_6 = arith.constant 0 : index
    %c0_7 = arith.constant 0 : index
    %5 = vector.load %arg3[%c0_4, %c0_5, %c0_6, %c0_7] : memref<1x4x32x8xf32, #tpu.memory_space<vmem>>, vector<1x1x32x8xf32>
    %6 = vector.shape_cast %5 : vector<1x1x32x8xf32> to vector<32x8xf32>
    %cst = arith.constant dense<0.000000e+00> : vector<8x8xf32>
    %7 = tpu.matmul %3, %6, %cst {dimension_numbers = #tpu.dot_dimension_numbers<[1], [0], [0], [1], [0, 0, 1, 1], [], []>} : vector<8x32xf32>, vector<32x8xf32>, vector<8x8xf32> -> vector<8x8xf32>
    %c0_8 = arith.constant 0 : index
    %c0_9 = arith.constant 0 : index
    %c0_10 = arith.constant 0 : index
    %c0_11 = arith.constant 0 : index
    %8 = vector.load %arg6[%c0_8, %c0_9, %c0_10, %c0_11] : memref<1x4x1x8xf32, #tpu.memory_space<vmem>>, vector<1x1x1x8xf32>
    %9 = vector.shape_cast %8 : vector<1x1x1x8xf32> to vector<1x8xf32>
    %10 = vector.broadcast %9 : vector<1x8xf32> to vector<8x8xf32>
    %11 = arith.addf %7, %10 : vector<8x8xf32>
    %c0_12 = arith.constant 0 : index
    %c0_13 = arith.constant 0 : index
    %c0_14 = arith.constant 0 : index
    %c0_15 = arith.constant 0 : index
    %12 = vector.load %arg4[%c0_12, %c0_13, %c0_14, %c0_15] : memref<1x4x32x8xf32, #tpu.memory_space<vmem>>, vector<1x1x32x8xf32>
    %13 = vector.shape_cast %12 : vector<1x1x32x8xf32> to vector<32x8xf32>
    %cst_16 = arith.constant dense<0.000000e+00> : vector<8x8xf32>
    %14 = tpu.matmul %3, %13, %cst_16 {dimension_numbers = #tpu.dot_dimension_numbers<[1], [0], [0], [1], [0, 0, 1, 1], [], []>} : vector<8x32xf32>, vector<32x8xf32>, vector<8x8xf32> -> vector<8x8xf32>
    %c0_17 = arith.constant 0 : index
    %c0_18 = arith.constant 0 : index
    %c0_19 = arith.constant 0 : index
    %c0_20 = arith.constant 0 : index
    %15 = vector.load %arg7[%c0_17, %c0_18, %c0_19, %c0_20] : memref<1x4x1x8xf32, #tpu.memory_space<vmem>>, vector<1x1x1x8xf32>
    %16 = vector.shape_cast %15 : vector<1x1x1x8xf32> to vector<1x8xf32>
    %17 = vector.broadcast %16 : vector<1x8xf32> to vector<8x8xf32>
    %18 = arith.addf %14, %17 : vector<8x8xf32>
    %c0_21 = arith.constant 0 : index
    %c0_22 = arith.constant 0 : index
    %c0_23 = arith.constant 0 : index
    %c0_24 = arith.constant 0 : index
    %19 = vector.load %arg5[%c0_21, %c0_22, %c0_23, %c0_24] : memref<1x4x32x8xf32, #tpu.memory_space<vmem>>, vector<1x1x32x8xf32>
    %20 = vector.shape_cast %19 : vector<1x1x32x8xf32> to vector<32x8xf32>
    %cst_25 = arith.constant dense<0.000000e+00> : vector<8x8xf32>
    %21 = tpu.matmul %3, %20, %cst_25 {dimension_numbers = #tpu.dot_dimension_numbers<[1], [0], [0], [1], [0, 0, 1, 1], [], []>} : vector<8x32xf32>, vector<32x8xf32>, vector<8x8xf32> -> vector<8x8xf32>
    %c0_26 = arith.constant 0 : index
    %c0_27 = arith.constant 0 : index
    %c0_28 = arith.constant 0 : index
    %c0_29 = arith.constant 0 : index
    %22 = vector.load %arg8[%c0_26, %c0_27, %c0_28, %c0_29] : memref<1x4x1x8xf32, #tpu.memory_space<vmem>>, vector<1x1x1x8xf32>
    %23 = vector.shape_cast %22 : vector<1x1x1x8xf32> to vector<1x8xf32>
    %24 = vector.broadcast %23 : vector<1x8xf32> to vector<8x8xf32>
    %25 = arith.addf %21, %24 : vector<8x8xf32>
    %cst_30 = arith.constant 0.353553385 : f32
    %26 = vector.broadcast %cst_30 : f32 to vector<8x8xf32>
    %27 = arith.mulf %11, %26 : vector<8x8xf32>
    %cst_31 = arith.constant dense<0.000000e+00> : vector<8x8xf32>
    %28 = tpu.matmul %27, %18, %cst_31 {dimension_numbers = #tpu.dot_dimension_numbers<[1], [1], [0], [0], [0, 0, 1, 0], [], []>} : vector<8x8xf32>, vector<8x8xf32>, vector<8x8xf32> -> vector<8x8xf32>
    %cst_32 = arith.constant dense<0xFF800000> : vector<8xf32>
    %29 = vector.multi_reduction <maximumf>, %28, %cst_32 [1] : vector<8x8xf32> to vector<8xf32>
    %30 = vector.shape_cast %29 : vector<8xf32> to vector<8x1xf32>
    %31 = vector.broadcast %30 : vector<8x1xf32> to vector<8x8xf32>
    %32 = arith.subf %28, %31 : vector<8x8xf32>
    %33 = math.exp %32 : vector<8x8xf32>
    %cst_33 = arith.constant dense<0.000000e+00> : vector<8xf32>
    %34 = vector.multi_reduction <add>, %33, %cst_33 [1] : vector<8x8xf32> to vector<8xf32>
    %35 = vector.shape_cast %34 : vector<8xf32> to vector<8x1xf32>
    %36 = tpu.reciprocal %35 {approx = true} : vector<8x1xf32> -> vector<8x1xf32>
    %37 = vector.broadcast %36 : vector<8x1xf32> to vector<8x8xf32>
    %38 = arith.mulf %33, %37 : vector<8x8xf32>
    %cst_34 = arith.constant dense<0.000000e+00> : vector<8x8xf32>
    %39 = tpu.matmul %38, %25, %cst_34 {dimension_numbers = #tpu.dot_dimension_numbers<[1], [0], [0], [1], [0, 0, 1, 1], [], []>} : vector<8x8xf32>, vector<8x8xf32>, vector<8x8xf32> -> vector<8x8xf32>
    %c0_35 = arith.constant 0 : index
    %c0_36 = arith.constant 0 : index
    %c0_37 = arith.constant 0 : index
    %c0_38 = arith.constant 0 : index
    %40 = vector.load %arg9[%c0_35, %c0_36, %c0_37, %c0_38] : memref<1x4x8x32xf32, #tpu.memory_space<vmem>>, vector<1x1x8x32xf32>
    %41 = vector.shape_cast %40 : vector<1x1x8x32xf32> to vector<8x32xf32>
    %cst_39 = arith.constant dense<0.000000e+00> : vector<8x32xf32>
    %42 = tpu.matmul %39, %41, %cst_39 {dimension_numbers = #tpu.dot_dimension_numbers<[1], [0], [0], [1], [0, 0, 1, 1], [], []>} : vector<8x8xf32>, vector<8x32xf32>, vector<8x32xf32> -> vector<8x32xf32>
    %c0_40 = arith.constant 0 : index
    %c1 = arith.constant 1 : index
    %c0_41 = arith.constant 0 : index
    %c0_42 = arith.constant 0 : index
    %43 = vector.load %arg3[%c0_40, %c1, %c0_41, %c0_42] : memref<1x4x32x8xf32, #tpu.memory_space<vmem>>, vector<1x1x32x8xf32>
    %44 = vector.shape_cast %43 : vector<1x1x32x8xf32> to vector<32x8xf32>
    %cst_43 = arith.constant dense<0.000000e+00> : vector<8x8xf32>
    %45 = tpu.matmul %3, %44, %cst_43 {dimension_numbers = #tpu.dot_dimension_numbers<[1], [0], [0], [1], [0, 0, 1, 1], [], []>} : vector<8x32xf32>, vector<32x8xf32>, vector<8x8xf32> -> vector<8x8xf32>
    %c0_44 = arith.constant 0 : index
    %c1_45 = arith.constant 1 : index
    %c0_46 = arith.constant 0 : index
    %c0_47 = arith.constant 0 : index
    %46 = vector.load %arg6[%c0_44, %c1_45, %c0_46, %c0_47] : memref<1x4x1x8xf32, #tpu.memory_space<vmem>>, vector<1x1x1x8xf32>
    %47 = vector.shape_cast %46 : vector<1x1x1x8xf32> to vector<1x8xf32>
    %48 = vector.broadcast %47 : vector<1x8xf32> to vector<8x8xf32>
    %49 = arith.addf %45, %48 : vector<8x8xf32>
    %c0_48 = arith.constant 0 : index
    %c1_49 = arith.constant 1 : index
    %c0_50 = arith.constant 0 : index
    %c0_51 = arith.constant 0 : index
    %50 = vector.load %arg4[%c0_48, %c1_49, %c0_50, %c0_51] : memref<1x4x32x8xf32, #tpu.memory_space<vmem>>, vector<1x1x32x8xf32>
    %51 = vector.shape_cast %50 : vector<1x1x32x8xf32> to vector<32x8xf32>
    %cst_52 = arith.constant dense<0.000000e+00> : vector<8x8xf32>
    %52 = tpu.matmul %3, %51, %cst_52 {dimension_numbers = #tpu.dot_dimension_numbers<[1], [0], [0], [1], [0, 0, 1, 1], [], []>} : vector<8x32xf32>, vector<32x8xf32>, vector<8x8xf32> -> vector<8x8xf32>
    %c0_53 = arith.constant 0 : index
    %c1_54 = arith.constant 1 : index
    %c0_55 = arith.constant 0 : index
    %c0_56 = arith.constant 0 : index
    %53 = vector.load %arg7[%c0_53, %c1_54, %c0_55, %c0_56] : memref<1x4x1x8xf32, #tpu.memory_space<vmem>>, vector<1x1x1x8xf32>
    %54 = vector.shape_cast %53 : vector<1x1x1x8xf32> to vector<1x8xf32>
    %55 = vector.broadcast %54 : vector<1x8xf32> to vector<8x8xf32>
    %56 = arith.addf %52, %55 : vector<8x8xf32>
    %c0_57 = arith.constant 0 : index
    %c1_58 = arith.constant 1 : index
    %c0_59 = arith.constant 0 : index
    %c0_60 = arith.constant 0 : index
    %57 = vector.load %arg5[%c0_57, %c1_58, %c0_59, %c0_60] : memref<1x4x32x8xf32, #tpu.memory_space<vmem>>, vector<1x1x32x8xf32>
    %58 = vector.shape_cast %57 : vector<1x1x32x8xf32> to vector<32x8xf32>
    %cst_61 = arith.constant dense<0.000000e+00> : vector<8x8xf32>
    %59 = tpu.matmul %3, %58, %cst_61 {dimension_numbers = #tpu.dot_dimension_numbers<[1], [0], [0], [1], [0, 0, 1, 1], [], []>} : vector<8x32xf32>, vector<32x8xf32>, vector<8x8xf32> -> vector<8x8xf32>
    %c0_62 = arith.constant 0 : index
    %c1_63 = arith.constant 1 : index
    %c0_64 = arith.constant 0 : index
    %c0_65 = arith.constant 0 : index
    %60 = vector.load %arg8[%c0_62, %c1_63, %c0_64, %c0_65] : memref<1x4x1x8xf32, #tpu.memory_space<vmem>>, vector<1x1x1x8xf32>
    %61 = vector.shape_cast %60 : vector<1x1x1x8xf32> to vector<1x8xf32>
    %62 = vector.broadcast %61 : vector<1x8xf32> to vector<8x8xf32>
    %63 = arith.addf %59, %62 : vector<8x8xf32>
    %cst_66 = arith.constant 0.353553385 : f32
    %64 = vector.broadcast %cst_66 : f32 to vector<8x8xf32>
    %65 = arith.mulf %49, %64 : vector<8x8xf32>
    %cst_67 = arith.constant dense<0.000000e+00> : vector<8x8xf32>
    %66 = tpu.matmul %65, %56, %cst_67 {dimension_numbers = #tpu.dot_dimension_numbers<[1], [1], [0], [0], [0, 0, 1, 0], [], []>} : vector<8x8xf32>, vector<8x8xf32>, vector<8x8xf32> -> vector<8x8xf32>
    %cst_68 = arith.constant dense<0xFF800000> : vector<8xf32>
    %67 = vector.multi_reduction <maximumf>, %66, %cst_68 [1] : vector<8x8xf32> to vector<8xf32>
    %68 = vector.shape_cast %67 : vector<8xf32> to vector<8x1xf32>
    %69 = vector.broadcast %68 : vector<8x1xf32> to vector<8x8xf32>
    %70 = arith.subf %66, %69 : vector<8x8xf32>
    %71 = math.exp %70 : vector<8x8xf32>
    %cst_69 = arith.constant dense<0.000000e+00> : vector<8xf32>
    %72 = vector.multi_reduction <add>, %71, %cst_69 [1] : vector<8x8xf32> to vector<8xf32>
    %73 = vector.shape_cast %72 : vector<8xf32> to vector<8x1xf32>
    %74 = tpu.reciprocal %73 {approx = true} : vector<8x1xf32> -> vector<8x1xf32>
    %75 = vector.broadcast %74 : vector<8x1xf32> to vector<8x8xf32>
    %76 = arith.mulf %71, %75 : vector<8x8xf32>
    %cst_70 = arith.constant dense<0.000000e+00> : vector<8x8xf32>
    %77 = tpu.matmul %76, %63, %cst_70 {dimension_numbers = #tpu.dot_dimension_numbers<[1], [0], [0], [1], [0, 0, 1, 1], [], []>} : vector<8x8xf32>, vector<8x8xf32>, vector<8x8xf32> -> vector<8x8xf32>
    %c0_71 = arith.constant 0 : index
    %c1_72 = arith.constant 1 : index
    %c0_73 = arith.constant 0 : index
    %c0_74 = arith.constant 0 : index
    %78 = vector.load %arg9[%c0_71, %c1_72, %c0_73, %c0_74] : memref<1x4x8x32xf32, #tpu.memory_space<vmem>>, vector<1x1x8x32xf32>
    %79 = vector.shape_cast %78 : vector<1x1x8x32xf32> to vector<8x32xf32>
    %cst_75 = arith.constant dense<0.000000e+00> : vector<8x32xf32>
    %80 = tpu.matmul %77, %79, %cst_75 {dimension_numbers = #tpu.dot_dimension_numbers<[1], [0], [0], [1], [0, 0, 1, 1], [], []>} : vector<8x8xf32>, vector<8x32xf32>, vector<8x32xf32> -> vector<8x32xf32>
    %81 = arith.addf %42, %80 : vector<8x32xf32>
    %c0_76 = arith.constant 0 : index
    %c2 = arith.constant 2 : index
    %c0_77 = arith.constant 0 : index
    %c0_78 = arith.constant 0 : index
    %82 = vector.load %arg3[%c0_76, %c2, %c0_77, %c0_78] : memref<1x4x32x8xf32, #tpu.memory_space<vmem>>, vector<1x1x32x8xf32>
    %83 = vector.shape_cast %82 : vector<1x1x32x8xf32> to vector<32x8xf32>
    %cst_79 = arith.constant dense<0.000000e+00> : vector<8x8xf32>
    %84 = tpu.matmul %3, %83, %cst_79 {dimension_numbers = #tpu.dot_dimension_numbers<[1], [0], [0], [1], [0, 0, 1, 1], [], []>} : vector<8x32xf32>, vector<32x8xf32>, vector<8x8xf32> -> vector<8x8xf32>
    %c0_80 = arith.constant 0 : index
    %c2_81 = arith.constant 2 : index
    %c0_82 = arith.constant 0 : index
    %c0_83 = arith.constant 0 : index
    %85 = vector.load %arg6[%c0_80, %c2_81, %c0_82, %c0_83] : memref<1x4x1x8xf32, #tpu.memory_space<vmem>>, vector<1x1x1x8xf32>
    %86 = vector.shape_cast %85 : vector<1x1x1x8xf32> to vector<1x8xf32>
    %87 = vector.broadcast %86 : vector<1x8xf32> to vector<8x8xf32>
    %88 = arith.addf %84, %87 : vector<8x8xf32>
    %c0_84 = arith.constant 0 : index
    %c2_85 = arith.constant 2 : index
    %c0_86 = arith.constant 0 : index
    %c0_87 = arith.constant 0 : index
    %89 = vector.load %arg4[%c0_84, %c2_85, %c0_86, %c0_87] : memref<1x4x32x8xf32, #tpu.memory_space<vmem>>, vector<1x1x32x8xf32>
    %90 = vector.shape_cast %89 : vector<1x1x32x8xf32> to vector<32x8xf32>
    %cst_88 = arith.constant dense<0.000000e+00> : vector<8x8xf32>
    %91 = tpu.matmul %3, %90, %cst_88 {dimension_numbers = #tpu.dot_dimension_numbers<[1], [0], [0], [1], [0, 0, 1, 1], [], []>} : vector<8x32xf32>, vector<32x8xf32>, vector<8x8xf32> -> vector<8x8xf32>
    %c0_89 = arith.constant 0 : index
    %c2_90 = arith.constant 2 : index
    %c0_91 = arith.constant 0 : index
    %c0_92 = arith.constant 0 : index
    %92 = vector.load %arg7[%c0_89, %c2_90, %c0_91, %c0_92] : memref<1x4x1x8xf32, #tpu.memory_space<vmem>>, vector<1x1x1x8xf32>
    %93 = vector.shape_cast %92 : vector<1x1x1x8xf32> to vector<1x8xf32>
    %94 = vector.broadcast %93 : vector<1x8xf32> to vector<8x8xf32>
    %95 = arith.addf %91, %94 : vector<8x8xf32>
    %c0_93 = arith.constant 0 : index
    %c2_94 = arith.constant 2 : index
    %c0_95 = arith.constant 0 : index
    %c0_96 = arith.constant 0 : index
    %96 = vector.load %arg5[%c0_93, %c2_94, %c0_95, %c0_96] : memref<1x4x32x8xf32, #tpu.memory_space<vmem>>, vector<1x1x32x8xf32>
    %97 = vector.shape_cast %96 : vector<1x1x32x8xf32> to vector<32x8xf32>
    %cst_97 = arith.constant dense<0.000000e+00> : vector<8x8xf32>
    %98 = tpu.matmul %3, %97, %cst_97 {dimension_numbers = #tpu.dot_dimension_numbers<[1], [0], [0], [1], [0, 0, 1, 1], [], []>} : vector<8x32xf32>, vector<32x8xf32>, vector<8x8xf32> -> vector<8x8xf32>
    %c0_98 = arith.constant 0 : index
    %c2_99 = arith.constant 2 : index
    %c0_100 = arith.constant 0 : index
    %c0_101 = arith.constant 0 : index
    %99 = vector.load %arg8[%c0_98, %c2_99, %c0_100, %c0_101] : memref<1x4x1x8xf32, #tpu.memory_space<vmem>>, vector<1x1x1x8xf32>
    %100 = vector.shape_cast %99 : vector<1x1x1x8xf32> to vector<1x8xf32>
    %101 = vector.broadcast %100 : vector<1x8xf32> to vector<8x8xf32>
    %102 = arith.addf %98, %101 : vector<8x8xf32>
    %cst_102 = arith.constant 0.353553385 : f32
    %103 = vector.broadcast %cst_102 : f32 to vector<8x8xf32>
    %104 = arith.mulf %88, %103 : vector<8x8xf32>
    %cst_103 = arith.constant dense<0.000000e+00> : vector<8x8xf32>
    %105 = tpu.matmul %104, %95, %cst_103 {dimension_numbers = #tpu.dot_dimension_numbers<[1], [1], [0], [0], [0, 0, 1, 0], [], []>} : vector<8x8xf32>, vector<8x8xf32>, vector<8x8xf32> -> vector<8x8xf32>
    %cst_104 = arith.constant dense<0xFF800000> : vector<8xf32>
    %106 = vector.multi_reduction <maximumf>, %105, %cst_104 [1] : vector<8x8xf32> to vector<8xf32>
    %107 = vector.shape_cast %106 : vector<8xf32> to vector<8x1xf32>
    %108 = vector.broadcast %107 : vector<8x1xf32> to vector<8x8xf32>
    %109 = arith.subf %105, %108 : vector<8x8xf32>
    %110 = math.exp %109 : vector<8x8xf32>
    %cst_105 = arith.constant dense<0.000000e+00> : vector<8xf32>
    %111 = vector.multi_reduction <add>, %110, %cst_105 [1] : vector<8x8xf32> to vector<8xf32>
    %112 = vector.shape_cast %111 : vector<8xf32> to vector<8x1xf32>
    %113 = tpu.reciprocal %112 {approx = true} : vector<8x1xf32> -> vector<8x1xf32>
    %114 = vector.broadcast %113 : vector<8x1xf32> to vector<8x8xf32>
    %115 = arith.mulf %110, %114 : vector<8x8xf32>
    %cst_106 = arith.constant dense<0.000000e+00> : vector<8x8xf32>
    %116 = tpu.matmul %115, %102, %cst_106 {dimension_numbers = #tpu.dot_dimension_numbers<[1], [0], [0], [1], [0, 0, 1, 1], [], []>} : vector<8x8xf32>, vector<8x8xf32>, vector<8x8xf32> -> vector<8x8xf32>
    %c0_107 = arith.constant 0 : index
    %c2_108 = arith.constant 2 : index
    %c0_109 = arith.constant 0 : index
    %c0_110 = arith.constant 0 : index
    %117 = vector.load %arg9[%c0_107, %c2_108, %c0_109, %c0_110] : memref<1x4x8x32xf32, #tpu.memory_space<vmem>>, vector<1x1x8x32xf32>
    %118 = vector.shape_cast %117 : vector<1x1x8x32xf32> to vector<8x32xf32>
    %cst_111 = arith.constant dense<0.000000e+00> : vector<8x32xf32>
    %119 = tpu.matmul %116, %118, %cst_111 {dimension_numbers = #tpu.dot_dimension_numbers<[1], [0], [0], [1], [0, 0, 1, 1], [], []>} : vector<8x8xf32>, vector<8x32xf32>, vector<8x32xf32> -> vector<8x32xf32>
    %120 = arith.addf %81, %119 : vector<8x32xf32>
    %c0_112 = arith.constant 0 : index
    %c3 = arith.constant 3 : index
    %c0_113 = arith.constant 0 : index
    %c0_114 = arith.constant 0 : index
    %121 = vector.load %arg3[%c0_112, %c3, %c0_113, %c0_114] : memref<1x4x32x8xf32, #tpu.memory_space<vmem>>, vector<1x1x32x8xf32>
    %122 = vector.shape_cast %121 : vector<1x1x32x8xf32> to vector<32x8xf32>
    %cst_115 = arith.constant dense<0.000000e+00> : vector<8x8xf32>
    %123 = tpu.matmul %3, %122, %cst_115 {dimension_numbers = #tpu.dot_dimension_numbers<[1], [0], [0], [1], [0, 0, 1, 1], [], []>} : vector<8x32xf32>, vector<32x8xf32>, vector<8x8xf32> -> vector<8x8xf32>
    %c0_116 = arith.constant 0 : index
    %c3_117 = arith.constant 3 : index
    %c0_118 = arith.constant 0 : index
    %c0_119 = arith.constant 0 : index
    %124 = vector.load %arg6[%c0_116, %c3_117, %c0_118, %c0_119] : memref<1x4x1x8xf32, #tpu.memory_space<vmem>>, vector<1x1x1x8xf32>
    %125 = vector.shape_cast %124 : vector<1x1x1x8xf32> to vector<1x8xf32>
    %126 = vector.broadcast %125 : vector<1x8xf32> to vector<8x8xf32>
    %127 = arith.addf %123, %126 : vector<8x8xf32>
    %c0_120 = arith.constant 0 : index
    %c3_121 = arith.constant 3 : index
    %c0_122 = arith.constant 0 : index
    %c0_123 = arith.constant 0 : index
    %128 = vector.load %arg4[%c0_120, %c3_121, %c0_122, %c0_123] : memref<1x4x32x8xf32, #tpu.memory_space<vmem>>, vector<1x1x32x8xf32>
    %129 = vector.shape_cast %128 : vector<1x1x32x8xf32> to vector<32x8xf32>
    %cst_124 = arith.constant dense<0.000000e+00> : vector<8x8xf32>
    %130 = tpu.matmul %3, %129, %cst_124 {dimension_numbers = #tpu.dot_dimension_numbers<[1], [0], [0], [1], [0, 0, 1, 1], [], []>} : vector<8x32xf32>, vector<32x8xf32>, vector<8x8xf32> -> vector<8x8xf32>
    %c0_125 = arith.constant 0 : index
    %c3_126 = arith.constant 3 : index
    %c0_127 = arith.constant 0 : index
    %c0_128 = arith.constant 0 : index
    %131 = vector.load %arg7[%c0_125, %c3_126, %c0_127, %c0_128] : memref<1x4x1x8xf32, #tpu.memory_space<vmem>>, vector<1x1x1x8xf32>
    %132 = vector.shape_cast %131 : vector<1x1x1x8xf32> to vector<1x8xf32>
    %133 = vector.broadcast %132 : vector<1x8xf32> to vector<8x8xf32>
    %134 = arith.addf %130, %133 : vector<8x8xf32>
    %c0_129 = arith.constant 0 : index
    %c3_130 = arith.constant 3 : index
    %c0_131 = arith.constant 0 : index
    %c0_132 = arith.constant 0 : index
    %135 = vector.load %arg5[%c0_129, %c3_130, %c0_131, %c0_132] : memref<1x4x32x8xf32, #tpu.memory_space<vmem>>, vector<1x1x32x8xf32>
    %136 = vector.shape_cast %135 : vector<1x1x32x8xf32> to vector<32x8xf32>
    %cst_133 = arith.constant dense<0.000000e+00> : vector<8x8xf32>
    %137 = tpu.matmul %3, %136, %cst_133 {dimension_numbers = #tpu.dot_dimension_numbers<[1], [0], [0], [1], [0, 0, 1, 1], [], []>} : vector<8x32xf32>, vector<32x8xf32>, vector<8x8xf32> -> vector<8x8xf32>
    %c0_134 = arith.constant 0 : index
    %c3_135 = arith.constant 3 : index
    %c0_136 = arith.constant 0 : index
    %c0_137 = arith.constant 0 : index
    %138 = vector.load %arg8[%c0_134, %c3_135, %c0_136, %c0_137] : memref<1x4x1x8xf32, #tpu.memory_space<vmem>>, vector<1x1x1x8xf32>
    %139 = vector.shape_cast %138 : vector<1x1x1x8xf32> to vector<1x8xf32>
    %140 = vector.broadcast %139 : vector<1x8xf32> to vector<8x8xf32>
    %141 = arith.addf %137, %140 : vector<8x8xf32>
    %cst_138 = arith.constant 0.353553385 : f32
    %142 = vector.broadcast %cst_138 : f32 to vector<8x8xf32>
    %143 = arith.mulf %127, %142 : vector<8x8xf32>
    %cst_139 = arith.constant dense<0.000000e+00> : vector<8x8xf32>
    %144 = tpu.matmul %143, %134, %cst_139 {dimension_numbers = #tpu.dot_dimension_numbers<[1], [1], [0], [0], [0, 0, 1, 0], [], []>} : vector<8x8xf32>, vector<8x8xf32>, vector<8x8xf32> -> vector<8x8xf32>
    %cst_140 = arith.constant dense<0xFF800000> : vector<8xf32>
    %145 = vector.multi_reduction <maximumf>, %144, %cst_140 [1] : vector<8x8xf32> to vector<8xf32>
    %146 = vector.shape_cast %145 : vector<8xf32> to vector<8x1xf32>
    %147 = vector.broadcast %146 : vector<8x1xf32> to vector<8x8xf32>
    %148 = arith.subf %144, %147 : vector<8x8xf32>
    %149 = math.exp %148 : vector<8x8xf32>
    %cst_141 = arith.constant dense<0.000000e+00> : vector<8xf32>
    %150 = vector.multi_reduction <add>, %149, %cst_141 [1] : vector<8x8xf32> to vector<8xf32>
    %151 = vector.shape_cast %150 : vector<8xf32> to vector<8x1xf32>
    %152 = tpu.reciprocal %151 {approx = true} : vector<8x1xf32> -> vector<8x1xf32>
    %153 = vector.broadcast %152 : vector<8x1xf32> to vector<8x8xf32>
    %154 = arith.mulf %149, %153 : vector<8x8xf32>
    %cst_142 = arith.constant dense<0.000000e+00> : vector<8x8xf32>
    %155 = tpu.matmul %154, %141, %cst_142 {dimension_numbers = #tpu.dot_dimension_numbers<[1], [0], [0], [1], [0, 0, 1, 1], [], []>} : vector<8x8xf32>, vector<8x8xf32>, vector<8x8xf32> -> vector<8x8xf32>
    %c0_143 = arith.constant 0 : index
    %c3_144 = arith.constant 3 : index
    %c0_145 = arith.constant 0 : index
    %c0_146 = arith.constant 0 : index
    %156 = vector.load %arg9[%c0_143, %c3_144, %c0_145, %c0_146] : memref<1x4x8x32xf32, #tpu.memory_space<vmem>>, vector<1x1x8x32xf32>
    %157 = vector.shape_cast %156 : vector<1x1x8x32xf32> to vector<8x32xf32>
    %cst_147 = arith.constant dense<0.000000e+00> : vector<8x32xf32>
    %158 = tpu.matmul %155, %157, %cst_147 {dimension_numbers = #tpu.dot_dimension_numbers<[1], [0], [0], [1], [0, 0, 1, 1], [], []>} : vector<8x8xf32>, vector<8x32xf32>, vector<8x32xf32> -> vector<8x32xf32>
    %159 = arith.addf %120, %158 : vector<8x32xf32>
    %c0_148 = arith.constant 0 : index
    %c0_149 = arith.constant 0 : index
    %c0_150 = arith.constant 0 : index
    %160 = vector.load %arg10[%c0_148, %c0_149, %c0_150] : memref<1x1x32xf32, #tpu.memory_space<vmem>>, vector<1x1x32xf32>
    %161 = vector.shape_cast %160 : vector<1x1x32xf32> to vector<1x32xf32>
    %162 = vector.broadcast %161 : vector<1x32xf32> to vector<8x32xf32>
    %163 = arith.addf %159, %162 : vector<8x32xf32>
    %c0_151 = arith.constant 0 : index
    %c0_152 = arith.constant 0 : index
    %c0_153 = arith.constant 0 : index
    %164 = vector.load %arg11[%c0_151, %c0_152, %c0_153] : memref<1x2x32xf32, #tpu.memory_space<vmem>>, vector<1x2x32xf32>
    %165 = vector.shape_cast %164 : vector<1x2x32xf32> to vector<2x32xf32>
    %166 = arith.addf %163, %3 : vector<8x32xf32>
    %167 = vector.extract_strided_slice %165 {offsets = [0, 0], sizes = [1, 32], strides = [1, 1]} : vector<2x32xf32> to vector<1x32xf32>
    %168 = vector.extract_strided_slice %165 {offsets = [1, 0], sizes = [1, 32], strides = [1, 1]} : vector<2x32xf32> to vector<1x32xf32>
    %cst_154 = arith.constant dense<0.000000e+00> : vector<8xf32>
    %169 = vector.multi_reduction <add>, %166, %cst_154 [1] : vector<8x32xf32> to vector<8xf32>
    %170 = vector.shape_cast %169 : vector<8xf32> to vector<8x1xf32>
    %cst_155 = arith.constant 3.200000e+01 : f32
    %171 = vector.broadcast %cst_155 : f32 to vector<8x1xf32>
    %172 = arith.divf %170, %171 : vector<8x1xf32>
    %173 = vector.broadcast %172 : vector<8x1xf32> to vector<8x32xf32>
    %174 = arith.subf %166, %173 : vector<8x32xf32>
    %175 = arith.mulf %174, %174 : vector<8x32xf32>
    %cst_156 = arith.constant dense<0.000000e+00> : vector<8xf32>
    %176 = vector.multi_reduction <add>, %175, %cst_156 [1] : vector<8x32xf32> to vector<8xf32>
    %177 = vector.shape_cast %176 : vector<8xf32> to vector<8x1xf32>
    %cst_157 = arith.constant 3.200000e+01 : f32
    %178 = vector.broadcast %cst_157 : f32 to vector<8x1xf32>
    %179 = arith.divf %177, %178 : vector<8x1xf32>
    %cst_158 = arith.constant 9.99999974E-6 : f32
    %180 = vector.broadcast %cst_158 : f32 to vector<8x1xf32>
    %181 = arith.addf %179, %180 : vector<8x1xf32>
    %182 = math.rsqrt %181 : vector<8x1xf32>
    %183 = vector.broadcast %182 : vector<8x1xf32> to vector<8x32xf32>
    %184 = arith.mulf %174, %183 : vector<8x32xf32>
    %185 = vector.broadcast %167 : vector<1x32xf32> to vector<8x32xf32>
    %186 = arith.mulf %184, %185 : vector<8x32xf32>
    %187 = vector.broadcast %168 : vector<1x32xf32> to vector<8x32xf32>
    %188 = arith.addf %186, %187 : vector<8x32xf32>
    %c0_159 = arith.constant 0 : index
    %c0_160 = arith.constant 0 : index
    %c0_161 = arith.constant 0 : index
    %c0_162 = arith.constant 0 : index
    %189 = vector.load %arg12[%c0_159, %c0_160, %c0_161, %c0_162] : memref<1x4x32x8xf32, #tpu.memory_space<vmem>>, vector<1x1x32x8xf32>
    %190 = vector.shape_cast %189 : vector<1x1x32x8xf32> to vector<32x8xf32>
    %cst_163 = arith.constant dense<0.000000e+00> : vector<8x8xf32>
    %191 = tpu.matmul %188, %190, %cst_163 {dimension_numbers = #tpu.dot_dimension_numbers<[1], [0], [0], [1], [0, 0, 1, 1], [], []>} : vector<8x32xf32>, vector<32x8xf32>, vector<8x8xf32> -> vector<8x8xf32>
    %c0_164 = arith.constant 0 : index
    %c0_165 = arith.constant 0 : index
    %c0_166 = arith.constant 0 : index
    %c0_167 = arith.constant 0 : index
    %192 = vector.load %arg15[%c0_164, %c0_165, %c0_166, %c0_167] : memref<1x4x1x8xf32, #tpu.memory_space<vmem>>, vector<1x1x1x8xf32>
    %193 = vector.shape_cast %192 : vector<1x1x1x8xf32> to vector<1x8xf32>
    %194 = vector.broadcast %193 : vector<1x8xf32> to vector<8x8xf32>
    %195 = arith.addf %191, %194 : vector<8x8xf32>
    %c0_168 = arith.constant 0 : index
    %c0_169 = arith.constant 0 : index
    %c0_170 = arith.constant 0 : index
    %c0_171 = arith.constant 0 : index
    %196 = vector.load %arg13[%c0_168, %c0_169, %c0_170, %c0_171] : memref<1x4x32x8xf32, #tpu.memory_space<vmem>>, vector<1x1x32x8xf32>
    %197 = vector.shape_cast %196 : vector<1x1x32x8xf32> to vector<32x8xf32>
    %cst_172 = arith.constant dense<0.000000e+00> : vector<16x8xf32>
    %198 = tpu.matmul %4, %197, %cst_172 {dimension_numbers = #tpu.dot_dimension_numbers<[1], [0], [0], [1], [0, 0, 1, 1], [], []>} : vector<16x32xf32>, vector<32x8xf32>, vector<16x8xf32> -> vector<16x8xf32>
    %c0_173 = arith.constant 0 : index
    %c0_174 = arith.constant 0 : index
    %c0_175 = arith.constant 0 : index
    %c0_176 = arith.constant 0 : index
    %199 = vector.load %arg16[%c0_173, %c0_174, %c0_175, %c0_176] : memref<1x4x1x8xf32, #tpu.memory_space<vmem>>, vector<1x1x1x8xf32>
    %200 = vector.shape_cast %199 : vector<1x1x1x8xf32> to vector<1x8xf32>
    %201 = vector.broadcast %200 : vector<1x8xf32> to vector<16x8xf32>
    %202 = arith.addf %198, %201 : vector<16x8xf32>
    %c0_177 = arith.constant 0 : index
    %c0_178 = arith.constant 0 : index
    %c0_179 = arith.constant 0 : index
    %c0_180 = arith.constant 0 : index
    %203 = vector.load %arg14[%c0_177, %c0_178, %c0_179, %c0_180] : memref<1x4x32x8xf32, #tpu.memory_space<vmem>>, vector<1x1x32x8xf32>
    %204 = vector.shape_cast %203 : vector<1x1x32x8xf32> to vector<32x8xf32>
    %cst_181 = arith.constant dense<0.000000e+00> : vector<16x8xf32>
    %205 = tpu.matmul %4, %204, %cst_181 {dimension_numbers = #tpu.dot_dimension_numbers<[1], [0], [0], [1], [0, 0, 1, 1], [], []>} : vector<16x32xf32>, vector<32x8xf32>, vector<16x8xf32> -> vector<16x8xf32>
    %c0_182 = arith.constant 0 : index
    %c0_183 = arith.constant 0 : index
    %c0_184 = arith.constant 0 : index
    %c0_185 = arith.constant 0 : index
    %206 = vector.load %arg17[%c0_182, %c0_183, %c0_184, %c0_185] : memref<1x4x1x8xf32, #tpu.memory_space<vmem>>, vector<1x1x1x8xf32>
    %207 = vector.shape_cast %206 : vector<1x1x1x8xf32> to vector<1x8xf32>
    %208 = vector.broadcast %207 : vector<1x8xf32> to vector<16x8xf32>
    %209 = arith.addf %205, %208 : vector<16x8xf32>
    %cst_186 = arith.constant 0.353553385 : f32
    %210 = vector.broadcast %cst_186 : f32 to vector<8x8xf32>
    %211 = arith.mulf %195, %210 : vector<8x8xf32>
    %cst_187 = arith.constant dense<0.000000e+00> : vector<8x16xf32>
    %212 = tpu.matmul %211, %202, %cst_187 {dimension_numbers = #tpu.dot_dimension_numbers<[1], [1], [0], [0], [0, 0, 1, 0], [], []>} : vector<8x8xf32>, vector<16x8xf32>, vector<8x16xf32> -> vector<8x16xf32>
    %cst_188 = arith.constant dense<0xFF800000> : vector<8xf32>
    %213 = vector.multi_reduction <maximumf>, %212, %cst_188 [1] : vector<8x16xf32> to vector<8xf32>
    %214 = vector.shape_cast %213 : vector<8xf32> to vector<8x1xf32>
    %215 = vector.broadcast %214 : vector<8x1xf32> to vector<8x16xf32>
    %216 = arith.subf %212, %215 : vector<8x16xf32>
    %217 = math.exp %216 : vector<8x16xf32>
    %cst_189 = arith.constant dense<0.000000e+00> : vector<8xf32>
    %218 = vector.multi_reduction <add>, %217, %cst_189 [1] : vector<8x16xf32> to vector<8xf32>
    %219 = vector.shape_cast %218 : vector<8xf32> to vector<8x1xf32>
    %220 = tpu.reciprocal %219 {approx = true} : vector<8x1xf32> -> vector<8x1xf32>
    %221 = vector.broadcast %220 : vector<8x1xf32> to vector<8x16xf32>
    %222 = arith.mulf %217, %221 : vector<8x16xf32>
    %cst_190 = arith.constant dense<0.000000e+00> : vector<8x8xf32>
    %223 = tpu.matmul %222, %209, %cst_190 {dimension_numbers = #tpu.dot_dimension_numbers<[1], [0], [0], [1], [0, 0, 1, 1], [], []>} : vector<8x16xf32>, vector<16x8xf32>, vector<8x8xf32> -> vector<8x8xf32>
    %c0_191 = arith.constant 0 : index
    %c0_192 = arith.constant 0 : index
    %c0_193 = arith.constant 0 : index
    %c0_194 = arith.constant 0 : index
    %224 = vector.load %arg18[%c0_191, %c0_192, %c0_193, %c0_194] : memref<1x4x8x32xf32, #tpu.memory_space<vmem>>, vector<1x1x8x32xf32>
    %225 = vector.shape_cast %224 : vector<1x1x8x32xf32> to vector<8x32xf32>
    %cst_195 = arith.constant dense<0.000000e+00> : vector<8x32xf32>
    %226 = tpu.matmul %223, %225, %cst_195 {dimension_numbers = #tpu.dot_dimension_numbers<[1], [0], [0], [1], [0, 0, 1, 1], [], []>} : vector<8x8xf32>, vector<8x32xf32>, vector<8x32xf32> -> vector<8x32xf32>
    %c0_196 = arith.constant 0 : index
    %c1_197 = arith.constant 1 : index
    %c0_198 = arith.constant 0 : index
    %c0_199 = arith.constant 0 : index
    %227 = vector.load %arg12[%c0_196, %c1_197, %c0_198, %c0_199] : memref<1x4x32x8xf32, #tpu.memory_space<vmem>>, vector<1x1x32x8xf32>
    %228 = vector.shape_cast %227 : vector<1x1x32x8xf32> to vector<32x8xf32>
    %cst_200 = arith.constant dense<0.000000e+00> : vector<8x8xf32>
    %229 = tpu.matmul %188, %228, %cst_200 {dimension_numbers = #tpu.dot_dimension_numbers<[1], [0], [0], [1], [0, 0, 1, 1], [], []>} : vector<8x32xf32>, vector<32x8xf32>, vector<8x8xf32> -> vector<8x8xf32>
    %c0_201 = arith.constant 0 : index
    %c1_202 = arith.constant 1 : index
    %c0_203 = arith.constant 0 : index
    %c0_204 = arith.constant 0 : index
    %230 = vector.load %arg15[%c0_201, %c1_202, %c0_203, %c0_204] : memref<1x4x1x8xf32, #tpu.memory_space<vmem>>, vector<1x1x1x8xf32>
    %231 = vector.shape_cast %230 : vector<1x1x1x8xf32> to vector<1x8xf32>
    %232 = vector.broadcast %231 : vector<1x8xf32> to vector<8x8xf32>
    %233 = arith.addf %229, %232 : vector<8x8xf32>
    %c0_205 = arith.constant 0 : index
    %c1_206 = arith.constant 1 : index
    %c0_207 = arith.constant 0 : index
    %c0_208 = arith.constant 0 : index
    %234 = vector.load %arg13[%c0_205, %c1_206, %c0_207, %c0_208] : memref<1x4x32x8xf32, #tpu.memory_space<vmem>>, vector<1x1x32x8xf32>
    %235 = vector.shape_cast %234 : vector<1x1x32x8xf32> to vector<32x8xf32>
    %cst_209 = arith.constant dense<0.000000e+00> : vector<16x8xf32>
    %236 = tpu.matmul %4, %235, %cst_209 {dimension_numbers = #tpu.dot_dimension_numbers<[1], [0], [0], [1], [0, 0, 1, 1], [], []>} : vector<16x32xf32>, vector<32x8xf32>, vector<16x8xf32> -> vector<16x8xf32>
    %c0_210 = arith.constant 0 : index
    %c1_211 = arith.constant 1 : index
    %c0_212 = arith.constant 0 : index
    %c0_213 = arith.constant 0 : index
    %237 = vector.load %arg16[%c0_210, %c1_211, %c0_212, %c0_213] : memref<1x4x1x8xf32, #tpu.memory_space<vmem>>, vector<1x1x1x8xf32>
    %238 = vector.shape_cast %237 : vector<1x1x1x8xf32> to vector<1x8xf32>
    %239 = vector.broadcast %238 : vector<1x8xf32> to vector<16x8xf32>
    %240 = arith.addf %236, %239 : vector<16x8xf32>
    %c0_214 = arith.constant 0 : index
    %c1_215 = arith.constant 1 : index
    %c0_216 = arith.constant 0 : index
    %c0_217 = arith.constant 0 : index
    %241 = vector.load %arg14[%c0_214, %c1_215, %c0_216, %c0_217] : memref<1x4x32x8xf32, #tpu.memory_space<vmem>>, vector<1x1x32x8xf32>
    %242 = vector.shape_cast %241 : vector<1x1x32x8xf32> to vector<32x8xf32>
    %cst_218 = arith.constant dense<0.000000e+00> : vector<16x8xf32>
    %243 = tpu.matmul %4, %242, %cst_218 {dimension_numbers = #tpu.dot_dimension_numbers<[1], [0], [0], [1], [0, 0, 1, 1], [], []>} : vector<16x32xf32>, vector<32x8xf32>, vector<16x8xf32> -> vector<16x8xf32>
    %c0_219 = arith.constant 0 : index
    %c1_220 = arith.constant 1 : index
    %c0_221 = arith.constant 0 : index
    %c0_222 = arith.constant 0 : index
    %244 = vector.load %arg17[%c0_219, %c1_220, %c0_221, %c0_222] : memref<1x4x1x8xf32, #tpu.memory_space<vmem>>, vector<1x1x1x8xf32>
    %245 = vector.shape_cast %244 : vector<1x1x1x8xf32> to vector<1x8xf32>
    %246 = vector.broadcast %245 : vector<1x8xf32> to vector<16x8xf32>
    %247 = arith.addf %243, %246 : vector<16x8xf32>
    %cst_223 = arith.constant 0.353553385 : f32
    %248 = vector.broadcast %cst_223 : f32 to vector<8x8xf32>
    %249 = arith.mulf %233, %248 : vector<8x8xf32>
    %cst_224 = arith.constant dense<0.000000e+00> : vector<8x16xf32>
    %250 = tpu.matmul %249, %240, %cst_224 {dimension_numbers = #tpu.dot_dimension_numbers<[1], [1], [0], [0], [0, 0, 1, 0], [], []>} : vector<8x8xf32>, vector<16x8xf32>, vector<8x16xf32> -> vector<8x16xf32>
    %cst_225 = arith.constant dense<0xFF800000> : vector<8xf32>
    %251 = vector.multi_reduction <maximumf>, %250, %cst_225 [1] : vector<8x16xf32> to vector<8xf32>
    %252 = vector.shape_cast %251 : vector<8xf32> to vector<8x1xf32>
    %253 = vector.broadcast %252 : vector<8x1xf32> to vector<8x16xf32>
    %254 = arith.subf %250, %253 : vector<8x16xf32>
    %255 = math.exp %254 : vector<8x16xf32>
    %cst_226 = arith.constant dense<0.000000e+00> : vector<8xf32>
    %256 = vector.multi_reduction <add>, %255, %cst_226 [1] : vector<8x16xf32> to vector<8xf32>
    %257 = vector.shape_cast %256 : vector<8xf32> to vector<8x1xf32>
    %258 = tpu.reciprocal %257 {approx = true} : vector<8x1xf32> -> vector<8x1xf32>
    %259 = vector.broadcast %258 : vector<8x1xf32> to vector<8x16xf32>
    %260 = arith.mulf %255, %259 : vector<8x16xf32>
    %cst_227 = arith.constant dense<0.000000e+00> : vector<8x8xf32>
    %261 = tpu.matmul %260, %247, %cst_227 {dimension_numbers = #tpu.dot_dimension_numbers<[1], [0], [0], [1], [0, 0, 1, 1], [], []>} : vector<8x16xf32>, vector<16x8xf32>, vector<8x8xf32> -> vector<8x8xf32>
    %c0_228 = arith.constant 0 : index
    %c1_229 = arith.constant 1 : index
    %c0_230 = arith.constant 0 : index
    %c0_231 = arith.constant 0 : index
    %262 = vector.load %arg18[%c0_228, %c1_229, %c0_230, %c0_231] : memref<1x4x8x32xf32, #tpu.memory_space<vmem>>, vector<1x1x8x32xf32>
    %263 = vector.shape_cast %262 : vector<1x1x8x32xf32> to vector<8x32xf32>
    %cst_232 = arith.constant dense<0.000000e+00> : vector<8x32xf32>
    %264 = tpu.matmul %261, %263, %cst_232 {dimension_numbers = #tpu.dot_dimension_numbers<[1], [0], [0], [1], [0, 0, 1, 1], [], []>} : vector<8x8xf32>, vector<8x32xf32>, vector<8x32xf32> -> vector<8x32xf32>
    %265 = arith.addf %226, %264 : vector<8x32xf32>
    %c0_233 = arith.constant 0 : index
    %c2_234 = arith.constant 2 : index
    %c0_235 = arith.constant 0 : index
    %c0_236 = arith.constant 0 : index
    %266 = vector.load %arg12[%c0_233, %c2_234, %c0_235, %c0_236] : memref<1x4x32x8xf32, #tpu.memory_space<vmem>>, vector<1x1x32x8xf32>
    %267 = vector.shape_cast %266 : vector<1x1x32x8xf32> to vector<32x8xf32>
    %cst_237 = arith.constant dense<0.000000e+00> : vector<8x8xf32>
    %268 = tpu.matmul %188, %267, %cst_237 {dimension_numbers = #tpu.dot_dimension_numbers<[1], [0], [0], [1], [0, 0, 1, 1], [], []>} : vector<8x32xf32>, vector<32x8xf32>, vector<8x8xf32> -> vector<8x8xf32>
    %c0_238 = arith.constant 0 : index
    %c2_239 = arith.constant 2 : index
    %c0_240 = arith.constant 0 : index
    %c0_241 = arith.constant 0 : index
    %269 = vector.load %arg15[%c0_238, %c2_239, %c0_240, %c0_241] : memref<1x4x1x8xf32, #tpu.memory_space<vmem>>, vector<1x1x1x8xf32>
    %270 = vector.shape_cast %269 : vector<1x1x1x8xf32> to vector<1x8xf32>
    %271 = vector.broadcast %270 : vector<1x8xf32> to vector<8x8xf32>
    %272 = arith.addf %268, %271 : vector<8x8xf32>
    %c0_242 = arith.constant 0 : index
    %c2_243 = arith.constant 2 : index
    %c0_244 = arith.constant 0 : index
    %c0_245 = arith.constant 0 : index
    %273 = vector.load %arg13[%c0_242, %c2_243, %c0_244, %c0_245] : memref<1x4x32x8xf32, #tpu.memory_space<vmem>>, vector<1x1x32x8xf32>
    %274 = vector.shape_cast %273 : vector<1x1x32x8xf32> to vector<32x8xf32>
    %cst_246 = arith.constant dense<0.000000e+00> : vector<16x8xf32>
    %275 = tpu.matmul %4, %274, %cst_246 {dimension_numbers = #tpu.dot_dimension_numbers<[1], [0], [0], [1], [0, 0, 1, 1], [], []>} : vector<16x32xf32>, vector<32x8xf32>, vector<16x8xf32> -> vector<16x8xf32>
    %c0_247 = arith.constant 0 : index
    %c2_248 = arith.constant 2 : index
    %c0_249 = arith.constant 0 : index
    %c0_250 = arith.constant 0 : index
    %276 = vector.load %arg16[%c0_247, %c2_248, %c0_249, %c0_250] : memref<1x4x1x8xf32, #tpu.memory_space<vmem>>, vector<1x1x1x8xf32>
    %277 = vector.shape_cast %276 : vector<1x1x1x8xf32> to vector<1x8xf32>
    %278 = vector.broadcast %277 : vector<1x8xf32> to vector<16x8xf32>
    %279 = arith.addf %275, %278 : vector<16x8xf32>
    %c0_251 = arith.constant 0 : index
    %c2_252 = arith.constant 2 : index
    %c0_253 = arith.constant 0 : index
    %c0_254 = arith.constant 0 : index
    %280 = vector.load %arg14[%c0_251, %c2_252, %c0_253, %c0_254] : memref<1x4x32x8xf32, #tpu.memory_space<vmem>>, vector<1x1x32x8xf32>
    %281 = vector.shape_cast %280 : vector<1x1x32x8xf32> to vector<32x8xf32>
    %cst_255 = arith.constant dense<0.000000e+00> : vector<16x8xf32>
    %282 = tpu.matmul %4, %281, %cst_255 {dimension_numbers = #tpu.dot_dimension_numbers<[1], [0], [0], [1], [0, 0, 1, 1], [], []>} : vector<16x32xf32>, vector<32x8xf32>, vector<16x8xf32> -> vector<16x8xf32>
    %c0_256 = arith.constant 0 : index
    %c2_257 = arith.constant 2 : index
    %c0_258 = arith.constant 0 : index
    %c0_259 = arith.constant 0 : index
    %283 = vector.load %arg17[%c0_256, %c2_257, %c0_258, %c0_259] : memref<1x4x1x8xf32, #tpu.memory_space<vmem>>, vector<1x1x1x8xf32>
    %284 = vector.shape_cast %283 : vector<1x1x1x8xf32> to vector<1x8xf32>
    %285 = vector.broadcast %284 : vector<1x8xf32> to vector<16x8xf32>
    %286 = arith.addf %282, %285 : vector<16x8xf32>
    %cst_260 = arith.constant 0.353553385 : f32
    %287 = vector.broadcast %cst_260 : f32 to vector<8x8xf32>
    %288 = arith.mulf %272, %287 : vector<8x8xf32>
    %cst_261 = arith.constant dense<0.000000e+00> : vector<8x16xf32>
    %289 = tpu.matmul %288, %279, %cst_261 {dimension_numbers = #tpu.dot_dimension_numbers<[1], [1], [0], [0], [0, 0, 1, 0], [], []>} : vector<8x8xf32>, vector<16x8xf32>, vector<8x16xf32> -> vector<8x16xf32>
    %cst_262 = arith.constant dense<0xFF800000> : vector<8xf32>
    %290 = vector.multi_reduction <maximumf>, %289, %cst_262 [1] : vector<8x16xf32> to vector<8xf32>
    %291 = vector.shape_cast %290 : vector<8xf32> to vector<8x1xf32>
    %292 = vector.broadcast %291 : vector<8x1xf32> to vector<8x16xf32>
    %293 = arith.subf %289, %292 : vector<8x16xf32>
    %294 = math.exp %293 : vector<8x16xf32>
    %cst_263 = arith.constant dense<0.000000e+00> : vector<8xf32>
    %295 = vector.multi_reduction <add>, %294, %cst_263 [1] : vector<8x16xf32> to vector<8xf32>
    %296 = vector.shape_cast %295 : vector<8xf32> to vector<8x1xf32>
    %297 = tpu.reciprocal %296 {approx = true} : vector<8x1xf32> -> vector<8x1xf32>
    %298 = vector.broadcast %297 : vector<8x1xf32> to vector<8x16xf32>
    %299 = arith.mulf %294, %298 : vector<8x16xf32>
    %cst_264 = arith.constant dense<0.000000e+00> : vector<8x8xf32>
    %300 = tpu.matmul %299, %286, %cst_264 {dimension_numbers = #tpu.dot_dimension_numbers<[1], [0], [0], [1], [0, 0, 1, 1], [], []>} : vector<8x16xf32>, vector<16x8xf32>, vector<8x8xf32> -> vector<8x8xf32>
    %c0_265 = arith.constant 0 : index
    %c2_266 = arith.constant 2 : index
    %c0_267 = arith.constant 0 : index
    %c0_268 = arith.constant 0 : index
    %301 = vector.load %arg18[%c0_265, %c2_266, %c0_267, %c0_268] : memref<1x4x8x32xf32, #tpu.memory_space<vmem>>, vector<1x1x8x32xf32>
    %302 = vector.shape_cast %301 : vector<1x1x8x32xf32> to vector<8x32xf32>
    %cst_269 = arith.constant dense<0.000000e+00> : vector<8x32xf32>
    %303 = tpu.matmul %300, %302, %cst_269 {dimension_numbers = #tpu.dot_dimension_numbers<[1], [0], [0], [1], [0, 0, 1, 1], [], []>} : vector<8x8xf32>, vector<8x32xf32>, vector<8x32xf32> -> vector<8x32xf32>
    %304 = arith.addf %265, %303 : vector<8x32xf32>
    %c0_270 = arith.constant 0 : index
    %c3_271 = arith.constant 3 : index
    %c0_272 = arith.constant 0 : index
    %c0_273 = arith.constant 0 : index
    %305 = vector.load %arg12[%c0_270, %c3_271, %c0_272, %c0_273] : memref<1x4x32x8xf32, #tpu.memory_space<vmem>>, vector<1x1x32x8xf32>
    %306 = vector.shape_cast %305 : vector<1x1x32x8xf32> to vector<32x8xf32>
    %cst_274 = arith.constant dense<0.000000e+00> : vector<8x8xf32>
    %307 = tpu.matmul %188, %306, %cst_274 {dimension_numbers = #tpu.dot_dimension_numbers<[1], [0], [0], [1], [0, 0, 1, 1], [], []>} : vector<8x32xf32>, vector<32x8xf32>, vector<8x8xf32> -> vector<8x8xf32>
    %c0_275 = arith.constant 0 : index
    %c3_276 = arith.constant 3 : index
    %c0_277 = arith.constant 0 : index
    %c0_278 = arith.constant 0 : index
    %308 = vector.load %arg15[%c0_275, %c3_276, %c0_277, %c0_278] : memref<1x4x1x8xf32, #tpu.memory_space<vmem>>, vector<1x1x1x8xf32>
    %309 = vector.shape_cast %308 : vector<1x1x1x8xf32> to vector<1x8xf32>
    %310 = vector.broadcast %309 : vector<1x8xf32> to vector<8x8xf32>
    %311 = arith.addf %307, %310 : vector<8x8xf32>
    %c0_279 = arith.constant 0 : index
    %c3_280 = arith.constant 3 : index
    %c0_281 = arith.constant 0 : index
    %c0_282 = arith.constant 0 : index
    %312 = vector.load %arg13[%c0_279, %c3_280, %c0_281, %c0_282] : memref<1x4x32x8xf32, #tpu.memory_space<vmem>>, vector<1x1x32x8xf32>
    %313 = vector.shape_cast %312 : vector<1x1x32x8xf32> to vector<32x8xf32>
    %cst_283 = arith.constant dense<0.000000e+00> : vector<16x8xf32>
    %314 = tpu.matmul %4, %313, %cst_283 {dimension_numbers = #tpu.dot_dimension_numbers<[1], [0], [0], [1], [0, 0, 1, 1], [], []>} : vector<16x32xf32>, vector<32x8xf32>, vector<16x8xf32> -> vector<16x8xf32>
    %c0_284 = arith.constant 0 : index
    %c3_285 = arith.constant 3 : index
    %c0_286 = arith.constant 0 : index
    %c0_287 = arith.constant 0 : index
    %315 = vector.load %arg16[%c0_284, %c3_285, %c0_286, %c0_287] : memref<1x4x1x8xf32, #tpu.memory_space<vmem>>, vector<1x1x1x8xf32>
    %316 = vector.shape_cast %315 : vector<1x1x1x8xf32> to vector<1x8xf32>
    %317 = vector.broadcast %316 : vector<1x8xf32> to vector<16x8xf32>
    %318 = arith.addf %314, %317 : vector<16x8xf32>
    %c0_288 = arith.constant 0 : index
    %c3_289 = arith.constant 3 : index
    %c0_290 = arith.constant 0 : index
    %c0_291 = arith.constant 0 : index
    %319 = vector.load %arg14[%c0_288, %c3_289, %c0_290, %c0_291] : memref<1x4x32x8xf32, #tpu.memory_space<vmem>>, vector<1x1x32x8xf32>
    %320 = vector.shape_cast %319 : vector<1x1x32x8xf32> to vector<32x8xf32>
    %cst_292 = arith.constant dense<0.000000e+00> : vector<16x8xf32>
    %321 = tpu.matmul %4, %320, %cst_292 {dimension_numbers = #tpu.dot_dimension_numbers<[1], [0], [0], [1], [0, 0, 1, 1], [], []>} : vector<16x32xf32>, vector<32x8xf32>, vector<16x8xf32> -> vector<16x8xf32>
    %c0_293 = arith.constant 0 : index
    %c3_294 = arith.constant 3 : index
    %c0_295 = arith.constant 0 : index
    %c0_296 = arith.constant 0 : index
    %322 = vector.load %arg17[%c0_293, %c3_294, %c0_295, %c0_296] : memref<1x4x1x8xf32, #tpu.memory_space<vmem>>, vector<1x1x1x8xf32>
    %323 = vector.shape_cast %322 : vector<1x1x1x8xf32> to vector<1x8xf32>
    %324 = vector.broadcast %323 : vector<1x8xf32> to vector<16x8xf32>
    %325 = arith.addf %321, %324 : vector<16x8xf32>
    %cst_297 = arith.constant 0.353553385 : f32
    %326 = vector.broadcast %cst_297 : f32 to vector<8x8xf32>
    %327 = arith.mulf %311, %326 : vector<8x8xf32>
    %cst_298 = arith.constant dense<0.000000e+00> : vector<8x16xf32>
    %328 = tpu.matmul %327, %318, %cst_298 {dimension_numbers = #tpu.dot_dimension_numbers<[1], [1], [0], [0], [0, 0, 1, 0], [], []>} : vector<8x8xf32>, vector<16x8xf32>, vector<8x16xf32> -> vector<8x16xf32>
    %cst_299 = arith.constant dense<0xFF800000> : vector<8xf32>
    %329 = vector.multi_reduction <maximumf>, %328, %cst_299 [1] : vector<8x16xf32> to vector<8xf32>
    %330 = vector.shape_cast %329 : vector<8xf32> to vector<8x1xf32>
    %331 = vector.broadcast %330 : vector<8x1xf32> to vector<8x16xf32>
    %332 = arith.subf %328, %331 : vector<8x16xf32>
    %333 = math.exp %332 : vector<8x16xf32>
    %cst_300 = arith.constant dense<0.000000e+00> : vector<8xf32>
    %334 = vector.multi_reduction <add>, %333, %cst_300 [1] : vector<8x16xf32> to vector<8xf32>
    %335 = vector.shape_cast %334 : vector<8xf32> to vector<8x1xf32>
    %336 = tpu.reciprocal %335 {approx = true} : vector<8x1xf32> -> vector<8x1xf32>
    %337 = vector.broadcast %336 : vector<8x1xf32> to vector<8x16xf32>
    %338 = arith.mulf %333, %337 : vector<8x16xf32>
    %cst_301 = arith.constant dense<0.000000e+00> : vector<8x8xf32>
    %339 = tpu.matmul %338, %325, %cst_301 {dimension_numbers = #tpu.dot_dimension_numbers<[1], [0], [0], [1], [0, 0, 1, 1], [], []>} : vector<8x16xf32>, vector<16x8xf32>, vector<8x8xf32> -> vector<8x8xf32>
    %c0_302 = arith.constant 0 : index
    %c3_303 = arith.constant 3 : index
    %c0_304 = arith.constant 0 : index
    %c0_305 = arith.constant 0 : index
    %340 = vector.load %arg18[%c0_302, %c3_303, %c0_304, %c0_305] : memref<1x4x8x32xf32, #tpu.memory_space<vmem>>, vector<1x1x8x32xf32>
    %341 = vector.shape_cast %340 : vector<1x1x8x32xf32> to vector<8x32xf32>
    %cst_306 = arith.constant dense<0.000000e+00> : vector<8x32xf32>
    %342 = tpu.matmul %339, %341, %cst_306 {dimension_numbers = #tpu.dot_dimension_numbers<[1], [0], [0], [1], [0, 0, 1, 1], [], []>} : vector<8x8xf32>, vector<8x32xf32>, vector<8x32xf32> -> vector<8x32xf32>
    %343 = arith.addf %304, %342 : vector<8x32xf32>
    %c0_307 = arith.constant 0 : index
    %c0_308 = arith.constant 0 : index
    %c0_309 = arith.constant 0 : index
    %344 = vector.load %arg19[%c0_307, %c0_308, %c0_309] : memref<1x1x32xf32, #tpu.memory_space<vmem>>, vector<1x1x32xf32>
    %345 = vector.shape_cast %344 : vector<1x1x32xf32> to vector<1x32xf32>
    %346 = vector.broadcast %345 : vector<1x32xf32> to vector<8x32xf32>
    %347 = arith.addf %343, %346 : vector<8x32xf32>
    %c0_310 = arith.constant 0 : index
    %c0_311 = arith.constant 0 : index
    %c0_312 = arith.constant 0 : index
    %348 = vector.load %arg20[%c0_310, %c0_311, %c0_312] : memref<1x2x32xf32, #tpu.memory_space<vmem>>, vector<1x2x32xf32>
    %349 = vector.shape_cast %348 : vector<1x2x32xf32> to vector<2x32xf32>
    %350 = arith.addf %347, %188 : vector<8x32xf32>
    %351 = vector.extract_strided_slice %349 {offsets = [0, 0], sizes = [1, 32], strides = [1, 1]} : vector<2x32xf32> to vector<1x32xf32>
    %352 = vector.extract_strided_slice %349 {offsets = [1, 0], sizes = [1, 32], strides = [1, 1]} : vector<2x32xf32> to vector<1x32xf32>
    %cst_313 = arith.constant dense<0.000000e+00> : vector<8xf32>
    %353 = vector.multi_reduction <add>, %350, %cst_313 [1] : vector<8x32xf32> to vector<8xf32>
    %354 = vector.shape_cast %353 : vector<8xf32> to vector<8x1xf32>
    %cst_314 = arith.constant 3.200000e+01 : f32
    %355 = vector.broadcast %cst_314 : f32 to vector<8x1xf32>
    %356 = arith.divf %354, %355 : vector<8x1xf32>
    %357 = vector.broadcast %356 : vector<8x1xf32> to vector<8x32xf32>
    %358 = arith.subf %350, %357 : vector<8x32xf32>
    %359 = arith.mulf %358, %358 : vector<8x32xf32>
    %cst_315 = arith.constant dense<0.000000e+00> : vector<8xf32>
    %360 = vector.multi_reduction <add>, %359, %cst_315 [1] : vector<8x32xf32> to vector<8xf32>
    %361 = vector.shape_cast %360 : vector<8xf32> to vector<8x1xf32>
    %cst_316 = arith.constant 3.200000e+01 : f32
    %362 = vector.broadcast %cst_316 : f32 to vector<8x1xf32>
    %363 = arith.divf %361, %362 : vector<8x1xf32>
    %cst_317 = arith.constant 9.99999974E-6 : f32
    %364 = vector.broadcast %cst_317 : f32 to vector<8x1xf32>
    %365 = arith.addf %363, %364 : vector<8x1xf32>
    %366 = math.rsqrt %365 : vector<8x1xf32>
    %367 = vector.broadcast %366 : vector<8x1xf32> to vector<8x32xf32>
    %368 = arith.mulf %358, %367 : vector<8x32xf32>
    %369 = vector.broadcast %351 : vector<1x32xf32> to vector<8x32xf32>
    %370 = arith.mulf %368, %369 : vector<8x32xf32>
    %371 = vector.broadcast %352 : vector<1x32xf32> to vector<8x32xf32>
    %372 = arith.addf %370, %371 : vector<8x32xf32>
    %c0_318 = arith.constant 0 : index
    %c0_319 = arith.constant 0 : index
    %c0_320 = arith.constant 0 : index
    %373 = vector.load %arg21[%c0_318, %c0_319, %c0_320] : memref<1x32x64xf32, #tpu.memory_space<vmem>>, vector<1x32x64xf32>
    %374 = vector.shape_cast %373 : vector<1x32x64xf32> to vector<32x64xf32>
    %cst_321 = arith.constant dense<0.000000e+00> : vector<8x64xf32>
    %375 = tpu.matmul %372, %374, %cst_321 {dimension_numbers = #tpu.dot_dimension_numbers<[1], [0], [0], [1], [0, 0, 1, 1], [], []>} : vector<8x32xf32>, vector<32x64xf32>, vector<8x64xf32> -> vector<8x64xf32>
    %c0_322 = arith.constant 0 : index
    %c0_323 = arith.constant 0 : index
    %c0_324 = arith.constant 0 : index
    %376 = vector.load %arg22[%c0_322, %c0_323, %c0_324] : memref<1x1x64xf32, #tpu.memory_space<vmem>>, vector<1x1x64xf32>
    %377 = vector.shape_cast %376 : vector<1x1x64xf32> to vector<1x64xf32>
    %378 = vector.broadcast %377 : vector<1x64xf32> to vector<8x64xf32>
    %379 = arith.addf %375, %378 : vector<8x64xf32>
    %cst_325 = arith.constant 0.000000e+00 : f32
    %380 = vector.broadcast %cst_325 : f32 to vector<8x64xf32>
    %381 = arith.maximumf %379, %380 : vector<8x64xf32>
    %c0_326 = arith.constant 0 : index
    %c0_327 = arith.constant 0 : index
    %c0_328 = arith.constant 0 : index
    %382 = vector.load %arg23[%c0_326, %c0_327, %c0_328] : memref<1x64x32xf32, #tpu.memory_space<vmem>>, vector<1x64x32xf32>
    %383 = vector.shape_cast %382 : vector<1x64x32xf32> to vector<64x32xf32>
    %cst_329 = arith.constant dense<0.000000e+00> : vector<8x32xf32>
    %384 = tpu.matmul %381, %383, %cst_329 {dimension_numbers = #tpu.dot_dimension_numbers<[1], [0], [0], [1], [0, 0, 1, 1], [], []>} : vector<8x64xf32>, vector<64x32xf32>, vector<8x32xf32> -> vector<8x32xf32>
    %c0_330 = arith.constant 0 : index
    %c0_331 = arith.constant 0 : index
    %c0_332 = arith.constant 0 : index
    %385 = vector.load %arg24[%c0_330, %c0_331, %c0_332] : memref<1x1x32xf32, #tpu.memory_space<vmem>>, vector<1x1x32xf32>
    %386 = vector.shape_cast %385 : vector<1x1x32xf32> to vector<1x32xf32>
    %387 = vector.broadcast %386 : vector<1x32xf32> to vector<8x32xf32>
    %388 = arith.addf %384, %387 : vector<8x32xf32>
    %c0_333 = arith.constant 0 : index
    %c0_334 = arith.constant 0 : index
    %c0_335 = arith.constant 0 : index
    %389 = vector.load %arg25[%c0_333, %c0_334, %c0_335] : memref<1x2x32xf32, #tpu.memory_space<vmem>>, vector<1x2x32xf32>
    %390 = vector.shape_cast %389 : vector<1x2x32xf32> to vector<2x32xf32>
    %391 = arith.addf %388, %372 : vector<8x32xf32>
    %392 = vector.extract_strided_slice %390 {offsets = [0, 0], sizes = [1, 32], strides = [1, 1]} : vector<2x32xf32> to vector<1x32xf32>
    %393 = vector.extract_strided_slice %390 {offsets = [1, 0], sizes = [1, 32], strides = [1, 1]} : vector<2x32xf32> to vector<1x32xf32>
    %cst_336 = arith.constant dense<0.000000e+00> : vector<8xf32>
    %394 = vector.multi_reduction <add>, %391, %cst_336 [1] : vector<8x32xf32> to vector<8xf32>
    %395 = vector.shape_cast %394 : vector<8xf32> to vector<8x1xf32>
    %cst_337 = arith.constant 3.200000e+01 : f32
    %396 = vector.broadcast %cst_337 : f32 to vector<8x1xf32>
    %397 = arith.divf %395, %396 : vector<8x1xf32>
    %398 = vector.broadcast %397 : vector<8x1xf32> to vector<8x32xf32>
    %399 = arith.subf %391, %398 : vector<8x32xf32>
    %400 = arith.mulf %399, %399 : vector<8x32xf32>
    %cst_338 = arith.constant dense<0.000000e+00> : vector<8xf32>
    %401 = vector.multi_reduction <add>, %400, %cst_338 [1] : vector<8x32xf32> to vector<8xf32>
    %402 = vector.shape_cast %401 : vector<8xf32> to vector<8x1xf32>
    %cst_339 = arith.constant 3.200000e+01 : f32
    %403 = vector.broadcast %cst_339 : f32 to vector<8x1xf32>
    %404 = arith.divf %402, %403 : vector<8x1xf32>
    %cst_340 = arith.constant 9.99999974E-6 : f32
    %405 = vector.broadcast %cst_340 : f32 to vector<8x1xf32>
    %406 = arith.addf %404, %405 : vector<8x1xf32>
    %407 = math.rsqrt %406 : vector<8x1xf32>
    %408 = vector.broadcast %407 : vector<8x1xf32> to vector<8x32xf32>
    %409 = arith.mulf %399, %408 : vector<8x32xf32>
    %410 = vector.broadcast %392 : vector<1x32xf32> to vector<8x32xf32>
    %411 = arith.mulf %409, %410 : vector<8x32xf32>
    %412 = vector.broadcast %393 : vector<1x32xf32> to vector<8x32xf32>
    %413 = arith.addf %411, %412 : vector<8x32xf32>
    %c0_341 = arith.constant 0 : index
    %c0_342 = arith.constant 0 : index
    %414 = vector.load %arg32[%c0_341, %c0_342] : memref<8x32xf32, #tpu.memory_space<vmem>>, vector<8x32xf32>
    tpu.vector_store %arg32[%c0_341, %c0_342], %413 {strides = array<i32>} : memref<8x32xf32, #tpu.memory_space<vmem>>, vector<8x32xf32>,
    %c5_i32 = arith.constant 5 : i32
    %415 = arith.cmpi eq, %arg0, %c5_i32 : i32
    %416 = arith.extui %415 : i1 to i32
    %c0_i32_343 = arith.constant 0 : i32
    %417 = arith.cmpi ne, %416, %c0_i32_343 : i32
    scf.if %417 {
      %c0_344 = arith.constant 0 : index
      %c0_345 = arith.constant 0 : index
      %418 = vector.load %arg26[%c0_344, %c0_345] : memref<2x32xf32, #tpu.memory_space<vmem>>, vector<2x32xf32>
      %419 = vector.extract_strided_slice %418 {offsets = [0, 0], sizes = [1, 32], strides = [1, 1]} : vector<2x32xf32> to vector<1x32xf32>
      %420 = vector.extract_strided_slice %418 {offsets = [1, 0], sizes = [1, 32], strides = [1, 1]} : vector<2x32xf32> to vector<1x32xf32>
      %cst_346 = arith.constant dense<0.000000e+00> : vector<8xf32>
      %421 = vector.multi_reduction <add>, %413, %cst_346 [1] : vector<8x32xf32> to vector<8xf32>
      %422 = vector.shape_cast %421 : vector<8xf32> to vector<8x1xf32>
      %cst_347 = arith.constant 3.200000e+01 : f32
      %423 = vector.broadcast %cst_347 : f32 to vector<8x1xf32>
      %424 = arith.divf %422, %423 : vector<8x1xf32>
      %425 = vector.broadcast %424 : vector<8x1xf32> to vector<8x32xf32>
      %426 = arith.subf %413, %425 : vector<8x32xf32>
      %427 = arith.mulf %426, %426 : vector<8x32xf32>
      %cst_348 = arith.constant dense<0.000000e+00> : vector<8xf32>
      %428 = vector.multi_reduction <add>, %427, %cst_348 [1] : vector<8x32xf32> to vector<8xf32>
      %429 = vector.shape_cast %428 : vector<8xf32> to vector<8x1xf32>
      %cst_349 = arith.constant 3.200000e+01 : f32
      %430 = vector.broadcast %cst_349 : f32 to vector<8x1xf32>
      %431 = arith.divf %429, %430 : vector<8x1xf32>
      %cst_350 = arith.constant 9.99999974E-6 : f32
      %432 = vector.broadcast %cst_350 : f32 to vector<8x1xf32>
      %433 = arith.addf %431, %432 : vector<8x1xf32>
      %434 = math.rsqrt %433 : vector<8x1xf32>
      %435 = vector.broadcast %434 : vector<8x1xf32> to vector<8x32xf32>
      %436 = arith.mulf %426, %435 : vector<8x32xf32>
      %437 = vector.broadcast %419 : vector<1x32xf32> to vector<8x32xf32>
      %438 = arith.mulf %436, %437 : vector<8x32xf32>
      %439 = vector.broadcast %420 : vector<1x32xf32> to vector<8x32xf32>
      %440 = arith.addf %438, %439 : vector<8x32xf32>
      %c0_351 = arith.constant 0 : index
      %c0_352 = arith.constant 0 : index
      %441 = vector.load %arg27[%c0_351, %c0_352] : memref<32x64xf32, #tpu.memory_space<vmem>>, vector<32x64xf32>
      %cst_353 = arith.constant dense<0.000000e+00> : vector<8x64xf32>
      %442 = tpu.matmul %440, %441, %cst_353 {dimension_numbers = #tpu.dot_dimension_numbers<[1], [0], [0], [1], [0, 0, 1, 1], [], []>} : vector<8x32xf32>, vector<32x64xf32>, vector<8x64xf32> -> vector<8x64xf32>
      %c0_354 = arith.constant 0 : index
      %c0_355 = arith.constant 0 : index
      %443 = vector.load %arg28[%c0_354, %c0_355] : memref<1x64xf32, #tpu.memory_space<vmem>>, vector<1x64xf32>
      %444 = vector.broadcast %443 : vector<1x64xf32> to vector<8x64xf32>
      %445 = arith.addf %442, %444 : vector<8x64xf32>
      %cst_356 = arith.constant 0.000000e+00 : f32
      %446 = vector.broadcast %cst_356 : f32 to vector<8x64xf32>
      %447 = arith.cmpf oge, %445, %446 : vector<8x64xf32>
      %cst_357 = arith.constant 0.00999999977 : f32
      %448 = vector.broadcast %cst_357 : f32 to vector<8x64xf32>
      %449 = arith.mulf %448, %445 : vector<8x64xf32>
      %450 = arith.select %447, %445, %449 : vector<8x64xi1>, vector<8x64xf32>
      %c0_358 = arith.constant 0 : index
      %c0_359 = arith.constant 0 : index
      %451 = vector.load %arg29[%c0_358, %c0_359] : memref<64x3xf32, #tpu.memory_space<vmem>>, vector<64x3xf32>
      %cst_360 = arith.constant dense<0.000000e+00> : vector<8x3xf32>
      %452 = tpu.matmul %450, %451, %cst_360 {dimension_numbers = #tpu.dot_dimension_numbers<[1], [0], [0], [1], [0, 0, 1, 1], [], []>} : vector<8x64xf32>, vector<64x3xf32>, vector<8x3xf32> -> vector<8x3xf32>
      %c0_361 = arith.constant 0 : index
      %c0_362 = arith.constant 0 : index
      %453 = vector.load %arg30[%c0_361, %c0_362] : memref<1x3xf32, #tpu.memory_space<vmem>>, vector<1x3xf32>
      %454 = vector.broadcast %453 : vector<1x3xf32> to vector<8x3xf32>
      %455 = arith.addf %452, %454 : vector<8x3xf32>
      %c0_363 = arith.constant 0 : index
      %c0_364 = arith.constant 0 : index
      %456 = vector.load %arg31[%c0_363, %c0_364] : memref<8x3xf32, #tpu.memory_space<vmem>>, vector<8x3xf32>
      tpu.vector_store %arg31[%c0_363, %c0_364], %455 {strides = array<i32>} : memref<8x3xf32, #tpu.memory_space<vmem>>, vector<8x3xf32>,
    } else {
    }
    return
  }
  func.func @transform_0(%arg0: i32) -> (i32, i32) {
    %c0_i32 = arith.constant 0 : i32
    %c0_i32_0 = arith.constant 0 : i32
    %c0_i32_1 = arith.constant 0 : i32
    return %c0_i32, %c0_i32_0 : i32, i32
  }
  func.func @transform_1(%arg0: i32) -> (i32, i32) {
    %c0_i32 = arith.constant 0 : i32
    %c0_i32_0 = arith.constant 0 : i32
    %c0_i32_1 = arith.constant 0 : i32
    return %c0_i32, %c0_i32_0 : i32, i32
  }
  func.func @transform_2(%arg0: i32) -> (i32, i32, i32, i32) {
    %c0_i32 = arith.constant 0 : i32
    %c0_i32_0 = arith.constant 0 : i32
    %c0_i32_1 = arith.constant 0 : i32
    %c0_i32_2 = arith.constant 0 : i32
    return %arg0, %c0_i32, %c0_i32_0, %c0_i32_1 : i32, i32, i32, i32
  }
  func.func @transform_3(%arg0: i32) -> (i32, i32, i32, i32) {
    %c0_i32 = arith.constant 0 : i32
    %c0_i32_0 = arith.constant 0 : i32
    %c0_i32_1 = arith.constant 0 : i32
    %c0_i32_2 = arith.constant 0 : i32
    return %arg0, %c0_i32, %c0_i32_0, %c0_i32_1 : i32, i32, i32, i32
  }
  func.func @transform_4(%arg0: i32) -> (i32, i32, i32, i32) {
    %c0_i32 = arith.constant 0 : i32
    %c0_i32_0 = arith.constant 0 : i32
    %c0_i32_1 = arith.constant 0 : i32
    %c0_i32_2 = arith.constant 0 : i32
    return %arg0, %c0_i32, %c0_i32_0, %c0_i32_1 : i32, i32, i32, i32
  }
  func.func @transform_5(%arg0: i32) -> (i32, i32, i32, i32) {
    %c0_i32 = arith.constant 0 : i32
    %c0_i32_0 = arith.constant 0 : i32
    %c0_i32_1 = arith.constant 0 : i32
    %c0_i32_2 = arith.constant 0 : i32
    return %arg0, %c0_i32, %c0_i32_0, %c0_i32_1 : i32, i32, i32, i32
  }
  func.func @transform_6(%arg0: i32) -> (i32, i32, i32, i32) {
    %c0_i32 = arith.constant 0 : i32
    %c0_i32_0 = arith.constant 0 : i32
    %c0_i32_1 = arith.constant 0 : i32
    %c0_i32_2 = arith.constant 0 : i32
    return %arg0, %c0_i32, %c0_i32_0, %c0_i32_1 : i32, i32, i32, i32
  }
  func.func @transform_7(%arg0: i32) -> (i32, i32, i32, i32) {
    %c0_i32 = arith.constant 0 : i32
    %c0_i32_0 = arith.constant 0 : i32
    %c0_i32_1 = arith.constant 0 : i32
    %c0_i32_2 = arith.constant 0 : i32
    return %arg0, %c0_i32, %c0_i32_0, %c0_i32_1 : i32, i32, i32, i32
  }
  func.func @transform_8(%arg0: i32) -> (i32, i32, i32, i32) {
    %c0_i32 = arith.constant 0 : i32
    %c0_i32_0 = arith.constant 0 : i32
    %c0_i32_1 = arith.constant 0 : i32
    %c0_i32_2 = arith.constant 0 : i32
    return %arg0, %c0_i32, %c0_i32_0, %c0_i32_1 : i32, i32, i32, i32
  }
  func.func @transform_9(%arg0: i32) -> (i32, i32, i32) {
    %c0_i32 = arith.constant 0 : i32
    %c0_i32_0 = arith.constant 0 : i32
    %c0_i32_1 = arith.constant 0 : i32
    return %arg0, %c0_i32, %c0_i32_0 : i32, i32, i32
  }
  func.func @transform_10(%arg0: i32) -> (i32, i32, i32) {
    %c0_i32 = arith.constant 0 : i32
    %c0_i32_0 = arith.constant 0 : i32
    %c0_i32_1 = arith.constant 0 : i32
    return %arg0, %c0_i32, %c0_i32_0 : i32, i32, i32
  }
  func.func @transform_11(%arg0: i32) -> (i32, i32, i32, i32) {
    %c0_i32 = arith.constant 0 : i32
    %c0_i32_0 = arith.constant 0 : i32
    %c0_i32_1 = arith.constant 0 : i32
    %c0_i32_2 = arith.constant 0 : i32
    return %arg0, %c0_i32, %c0_i32_0, %c0_i32_1 : i32, i32, i32, i32
  }
  func.func @transform_12(%arg0: i32) -> (i32, i32, i32, i32) {
    %c0_i32 = arith.constant 0 : i32
    %c0_i32_0 = arith.constant 0 : i32
    %c0_i32_1 = arith.constant 0 : i32
    %c0_i32_2 = arith.constant 0 : i32
    return %arg0, %c0_i32, %c0_i32_0, %c0_i32_1 : i32, i32, i32, i32
  }
  func.func @transform_13(%arg0: i32) -> (i32, i32, i32, i32) {
    %c0_i32 = arith.constant 0 : i32
    %c0_i32_0 = arith.constant 0 : i32
    %c0_i32_1 = arith.constant 0 : i32
    %c0_i32_2 = arith.constant 0 : i32
    return %arg0, %c0_i32, %c0_i32_0, %c0_i32_1 : i32, i32, i32, i32
  }
  func.func @transform_14(%arg0: i32) -> (i32, i32, i32, i32) {
    %c0_i32 = arith.constant 0 : i32
    %c0_i32_0 = arith.constant 0 : i32
    %c0_i32_1 = arith.constant 0 : i32
    %c0_i32_2 = arith.constant 0 : i32
    return %arg0, %c0_i32, %c0_i32_0, %c0_i32_1 : i32, i32, i32, i32
  }
  func.func @transform_15(%arg0: i32) -> (i32, i32, i32, i32) {
    %c0_i32 = arith.constant 0 : i32
    %c0_i32_0 = arith.constant 0 : i32
    %c0_i32_1 = arith.constant 0 : i32
    %c0_i32_2 = arith.constant 0 : i32
    return %arg0, %c0_i32, %c0_i32_0, %c0_i32_1 : i32, i32, i32, i32
  }
  func.func @transform_16(%arg0: i32) -> (i32, i32, i32, i32) {
    %c0_i32 = arith.constant 0 : i32
    %c0_i32_0 = arith.constant 0 : i32
    %c0_i32_1 = arith.constant 0 : i32
    %c0_i32_2 = arith.constant 0 : i32
    return %arg0, %c0_i32, %c0_i32_0, %c0_i32_1 : i32, i32, i32, i32
  }
  func.func @transform_17(%arg0: i32) -> (i32, i32, i32, i32) {
    %c0_i32 = arith.constant 0 : i32
    %c0_i32_0 = arith.constant 0 : i32
    %c0_i32_1 = arith.constant 0 : i32
    %c0_i32_2 = arith.constant 0 : i32
    return %arg0, %c0_i32, %c0_i32_0, %c0_i32_1 : i32, i32, i32, i32
  }
  func.func @transform_18(%arg0: i32) -> (i32, i32, i32) {
    %c0_i32 = arith.constant 0 : i32
    %c0_i32_0 = arith.constant 0 : i32
    %c0_i32_1 = arith.constant 0 : i32
    return %arg0, %c0_i32, %c0_i32_0 : i32, i32, i32
  }
  func.func @transform_19(%arg0: i32) -> (i32, i32, i32) {
    %c0_i32 = arith.constant 0 : i32
    %c0_i32_0 = arith.constant 0 : i32
    %c0_i32_1 = arith.constant 0 : i32
    return %arg0, %c0_i32, %c0_i32_0 : i32, i32, i32
  }
  func.func @transform_20(%arg0: i32) -> (i32, i32, i32) {
    %c0_i32 = arith.constant 0 : i32
    %c0_i32_0 = arith.constant 0 : i32
    %c0_i32_1 = arith.constant 0 : i32
    return %arg0, %c0_i32, %c0_i32_0 : i32, i32, i32
  }
  func.func @transform_21(%arg0: i32) -> (i32, i32, i32) {
    %c0_i32 = arith.constant 0 : i32
    %c0_i32_0 = arith.constant 0 : i32
    %c0_i32_1 = arith.constant 0 : i32
    return %arg0, %c0_i32, %c0_i32_0 : i32, i32, i32
  }
  func.func @transform_22(%arg0: i32) -> (i32, i32, i32) {
    %c0_i32 = arith.constant 0 : i32
    %c0_i32_0 = arith.constant 0 : i32
    %c0_i32_1 = arith.constant 0 : i32
    return %arg0, %c0_i32, %c0_i32_0 : i32, i32, i32
  }
  func.func @transform_23(%arg0: i32) -> (i32, i32, i32) {
    %c0_i32 = arith.constant 0 : i32
    %c0_i32_0 = arith.constant 0 : i32
    %c0_i32_1 = arith.constant 0 : i32
    return %arg0, %c0_i32, %c0_i32_0 : i32, i32, i32
  }
  func.func @transform_24(%arg0: i32) -> (i32, i32, i32) {
    %c0_i32 = arith.constant 0 : i32
    %c0_i32_0 = arith.constant 0 : i32
    %c0_i32_1 = arith.constant 0 : i32
    return %arg0, %c0_i32, %c0_i32_0 : i32, i32, i32
  }
  func.func @transform_25(%arg0: i32) -> (i32, i32) {
    %c0_i32 = arith.constant 0 : i32
    %c0_i32_0 = arith.constant 0 : i32
    %c0_i32_1 = arith.constant 0 : i32
    return %c0_i32, %c0_i32_0 : i32, i32
  }
  func.func @transform_26(%arg0: i32) -> (i32, i32) {
    %c0_i32 = arith.constant 0 : i32
    %c0_i32_0 = arith.constant 0 : i32
    %c0_i32_1 = arith.constant 0 : i32
    return %c0_i32, %c0_i32_0 : i32, i32
  }
  func.func @transform_27(%arg0: i32) -> (i32, i32) {
    %c0_i32 = arith.constant 0 : i32
    %c0_i32_0 = arith.constant 0 : i32
    %c0_i32_1 = arith.constant 0 : i32
    return %c0_i32, %c0_i32_0 : i32, i32
  }
  func.func @transform_28(%arg0: i32) -> (i32, i32) {
    %c0_i32 = arith.constant 0 : i32
    %c0_i32_0 = arith.constant 0 : i32
    %c0_i32_1 = arith.constant 0 : i32
    return %c0_i32, %c0_i32_0 : i32, i32
  }
  func.func @transform_29(%arg0: i32) -> (i32, i32) {
    %c0_i32 = arith.constant 0 : i32
    %c0_i32_0 = arith.constant 0 : i32
    %c0_i32_1 = arith.constant 0 : i32
    return %c0_i32, %c0_i32_0 : i32, i32
  }
  func.func @transform_30(%arg0: i32) -> (i32, i32) {
    %c0_i32 = arith.constant 0 : i32
    %c0_i32_0 = arith.constant 0 : i32
    %c0_i32_1 = arith.constant 0 : i32
    return %c0_i32, %c0_i32_0 : i32, i32
  }
}

</mosaic_0001>

<llo_original>
// kernel: d3g_pair_transformer_px_forward.2
$region0: #{d3g_pair_transformer_px_forward.2}
  #allocation0 [shape = 'u32[]', space=smem, size = 0x4, offset = 0x4, fixed_abs, tag = 'smem constant byte address 0x4 - core index']
  #allocation1 [shape = 'u32[144,128]{1,0:T(1,128)}', space=vmem, size = 0x12000, scoped, tag = 'internal scratch']
  #allocation2 [shape = 'f32[16,32]{1,0:T(8,128)}', space=vmem, size = 0x2000, scoped, tag = 'scratch operand']
  %s0 = inlined_call_operand.vmem [shape: f32[16,32], index: 0, kind: input, shape index: {}]
  %s1 = inlined_call_operand.vmem [shape: f32[6,4,32,8], index: 1, kind: input, shape index: {}]
  %s2 = inlined_call_operand.vmem [shape: f32[6,4,32,8], index: 2, kind: input, shape index: {}]
  %s3 = inlined_call_operand.vmem [shape: f32[6,4,32,8], index: 3, kind: input, shape index: {}]
  %s4 = inlined_call_operand.vmem [shape: f32[6,4,1,8], index: 4, kind: input, shape index: {}]
  %s5 = inlined_call_operand.vmem [shape: f32[6,4,1,8], index: 5, kind: input, shape index: {}]
  %s6 = inlined_call_operand.vmem [shape: f32[6,4,1,8], index: 6, kind: input, shape index: {}]
  %s7 = inlined_call_operand.vmem [shape: f32[6,4,8,32], index: 7, kind: input, shape index: {}]
  %s8 = inlined_call_operand.vmem [shape: f32[6,1,32], index: 8, kind: input, shape index: {}]
  %s9 = inlined_call_operand.vmem [shape: f32[6,2,32], index: 9, kind: input, shape index: {}]
  %s10 = inlined_call_operand.vmem [shape: f32[6,32,64], index: 10, kind: input, shape index: {}]
  %s11 = inlined_call_operand.vmem [shape: f32[6,1,64], index: 11, kind: input, shape index: {}]
  %s12 = inlined_call_operand.vmem [shape: f32[6,64,32], index: 12, kind: input, shape index: {}]
  %s13 = inlined_call_operand.vmem [shape: f32[6,1,32], index: 13, kind: input, shape index: {}]
  %s14 = inlined_call_operand.vmem [shape: f32[6,2,32], index: 14, kind: input, shape index: {}]
  %s15 = inlined_call_operand.vmem [shape: f32[2,32], index: 15, kind: input, shape index: {}]
  %s16 = inlined_call_operand.vmem [shape: f32[16,32], index: 16, kind: output, shape index: {}]
  %s17 = sld [smem:[#allocation0]]
  $region105: #{d3g_pair_transformer_px_forward.2} parent=0
    _
  %s19 = ssub.s32 1, %s17
  %s20 = scalar_select 0, %s19, %s17
  loop: start=0, step=1, limit=8
  $region2: #{d3g_pair_transformer_px_forward.2} parent=0 // loop_pre_header
    _
  $region3: #{d3g_pair_transformer_px_forward.2} parent=0 // loop_header
    %s22 = sphi 0, %s26
    %p23 = scmp.ge.s32.totalorder %s22, 8
    %s30 = sphi 0, %s30
    %s32 = sphi 0, %s30
    %s33 = sphi 0, %s32
    %s47 = sphi 0, %s33
    %s53 = sphi 0, %s55
    %s56 = sphi 0, %s53
    %s57 = sphi 0, %s56
    %s73 = sphi 0, %s57
    %s79 = sphi 0, %s81
    %s82 = sphi 0, %s79
    %s83 = sphi 0, %s82
    %s99 = sphi 0, %s83
    %s105 = sphi 0, %s107
    %s108 = sphi 0, %s105
    %s109 = sphi 0, %s108
    %s125 = sphi 0, %s109
    %s131 = sphi 0, %s133
    %s134 = sphi 0, %s131
    %s135 = sphi 0, %s134
    %s151 = sphi 0, %s135
    %s157 = sphi 0, %s159
    %s160 = sphi 0, %s157
    %s161 = sphi 0, %s160
    %s177 = sphi 0, %s161
    %s183 = sphi 0, %s185
    %s186 = sphi 0, %s183
    %s187 = sphi 0, %s186
    %s203 = sphi 0, %s187
    %s209 = sphi 0, %s211
    %s212 = sphi 0, %s209
    %s213 = sphi 0, %s212
    %s229 = sphi 0, %s213
    %s235 = sphi 0, %s237
    %s238 = sphi 0, %s235
    %s239 = sphi 0, %s238
    %s255 = sphi 0, %s239
    %s261 = sphi 0, %s263
    %s264 = sphi 0, %s261
    %s265 = sphi 0, %s264
    %s281 = sphi 0, %s265
    %s287 = sphi 0, %s289
    %s290 = sphi 0, %s287
    %s291 = sphi 0, %s290
    %s307 = sphi 0, %s291
    %s313 = sphi 0, %s315
    %s316 = sphi 0, %s313
    %s317 = sphi 0, %s316
    %s333 = sphi 0, %s317
    %s339 = sphi 0, %s341
    %s342 = sphi 0, %s339
    %s343 = sphi 0, %s342
    %s359 = sphi 0, %s343
    %s365 = sphi 0, %s367
    %s368 = sphi 0, %s365
    %s369 = sphi 0, %s368
    %s385 = sphi 0, %s369
    %s391 = sphi 0, %s393
    %s394 = sphi 0, %s391
    %s395 = sphi 0, %s394
    %s411 = sphi 0, %s395
    %s415 = sphi 0, %s415
    %s417 = sphi 0, %s415
    %s418 = sphi 0, %s417
    %s432 = sphi 0, %s418
    %s436 = sphi 0, %s436
    %s438 = sphi 0, %s436
    %s439 = sphi 0, %s438
    %s453 = sphi 0, %s439
  $region4: #{d3g_pair_transformer_px_forward.2} parent=0 // loop_header_branch
    %25 = sbr.rel (%p23) target = $region8
  $region5: #{d3g_pair_transformer_px_forward.2} parent=0 // loop_body
    %s27 = ssub.s32 %s22, 1
    %s28 = ssub.s32 %s22, 2
    %s29 = sadd.s32 %s22, 1
    %s31 = sadd.s32 %s30, 1
    %p34 = scmp.eq.s32.totalorder %s22, 5
    %p35 = scmp.ne.s32.totalorder %s30, %s32
    %p36 = scmp.eq.s32.totalorder %s22, 0
    %p37 = por %p35, %p36
    %p38 = scmp.ne.s32.totalorder %s30, %s32
    %p39 = scmp.eq.s32.totalorder %s27, 5
    %p40 = por %p38, %p39
    %p41 = scmp.ne.s32.totalorder %s32, %s33
    %p42 = scmp.eq.s32.totalorder %s27, 0
    %p43 = por %p41, %p42
    %p44 = scmp.ne.s32.totalorder %s32, %s33
    %p45 = scmp.eq.s32.totalorder %s28, 5
    %p46 = por %p44, %p45
    %p48 = scmp.ne.s32.totalorder %s33, %s47
    %p49 = scmp.eq.s32.totalorder %s28, 0
    %p50 = por %p48, %p49
    %s51 = ssub.s32 %s22, %s29
    %p52 = scmp.eq.s32.totalorder %s51, 0
    %s54 = sadd.s32 %s53, 1
    %s55 = scalar_select %p52, %s53, %s54
    %p58 = pneg %p52
    %p59 = scmp.eq.s32.totalorder %s22, 5
    %p60 = por %p58, %p59
    %p61 = scmp.ne.s32.totalorder %s53, %s56
    %p62 = scmp.eq.s32.totalorder %s22, 0
    %p63 = por %p61, %p62
    %p64 = scmp.ne.s32.totalorder %s53, %s56
    %p65 = scmp.eq.s32.totalorder %s27, 5
    %p66 = por %p64, %p65
    %p67 = scmp.ne.s32.totalorder %s56, %s57
    %p68 = scmp.eq.s32.totalorder %s27, 0
    %p69 = por %p67, %p68
    %p70 = scmp.ne.s32.totalorder %s56, %s57
    %p71 = scmp.eq.s32.totalorder %s28, 5
    %p72 = por %p70, %p71
    %p74 = scmp.ne.s32.totalorder %s57, %s73
    %p75 = scmp.eq.s32.totalorder %s28, 0
    %p76 = por %p74, %p75
    %s77 = ssub.s32 %s22, %s29
    %p78 = scmp.eq.s32.totalorder %s77, 0
    %s80 = sadd.s32 %s79, 1
    %s81 = scalar_select %p78, %s79, %s80
    %p84 = pneg %p78
    %p85 = scmp.eq.s32.totalorder %s22, 5
    %p86 = por %p84, %p85
    %p87 = scmp.ne.s32.totalorder %s79, %s82
    %p88 = scmp.eq.s32.totalorder %s22, 0
    %p89 = por %p87, %p88
    %p90 = scmp.ne.s32.totalorder %s79, %s82
    %p91 = scmp.eq.s32.totalorder %s27, 5
    %p92 = por %p90, %p91
    %p93 = scmp.ne.s32.totalorder %s82, %s83
    %p94 = scmp.eq.s32.totalorder %s27, 0
    %p95 = por %p93, %p94
    %p96 = scmp.ne.s32.totalorder %s82, %s83
    %p97 = scmp.eq.s32.totalorder %s28, 5
    %p98 = por %p96, %p97
    %p100 = scmp.ne.s32.totalorder %s83, %s99
    %p101 = scmp.eq.s32.totalorder %s28, 0
    %p102 = por %p100, %p101
    %s103 = ssub.s32 %s22, %s29
    %p104 = scmp.eq.s32.totalorder %s103, 0
    %s106 = sadd.s32 %s105, 1
    %s107 = scalar_select %p104, %s105, %s106
    %p110 = pneg %p104
    %p111 = scmp.eq.s32.totalorder %s22, 5
    %p112 = por %p110, %p111
    %p113 = scmp.ne.s32.totalorder %s105, %s108
    %p114 = scmp.eq.s32.totalorder %s22, 0
    %p115 = por %p113, %p114
    %p116 = scmp.ne.s32.totalorder %s105, %s108
    %p117 = scmp.eq.s32.totalorder %s27, 5
    %p118 = por %p116, %p117
    %p119 = scmp.ne.s32.totalorder %s108, %s109
    %p120 = scmp.eq.s32.totalorder %s27, 0
    %p121 = por %p119, %p120
    %p122 = scmp.ne.s32.totalorder %s108, %s109
    %p123 = scmp.eq.s32.totalorder %s28, 5
    %p124 = por %p122, %p123
    %p126 = scmp.ne.s32.totalorder %s109, %s125
    %p127 = scmp.eq.s32.totalorder %s28, 0
    %p128 = por %p126, %p127
    %s129 = ssub.s32 %s22, %s29
    %p130 = scmp.eq.s32.totalorder %s129, 0
    %s132 = sadd.s32 %s131, 1
    %s133 = scalar_select %p130, %s131, %s132
    %p136 = pneg %p130
    %p137 = scmp.eq.s32.totalorder %s22, 5
    %p138 = por %p136, %p137
    %p139 = scmp.ne.s32.totalorder %s131, %s134
    %p140 = scmp.eq.s32.totalorder %s22, 0
    %p141 = por %p139, %p140
    %p142 = scmp.ne.s32.totalorder %s131, %s134
    %p143 = scmp.eq.s32.totalorder %s27, 5
    %p144 = por %p142, %p143
    %p145 = scmp.ne.s32.totalorder %s134, %s135
    %p146 = scmp.eq.s32.totalorder %s27, 0
    %p147 = por %p145, %p146
    %p148 = scmp.ne.s32.totalorder %s134, %s135
    %p149 = scmp.eq.s32.totalorder %s28, 5
    %p150 = por %p148, %p149
    %p152 = scmp.ne.s32.totalorder %s135, %s151
    %p153 = scmp.eq.s32.totalorder %s28, 0
    %p154 = por %p152, %p153
    %s155 = ssub.s32 %s22, %s29
    %p156 = scmp.eq.s32.totalorder %s155, 0
    %s158 = sadd.s32 %s157, 1
    %s159 = scalar_select %p156, %s157, %s158
    %p162 = pneg %p156
    %p163 = scmp.eq.s32.totalorder %s22, 5
    %p164 = por %p162, %p163
    %p165 = scmp.ne.s32.totalorder %s157, %s160
    %p166 = scmp.eq.s32.totalorder %s22, 0
    %p167 = por %p165, %p166
    %p168 = scmp.ne.s32.totalorder %s157, %s160
    %p169 = scmp.eq.s32.totalorder %s27, 5
    %p170 = por %p168, %p169
    %p171 = scmp.ne.s32.totalorder %s160, %s161
    %p172 = scmp.eq.s32.totalorder %s27, 0
    %p173 = por %p171, %p172
    %p174 = scmp.ne.s32.totalorder %s160, %s161
    %p175 = scmp.eq.s32.totalorder %s28, 5
    %p176 = por %p174, %p175
    %p178 = scmp.ne.s32.totalorder %s161, %s177
    %p179 = scmp.eq.s32.totalorder %s28, 0
    %p180 = por %p178, %p179
    %s181 = ssub.s32 %s22, %s29
    %p182 = scmp.eq.s32.totalorder %s181, 0
    %s184 = sadd.s32 %s183, 1
    %s185 = scalar_select %p182, %s183, %s184
    %p188 = pneg %p182
    %p189 = scmp.eq.s32.totalorder %s22, 5
    %p190 = por %p188, %p189
    %p191 = scmp.ne.s32.totalorder %s183, %s186
    %p192 = scmp.eq.s32.totalorder %s22, 0
    %p193 = por %p191, %p192
    %p194 = scmp.ne.s32.totalorder %s183, %s186
    %p195 = scmp.eq.s32.totalorder %s27, 5
    %p196 = por %p194, %p195
    %p197 = scmp.ne.s32.totalorder %s186, %s187
    %p198 = scmp.eq.s32.totalorder %s27, 0
    %p199 = por %p197, %p198
    %p200 = scmp.ne.s32.totalorder %s186, %s187
    %p201 = scmp.eq.s32.totalorder %s28, 5
    %p202 = por %p200, %p201
    %p204 = scmp.ne.s32.totalorder %s187, %s203
    %p205 = scmp.eq.s32.totalorder %s28, 0
    %p206 = por %p204, %p205
    %s207 = ssub.s32 %s22, %s29
    %p208 = scmp.eq.s32.totalorder %s207, 0
    %s210 = sadd.s32 %s209, 1
    %s211 = scalar_select %p208, %s209, %s210
    %p214 = pneg %p208
    %p215 = scmp.eq.s32.totalorder %s22, 5
    %p216 = por %p214, %p215
    %p217 = scmp.ne.s32.totalorder %s209, %s212
    %p218 = scmp.eq.s32.totalorder %s22, 0
    %p219 = por %p217, %p218
    %p220 = scmp.ne.s32.totalorder %s209, %s212
    %p221 = scmp.eq.s32.totalorder %s27, 5
    %p222 = por %p220, %p221
    %p223 = scmp.ne.s32.totalorder %s212, %s213
    %p224 = scmp.eq.s32.totalorder %s27, 0
    %p225 = por %p223, %p224
    %p226 = scmp.ne.s32.totalorder %s212, %s213
    %p227 = scmp.eq.s32.totalorder %s28, 5
    %p228 = por %p226, %p227
    %p230 = scmp.ne.s32.totalorder %s213, %s229
    %p231 = scmp.eq.s32.totalorder %s28, 0
    %p232 = por %p230, %p231
    %s233 = ssub.s32 %s22, %s29
    %p234 = scmp.eq.s32.totalorder %s233, 0
    %s236 = sadd.s32 %s235, 1
    %s237 = scalar_select %p234, %s235, %s236
    %p240 = pneg %p234
    %p241 = scmp.eq.s32.totalorder %s22, 5
    %p242 = por %p240, %p241
    %p243 = scmp.ne.s32.totalorder %s235, %s238
    %p244 = scmp.eq.s32.totalorder %s22, 0
    %p245 = por %p243, %p244
    %p246 = scmp.ne.s32.totalorder %s235, %s238
    %p247 = scmp.eq.s32.totalorder %s27, 5
    %p248 = por %p246, %p247
    %p249 = scmp.ne.s32.totalorder %s238, %s239
    %p250 = scmp.eq.s32.totalorder %s27, 0
    %p251 = por %p249, %p250
    %p252 = scmp.ne.s32.totalorder %s238, %s239
    %p253 = scmp.eq.s32.totalorder %s28, 5
    %p254 = por %p252, %p253
    %p256 = scmp.ne.s32.totalorder %s239, %s255
    %p257 = scmp.eq.s32.totalorder %s28, 0
    %p258 = por %p256, %p257
    %s259 = ssub.s32 %s22, %s29
    %p260 = scmp.eq.s32.totalorder %s259, 0
    %s262 = sadd.s32 %s261, 1
    %s263 = scalar_select %p260, %s261, %s262
    %p266 = pneg %p260
    %p267 = scmp.eq.s32.totalorder %s22, 5
    %p268 = por %p266, %p267
    %p269 = scmp.ne.s32.totalorder %s261, %s264
    %p270 = scmp.eq.s32.totalorder %s22, 0
    %p271 = por %p269, %p270
    %p272 = scmp.ne.s32.totalorder %s261, %s264
    %p273 = scmp.eq.s32.totalorder %s27, 5
    %p274 = por %p272, %p273
    %p275 = scmp.ne.s32.totalorder %s264, %s265
    %p276 = scmp.eq.s32.totalorder %s27, 0
    %p277 = por %p275, %p276
    %p278 = scmp.ne.s32.totalorder %s264, %s265
    %p279 = scmp.eq.s32.totalorder %s28, 5
    %p280 = por %p278, %p279
    %p282 = scmp.ne.s32.totalorder %s265, %s281
    %p283 = scmp.eq.s32.totalorder %s28, 0
    %p284 = por %p282, %p283
    %s285 = ssub.s32 %s22, %s29
    %p286 = scmp.eq.s32.totalorder %s285, 0
    %s288 = sadd.s32 %s287, 1
    %s289 = scalar_select %p286, %s287, %s288
    %p292 = pneg %p286
    %p293 = scmp.eq.s32.totalorder %s22, 5
    %p294 = por %p292, %p293
    %p295 = scmp.ne.s32.totalorder %s287, %s290
    %p296 = scmp.eq.s32.totalorder %s22, 0
    %p297 = por %p295, %p296
    %p298 = scmp.ne.s32.totalorder %s287, %s290
    %p299 = scmp.eq.s32.totalorder %s27, 5
    %p300 = por %p298, %p299
    %p301 = scmp.ne.s32.totalorder %s290, %s291
    %p302 = scmp.eq.s32.totalorder %s27, 0
    %p303 = por %p301, %p302
    %p304 = scmp.ne.s32.totalorder %s290, %s291
    %p305 = scmp.eq.s32.totalorder %s28, 5
    %p306 = por %p304, %p305
    %p308 = scmp.ne.s32.totalorder %s291, %s307
    %p309 = scmp.eq.s32.totalorder %s28, 0
    %p310 = por %p308, %p309
    %s311 = ssub.s32 %s22, %s29
    %p312 = scmp.eq.s32.totalorder %s311, 0
    %s314 = sadd.s32 %s313, 1
    %s315 = scalar_select %p312, %s313, %s314
    %p318 = pneg %p312
    %p319 = scmp.eq.s32.totalorder %s22, 5
    %p320 = por %p318, %p319
    %p321 = scmp.ne.s32.totalorder %s313, %s316
    %p322 = scmp.eq.s32.totalorder %s22, 0
    %p323 = por %p321, %p322
    %p324 = scmp.ne.s32.totalorder %s313, %s316
    %p325 = scmp.eq.s32.totalorder %s27, 5
    %p326 = por %p324, %p325
    %p327 = scmp.ne.s32.totalorder %s316, %s317
    %p328 = scmp.eq.s32.totalorder %s27, 0
    %p329 = por %p327, %p328
    %p330 = scmp.ne.s32.totalorder %s316, %s317
    %p331 = scmp.eq.s32.totalorder %s28, 5
    %p332 = por %p330, %p331
    %p334 = scmp.ne.s32.totalorder %s317, %s333
    %p335 = scmp.eq.s32.totalorder %s28, 0
    %p336 = por %p334, %p335
    %s337 = ssub.s32 %s22, %s29
    %p338 = scmp.eq.s32.totalorder %s337, 0
    %s340 = sadd.s32 %s339, 1
    %s341 = scalar_select %p338, %s339, %s340
    %p344 = pneg %p338
    %p345 = scmp.eq.s32.totalorder %s22, 5
    %p346 = por %p344, %p345
    %p347 = scmp.ne.s32.totalorder %s339, %s342
    %p348 = scmp.eq.s32.totalorder %s22, 0
    %p349 = por %p347, %p348
    %p350 = scmp.ne.s32.totalorder %s339, %s342
    %p351 = scmp.eq.s32.totalorder %s27, 5
    %p352 = por %p350, %p351
    %p353 = scmp.ne.s32.totalorder %s342, %s343
    %p354 = scmp.eq.s32.totalorder %s27, 0
    %p355 = por %p353, %p354
    %p356 = scmp.ne.s32.totalorder %s342, %s343
    %p357 = scmp.eq.s32.totalorder %s28, 5
    %p358 = por %p356, %p357
    %p360 = scmp.ne.s32.totalorder %s343, %s359
    %p361 = scmp.eq.s32.totalorder %s28, 0
    %p362 = por %p360, %p361
    %s363 = ssub.s32 %s22, %s29
    %p364 = scmp.eq.s32.totalorder %s363, 0
    %s366 = sadd.s32 %s365, 1
    %s367 = scalar_select %p364, %s365, %s366
    %p370 = pneg %p364
    %p371 = scmp.eq.s32.totalorder %s22, 5
    %p372 = por %p370, %p371
    %p373 = scmp.ne.s32.totalorder %s365, %s368
    %p374 = scmp.eq.s32.totalorder %s22, 0
    %p375 = por %p373, %p374
    %p376 = scmp.ne.s32.totalorder %s365, %s368
    %p377 = scmp.eq.s32.totalorder %s27, 5
    %p378 = por %p376, %p377
    %p379 = scmp.ne.s32.totalorder %s368, %s369
    %p380 = scmp.eq.s32.totalorder %s27, 0
    %p381 = por %p379, %p380
    %p382 = scmp.ne.s32.totalorder %s368, %s369
    %p383 = scmp.eq.s32.totalorder %s28, 5
    %p384 = por %p382, %p383
    %p386 = scmp.ne.s32.totalorder %s369, %s385
    %p387 = scmp.eq.s32.totalorder %s28, 0
    %p388 = por %p386, %p387
    %s389 = ssub.s32 %s22, %s29
    %p390 = scmp.eq.s32.totalorder %s389, 0
    %s392 = sadd.s32 %s391, 1
    %s393 = scalar_select %p390, %s391, %s392
    %p396 = pneg %p390
    %p397 = scmp.eq.s32.totalorder %s22, 5
    %p398 = por %p396, %p397
    %p399 = scmp.ne.s32.totalorder %s391, %s394
    %p400 = scmp.eq.s32.totalorder %s22, 0
    %p401 = por %p399, %p400
    %p402 = scmp.ne.s32.totalorder %s391, %s394
    %p403 = scmp.eq.s32.totalorder %s27, 5
    %p404 = por %p402, %p403
    %p405 = scmp.ne.s32.totalorder %s394, %s395
    %p406 = scmp.eq.s32.totalorder %s27, 0
    %p407 = por %p405, %p406
    %p408 = scmp.ne.s32.totalorder %s394, %s395
    %p409 = scmp.eq.s32.totalorder %s28, 5
    %p410 = por %p408, %p409
    %p412 = scmp.ne.s32.totalorder %s395, %s411
    %p413 = scmp.eq.s32.totalorder %s28, 0
    %p414 = por %p412, %p413
    %s416 = sadd.s32 %s415, 1
    %p419 = scmp.eq.s32.totalorder %s22, 5
    %p420 = scmp.ne.s32.totalorder %s415, %s417
    %p421 = scmp.eq.s32.totalorder %s22, 0
    %p422 = por %p420, %p421
    %p423 = scmp.ne.s32.totalorder %s415, %s417
    %p424 = scmp.eq.s32.totalorder %s27, 5
    %p425 = por %p423, %p424
    %p426 = scmp.ne.s32.totalorder %s417, %s418
    %p427 = scmp.eq.s32.totalorder %s27, 0
    %p428 = por %p426, %p427
    %p429 = scmp.ne.s32.totalorder %s417, %s418
    %p430 = scmp.eq.s32.totalorder %s28, 5
    %p431 = por %p429, %p430
    %p433 = scmp.ne.s32.totalorder %s418, %s432
    %p434 = scmp.eq.s32.totalorder %s28, 0
    %p435 = por %p433, %p434
    %s437 = sadd.s32 %s436, 1
    %p440 = scmp.eq.s32.totalorder %s22, 5
    %p441 = scmp.ne.s32.totalorder %s436, %s438
    %p442 = scmp.eq.s32.totalorder %s22, 0
    %p443 = por %p441, %p442
    %p444 = scmp.ne.s32.totalorder %s436, %s438
    %p445 = scmp.eq.s32.totalorder %s27, 5
    %p446 = por %p444, %p445
    %p447 = scmp.ne.s32.totalorder %s438, %s439
    %p448 = scmp.eq.s32.totalorder %s27, 0
    %p449 = por %p447, %p448
    %p450 = scmp.ne.s32.totalorder %s438, %s439
    %p451 = scmp.eq.s32.totalorder %s28, 5
    %p452 = por %p450, %p451
    %p454 = scmp.ne.s32.totalorder %s439, %s453
    %p455 = scmp.eq.s32.totalorder %s28, 0
    %p456 = por %p454, %p455
    %p457 = scmp.le.s32.totalorder 1, %s22
    %p458 = scmp.lt.s32.totalorder %s22, 7
    %p459 = pnand %p457, %p458
    %p460 = pneg %p459
    // Predicated region
    $region9: #{d3g_pair_transformer_px_forward.2} parent=5 // pred_check
      _
    $region10: #{d3g_pair_transformer_px_forward.2} parent=5 // pred_check_branch
      %462 = sbr.rel (%p459) target = $region12
    $region11: #{d3g_pair_transformer_px_forward.2} parent=5 // pred_region
      %s463 = ssub.s32 %s22, 1
      // Predicated region
      $region13: #{d3g_pair_transformer_px_forward.2} parent=11 // pred_check
        %p464 = pneg %p43
      $region14: #{d3g_pair_transformer_px_forward.2} parent=11 // pred_check_branch
        %466 = sbr.rel (%p464) target = $region16
      $region15: #{d3g_pair_transformer_px_forward.2} parent=11 // pred_region
        _
      $region16: #{d3g_pair_transformer_px_forward.2} parent=11 // pred_fallthru
        _
      // Predicated region
      $region17: #{d3g_pair_transformer_px_forward.2} parent=11 // pred_check
        %p467 = pneg %p428
      $region18: #{d3g_pair_transformer_px_forward.2} parent=11 // pred_check_branch
        %469 = sbr.rel (%p467) target = $region20
      $region19: #{d3g_pair_transformer_px_forward.2} parent=11 // pred_region
        _
      $region20: #{d3g_pair_transformer_px_forward.2} parent=11 // pred_fallthru
        _
    $region12: #{d3g_pair_transformer_px_forward.2} parent=5 // pred_fallthru
      _
    %p470 = scmp.lt.s32.totalorder %s22, 6
    // Predicated region
    $region21: #{d3g_pair_transformer_px_forward.2} parent=5 // pred_check
      %p471 = pneg %p470
    $region22: #{d3g_pair_transformer_px_forward.2} parent=5 // pred_check_branch
      %473 = sbr.rel (%p471) target = $region24
    $region23: #{d3g_pair_transformer_px_forward.2} parent=5 // pred_region
      // Predicated region
      $region25: #{d3g_pair_transformer_px_forward.2} parent=23 // pred_check
        %p474 = pneg %p63
      $region26: #{d3g_pair_transformer_px_forward.2} parent=23 // pred_check_branch
        %476 = sbr.rel (%p474) target = $region28
      $region27: #{d3g_pair_transformer_px_forward.2} parent=23 // pred_region
        %p477 = scmp.lt.s32.totalorder %s22, 5
        %s478 = scalar_select %p477, %s22, 5
        %s479 = smul.addr %s478, 16
        %s480 = smul.addr %s479, 8
        %s481 = scalar_lea.vmem %s1, %s480
      $region28: #{d3g_pair_transformer_px_forward.2} parent=23 // pred_fallthru
        _
      // Predicated region
      $region29: #{d3g_pair_transformer_px_forward.2} parent=23 // pred_check
        %p482 = pneg %p89
      $region30: #{d3g_pair_transformer_px_forward.2} parent=23 // pred_check_branch
        %484 = sbr.rel (%p482) target = $region32
      $region31: #{d3g_pair_transformer_px_forward.2} parent=23 // pred_region
        %p485 = scmp.lt.s32.totalorder %s22, 5
        %s486 = scalar_select %p485, %s22, 5
        %s487 = smul.addr %s486, 16
        %s488 = smul.addr %s487, 8
        %s489 = scalar_lea.vmem %s2, %s488
      $region32: #{d3g_pair_transformer_px_forward.2} parent=23 // pred_fallthru
        _
      // Predicated region
      $region33: #{d3g_pair_transformer_px_forward.2} parent=23 // pred_check
        %p490 = pneg %p115
      $region34: #{d3g_pair_transformer_px_forward.2} parent=23 // pred_check_branch
        %492 = sbr.rel (%p490) target = $region36
      $region35: #{d3g_pair_transformer_px_forward.2} parent=23 // pred_region
        %p493 = scmp.lt.s32.totalorder %s22, 5
        %s494 = scalar_select %p493, %s22, 5
        %s495 = smul.addr %s494, 16
        %s496 = smul.addr %s495, 8
        %s497 = scalar_lea.vmem %s3, %s496
      $region36: #{d3g_pair_transformer_px_forward.2} parent=23 // pred_fallthru
        _
      // Predicated region
      $region37: #{d3g_pair_transformer_px_forward.2} parent=23 // pred_check
        %p498 = pneg %p141
      $region38: #{d3g_pair_transformer_px_forward.2} parent=23 // pred_check_branch
        %500 = sbr.rel (%p498) target = $region40
      $region39: #{d3g_pair_transformer_px_forward.2} parent=23 // pred_region
        %p501 = scmp.lt.s32.totalorder %s22, 5
        %s502 = scalar_select %p501, %s22, 5
        %s503 = smul.addr %s502, 4
        %s504 = scalar_lea.vmem %s4, %s503
      $region40: #{d3g_pair_transformer_px_forward.2} parent=23 // pred_fallthru
        _
      // Predicated region
      $region41: #{d3g_pair_transformer_px_forward.2} parent=23 // pred_check
        %p505 = pneg %p167
      $region42: #{d3g_pair_transformer_px_forward.2} parent=23 // pred_check_branch
        %507 = sbr.rel (%p505) target = $region44
      $region43: #{d3g_pair_transformer_px_forward.2} parent=23 // pred_region
        %p508 = scmp.lt.s32.totalorder %s22, 5
        %s509 = scalar_select %p508, %s22, 5
        %s510 = smul.addr %s509, 4
        %s511 = scalar_lea.vmem %s5, %s510
      $region44: #{d3g_pair_transformer_px_forward.2} parent=23 // pred_fallthru
        _
      // Predicated region
      $region45: #{d3g_pair_transformer_px_forward.2} parent=23 // pred_check
        %p512 = pneg %p193
      $region46: #{d3g_pair_transformer_px_forward.2} parent=23 // pred_check_branch
        %514 = sbr.rel (%p512) target = $region48
      $region47: #{d3g_pair_transformer_px_forward.2} parent=23 // pred_region
        %p515 = scmp.lt.s32.totalorder %s22, 5
        %s516 = scalar_select %p515, %s22, 5
        %s517 = smul.addr %s516, 4
        %s518 = scalar_lea.vmem %s6, %s517
      $region48: #{d3g_pair_transformer_px_forward.2} parent=23 // pred_fallthru
        _
      // Predicated region
      $region49: #{d3g_pair_transformer_px_forward.2} parent=23 // pred_check
        %p519 = pneg %p219
      $region50: #{d3g_pair_transformer_px_forward.2} parent=23 // pred_check_branch
        %521 = sbr.rel (%p519) target = $region52
      $region51: #{d3g_pair_transformer_px_forward.2} parent=23 // pred_region
        %p522 = scmp.lt.s32.totalorder %s22, 5
        %s523 = scalar_select %p522, %s22, 5
        %s524 = smul.addr %s523, 4
        %s525 = smul.addr %s524, 8
        %s526 = scalar_lea.vmem %s7, %s525
      $region52: #{d3g_pair_transformer_px_forward.2} parent=23 // pred_fallthru
        _
      // Predicated region
      $region53: #{d3g_pair_transformer_px_forward.2} parent=23 // pred_check
        %p527 = pneg %p245
      $region54: #{d3g_pair_transformer_px_forward.2} parent=23 // pred_check_branch
        %529 = sbr.rel (%p527) target = $region56
      $region55: #{d3g_pair_transformer_px_forward.2} parent=23 // pred_region
        %p530 = scmp.lt.s32.totalorder %s22, 5
        %s531 = scalar_select %p530, %s22, 5
        %s532 = scalar_lea.vmem %s8, %s531
      $region56: #{d3g_pair_transformer_px_forward.2} parent=23 // pred_fallthru
        _
      // Predicated region
      $region57: #{d3g_pair_transformer_px_forward.2} parent=23 // pred_check
        %p533 = pneg %p271
      $region58: #{d3g_pair_transformer_px_forward.2} parent=23 // pred_check_branch
        %535 = sbr.rel (%p533) target = $region60
      $region59: #{d3g_pair_transformer_px_forward.2} parent=23 // pred_region
        %p536 = scmp.lt.s32.totalorder %s22, 5
        %s537 = scalar_select %p536, %s22, 5
        %s538 = smul.addr %s537, 2
        %s539 = scalar_lea.vmem %s9, %s538
      $region60: #{d3g_pair_transformer_px_forward.2} parent=23 // pred_fallthru
        _
      // Predicated region
      $region61: #{d3g_pair_transformer_px_forward.2} parent=23 // pred_check
        %p540 = pneg %p297
      $region62: #{d3g_pair_transformer_px_forward.2} parent=23 // pred_check_branch
        %542 = sbr.rel (%p540) target = $region64
      $region63: #{d3g_pair_transformer_px_forward.2} parent=23 // pred_region
        %p543 = scmp.lt.s32.totalorder %s22, 5
        %s544 = scalar_select %p543, %s22, 5
        %s545 = smul.addr %s544, 4
        %s546 = smul.addr %s545, 8
        %s547 = scalar_lea.vmem %s10, %s546
      $region64: #{d3g_pair_transformer_px_forward.2} parent=23 // pred_fallthru
        _
      // Predicated region
      $region65: #{d3g_pair_transformer_px_forward.2} parent=23 // pred_check
        %p548 = pneg %p323
      $region66: #{d3g_pair_transformer_px_forward.2} parent=23 // pred_check_branch
        %550 = sbr.rel (%p548) target = $region68
      $region67: #{d3g_pair_transformer_px_forward.2} parent=23 // pred_region
        %p551 = scmp.lt.s32.totalorder %s22, 5
        %s552 = scalar_select %p551, %s22, 5
        %s553 = scalar_lea.vmem %s11, %s552
      $region68: #{d3g_pair_transformer_px_forward.2} parent=23 // pred_fallthru
        _
      // Predicated region
      $region69: #{d3g_pair_transformer_px_forward.2} parent=23 // pred_check
        %p554 = pneg %p349
      $region70: #{d3g_pair_transformer_px_forward.2} parent=23 // pred_check_branch
        %556 = sbr.rel (%p554) target = $region72
      $region71: #{d3g_pair_transformer_px_forward.2} parent=23 // pred_region
        %p557 = scmp.lt.s32.totalorder %s22, 5
        %s558 = scalar_select %p557, %s22, 5
        %s559 = smul.addr %s558, 8
        %s560 = smul.addr %s559, 8
        %s561 = scalar_lea.vmem %s12, %s560
      $region72: #{d3g_pair_transformer_px_forward.2} parent=23 // pred_fallthru
        _
      // Predicated region
      $region73: #{d3g_pair_transformer_px_forward.2} parent=23 // pred_check
        %p562 = pneg %p375
      $region74: #{d3g_pair_transformer_px_forward.2} parent=23 // pred_check_branch
        %564 = sbr.rel (%p562) target = $region76
      $region75: #{d3g_pair_transformer_px_forward.2} parent=23 // pred_region
        %p565 = scmp.lt.s32.totalorder %s22, 5
        %s566 = scalar_select %p565, %s22, 5
        %s567 = scalar_lea.vmem %s13, %s566
      $region76: #{d3g_pair_transformer_px_forward.2} parent=23 // pred_fallthru
        _
      // Predicated region
      $region77: #{d3g_pair_transformer_px_forward.2} parent=23 // pred_check
        %p568 = pneg %p401
      $region78: #{d3g_pair_transformer_px_forward.2} parent=23 // pred_check_branch
        %570 = sbr.rel (%p568) target = $region80
      $region79: #{d3g_pair_transformer_px_forward.2} parent=23 // pred_region
        %p571 = scmp.lt.s32.totalorder %s22, 5
        %s572 = scalar_select %p571, %s22, 5
        %s573 = smul.addr %s572, 2
        %s574 = scalar_lea.vmem %s14, %s573
      $region80: #{d3g_pair_transformer_px_forward.2} parent=23 // pred_fallthru
        _
    $region24: #{d3g_pair_transformer_px_forward.2} parent=5 // pred_fallthru
      _
    %p575 = scmp.le.s32.totalorder 1, %s22
    %p576 = scmp.lt.s32.totalorder %s22, 7
    %p577 = pnand %p575, %p576
    %p578 = pneg %p577
    // Predicated region
    $region81: #{d3g_pair_transformer_px_forward.2} parent=5 // pred_check
      _
    $region82: #{d3g_pair_transformer_px_forward.2} parent=5 // pred_check_branch
      %580 = sbr.rel (%p577) target = $region84
    $region83: #{d3g_pair_transformer_px_forward.2} parent=5 // pred_region
      %s581 = ssub.s32 %s22, 1
      %p582 = pneg %p43
      %p583 = pneg %p40
      %p584 = scmp.lt.s32.totalorder %s27, 5
      %s585 = scalar_select %p584, %s27, 5
      %s586 = smul.addr %s585, 16
      %s587 = smul.addr %s586, 8
      %s588 = scalar_lea.vmem %s1, %s587
      %p589 = pneg %p69
      %p590 = pneg %p66
      %p591 = scmp.lt.s32.totalorder %s27, 5
      %s592 = scalar_select %p591, %s27, 5
      %s593 = smul.addr %s592, 16
      %s594 = smul.addr %s593, 8
      %s595 = scalar_lea.vmem %s2, %s594
      %p596 = pneg %p95
      %p597 = pneg %p92
      %p598 = scmp.lt.s32.totalorder %s27, 5
      %s599 = scalar_select %p598, %s27, 5
      %s600 = smul.addr %s599, 16
      %s601 = smul.addr %s600, 8
      %s602 = scalar_lea.vmem %s3, %s601
      %p603 = pneg %p121
      %p604 = pneg %p118
      %p605 = scmp.lt.s32.totalorder %s27, 5
      %s606 = scalar_select %p605, %s27, 5
      %s607 = smul.addr %s606, 4
      %s608 = scalar_lea.vmem %s4, %s607
      %p609 = pneg %p147
      %p610 = pneg %p144
      %p611 = scmp.lt.s32.totalorder %s27, 5
      %s612 = scalar_select %p611, %s27, 5
      %s613 = smul.addr %s612, 4
      %s614 = scalar_lea.vmem %s5, %s613
      %p615 = pneg %p173
      %p616 = pneg %p170
      %p617 = scmp.lt.s32.totalorder %s27, 5
      %s618 = scalar_select %p617, %s27, 5
      %s619 = smul.addr %s618, 4
      %s620 = scalar_lea.vmem %s6, %s619
      %p621 = pneg %p199
      %p622 = pneg %p196
      %p623 = scmp.lt.s32.totalorder %s27, 5
      %s624 = scalar_select %p623, %s27, 5
      %s625 = smul.addr %s624, 4
      %s626 = smul.addr %s625, 8
      %s627 = scalar_lea.vmem %s7, %s626
      %p628 = pneg %p225
      %p629 = pneg %p222
      %p630 = scmp.lt.s32.totalorder %s27, 5
      %s631 = scalar_select %p630, %s27, 5
      %s632 = scalar_lea.vmem %s8, %s631
      %p633 = pneg %p251
      %p634 = pneg %p248
      %p635 = scmp.lt.s32.totalorder %s27, 5
      %s636 = scalar_select %p635, %s27, 5
      %s637 = smul.addr %s636, 2
      %s638 = scalar_lea.vmem %s9, %s637
      %p639 = pneg %p277
      %p640 = pneg %p274
      %p641 = scmp.lt.s32.totalorder %s27, 5
      %s642 = scalar_select %p641, %s27, 5
      %s643 = smul.addr %s642, 4
      %s644 = smul.addr %s643, 8
      %s645 = scalar_lea.vmem %s10, %s644
      %p646 = pneg %p303
      %p647 = pneg %p300
      %p648 = scmp.lt.s32.totalorder %s27, 5
      %s649 = scalar_select %p648, %s27, 5
      %s650 = scalar_lea.vmem %s11, %s649
      %p651 = pneg %p329
      %p652 = pneg %p326
      %p653 = scmp.lt.s32.totalorder %s27, 5
      %s654 = scalar_select %p653, %s27, 5
      %s655 = smul.addr %s654, 8
      %s656 = smul.addr %s655, 8
      %s657 = scalar_lea.vmem %s12, %s656
      %p658 = pneg %p355
      %p659 = pneg %p352
      %p660 = scmp.lt.s32.totalorder %s27, 5
      %s661 = scalar_select %p660, %s27, 5
      %s662 = scalar_lea.vmem %s13, %s661
      %p663 = pneg %p381
      %p664 = pneg %p378
      %p665 = scmp.lt.s32.totalorder %s27, 5
      %s666 = scalar_select %p665, %s27, 5
      %s667 = smul.addr %s666, 2
      %s668 = scalar_lea.vmem %s14, %s667
      %p669 = pneg %p407
      %p670 = pneg %p404
      %p671 = pneg %p428
      %p672 = pneg %p425
      %p673 = pneg %p449
      %p674 = pneg %p446
      %p675 = scmp.lt.s32.totalorder %s27, 5
      %s676 = scalar_select %p675, %s27, 5
      %s677 = smul.addr %s676, 16
      %s678 = smul.addr %s677, 8
      %s679 = scalar_lea.vmem %s1, %s678
      %p680 = scmp.lt.s32.totalorder %s27, 5
      %s681 = scalar_select %p680, %s27, 5
      %s682 = smul.addr %s681, 16
      %s683 = smul.addr %s682, 8
      %s684 = scalar_lea.vmem %s2, %s683
      %p685 = scmp.lt.s32.totalorder %s27, 5
      %s686 = scalar_select %p685, %s27, 5
      %s687 = smul.addr %s686, 16
      %s688 = smul.addr %s687, 8
      %s689 = scalar_lea.vmem %s3, %s688
      %p690 = scmp.lt.s32.totalorder %s27, 5
      %s691 = scalar_select %p690, %s27, 5
      %s692 = smul.addr %s691, 4
      %s693 = scalar_lea.vmem %s4, %s692
      %p694 = scmp.lt.s32.totalorder %s27, 5
      %s695 = scalar_select %p694, %s27, 5
      %s696 = smul.addr %s695, 4
      %s697 = scalar_lea.vmem %s5, %s696
      %p698 = scmp.lt.s32.totalorder %s27, 5
      %s699 = scalar_select %p698, %s27, 5
      %s700 = smul.addr %s699, 4
      %s701 = scalar_lea.vmem %s6, %s700
      %p702 = scmp.lt.s32.totalorder %s27, 5
      %s703 = scalar_select %p702, %s27, 5
      %s704 = smul.addr %s703, 4
      %s705 = smul.addr %s704, 8
      %s706 = scalar_lea.vmem %s7, %s705
      %p707 = scmp.lt.s32.totalorder %s27, 5
      %s708 = scalar_select %p707, %s27, 5
      %s709 = scalar_lea.vmem %s8, %s708
      %p710 = scmp.lt.s32.totalorder %s27, 5
      %s711 = scalar_select %p710, %s27, 5
      %s712 = smul.addr %s711, 2
      %s713 = scalar_lea.vmem %s9, %s712
      %p714 = scmp.lt.s32.totalorder %s27, 5
      %s715 = scalar_select %p714, %s27, 5
      %s716 = smul.addr %s715, 4
      %s717 = smul.addr %s716, 8
      %s718 = scalar_lea.vmem %s10, %s717
      %p719 = scmp.lt.s32.totalorder %s27, 5
      %s720 = scalar_select %p719, %s27, 5
      %s721 = scalar_lea.vmem %s11, %s720
      %p722 = scmp.lt.s32.totalorder %s27, 5
      %s723 = scalar_select %p722, %s27, 5
      %s724 = smul.addr %s723, 8
      %s725 = smul.addr %s724, 8
      %s726 = scalar_lea.vmem %s12, %s725
      %p727 = scmp.lt.s32.totalorder %s27, 5
      %s728 = scalar_select %p727, %s27, 5
      %s729 = scalar_lea.vmem %s13, %s728
      %p730 = scmp.lt.s32.totalorder %s27, 5
      %s731 = scalar_select %p730, %s27, 5
      %s732 = smul.addr %s731, 2
      %s733 = scalar_lea.vmem %s14, %s732
      %p734 = scmp.eq.s32.totalorder %s27, 0
      // Predicated region
      $region85: #{d3g_pair_transformer_px_forward.2} parent=83 // pred_check
        %p735 = pneg %p734
      $region86: #{d3g_pair_transformer_px_forward.2} parent=83 // pred_check_branch
        %737 = sbr.rel (%p735) target = $region88
      $region87: #{d3g_pair_transformer_px_forward.2} parent=83 // pred_region
        %v738 = vld [vmem:[%s0] sm:$0xff]
        %v739 = vld [vmem:[%s0 + $0x8] sm:$0xff]
        %vm740 = vcmask 261120
        %741 = vst.msk [vmem:[#allocation2] sm:$0xff] %vm740, %v738
        %742 = vst.msk [vmem:[#allocation2 + $0x8] sm:$0xff] %vm740, %v739
      $region88: #{d3g_pair_transformer_px_forward.2} parent=83 // pred_fallthru
        _
      %v743 = vld [vmem:[#allocation2] sm:$0xff]
      %v744 = vld [vmem:[#allocation2 + $0x8] sm:$0xff]
      %v745 = vld [vmem:[%s679] sm:$0xff]
      %v746 = vld [vmem:[%s679 + $0x8] sm:$0xff]
      %v747 = vld [vmem:[%s679 + $0x10] sm:$0xff]
      %v748 = vld [vmem:[%s679 + $0x18] sm:$0xff]
      %v749 = vld [vmem:[%s693] sm:$0x1]
      %v751 = vlaneseq
      %v752 = vshrl.u32 %v751, 7
      %v753 = vsub.s32 0, %v752
      %v754 = vrot.slane %v749, %v753
      %vm756 = vcmask 261120
      %v758 = vsel %vm756, %v743, 0
      %v761 = vsel %vm756, %v744, 0
      %763 = vmatprep.subr.mxu0 0.0
      %764 = vmatpush1.msra.mxu0 %v745
      %765 = vmatprep.subr.mxu0 0.0
      %766 = vmatpush1.msra.mxu0 %v746
      %767 = vmatprep.subr.mxu0 0.0
      %768 = vmatpush1.msra.mxu0 %v747
      %769 = vmatprep.subr.mxu0 0.0
      %770 = vmatpush1.msra.mxu0 %v748
      %771 = vmatprep.subr.mxu0 0.0
      %772 = vmatpush1.msra.mxu0 0.0
      %773 = vmatprep.subr.mxu0 0.0
      %774 = vmatpush1.msra.mxu0 0.0
      %775 = vmatprep.subr.mxu0 0.0
      %776 = vmatpush1.msra.mxu0 0.0
      %777 = vmatprep.subr.mxu0 0.0
      %778 = vmatpush1.msra.mxu0 0.0
      %779 = vmatprep.subr.mxu0 0.0
      %780 = vmatpush1.msra.mxu0 0.0
      %781 = vmatprep.subr.mxu0 0.0
      %782 = vmatpush1.msra.mxu0 0.0
      %783 = vmatprep.subr.mxu0 0.0
      %784 = vmatpush1.msra.mxu0 0.0
      %785 = vmatprep.subr.mxu0 0.0
      %786 = vmatpush1.msra.mxu0 0.0
      %787 = vmatprep.subr.mxu0 0.0
      %788 = vmatpush1.msra.mxu0 0.0
      %789 = vmatprep.subr.mxu0 0.0
      %790 = vmatpush1.msra.mxu0 0.0
      %791 = vmatprep.subr.mxu0 0.0
      %792 = vmatpush1.msra.mxu0 0.0
      %793 = vmatprep.subr.mxu0 0.0
      %794 = vmatpush1.msra.mxu0 0.0
      %795 = vmatprep.subr.mxu0 0.0
      %796 = vmatpush1.msra.mxu0 0.0
      %797 = vmatprep.subr.mxu0 0.0
      %798 = vmatpush1.msra.mxu0 0.0
      %799 = vmatprep.subr.mxu0 0.0
      %800 = vmatpush1.msra.mxu0 0.0
      %801 = vmatprep.subr.mxu0 0.0
      %802 = vmatpush1.msra.mxu0 0.0
      %803 = vmatprep.subr.mxu0 0.0
      %804 = vmatpush1.msra.mxu0 0.0
      %805 = vmatprep.subr.mxu0 0.0
      %806 = vmatpush1.msra.mxu0 0.0
      %807 = vmatprep.subr.mxu0 0.0
      %808 = vmatpush1.msra.mxu0 0.0
      %809 = vmatprep.subr.mxu0 0.0
      %810 = vmatpush1.msra.mxu0 0.0
      %811 = vmatprep.subr.mxu0 0.0
      %812 = vmatpush1.msra.mxu0 0.0
      %813 = vmatprep.subr.mxu0 0.0
      %814 = vmatpush1.msra.mxu0 0.0
      %815 = vmatprep.subr.mxu0 0.0
      %816 = vmatpush1.msra.mxu0 0.0
      %817 = vmatprep.subr.mxu0 0.0
      %818 = vmatpush1.msra.mxu0 0.0
      %819 = vmatprep.subr.mxu0 0.0
      %820 = vmatpush1.msra.mxu0 0.0
      %821 = vmatprep.subr.mxu0 0.0
      %822 = vmatpush1.msra.mxu0 0.0
      %823 = vmatprep.subr.mxu0 0.0
      %824 = vmatpush1.msra.mxu0 0.0
      %825 = vmatprep.subr.mxu0 0.0
      %826 = vmatpush1.msra.mxu0 0.0
      %827 = vmatprep.mubr.f32.mxu0 0.0
      %828 = vmatmul.mubr.f32.gmra.mrb[0].mxu0 %v758
      %v829 = vpop.f32.mrb[0].mxu0
      %v830 = vadd.f32 %v754, %v829
      %v831 = vpop.f32.mrb[0].mxu0
      %832 = vmatprep.mubr.f32.mxu0 0.0
      %833 = vmatmul.mubr.f32.gmra.mrb[0].mxu0 %v761
      %v834 = vpop.f32.mrb[0].mxu0
      %v835 = vadd.f32 %v754, %v834
      %v836 = vpop.f32.mrb[0].mxu0
      %837 = vdwg.mxu0
      %v838 = vld [vmem:[%s684] sm:$0xff]
      %v839 = vld [vmem:[%s684 + $0x8] sm:$0xff]
      %v840 = vld [vmem:[%s684 + $0x10] sm:$0xff]
      %v841 = vld [vmem:[%s684 + $0x18] sm:$0xff]
      %v842 = vld [vmem:[%s697] sm:$0x1]
      %v844 = vlaneseq
      %v845 = vshrl.u32 %v844, 7
      %v846 = vsub.s32 0, %v845
      %v847 = vrot.slane %v842, %v846
      %849 = vmatprep.subr.mxu0 0.0
      %850 = vmatpush1.msra.mxu0 %v838
      %851 = vmatprep.subr.mxu0 0.0
      %852 = vmatpush1.msra.mxu0 %v839
      %853 = vmatprep.subr.mxu0 0.0
      %854 = vmatpush1.msra.mxu0 %v840
      %855 = vmatprep.subr.mxu0 0.0
      %856 = vmatpush1.msra.mxu0 %v841
      %857 = vmatprep.subr.mxu0 0.0
      %858 = vmatpush1.msra.mxu0 0.0
      %859 = vmatprep.subr.mxu0 0.0
      %860 = vmatpush1.msra.mxu0 0.0
      %861 = vmatprep.subr.mxu0 0.0
      %862 = vmatpush1.msra.mxu0 0.0
      %863 = vmatprep.subr.mxu0 0.0
      %864 = vmatpush1.msra.mxu0 0.0
      %865 = vmatprep.subr.mxu0 0.0
      %866 = vmatpush1.msra.mxu0 0.0
      %867 = vmatprep.subr.mxu0 0.0
      %868 = vmatpush1.msra.mxu0 0.0
      %869 = vmatprep.subr.mxu0 0.0
      %870 = vmatpush1.msra.mxu0 0.0
      %871 = vmatprep.subr.mxu0 0.0
      %872 = vmatpush1.msra.mxu0 0.0
      %873 = vmatprep.subr.mxu0 0.0
      %874 = vmatpush1.msra.mxu0 0.0
      %875 = vmatprep.subr.mxu0 0.0
      %876 = vmatpush1.msra.mxu0 0.0
      %877 = vmatprep.subr.mxu0 0.0
      %878 = vmatpush1.msra.mxu0 0.0
      %879 = vmatprep.subr.mxu0 0.0
      %880 = vmatpush1.msra.mxu0 0.0
      %881 = vmatprep.subr.mxu0 0.0
      %882 = vmatpush1.msra.mxu0 0.0
      %883 = vmatprep.subr.mxu0 0.0
      %884 = vmatpush1.msra.mxu0 0.0
      %885 = vmatprep.subr.mxu0 0.0
      %886 = vmatpush1.msra.mxu0 0.0
      %887 = vmatprep.subr.mxu0 0.0
      %888 = vmatpush1.msra.mxu0 0.0
      %889 = vmatprep.subr.mxu0 0.0
      %890 = vmatpush1.msra.mxu0 0.0
      %891 = vmatprep.subr.mxu0 0.0
      %892 = vmatpush1.msra.mxu0 0.0
      %893 = vmatprep.subr.mxu0 0.0
      %894 = vmatpush1.msra.mxu0 0.0
      %895 = vmatprep.subr.mxu0 0.0
      %896 = vmatpush1.msra.mxu0 0.0
      %897 = vmatprep.subr.mxu0 0.0
      %898 = vmatpush1.msra.mxu0 0.0
      %899 = vmatprep.subr.mxu0 0.0
      %900 = vmatpush1.msra.mxu0 0.0
      %901 = vmatprep.subr.mxu0 0.0
      %902 = vmatpush1.msra.mxu0 0.0
      %903 = vmatprep.subr.mxu0 0.0
      %904 = vmatpush1.msra.mxu0 0.0
      %905 = vmatprep.subr.mxu0 0.0
      %906 = vmatpush1.msra.mxu0 0.0
      %907 = vmatprep.subr.mxu0 0.0
      %908 = vmatpush1.msra.mxu0 0.0
      %909 = vmatprep.subr.mxu0 0.0
      %910 = vmatpush1.msra.mxu0 0.0
      %911 = vmatprep.subr.mxu0 0.0
      %912 = vmatpush1.msra.mxu0 0.0
      %913 = vmatprep.mubr.f32.mxu0 0.0
      %914 = vmatmul.mubr.f32.gmra.mrb[0].mxu0 %v758
      %v915 = vpop.f32.mrb[0].mxu0
      %v916 = vadd.f32 %v847, %v915
      %v917 = vpop.f32.mrb[0].mxu0
      %918 = vmatprep.mubr.f32.mxu0 0.0
      %919 = vmatmul.mubr.f32.gmra.mrb[0].mxu0 %v761
      %v920 = vpop.f32.mrb[0].mxu0
      %v921 = vadd.f32 %v847, %v920
      %v922 = vpop.f32.mrb[0].mxu0
      %923 = vdwg.mxu0
      %v924 = vld [vmem:[%s689] sm:$0xff]
      %v925 = vld [vmem:[%s689 + $0x8] sm:$0xff]
      %v926 = vld [vmem:[%s689 + $0x10] sm:$0xff]
      %v927 = vld [vmem:[%s689 + $0x18] sm:$0xff]
      %v928 = vld [vmem:[%s701] sm:$0x1]
      %v930 = vlaneseq
      %v931 = vshrl.u32 %v930, 7
      %v932 = vsub.s32 0, %v931
      %v933 = vrot.slane %v928, %v932
      %935 = vmatprep.subr.mxu0 0.0
      %936 = vmatpush1.msra.mxu0 %v924
      %937 = vmatprep.subr.mxu0 0.0
      %938 = vmatpush1.msra.mxu0 %v925
      %939 = vmatprep.subr.mxu0 0.0
      %940 = vmatpush1.msra.mxu0 %v926
      %941 = vmatprep.subr.mxu0 0.0
      %942 = vmatpush1.msra.mxu0 %v927
      %943 = vmatprep.subr.mxu0 0.0
      %944 = vmatpush1.msra.mxu0 0.0
      %945 = vmatprep.subr.mxu0 0.0
      %946 = vmatpush1.msra.mxu0 0.0
      %947 = vmatprep.subr.mxu0 0.0
      %948 = vmatpush1.msra.mxu0 0.0
      %949 = vmatprep.subr.mxu0 0.0
      %950 = vmatpush1.msra.mxu0 0.0
      %951 = vmatprep.subr.mxu0 0.0
      %952 = vmatpush1.msra.mxu0 0.0
      %953 = vmatprep.subr.mxu0 0.0
      %954 = vmatpush1.msra.mxu0 0.0
      %955 = vmatprep.subr.mxu0 0.0
      %956 = vmatpush1.msra.mxu0 0.0
      %957 = vmatprep.subr.mxu0 0.0
      %958 = vmatpush1.msra.mxu0 0.0
      %959 = vmatprep.subr.mxu0 0.0
      %960 = vmatpush1.msra.mxu0 0.0
      %961 = vmatprep.subr.mxu0 0.0
      %962 = vmatpush1.msra.mxu0 0.0
      %963 = vmatprep.subr.mxu0 0.0
      %964 = vmatpush1.msra.mxu0 0.0
      %965 = vmatprep.subr.mxu0 0.0
      %966 = vmatpush1.msra.mxu0 0.0
      %967 = vmatprep.subr.mxu0 0.0
      %968 = vmatpush1.msra.mxu0 0.0
      %969 = vmatprep.subr.mxu0 0.0
      %970 = vmatpush1.msra.mxu0 0.0
      %971 = vmatprep.subr.mxu0 0.0
      %972 = vmatpush1.msra.mxu0 0.0
      %973 = vmatprep.subr.mxu0 0.0
      %974 = vmatpush1.msra.mxu0 0.0
      %975 = vmatprep.subr.mxu0 0.0
      %976 = vmatpush1.msra.mxu0 0.0
      %977 = vmatprep.subr.mxu0 0.0
      %978 = vmatpush1.msra.mxu0 0.0
      %979 = vmatprep.subr.mxu0 0.0
      %980 = vmatpush1.msra.mxu0 0.0
      %981 = vmatprep.subr.mxu0 0.0
      %982 = vmatpush1.msra.mxu0 0.0
      %983 = vmatprep.subr.mxu0 0.0
      %984 = vmatpush1.msra.mxu0 0.0
      %985 = vmatprep.subr.mxu0 0.0
      %986 = vmatpush1.msra.mxu0 0.0
      %987 = vmatprep.subr.mxu0 0.0
      %988 = vmatpush1.msra.mxu0 0.0
      %989 = vmatprep.subr.mxu0 0.0
      %990 = vmatpush1.msra.mxu0 0.0
      %991 = vmatprep.subr.mxu0 0.0
      %992 = vmatpush1.msra.mxu0 0.0
      %993 = vmatprep.subr.mxu0 0.0
      %994 = vmatpush1.msra.mxu0 0.0
      %995 = vmatprep.subr.mxu0 0.0
      %996 = vmatpush1.msra.mxu0 0.0
      %997 = vmatprep.subr.mxu0 0.0
      %998 = vmatpush1.msra.mxu0 0.0
      %999 = vmatprep.mubr.f32.mxu0 0.0
      %1000 = vmatmul.mubr.f32.gmra.mrb[0].mxu0 %v758
      %v1001 = vpop.f32.mrb[0].mxu0
      %v1002 = vadd.f32 %v933, %v1001
      %v1003 = vpop.f32.mrb[0].mxu0
      %1004 = vmatprep.mubr.f32.mxu0 0.0
      %1005 = vmatmul.mubr.f32.gmra.mrb[0].mxu0 %v761
      %v1006 = vpop.f32.mrb[0].mxu0
      %v1007 = vadd.f32 %v933, %v1006
      %v1008 = vpop.f32.mrb[0].mxu0
      %1009 = vdwg.mxu0
      %v1010 = vmul.f32 %v830, 0.35355338
      %v1011 = vmul.f32 %v835, 0.35355338
      %vm1012 = vcmask 64512
      %v1014 = vsel %vm1012, %v1010, 0
      %v1017 = vsel %vm1012, %v1011, 0
      %v1020 = vsel %vm1012, %v916, 0
      %v1023 = vsel %vm1012, %v921, 0
      %1025 = vmatprep.subr.mxu0 0.0
      %1026 = vmatpush1.xpose.msra.mxu0 %v1020
      %1027 = vmatprep.subr.mxu0 0.0
      %1028 = vmatpush1.xpose.msra.mxu0 %v1023
      %1029 = vmatprep.subr.mxu0 0.0
      %1030 = vmatpush1.xpose.msra.mxu0 0.0
      %1031 = vmatprep.subr.mxu0 0.0
      %1032 = vmatpush1.xpose.msra.mxu0 0.0
      %1033 = vmatprep.subr.mxu0 0.0
      %1034 = vmatpush1.xpose.msra.mxu0 0.0
      %1035 = vmatprep.subr.mxu0 0.0
      %1036 = vmatpush1.xpose.msra.mxu0 0.0
      %1037 = vmatprep.subr.mxu0 0.0
      %1038 = vmatpush1.xpose.msra.mxu0 0.0
      %1039 = vmatprep.subr.mxu0 0.0
      %1040 = vmatpush1.xpose.msra.mxu0 0.0
      %1041 = vmatprep.subr.mxu0 0.0
      %1042 = vmatpush1.xpose.msra.mxu0 0.0
      %1043 = vmatprep.subr.mxu0 0.0
      %1044 = vmatpush1.xpose.msra.mxu0 0.0
      %1045 = vmatprep.subr.mxu0 0.0
      %1046 = vmatpush1.xpose.msra.mxu0 0.0
      %1047 = vmatprep.subr.mxu0 0.0
      %1048 = vmatpush1.xpose.msra.mxu0 0.0
      %1049 = vmatprep.subr.mxu0 0.0
      %1050 = vmatpush1.xpose.msra.mxu0 0.0
      %1051 = vmatprep.subr.mxu0 0.0
      %1052 = vmatpush1.xpose.msra.mxu0 0.0
      %1053 = vmatprep.subr.mxu0 0.0
      %1054 = vmatpush1.xpose.msra.mxu0 0.0
      %1055 = vmatprep.subr.mxu0 0.0
      %1056 = vmatpush1.xpose.msra.mxu0 0.0
      %1057 = vmatprep.subr.mxu0 0.0
      %1058 = vmatpush1.xpose.msra.mxu0 0.0
      %1059 = vmatprep.subr.mxu0 0.0
      %1060 = vmatpush1.xpose.msra.mxu0 0.0
      %1061 = vmatprep.subr.mxu0 0.0
      %1062 = vmatpush1.xpose.msra.mxu0 0.0
      %1063 = vmatprep.subr.mxu0 0.0
      %1064 = vmatpush1.xpose.msra.mxu0 0.0
      %1065 = vmatprep.subr.mxu0 0.0
      %1066 = vmatpush1.xpose.msra.mxu0 0.0
      %1067 = vmatprep.subr.mxu0 0.0
      %1068 = vmatpush1.xpose.msra.mxu0 0.0
      %1069 = vmatprep.subr.mxu0 0.0
      %1070 = vmatpush1.xpose.msra.mxu0 0.0
      %1071 = vmatprep.subr.mxu0 0.0
      %1072 = vmatpush1.xpose.msra.mxu0 0.0
      %1073 = vmatprep.subr.mxu0 0.0
      %1074 = vmatpush1.xpose.msra.mxu0 0.0
      %1075 = vmatprep.subr.mxu0 0.0
      %1076 = vmatpush1.xpose.msra.mxu0 0.0
      %1077 = vmatprep.subr.mxu0 0.0
      %1078 = vmatpush1.xpose.msra.mxu0 0.0
      %1079 = vmatprep.subr.mxu0 0.0
      %1080 = vmatpush1.xpose.msra.mxu0 0.0
      %1081 = vmatprep.subr.mxu0 0.0
      %1082 = vmatpush1.xpose.msra.mxu0 0.0
      %1083 = vmatprep.subr.mxu0 0.0
      %1084 = vmatpush1.xpose.msra.mxu0 0.0
      %1085 = vmatprep.subr.mxu0 0.0
      %1086 = vmatpush1.xpose.msra.mxu0 0.0
      %1087 = vmatprep.subr.mxu0 0.0
      %1088 = vmatpush1.xpose.msra.mxu0 0.0
      %1089 = vmatprep.mubr.f32.mxu0 0.0
      %1090 = vmatmul.mubr.f32.gmra.mrb[0].mxu0 %v1014
      %v1091 = vpop.f32.mrb[0].mxu0
      %v1092 = vadd.f32 0.0, %v1091
      %v1093 = vpop.f32.mrb[0].mxu0
      %1094 = vmatprep.mubr.f32.mxu0 0.0
      %1095 = vmatmul.mubr.f32.gmra.mrb[0].mxu0 %v1017
      %v1096 = vpop.f32.mrb[0].mxu0
      %v1097 = vadd.f32 0.0, %v1096
      %v1098 = vpop.f32.mrb[0].mxu0
      %1099 = vdwg.mxu0
      %vm1100 = vcmask 130048
      %v1101 = vsel %vm1100, %v1092, -inf
      %1102 = vmax.xlane.f32.xlu0 %v1101
      %v1103 = vpop.xlane.xlu0 %1102
      %v1104 = vsel %vm1100, %v1097, -inf
      %1105 = vmax.xlane.f32.xlu0 %v1104
      %v1106 = vpop.xlane.xlu0 %1105
      %v1107 = vsub.f32 %v1092, %v1103
      %v1108 = vsub.f32 %v1097, %v1106
      %v1109 = vmul.f32 %v1107, 1.442695
      %v1110 = vpow.pop %v1109
      %v1111 = vmul.f32 %v1108, 1.442695
      %v1112 = vpow.pop %v1111
      %v1113 = vsel %vm1100, %v1110, 0.0
      %1114 = vadd.xlane.f32.xlu0 %v1113
      %v1115 = vpop.xlane.xlu0 %1114
      %v1116 = vsel %vm1100, %v1112, 0.0
      %1117 = vadd.xlane.f32.xlu0 %v1116
      %v1118 = vpop.xlane.xlu0 %1117
      %v1119 = vrcp.pop %v1115
      %v1120 = vrcp.pop %v1118
      %v1121 = vmul.f32 %v1110, %v1119
      %v1122 = vmul.f32 %v1112, %v1120
      %v1124 = vsel %vm1100, %v1121, 0
      %v1127 = vsel %vm1100, %v1122, 0
      %1129 = vmatprep.subr.mxu0 0.0
      %1130 = vmatpush1.msra.mxu0 %v1002
      %1131 = vmatprep.subr.mxu0 0.0
      %1132 = vmatpush1.msra.mxu0 %v1007
      %1133 = vmatprep.subr.mxu0 0.0
      %1134 = vmatpush1.msra.mxu0 0.0
      %1135 = vmatprep.subr.mxu0 0.0
      %1136 = vmatpush1.msra.mxu0 0.0
      %1137 = vmatprep.subr.mxu0 0.0
      %1138 = vmatpush1.msra.mxu0 0.0
      %1139 = vmatprep.subr.mxu0 0.0
      %1140 = vmatpush1.msra.mxu0 0.0
      %1141 = vmatprep.subr.mxu0 0.0
      %1142 = vmatpush1.msra.mxu0 0.0
      %1143 = vmatprep.subr.mxu0 0.0
      %1144 = vmatpush1.msra.mxu0 0.0
      %1145 = vmatprep.subr.mxu0 0.0
      %1146 = vmatpush1.msra.mxu0 0.0
      %1147 = vmatprep.subr.mxu0 0.0
      %1148 = vmatpush1.msra.mxu0 0.0
      %1149 = vmatprep.subr.mxu0 0.0
      %1150 = vmatpush1.msra.mxu0 0.0
      %1151 = vmatprep.subr.mxu0 0.0
      %1152 = vmatpush1.msra.mxu0 0.0
      %1153 = vmatprep.subr.mxu0 0.0
      %1154 = vmatpush1.msra.mxu0 0.0
      %1155 = vmatprep.subr.mxu0 0.0
      %1156 = vmatpush1.msra.mxu0 0.0
      %1157 = vmatprep.subr.mxu0 0.0
      %1158 = vmatpush1.msra.mxu0 0.0
      %1159 = vmatprep.subr.mxu0 0.0
      %1160 = vmatpush1.msra.mxu0 0.0
      %1161 = vmatprep.subr.mxu0 0.0
      %1162 = vmatpush1.msra.mxu0 0.0
      %1163 = vmatprep.subr.mxu0 0.0
      %1164 = vmatpush1.msra.mxu0 0.0
      %1165 = vmatprep.subr.mxu0 0.0
      %1166 = vmatpush1.msra.mxu0 0.0
      %1167 = vmatprep.subr.mxu0 0.0
      %1168 = vmatpush1.msra.mxu0 0.0
      %1169 = vmatprep.subr.mxu0 0.0
      %1170 = vmatpush1.msra.mxu0 0.0
      %1171 = vmatprep.subr.mxu0 0.0
      %1172 = vmatpush1.msra.mxu0 0.0
      %1173 = vmatprep.subr.mxu0 0.0
      %1174 = vmatpush1.msra.mxu0 0.0
      %1175 = vmatprep.subr.mxu0 0.0
      %1176 = vmatpush1.msra.mxu0 0.0
      %1177 = vmatprep.subr.mxu0 0.0
      %1178 = vmatpush1.msra.mxu0 0.0
      %1179 = vmatprep.subr.mxu0 0.0
      %1180 = vmatpush1.msra.mxu0 0.0
      %1181 = vmatprep.subr.mxu0 0.0
      %1182 = vmatpush1.msra.mxu0 0.0
      %1183 = vmatprep.subr.mxu0 0.0
      %1184 = vmatpush1.msra.mxu0 0.0
      %1185 = vmatprep.subr.mxu0 0.0
      %1186 = vmatpush1.msra.mxu0 0.0
      %1187 = vmatprep.subr.mxu0 0.0
      %1188 = vmatpush1.msra.mxu0 0.0
      %1189 = vmatprep.subr.mxu0 0.0
      %1190 = vmatpush1.msra.mxu0 0.0
      %1191 = vmatprep.subr.mxu0 0.0
      %1192 = vmatpush1.msra.mxu0 0.0
      %1193 = vmatprep.mubr.f32.mxu0 0.0
      %1194 = vmatmul.mubr.f32.gmra.mrb[0].mxu0 %v1124
      %v1195 = vpop.f32.mrb[0].mxu0
      %v1196 = vadd.f32 0.0, %v1195
      %v1197 = vpop.f32.mrb[0].mxu0
      %1198 = vmatprep.mubr.f32.mxu0 0.0
      %1199 = vmatmul.mubr.f32.gmra.mrb[0].mxu0 %v1127
      %v1200 = vpop.f32.mrb[0].mxu0
      %v1201 = vadd.f32 0.0, %v1200
      %v1202 = vpop.f32.mrb[0].mxu0
      %1203 = vdwg.mxu0
      %v1204 = vld [vmem:[%s706] sm:$0xff]
      %s1205 = scalar_lea.vmem %s679, 32
      %v1206 = vld [vmem:[%s1205] sm:$0xff]
      %v1207 = vld [vmem:[%s1205 + $0x8] sm:$0xff]
      %v1208 = vld [vmem:[%s1205 + $0x10] sm:$0xff]
      %v1209 = vld [vmem:[%s1205 + $0x18] sm:$0xff]
      %s1210 = scalar_lea.vmem %s693, 1
      %v1211 = vld [vmem:[%s1210] sm:$0x1]
      %v1213 = vlaneseq
      %v1214 = vshrl.u32 %v1213, 7
      %v1215 = vsub.s32 0, %v1214
      %v1216 = vrot.slane %v1211, %v1215
      %1218 = vmatprep.subr.mxu0 0.0
      %1219 = vmatpush1.msra.mxu0 %v1206
      %1220 = vmatprep.subr.mxu0 0.0
      %1221 = vmatpush1.msra.mxu0 %v1207
      %1222 = vmatprep.subr.mxu0 0.0
      %1223 = vmatpush1.msra.mxu0 %v1208
      %1224 = vmatprep.subr.mxu0 0.0
      %1225 = vmatpush1.msra.mxu0 %v1209
      %1226 = vmatprep.subr.mxu0 0.0
      %1227 = vmatpush1.msra.mxu0 0.0
      %1228 = vmatprep.subr.mxu0 0.0
      %1229 = vmatpush1.msra.mxu0 0.0
      %1230 = vmatprep.subr.mxu0 0.0
      %1231 = vmatpush1.msra.mxu0 0.0
      %1232 = vmatprep.subr.mxu0 0.0
      %1233 = vmatpush1.msra.mxu0 0.0
      %1234 = vmatprep.subr.mxu0 0.0
      %1235 = vmatpush1.msra.mxu0 0.0
      %1236 = vmatprep.subr.mxu0 0.0
      %1237 = vmatpush1.msra.mxu0 0.0
      %1238 = vmatprep.subr.mxu0 0.0
      %1239 = vmatpush1.msra.mxu0 0.0
      %1240 = vmatprep.subr.mxu0 0.0
      %1241 = vmatpush1.msra.mxu0 0.0
      %1242 = vmatprep.subr.mxu0 0.0
      %1243 = vmatpush1.msra.mxu0 0.0
      %1244 = vmatprep.subr.mxu0 0.0
      %1245 = vmatpush1.msra.mxu0 0.0
      %1246 = vmatprep.subr.mxu0 0.0
      %1247 = vmatpush1.msra.mxu0 0.0
      %1248 = vmatprep.subr.mxu0 0.0
      %1249 = vmatpush1.msra.mxu0 0.0
      %1250 = vmatprep.subr.mxu0 0.0
      %1251 = vmatpush1.msra.mxu0 0.0
      %1252 = vmatprep.subr.mxu0 0.0
      %1253 = vmatpush1.msra.mxu0 0.0
      %1254 = vmatprep.subr.mxu0 0.0
      %1255 = vmatpush1.msra.mxu0 0.0
      %1256 = vmatprep.subr.mxu0 0.0
      %1257 = vmatpush1.msra.mxu0 0.0
      %1258 = vmatprep.subr.mxu0 0.0
      %1259 = vmatpush1.msra.mxu0 0.0
      %1260 = vmatprep.subr.mxu0 0.0
      %1261 = vmatpush1.msra.mxu0 0.0
      %1262 = vmatprep.subr.mxu0 0.0
      %1263 = vmatpush1.msra.mxu0 0.0
      %1264 = vmatprep.subr.mxu0 0.0
      %1265 = vmatpush1.msra.mxu0 0.0
      %1266 = vmatprep.subr.mxu0 0.0
      %1267 = vmatpush1.msra.mxu0 0.0
      %1268 = vmatprep.subr.mxu0 0.0
      %1269 = vmatpush1.msra.mxu0 0.0
      %1270 = vmatprep.subr.mxu0 0.0
      %1271 = vmatpush1.msra.mxu0 0.0
      %1272 = vmatprep.subr.mxu0 0.0
      %1273 = vmatpush1.msra.mxu0 0.0
      %1274 = vmatprep.subr.mxu0 0.0
      %1275 = vmatpush1.msra.mxu0 0.0
      %1276 = vmatprep.subr.mxu0 0.0
      %1277 = vmatpush1.msra.mxu0 0.0
      %1278 = vmatprep.subr.mxu0 0.0
      %1279 = vmatpush1.msra.mxu0 0.0
      %1280 = vmatprep.subr.mxu0 0.0
      %1281 = vmatpush1.msra.mxu0 0.0
      %1282 = vmatprep.mubr.f32.mxu0 0.0
      %1283 = vmatmul.mubr.f32.gmra.mrb[0].mxu0 %v758
      %v1284 = vpop.f32.mrb[0].mxu0
      %v1285 = vadd.f32 %v1216, %v1284
      %v1286 = vpop.f32.mrb[0].mxu0
      %1287 = vmatprep.mubr.f32.mxu0 0.0
      %1288 = vmatmul.mubr.f32.gmra.mrb[0].mxu0 %v761
      %v1289 = vpop.f32.mrb[0].mxu0
      %v1290 = vadd.f32 %v1216, %v1289
      %v1291 = vpop.f32.mrb[0].mxu0
      %1292 = vdwg.mxu0
      %s1293 = scalar_lea.vmem %s684, 32
      %v1294 = vld [vmem:[%s1293] sm:$0xff]
      %v1295 = vld [vmem:[%s1293 + $0x8] sm:$0xff]
      %v1296 = vld [vmem:[%s1293 + $0x10] sm:$0xff]
      %v1297 = vld [vmem:[%s1293 + $0x18] sm:$0xff]
      %s1298 = scalar_lea.vmem %s697, 1
      %v1299 = vld [vmem:[%s1298] sm:$0x1]
      %v1301 = vlaneseq
      %v1302 = vshrl.u32 %v1301, 7
      %v1303 = vsub.s32 0, %v1302
      %v1304 = vrot.slane %v1299, %v1303
      %1306 = vmatprep.subr.mxu0 0.0
      %1307 = vmatpush1.msra.mxu0 %v1294
      %1308 = vmatprep.subr.mxu0 0.0
      %1309 = vmatpush1.msra.mxu0 %v1295
      %1310 = vmatprep.subr.mxu0 0.0
      %1311 = vmatpush1.msra.mxu0 %v1296
      %1312 = vmatprep.subr.mxu0 0.0
      %1313 = vmatpush1.msra.mxu0 %v1297
      %1314 = vmatprep.subr.mxu0 0.0
      %1315 = vmatpush1.msra.mxu0 0.0
      %1316 = vmatprep.subr.mxu0 0.0
      %1317 = vmatpush1.msra.mxu0 0.0
      %1318 = vmatprep.subr.mxu0 0.0
      %1319 = vmatpush1.msra.mxu0 0.0
      %1320 = vmatprep.subr.mxu0 0.0
      %1321 = vmatpush1.msra.mxu0 0.0
      %1322 = vmatprep.subr.mxu0 0.0
      %1323 = vmatpush1.msra.mxu0 0.0
      %1324 = vmatprep.subr.mxu0 0.0
      %1325 = vmatpush1.msra.mxu0 0.0
      %1326 = vmatprep.subr.mxu0 0.0
      %1327 = vmatpush1.msra.mxu0 0.0
      %1328 = vmatprep.subr.mxu0 0.0
      %1329 = vmatpush1.msra.mxu0 0.0
      %1330 = vmatprep.subr.mxu0 0.0
      %1331 = vmatpush1.msra.mxu0 0.0
      %1332 = vmatprep.subr.mxu0 0.0
      %1333 = vmatpush1.msra.mxu0 0.0
      %1334 = vmatprep.subr.mxu0 0.0
      %1335 = vmatpush1.msra.mxu0 0.0
      %1336 = vmatprep.subr.mxu0 0.0
      %1337 = vmatpush1.msra.mxu0 0.0
      %1338 = vmatprep.subr.mxu0 0.0
      %1339 = vmatpush1.msra.mxu0 0.0
      %1340 = vmatprep.subr.mxu0 0.0
      %1341 = vmatpush1.msra.mxu0 0.0
      %1342 = vmatprep.subr.mxu0 0.0
      %1343 = vmatpush1.msra.mxu0 0.0
      %1344 = vmatprep.subr.mxu0 0.0
      %1345 = vmatpush1.msra.mxu0 0.0
      %1346 = vmatprep.subr.mxu0 0.0
      %1347 = vmatpush1.msra.mxu0 0.0
      %1348 = vmatprep.subr.mxu0 0.0
      %1349 = vmatpush1.msra.mxu0 0.0
      %1350 = vmatprep.subr.mxu0 0.0
      %1351 = vmatpush1.msra.mxu0 0.0
      %1352 = vmatprep.subr.mxu0 0.0
      %1353 = vmatpush1.msra.mxu0 0.0
      %1354 = vmatprep.subr.mxu0 0.0
      %1355 = vmatpush1.msra.mxu0 0.0
      %1356 = vmatprep.subr.mxu0 0.0
      %1357 = vmatpush1.msra.mxu0 0.0
      %1358 = vmatprep.subr.mxu0 0.0
      %1359 = vmatpush1.msra.mxu0 0.0
      %1360 = vmatprep.subr.mxu0 0.0
      %1361 = vmatpush1.msra.mxu0 0.0
      %1362 = vmatprep.subr.mxu0 0.0
      %1363 = vmatpush1.msra.mxu0 0.0
      %1364 = vmatprep.subr.mxu0 0.0
      %1365 = vmatpush1.msra.mxu0 0.0
      %1366 = vmatprep.subr.mxu0 0.0
      %1367 = vmatpush1.msra.mxu0 0.0
      %1368 = vmatprep.subr.mxu0 0.0
      %1369 = vmatpush1.msra.mxu0 0.0
      %1370 = vmatprep.mubr.f32.mxu0 0.0
      %1371 = vmatmul.mubr.f32.gmra.mrb[0].mxu0 %v758
      %v1372 = vpop.f32.mrb[0].mxu0
      %v1373 = vadd.f32 %v1304, %v1372
      %v1374 = vpop.f32.mrb[0].mxu0
      %1375 = vmatprep.mubr.f32.mxu0 0.0
      %1376 = vmatmul.mubr.f32.gmra.mrb[0].mxu0 %v761
      %v1377 = vpop.f32.mrb[0].mxu0
      %v1378 = vadd.f32 %v1304, %v1377
      %v1379 = vpop.f32.mrb[0].mxu0
      %1380 = vdwg.mxu0
      %s1381 = scalar_lea.vmem %s689, 32
      %v1382 = vld [vmem:[%s1381] sm:$0xff]
      %v1383 = vld [vmem:[%s1381 + $0x8] sm:$0xff]
      %v1384 = vld [vmem:[%s1381 + $0x10] sm:$0xff]
      %v1385 = vld [vmem:[%s1381 + $0x18] sm:$0xff]
      %s1386 = scalar_lea.vmem %s701, 1
      %v1387 = vld [vmem:[%s1386] sm:$0x1]
      %v1389 = vlaneseq
      %v1390 = vshrl.u32 %v1389, 7
      %v1391 = vsub.s32 0, %v1390
      %v1392 = vrot.slane %v1387, %v1391
      %1394 = vmatprep.subr.mxu0 0.0
      %1395 = vmatpush1.msra.mxu0 %v1382
      %1396 = vmatprep.subr.mxu0 0.0
      %1397 = vmatpush1.msra.mxu0 %v1383
      %1398 = vmatprep.subr.mxu0 0.0
      %1399 = vmatpush1.msra.mxu0 %v1384
      %1400 = vmatprep.subr.mxu0 0.0
      %1401 = vmatpush1.msra.mxu0 %v1385
      %1402 = vmatprep.subr.mxu0 0.0
      %1403 = vmatpush1.msra.mxu0 0.0
      %1404 = vmatprep.subr.mxu0 0.0
      %1405 = vmatpush1.msra.mxu0 0.0
      %1406 = vmatprep.subr.mxu0 0.0
      %1407 = vmatpush1.msra.mxu0 0.0
      %1408 = vmatprep.subr.mxu0 0.0
      %1409 = vmatpush1.msra.mxu0 0.0
      %1410 = vmatprep.subr.mxu0 0.0
      %1411 = vmatpush1.msra.mxu0 0.0
      %1412 = vmatprep.subr.mxu0 0.0
      %1413 = vmatpush1.msra.mxu0 0.0
      %1414 = vmatprep.subr.mxu0 0.0
      %1415 = vmatpush1.msra.mxu0 0.0
      %1416 = vmatprep.subr.mxu0 0.0
      %1417 = vmatpush1.msra.mxu0 0.0
      %1418 = vmatprep.subr.mxu0 0.0
      %1419 = vmatpush1.msra.mxu0 0.0
      %1420 = vmatprep.subr.mxu0 0.0
      %1421 = vmatpush1.msra.mxu0 0.0
      %1422 = vmatprep.subr.mxu0 0.0
      %1423 = vmatpush1.msra.mxu0 0.0
      %1424 = vmatprep.subr.mxu0 0.0
      %1425 = vmatpush1.msra.mxu0 0.0
      %1426 = vmatprep.subr.mxu0 0.0
      %1427 = vmatpush1.msra.mxu0 0.0
      %1428 = vmatprep.subr.mxu0 0.0
      %1429 = vmatpush1.msra.mxu0 0.0
      %1430 = vmatprep.subr.mxu0 0.0
      %1431 = vmatpush1.msra.mxu0 0.0
      %1432 = vmatprep.subr.mxu0 0.0
      %1433 = vmatpush1.msra.mxu0 0.0
      %1434 = vmatprep.subr.mxu0 0.0
      %1435 = vmatpush1.msra.mxu0 0.0
      %1436 = vmatprep.subr.mxu0 0.0
      %1437 = vmatpush1.msra.mxu0 0.0
      %1438 = vmatprep.subr.mxu0 0.0
      %1439 = vmatpush1.msra.mxu0 0.0
      %1440 = vmatprep.subr.mxu0 0.0
      %1441 = vmatpush1.msra.mxu0 0.0
      %1442 = vmatprep.subr.mxu0 0.0
      %1443 = vmatpush1.msra.mxu0 0.0
      %1444 = vmatprep.subr.mxu0 0.0
      %1445 = vmatpush1.msra.mxu0 0.0
      %1446 = vmatprep.subr.mxu0 0.0
      %1447 = vmatpush1.msra.mxu0 0.0
      %1448 = vmatprep.subr.mxu0 0.0
      %1449 = vmatpush1.msra.mxu0 0.0
      %1450 = vmatprep.subr.mxu0 0.0
      %1451 = vmatpush1.msra.mxu0 0.0
      %1452 = vmatprep.subr.mxu0 0.0
      %1453 = vmatpush1.msra.mxu0 0.0
      %1454 = vmatprep.subr.mxu0 0.0
      %1455 = vmatpush1.msra.mxu0 0.0
      %1456 = vmatprep.subr.mxu0 0.0
      %1457 = vmatpush1.msra.mxu0 0.0
      %1458 = vmatprep.mubr.f32.mxu0 0.0
      %1459 = vmatmul.mubr.f32.gmra.mrb[0].mxu0 %v758
      %v1460 = vpop.f32.mrb[0].mxu0
      %v1461 = vadd.f32 %v1392, %v1460
      %v1462 = vpop.f32.mrb[0].mxu0
      %1463 = vmatprep.mubr.f32.mxu0 0.0
      %1464 = vmatmul.mubr.f32.gmra.mrb[0].mxu0 %v761
      %v1465 = vpop.f32.mrb[0].mxu0
      %v1466 = vadd.f32 %v1392, %v1465
      %v1467 = vpop.f32.mrb[0].mxu0
      %1468 = vdwg.mxu0
      %v1469 = vmul.f32 %v1285, 0.35355338
      %v1470 = vmul.f32 %v1290, 0.35355338
      %v1472 = vsel %vm1012, %v1469, 0
      %v1475 = vsel %vm1012, %v1470, 0
      %v1478 = vsel %vm1012, %v1373, 0
      %v1481 = vsel %vm1012, %v1378, 0
      %1483 = vmatprep.subr.mxu0 0.0
      %1484 = vmatpush1.xpose.msra.mxu0 %v1478
      %1485 = vmatprep.subr.mxu0 0.0
      %1486 = vmatpush1.xpose.msra.mxu0 %v1481
      %1487 = vmatprep.subr.mxu0 0.0
      %1488 = vmatpush1.xpose.msra.mxu0 0.0
      %1489 = vmatprep.subr.mxu0 0.0
      %1490 = vmatpush1.xpose.msra.mxu0 0.0
      %1491 = vmatprep.subr.mxu0 0.0
      %1492 = vmatpush1.xpose.msra.mxu0 0.0
      %1493 = vmatprep.subr.mxu0 0.0
      %1494 = vmatpush1.xpose.msra.mxu0 0.0
      %1495 = vmatprep.subr.mxu0 0.0
      %1496 = vmatpush1.xpose.msra.mxu0 0.0
      %1497 = vmatprep.subr.mxu0 0.0
      %1498 = vmatpush1.xpose.msra.mxu0 0.0
      %1499 = vmatprep.subr.mxu0 0.0
      %1500 = vmatpush1.xpose.msra.mxu0 0.0
      %1501 = vmatprep.subr.mxu0 0.0
      %1502 = vmatpush1.xpose.msra.mxu0 0.0
      %1503 = vmatprep.subr.mxu0 0.0
      %1504 = vmatpush1.xpose.msra.mxu0 0.0
      %1505 = vmatprep.subr.mxu0 0.0
      %1506 = vmatpush1.xpose.msra.mxu0 0.0
      %1507 = vmatprep.subr.mxu0 0.0
      %1508 = vmatpush1.xpose.msra.mxu0 0.0
      %1509 = vmatprep.subr.mxu0 0.0
      %1510 = vmatpush1.xpose.msra.mxu0 0.0
      %1511 = vmatprep.subr.mxu0 0.0
      %1512 = vmatpush1.xpose.msra.mxu0 0.0
      %1513 = vmatprep.subr.mxu0 0.0
      %1514 = vmatpush1.xpose.msra.mxu0 0.0
      %1515 = vmatprep.subr.mxu0 0.0
      %1516 = vmatpush1.xpose.msra.mxu0 0.0
      %1517 = vmatprep.subr.mxu0 0.0
      %1518 = vmatpush1.xpose.msra.mxu0 0.0
      %1519 = vmatprep.subr.mxu0 0.0
      %1520 = vmatpush1.xpose.msra.mxu0 0.0
      %1521 = vmatprep.subr.mxu0 0.0
      %1522 = vmatpush1.xpose.msra.mxu0 0.0
      %1523 = vmatprep.subr.mxu0 0.0
      %1524 = vmatpush1.xpose.msra.mxu0 0.0
      %1525 = vmatprep.subr.mxu0 0.0
      %1526 = vmatpush1.xpose.msra.mxu0 0.0
      %1527 = vmatprep.subr.mxu0 0.0
      %1528 = vmatpush1.xpose.msra.mxu0 0.0
      %1529 = vmatprep.subr.mxu0 0.0
      %1530 = vmatpush1.xpose.msra.mxu0 0.0
      %1531 = vmatprep.subr.mxu0 0.0
      %1532 = vmatpush1.xpose.msra.mxu0 0.0
      %1533 = vmatprep.subr.mxu0 0.0
      %1534 = vmatpush1.xpose.msra.mxu0 0.0
      %1535 = vmatprep.subr.mxu0 0.0
      %1536 = vmatpush1.xpose.msra.mxu0 0.0
      %1537 = vmatprep.subr.mxu0 0.0
      %1538 = vmatpush1.xpose.msra.mxu0 0.0
      %1539 = vmatprep.subr.mxu0 0.0
      %1540 = vmatpush1.xpose.msra.mxu0 0.0
      %1541 = vmatprep.subr.mxu0 0.0
      %1542 = vmatpush1.xpose.msra.mxu0 0.0
      %1543 = vmatprep.subr.mxu0 0.0
      %1544 = vmatpush1.xpose.msra.mxu0 0.0
      %1545 = vmatprep.subr.mxu0 0.0
      %1546 = vmatpush1.xpose.msra.mxu0 0.0
      %1547 = vmatprep.mubr.f32.mxu0 0.0
      %1548 = vmatmul.mubr.f32.gmra.mrb[0].mxu0 %v1472
      %v1549 = vpop.f32.mrb[0].mxu0
      %v1550 = vadd.f32 0.0, %v1549
      %v1551 = vpop.f32.mrb[0].mxu0
      %1552 = vmatprep.mubr.f32.mxu0 0.0
      %1553 = vmatmul.mubr.f32.gmra.mrb[0].mxu0 %v1475
      %v1554 = vpop.f32.mrb[0].mxu0
      %v1555 = vadd.f32 0.0, %v1554
      %v1556 = vpop.f32.mrb[0].mxu0
      %1557 = vdwg.mxu0
      %v1558 = vsel %vm1100, %v1550, -inf
      %1559 = vmax.xlane.f32.xlu0 %v1558
      %v1560 = vpop.xlane.xlu0 %1559
      %v1561 = vsel %vm1100, %v1555, -inf
      %1562 = vmax.xlane.f32.xlu0 %v1561
      %v1563 = vpop.xlane.xlu0 %1562
      %v1564 = vsub.f32 %v1550, %v1560
      %v1565 = vsub.f32 %v1555, %v1563
      %v1566 = vmul.f32 %v1564, 1.442695
      %v1567 = vpow.pop %v1566
      %v1568 = vmul.f32 %v1565, 1.442695
      %v1569 = vpow.pop %v1568
      %v1570 = vsel %vm1100, %v1567, 0.0
      %1571 = vadd.xlane.f32.xlu0 %v1570
      %v1572 = vpop.xlane.xlu0 %1571
      %v1573 = vsel %vm1100, %v1569, 0.0
      %1574 = vadd.xlane.f32.xlu0 %v1573
      %v1575 = vpop.xlane.xlu0 %1574
      %v1576 = vrcp.pop %v1572
      %v1577 = vrcp.pop %v1575
      %v1578 = vmul.f32 %v1567, %v1576
      %v1579 = vmul.f32 %v1569, %v1577
      %v1581 = vsel %vm1100, %v1578, 0
      %v1584 = vsel %vm1100, %v1579, 0
      %1586 = vmatprep.subr.mxu0 0.0
      %1587 = vmatpush1.msra.mxu0 %v1461
      %1588 = vmatprep.subr.mxu0 0.0
      %1589 = vmatpush1.msra.mxu0 %v1466
      %1590 = vmatprep.subr.mxu0 0.0
      %1591 = vmatpush1.msra.mxu0 0.0
      %1592 = vmatprep.subr.mxu0 0.0
      %1593 = vmatpush1.msra.mxu0 0.0
      %1594 = vmatprep.subr.mxu0 0.0
      %1595 = vmatpush1.msra.mxu0 0.0
      %1596 = vmatprep.subr.mxu0 0.0
      %1597 = vmatpush1.msra.mxu0 0.0
      %1598 = vmatprep.subr.mxu0 0.0
      %1599 = vmatpush1.msra.mxu0 0.0
      %1600 = vmatprep.subr.mxu0 0.0
      %1601 = vmatpush1.msra.mxu0 0.0
      %1602 = vmatprep.subr.mxu0 0.0
      %1603 = vmatpush1.msra.mxu0 0.0
      %1604 = vmatprep.subr.mxu0 0.0
      %1605 = vmatpush1.msra.mxu0 0.0
      %1606 = vmatprep.subr.mxu0 0.0
      %1607 = vmatpush1.msra.mxu0 0.0
      %1608 = vmatprep.subr.mxu0 0.0
      %1609 = vmatpush1.msra.mxu0 0.0
      %1610 = vmatprep.subr.mxu0 0.0
      %1611 = vmatpush1.msra.mxu0 0.0
      %1612 = vmatprep.subr.mxu0 0.0
      %1613 = vmatpush1.msra.mxu0 0.0
      %1614 = vmatprep.subr.mxu0 0.0
      %1615 = vmatpush1.msra.mxu0 0.0
      %1616 = vmatprep.subr.mxu0 0.0
      %1617 = vmatpush1.msra.mxu0 0.0
      %1618 = vmatprep.subr.mxu0 0.0
      %1619 = vmatpush1.msra.mxu0 0.0
      %1620 = vmatprep.subr.mxu0 0.0
      %1621 = vmatpush1.msra.mxu0 0.0
      %1622 = vmatprep.subr.mxu0 0.0
      %1623 = vmatpush1.msra.mxu0 0.0
      %1624 = vmatprep.subr.mxu0 0.0
      %1625 = vmatpush1.msra.mxu0 0.0
      %1626 = vmatprep.subr.mxu0 0.0
      %1627 = vmatpush1.msra.mxu0 0.0
      %1628 = vmatprep.subr.mxu0 0.0
      %1629 = vmatpush1.msra.mxu0 0.0
      %1630 = vmatprep.subr.mxu0 0.0
      %1631 = vmatpush1.msra.mxu0 0.0
      %1632 = vmatprep.subr.mxu0 0.0
      %1633 = vmatpush1.msra.mxu0 0.0
      %1634 = vmatprep.subr.mxu0 0.0
      %1635 = vmatpush1.msra.mxu0 0.0
      %1636 = vmatprep.subr.mxu0 0.0
      %1637 = vmatpush1.msra.mxu0 0.0
      %1638 = vmatprep.subr.mxu0 0.0
      %1639 = vmatpush1.msra.mxu0 0.0
      %1640 = vmatprep.subr.mxu0 0.0
      %1641 = vmatpush1.msra.mxu0 0.0
      %1642 = vmatprep.subr.mxu0 0.0
      %1643 = vmatpush1.msra.mxu0 0.0
      %1644 = vmatprep.subr.mxu0 0.0
      %1645 = vmatpush1.msra.mxu0 0.0
      %1646 = vmatprep.subr.mxu0 0.0
      %1647 = vmatpush1.msra.mxu0 0.0
      %1648 = vmatprep.subr.mxu0 0.0
      %1649 = vmatpush1.msra.mxu0 0.0
      %1650 = vmatprep.mubr.f32.mxu0 0.0
      %1651 = vmatmul.mubr.f32.gmra.mrb[0].mxu0 %v1581
      %v1652 = vpop.f32.mrb[0].mxu0
      %v1653 = vadd.f32 0.0, %v1652
      %v1654 = vpop.f32.mrb[0].mxu0
      %1655 = vmatprep.mubr.f32.mxu0 0.0
      %1656 = vmatmul.mubr.f32.gmra.mrb[0].mxu0 %v1584
      %v1657 = vpop.f32.mrb[0].mxu0
      %v1658 = vadd.f32 0.0, %v1657
      %v1659 = vpop.f32.mrb[0].mxu0
      %1660 = vdwg.mxu0
      %s1661 = scalar_lea.vmem %s706, 8
      %v1662 = vld [vmem:[%s1661] sm:$0xff]
      %v1664 = vsel %vm1012, %v1653, 0
      %v1667 = vsel %vm1012, %v1658, 0
      %1669 = vmatprep.subr.mxu0 0.0
      %1670 = vmatpush1.msra.mxu0 %v1662
      %1671 = vmatprep.subr.mxu0 0.0
      %1672 = vmatpush1.msra.mxu0 0.0
      %1673 = vmatprep.subr.mxu0 0.0
      %1674 = vmatpush1.msra.mxu0 0.0
      %1675 = vmatprep.subr.mxu0 0.0
      %1676 = vmatpush1.msra.mxu0 0.0
      %1677 = vmatprep.subr.mxu0 0.0
      %1678 = vmatpush1.msra.mxu0 0.0
      %1679 = vmatprep.subr.mxu0 0.0
      %1680 = vmatpush1.msra.mxu0 0.0
      %1681 = vmatprep.subr.mxu0 0.0
      %1682 = vmatpush1.msra.mxu0 0.0
      %1683 = vmatprep.subr.mxu0 0.0
      %1684 = vmatpush1.msra.mxu0 0.0
      %1685 = vmatprep.subr.mxu0 0.0
      %1686 = vmatpush1.msra.mxu0 0.0
      %1687 = vmatprep.subr.mxu0 0.0
      %1688 = vmatpush1.msra.mxu0 0.0
      %1689 = vmatprep.subr.mxu0 0.0
      %1690 = vmatpush1.msra.mxu0 0.0
      %1691 = vmatprep.subr.mxu0 0.0
      %1692 = vmatpush1.msra.mxu0 0.0
      %1693 = vmatprep.subr.mxu0 0.0
      %1694 = vmatpush1.msra.mxu0 0.0
      %1695 = vmatprep.subr.mxu0 0.0
      %1696 = vmatpush1.msra.mxu0 0.0
      %1697 = vmatprep.subr.mxu0 0.0
      %1698 = vmatpush1.msra.mxu0 0.0
      %1699 = vmatprep.subr.mxu0 0.0
      %1700 = vmatpush1.msra.mxu0 0.0
      %1701 = vmatprep.subr.mxu0 0.0
      %1702 = vmatpush1.msra.mxu0 0.0
      %1703 = vmatprep.subr.mxu0 0.0
      %1704 = vmatpush1.msra.mxu0 0.0
      %1705 = vmatprep.subr.mxu0 0.0
      %1706 = vmatpush1.msra.mxu0 0.0
      %1707 = vmatprep.subr.mxu0 0.0
      %1708 = vmatpush1.msra.mxu0 0.0
      %1709 = vmatprep.subr.mxu0 0.0
      %1710 = vmatpush1.msra.mxu0 0.0
      %1711 = vmatprep.subr.mxu0 0.0
      %1712 = vmatpush1.msra.mxu0 0.0
      %1713 = vmatprep.subr.mxu0 0.0
      %1714 = vmatpush1.msra.mxu0 0.0
      %1715 = vmatprep.subr.mxu0 0.0
      %1716 = vmatpush1.msra.mxu0 0.0
      %1717 = vmatprep.subr.mxu0 0.0
      %1718 = vmatpush1.msra.mxu0 0.0
      %1719 = vmatprep.subr.mxu0 0.0
      %1720 = vmatpush1.msra.mxu0 0.0
      %1721 = vmatprep.subr.mxu0 0.0
      %1722 = vmatpush1.msra.mxu0 0.0
      %1723 = vmatprep.subr.mxu0 0.0
      %1724 = vmatpush1.msra.mxu0 0.0
      %1725 = vmatprep.subr.mxu0 0.0
      %1726 = vmatpush1.msra.mxu0 0.0
      %1727 = vmatprep.subr.mxu0 0.0
      %1728 = vmatpush1.msra.mxu0 0.0
      %1729 = vmatprep.subr.mxu0 0.0
      %1730 = vmatpush1.msra.mxu0 0.0
      %1731 = vmatprep.subr.mxu0 0.0
      %1732 = vmatpush1.msra.mxu0 0.0
      %1733 = vmatprep.mubr.f32.mxu0 0.0
      %1734 = vmatmul.mubr.f32.gmra.mrb[0].mxu0 %v1664
      %v1735 = vpop.f32.mrb[0].mxu0
      %v1736 = vadd.f32 0.0, %v1735
      %v1737 = vpop.f32.mrb[0].mxu0
      %1738 = vmatprep.mubr.f32.mxu0 0.0
      %1739 = vmatmul.mubr.f32.gmra.mrb[0].mxu0 %v1667
      %v1740 = vpop.f32.mrb[0].mxu0
      %v1741 = vadd.f32 0.0, %v1740
      %v1742 = vpop.f32.mrb[0].mxu0
      %1743 = vdwg.mxu0
      %v1745 = vsel %vm1012, %v1196, 0
      %v1748 = vsel %vm1012, %v1201, 0
      %1750 = vmatprep.subr.mxu0 0.0
      %1751 = vmatpush1.msra.mxu0 %v1204
      %1752 = vmatprep.subr.mxu0 0.0
      %1753 = vmatpush1.msra.mxu0 0.0
      %1754 = vmatprep.subr.mxu0 0.0
      %1755 = vmatpush1.msra.mxu0 0.0
      %1756 = vmatprep.subr.mxu0 0.0
      %1757 = vmatpush1.msra.mxu0 0.0
      %1758 = vmatprep.subr.mxu0 0.0
      %1759 = vmatpush1.msra.mxu0 0.0
      %1760 = vmatprep.subr.mxu0 0.0
      %1761 = vmatpush1.msra.mxu0 0.0
      %1762 = vmatprep.subr.mxu0 0.0
      %1763 = vmatpush1.msra.mxu0 0.0
      %1764 = vmatprep.subr.mxu0 0.0
      %1765 = vmatpush1.msra.mxu0 0.0
      %1766 = vmatprep.subr.mxu0 0.0
      %1767 = vmatpush1.msra.mxu0 0.0
      %1768 = vmatprep.subr.mxu0 0.0
      %1769 = vmatpush1.msra.mxu0 0.0
      %1770 = vmatprep.subr.mxu0 0.0
      %1771 = vmatpush1.msra.mxu0 0.0
      %1772 = vmatprep.subr.mxu0 0.0
      %1773 = vmatpush1.msra.mxu0 0.0
      %1774 = vmatprep.subr.mxu0 0.0
      %1775 = vmatpush1.msra.mxu0 0.0
      %1776 = vmatprep.subr.mxu0 0.0
      %1777 = vmatpush1.msra.mxu0 0.0
      %1778 = vmatprep.subr.mxu0 0.0
      %1779 = vmatpush1.msra.mxu0 0.0
      %1780 = vmatprep.subr.mxu0 0.0
      %1781 = vmatpush1.msra.mxu0 0.0
      %1782 = vmatprep.subr.mxu0 0.0
      %1783 = vmatpush1.msra.mxu0 0.0
      %1784 = vmatprep.subr.mxu0 0.0
      %1785 = vmatpush1.msra.mxu0 0.0
      %1786 = vmatprep.subr.mxu0 0.0
      %1787 = vmatpush1.msra.mxu0 0.0
      %1788 = vmatprep.subr.mxu0 0.0
      %1789 = vmatpush1.msra.mxu0 0.0
      %1790 = vmatprep.subr.mxu0 0.0
      %1791 = vmatpush1.msra.mxu0 0.0
      %1792 = vmatprep.subr.mxu0 0.0
      %1793 = vmatpush1.msra.mxu0 0.0
      %1794 = vmatprep.subr.mxu0 0.0
      %1795 = vmatpush1.msra.mxu0 0.0
      %1796 = vmatprep.subr.mxu0 0.0
      %1797 = vmatpush1.msra.mxu0 0.0
      %1798 = vmatprep.subr.mxu0 0.0
      %1799 = vmatpush1.msra.mxu0 0.0
      %1800 = vmatprep.subr.mxu0 0.0
      %1801 = vmatpush1.msra.mxu0 0.0
      %1802 = vmatprep.subr.mxu0 0.0
      %1803 = vmatpush1.msra.mxu0 0.0
      %1804 = vmatprep.subr.mxu0 0.0
      %1805 = vmatpush1.msra.mxu0 0.0
      %1806 = vmatprep.subr.mxu0 0.0
      %1807 = vmatpush1.msra.mxu0 0.0
      %1808 = vmatprep.subr.mxu0 0.0
      %1809 = vmatpush1.msra.mxu0 0.0
      %1810 = vmatprep.subr.mxu0 0.0
      %1811 = vmatpush1.msra.mxu0 0.0
      %1812 = vmatprep.subr.mxu0 0.0
      %1813 = vmatpush1.msra.mxu0 0.0
      %1814 = vmatprep.mubr.f32.mxu0 0.0
      %1815 = vmatmul.mubr.f32.gmra.mrb[0].mxu0 %v1745
      %v1816 = vpop.f32.mrb[0].mxu0
      %v1817 = vadd.f32 %v1736, %v1816
      %v1818 = vpop.f32.mrb[0].mxu0
      %1819 = vmatprep.mubr.f32.mxu0 0.0
      %1820 = vmatmul.mubr.f32.gmra.mrb[0].mxu0 %v1748
      %v1821 = vpop.f32.mrb[0].mxu0
      %v1822 = vadd.f32 %v1741, %v1821
      %v1823 = vpop.f32.mrb[0].mxu0
      %1824 = vdwg.mxu0
      %s1825 = scalar_lea.vmem %s679, 64
      %v1826 = vld [vmem:[%s1825] sm:$0xff]
      %v1827 = vld [vmem:[%s1825 + $0x8] sm:$0xff]
      %v1828 = vld [vmem:[%s1825 + $0x10] sm:$0xff]
      %v1829 = vld [vmem:[%s1825 + $0x18] sm:$0xff]
      %s1830 = scalar_lea.vmem %s693, 2
      %v1831 = vld [vmem:[%s1830] sm:$0x1]
      %v1833 = vlaneseq
      %v1834 = vshrl.u32 %v1833, 7
      %v1835 = vsub.s32 0, %v1834
      %v1836 = vrot.slane %v1831, %v1835
      %1838 = vmatprep.subr.mxu0 0.0
      %1839 = vmatpush1.msra.mxu0 %v1826
      %1840 = vmatprep.subr.mxu0 0.0
      %1841 = vmatpush1.msra.mxu0 %v1827
      %1842 = vmatprep.subr.mxu0 0.0
      %1843 = vmatpush1.msra.mxu0 %v1828
      %1844 = vmatprep.subr.mxu0 0.0
      %1845 = vmatpush1.msra.mxu0 %v1829
      %1846 = vmatprep.subr.mxu0 0.0
      %1847 = vmatpush1.msra.mxu0 0.0
      %1848 = vmatprep.subr.mxu0 0.0
      %1849 = vmatpush1.msra.mxu0 0.0
      %1850 = vmatprep.subr.mxu0 0.0
      %1851 = vmatpush1.msra.mxu0 0.0
      %1852 = vmatprep.subr.mxu0 0.0
      %1853 = vmatpush1.msra.mxu0 0.0
      %1854 = vmatprep.subr.mxu0 0.0
      %1855 = vmatpush1.msra.mxu0 0.0
      %1856 = vmatprep.subr.mxu0 0.0
      %1857 = vmatpush1.msra.mxu0 0.0
      %1858 = vmatprep.subr.mxu0 0.0
      %1859 = vmatpush1.msra.mxu0 0.0
      %1860 = vmatprep.subr.mxu0 0.0
      %1861 = vmatpush1.msra.mxu0 0.0
      %1862 = vmatprep.subr.mxu0 0.0
      %1863 = vmatpush1.msra.mxu0 0.0
      %1864 = vmatprep.subr.mxu0 0.0
      %1865 = vmatpush1.msra.mxu0 0.0
      %1866 = vmatprep.subr.mxu0 0.0
      %1867 = vmatpush1.msra.mxu0 0.0
      %1868 = vmatprep.subr.mxu0 0.0
      %1869 = vmatpush1.msra.mxu0 0.0
      %1870 = vmatprep.subr.mxu0 0.0
      %1871 = vmatpush1.msra.mxu0 0.0
      %1872 = vmatprep.subr.mxu0 0.0
      %1873 = vmatpush1.msra.mxu0 0.0
      %1874 = vmatprep.subr.mxu0 0.0
      %1875 = vmatpush1.msra.mxu0 0.0
      %1876 = vmatprep.subr.mxu0 0.0
      %1877 = vmatpush1.msra.mxu0 0.0
      %1878 = vmatprep.subr.mxu0 0.0
      %1879 = vmatpush1.msra.mxu0 0.0
      %1880 = vmatprep.subr.mxu0 0.0
      %1881 = vmatpush1.msra.mxu0 0.0
      %1882 = vmatprep.subr.mxu0 0.0
      %1883 = vmatpush1.msra.mxu0 0.0
      %1884 = vmatprep.subr.mxu0 0.0
      %1885 = vmatpush1.msra.mxu0 0.0
      %1886 = vmatprep.subr.mxu0 0.0
      %1887 = vmatpush1.msra.mxu0 0.0
      %1888 = vmatprep.subr.mxu0 0.0
      %1889 = vmatpush1.msra.mxu0 0.0
      %1890 = vmatprep.subr.mxu0 0.0
      %1891 = vmatpush1.msra.mxu0 0.0
      %1892 = vmatprep.subr.mxu0 0.0
      %1893 = vmatpush1.msra.mxu0 0.0
      %1894 = vmatprep.subr.mxu0 0.0
      %1895 = vmatpush1.msra.mxu0 0.0
      %1896 = vmatprep.subr.mxu0 0.0
      %1897 = vmatpush1.msra.mxu0 0.0
      %1898 = vmatprep.subr.mxu0 0.0
      %1899 = vmatpush1.msra.mxu0 0.0
      %1900 = vmatprep.subr.mxu0 0.0
      %1901 = vmatpush1.msra.mxu0 0.0
      %1902 = vmatprep.mubr.f32.mxu0 0.0
      %1903 = vmatmul.mubr.f32.gmra.mrb[0].mxu0 %v758
      %v1904 = vpop.f32.mrb[0].mxu0
      %v1905 = vadd.f32 %v1836, %v1904
      %v1906 = vpop.f32.mrb[0].mxu0
      %1907 = vmatprep.mubr.f32.mxu0 0.0
      %1908 = vmatmul.mubr.f32.gmra.mrb[0].mxu0 %v761
      %v1909 = vpop.f32.mrb[0].mxu0
      %v1910 = vadd.f32 %v1836, %v1909
      %v1911 = vpop.f32.mrb[0].mxu0
      %1912 = vdwg.mxu0
      %s1913 = scalar_lea.vmem %s684, 64
      %v1914 = vld [vmem:[%s1913] sm:$0xff]
      %v1915 = vld [vmem:[%s1913 + $0x8] sm:$0xff]
      %v1916 = vld [vmem:[%s1913 + $0x10] sm:$0xff]
      %v1917 = vld [vmem:[%s1913 + $0x18] sm:$0xff]
      %s1918 = scalar_lea.vmem %s697, 2
      %v1919 = vld [vmem:[%s1918] sm:$0x1]
      %v1921 = vlaneseq
      %v1922 = vshrl.u32 %v1921, 7
      %v1923 = vsub.s32 0, %v1922
      %v1924 = vrot.slane %v1919, %v1923
      %1926 = vmatprep.subr.mxu0 0.0
      %1927 = vmatpush1.msra.mxu0 %v1914
      %1928 = vmatprep.subr.mxu0 0.0
      %1929 = vmatpush1.msra.mxu0 %v1915
      %1930 = vmatprep.subr.mxu0 0.0
      %1931 = vmatpush1.msra.mxu0 %v1916
      %1932 = vmatprep.subr.mxu0 0.0
      %1933 = vmatpush1.msra.mxu0 %v1917
      %1934 = vmatprep.subr.mxu0 0.0
      %1935 = vmatpush1.msra.mxu0 0.0
      %1936 = vmatprep.subr.mxu0 0.0
      %1937 = vmatpush1.msra.mxu0 0.0
      %1938 = vmatprep.subr.mxu0 0.0
      %1939 = vmatpush1.msra.mxu0 0.0
      %1940 = vmatprep.subr.mxu0 0.0
      %1941 = vmatpush1.msra.mxu0 0.0
      %1942 = vmatprep.subr.mxu0 0.0
      %1943 = vmatpush1.msra.mxu0 0.0
      %1944 = vmatprep.subr.mxu0 0.0
      %1945 = vmatpush1.msra.mxu0 0.0
      %1946 = vmatprep.subr.mxu0 0.0
      %1947 = vmatpush1.msra.mxu0 0.0
      %1948 = vmatprep.subr.mxu0 0.0
      %1949 = vmatpush1.msra.mxu0 0.0
      %1950 = vmatprep.subr.mxu0 0.0
      %1951 = vmatpush1.msra.mxu0 0.0
      %1952 = vmatprep.subr.mxu0 0.0
      %1953 = vmatpush1.msra.mxu0 0.0
      %1954 = vmatprep.subr.mxu0 0.0
      %1955 = vmatpush1.msra.mxu0 0.0
      %1956 = vmatprep.subr.mxu0 0.0
      %1957 = vmatpush1.msra.mxu0 0.0
      %1958 = vmatprep.subr.mxu0 0.0
      %1959 = vmatpush1.msra.mxu0 0.0
      %1960 = vmatprep.subr.mxu0 0.0
      %1961 = vmatpush1.msra.mxu0 0.0
      %1962 = vmatprep.subr.mxu0 0.0
      %1963 = vmatpush1.msra.mxu0 0.0
      %1964 = vmatprep.subr.mxu0 0.0
      %1965 = vmatpush1.msra.mxu0 0.0
      %1966 = vmatprep.subr.mxu0 0.0
      %1967 = vmatpush1.msra.mxu0 0.0
      %1968 = vmatprep.subr.mxu0 0.0
      %1969 = vmatpush1.msra.mxu0 0.0
      %1970 = vmatprep.subr.mxu0 0.0
      %1971 = vmatpush1.msra.mxu0 0.0
      %1972 = vmatprep.subr.mxu0 0.0
      %1973 = vmatpush1.msra.mxu0 0.0
      %1974 = vmatprep.subr.mxu0 0.0
      %1975 = vmatpush1.msra.mxu0 0.0
      %1976 = vmatprep.subr.mxu0 0.0
      %1977 = vmatpush1.msra.mxu0 0.0
      %1978 = vmatprep.subr.mxu0 0.0
      %1979 = vmatpush1.msra.mxu0 0.0
      %1980 = vmatprep.subr.mxu0 0.0
      %1981 = vmatpush1.msra.mxu0 0.0
      %1982 = vmatprep.subr.mxu0 0.0
      %1983 = vmatpush1.msra.mxu0 0.0
      %1984 = vmatprep.subr.mxu0 0.0
      %1985 = vmatpush1.msra.mxu0 0.0
      %1986 = vmatprep.subr.mxu0 0.0
      %1987 = vmatpush1.msra.mxu0 0.0
      %1988 = vmatprep.subr.mxu0 0.0
      %1989 = vmatpush1.msra.mxu0 0.0
      %1990 = vmatprep.mubr.f32.mxu0 0.0
      %1991 = vmatmul.mubr.f32.gmra.mrb[0].mxu0 %v758
      %v1992 = vpop.f32.mrb[0].mxu0
      %v1993 = vadd.f32 %v1924, %v1992
      %v1994 = vpop.f32.mrb[0].mxu0
      %1995 = vmatprep.mubr.f32.mxu0 0.0
      %1996 = vmatmul.mubr.f32.gmra.mrb[0].mxu0 %v761
      %v1997 = vpop.f32.mrb[0].mxu0
      %v1998 = vadd.f32 %v1924, %v1997
      %v1999 = vpop.f32.mrb[0].mxu0
      %2000 = vdwg.mxu0
      %s2001 = scalar_lea.vmem %s689, 64
      %v2002 = vld [vmem:[%s2001] sm:$0xff]
      %v2003 = vld [vmem:[%s2001 + $0x8] sm:$0xff]
      %v2004 = vld [vmem:[%s2001 + $0x10] sm:$0xff]
      %v2005 = vld [vmem:[%s2001 + $0x18] sm:$0xff]
      %s2006 = scalar_lea.vmem %s701, 2
      %v2007 = vld [vmem:[%s2006] sm:$0x1]
      %v2009 = vlaneseq
      %v2010 = vshrl.u32 %v2009, 7
      %v2011 = vsub.s32 0, %v2010
      %v2012 = vrot.slane %v2007, %v2011
      %2014 = vmatprep.subr.mxu0 0.0
      %2015 = vmatpush1.msra.mxu0 %v2002
      %2016 = vmatprep.subr.mxu0 0.0
      %2017 = vmatpush1.msra.mxu0 %v2003
      %2018 = vmatprep.subr.mxu0 0.0
      %2019 = vmatpush1.msra.mxu0 %v2004
      %2020 = vmatprep.subr.mxu0 0.0
      %2021 = vmatpush1.msra.mxu0 %v2005
      %2022 = vmatprep.subr.mxu0 0.0
      %2023 = vmatpush1.msra.mxu0 0.0
      %2024 = vmatprep.subr.mxu0 0.0
      %2025 = vmatpush1.msra.mxu0 0.0
      %2026 = vmatprep.subr.mxu0 0.0
      %2027 = vmatpush1.msra.mxu0 0.0
      %2028 = vmatprep.subr.mxu0 0.0
      %2029 = vmatpush1.msra.mxu0 0.0
      %2030 = vmatprep.subr.mxu0 0.0
      %2031 = vmatpush1.msra.mxu0 0.0
      %2032 = vmatprep.subr.mxu0 0.0
      %2033 = vmatpush1.msra.mxu0 0.0
      %2034 = vmatprep.subr.mxu0 0.0
      %2035 = vmatpush1.msra.mxu0 0.0
      %2036 = vmatprep.subr.mxu0 0.0
      %2037 = vmatpush1.msra.mxu0 0.0
      %2038 = vmatprep.subr.mxu0 0.0
      %2039 = vmatpush1.msra.mxu0 0.0
      %2040 = vmatprep.subr.mxu0 0.0
      %2041 = vmatpush1.msra.mxu0 0.0
      %2042 = vmatprep.subr.mxu0 0.0
      %2043 = vmatpush1.msra.mxu0 0.0
      %2044 = vmatprep.subr.mxu0 0.0
      %2045 = vmatpush1.msra.mxu0 0.0
      %2046 = vmatprep.subr.mxu0 0.0
      %2047 = vmatpush1.msra.mxu0 0.0
      %2048 = vmatprep.subr.mxu0 0.0
      %2049 = vmatpush1.msra.mxu0 0.0
      %2050 = vmatprep.subr.mxu0 0.0
      %2051 = vmatpush1.msra.mxu0 0.0
      %2052 = vmatprep.subr.mxu0 0.0
      %2053 = vmatpush1.msra.mxu0 0.0
      %2054 = vmatprep.subr.mxu0 0.0
      %2055 = vmatpush1.msra.mxu0 0.0
      %2056 = vmatprep.subr.mxu0 0.0
      %2057 = vmatpush1.msra.mxu0 0.0
      %2058 = vmatprep.subr.mxu0 0.0
      %2059 = vmatpush1.msra.mxu0 0.0
      %2060 = vmatprep.subr.mxu0 0.0
      %2061 = vmatpush1.msra.mxu0 0.0
      %2062 = vmatprep.subr.mxu0 0.0
      %2063 = vmatpush1.msra.mxu0 0.0
      %2064 = vmatprep.subr.mxu0 0.0
      %2065 = vmatpush1.msra.mxu0 0.0
      %2066 = vmatprep.subr.mxu0 0.0
      %2067 = vmatpush1.msra.mxu0 0.0
      %2068 = vmatprep.subr.mxu0 0.0
      %2069 = vmatpush1.msra.mxu0 0.0
      %2070 = vmatprep.subr.mxu0 0.0
      %2071 = vmatpush1.msra.mxu0 0.0
      %2072 = vmatprep.subr.mxu0 0.0
      %2073 = vmatpush1.msra.mxu0 0.0
      %2074 = vmatprep.subr.mxu0 0.0
      %2075 = vmatpush1.msra.mxu0 0.0
      %2076 = vmatprep.subr.mxu0 0.0
      %2077 = vmatpush1.msra.mxu0 0.0
      %2078 = vmatprep.mubr.f32.mxu0 0.0
      %2079 = vmatmul.mubr.f32.gmra.mrb[0].mxu0 %v758
      %v2080 = vpop.f32.mrb[0].mxu0
      %v2081 = vadd.f32 %v2012, %v2080
      %v2082 = vpop.f32.mrb[0].mxu0
      %2083 = vmatprep.mubr.f32.mxu0 0.0
      %2084 = vmatmul.mubr.f32.gmra.mrb[0].mxu0 %v761
      %v2085 = vpop.f32.mrb[0].mxu0
      %v2086 = vadd.f32 %v2012, %v2085
      %v2087 = vpop.f32.mrb[0].mxu0
      %2088 = vdwg.mxu0
      %v2089 = vmul.f32 %v1905, 0.35355338
      %v2090 = vmul.f32 %v1910, 0.35355338
      %v2092 = vsel %vm1012, %v2089, 0
      %v2095 = vsel %vm1012, %v2090, 0
      %v2098 = vsel %vm1012, %v1993, 0
      %v2101 = vsel %vm1012, %v1998, 0
      %2103 = vmatprep.subr.mxu0 0.0
      %2104 = vmatpush1.xpose.msra.mxu0 %v2098
      %2105 = vmatprep.subr.mxu0 0.0
      %2106 = vmatpush1.xpose.msra.mxu0 %v2101
      %2107 = vmatprep.subr.mxu0 0.0
      %2108 = vmatpush1.xpose.msra.mxu0 0.0
      %2109 = vmatprep.subr.mxu0 0.0
      %2110 = vmatpush1.xpose.msra.mxu0 0.0
      %2111 = vmatprep.subr.mxu0 0.0
      %2112 = vmatpush1.xpose.msra.mxu0 0.0
      %2113 = vmatprep.subr.mxu0 0.0
      %2114 = vmatpush1.xpose.msra.mxu0 0.0
      %2115 = vmatprep.subr.mxu0 0.0
      %2116 = vmatpush1.xpose.msra.mxu0 0.0
      %2117 = vmatprep.subr.mxu0 0.0
      %2118 = vmatpush1.xpose.msra.mxu0 0.0
      %2119 = vmatprep.subr.mxu0 0.0
      %2120 = vmatpush1.xpose.msra.mxu0 0.0
      %2121 = vmatprep.subr.mxu0 0.0
      %2122 = vmatpush1.xpose.msra.mxu0 0.0
      %2123 = vmatprep.subr.mxu0 0.0
      %2124 = vmatpush1.xpose.msra.mxu0 0.0
      %2125 = vmatprep.subr.mxu0 0.0
      %2126 = vmatpush1.xpose.msra.mxu0 0.0
      %2127 = vmatprep.subr.mxu0 0.0
      %2128 = vmatpush1.xpose.msra.mxu0 0.0
      %2129 = vmatprep.subr.mxu0 0.0
      %2130 = vmatpush1.xpose.msra.mxu0 0.0
      %2131 = vmatprep.subr.mxu0 0.0
      %2132 = vmatpush1.xpose.msra.mxu0 0.0
      %2133 = vmatprep.subr.mxu0 0.0
      %2134 = vmatpush1.xpose.msra.mxu0 0.0
      %2135 = vmatprep.subr.mxu0 0.0
      %2136 = vmatpush1.xpose.msra.mxu0 0.0
      %2137 = vmatprep.subr.mxu0 0.0
      %2138 = vmatpush1.xpose.msra.mxu0 0.0
      %2139 = vmatprep.subr.mxu0 0.0
      %2140 = vmatpush1.xpose.msra.mxu0 0.0
      %2141 = vmatprep.subr.mxu0 0.0
      %2142 = vmatpush1.xpose.msra.mxu0 0.0
      %2143 = vmatprep.subr.mxu0 0.0
      %2144 = vmatpush1.xpose.msra.mxu0 0.0
      %2145 = vmatprep.subr.mxu0 0.0
      %2146 = vmatpush1.xpose.msra.mxu0 0.0
      %2147 = vmatprep.subr.mxu0 0.0
      %2148 = vmatpush1.xpose.msra.mxu0 0.0
      %2149 = vmatprep.subr.mxu0 0.0
      %2150 = vmatpush1.xpose.msra.mxu0 0.0
      %2151 = vmatprep.subr.mxu0 0.0
      %2152 = vmatpush1.xpose.msra.mxu0 0.0
      %2153 = vmatprep.subr.mxu0 0.0
      %2154 = vmatpush1.xpose.msra.mxu0 0.0
      %2155 = vmatprep.subr.mxu0 0.0
      %2156 = vmatpush1.xpose.msra.mxu0 0.0
      %2157 = vmatprep.subr.mxu0 0.0
      %2158 = vmatpush1.xpose.msra.mxu0 0.0
      %2159 = vmatprep.subr.mxu0 0.0
      %2160 = vmatpush1.xpose.msra.mxu0 0.0
      %2161 = vmatprep.subr.mxu0 0.0
      %2162 = vmatpush1.xpose.msra.mxu0 0.0
      %2163 = vmatprep.subr.mxu0 0.0
      %2164 = vmatpush1.xpose.msra.mxu0 0.0
      %2165 = vmatprep.subr.mxu0 0.0
      %2166 = vmatpush1.xpose.msra.mxu0 0.0
      %2167 = vmatprep.mubr.f32.mxu0 0.0
      %2168 = vmatmul.mubr.f32.gmra.mrb[0].mxu0 %v2092
      %v2169 = vpop.f32.mrb[0].mxu0
      %v2170 = vadd.f32 0.0, %v2169
      %v2171 = vpop.f32.mrb[0].mxu0
      %2172 = vmatprep.mubr.f32.mxu0 0.0
      %2173 = vmatmul.mubr.f32.gmra.mrb[0].mxu0 %v2095
      %v2174 = vpop.f32.mrb[0].mxu0
      %v2175 = vadd.f32 0.0, %v2174
      %v2176 = vpop.f32.mrb[0].mxu0
      %2177 = vdwg.mxu0
      %v2178 = vsel %vm1100, %v2170, -inf
      %2179 = vmax.xlane.f32.xlu0 %v2178
      %v2180 = vpop.xlane.xlu0 %2179
      %v2181 = vsel %vm1100, %v2175, -inf
      %2182 = vmax.xlane.f32.xlu0 %v2181
      %v2183 = vpop.xlane.xlu0 %2182
      %v2184 = vsub.f32 %v2170, %v2180
      %v2185 = vsub.f32 %v2175, %v2183
      %v2186 = vmul.f32 %v2184, 1.442695
      %v2187 = vpow.pop %v2186
      %v2188 = vmul.f32 %v2185, 1.442695
      %v2189 = vpow.pop %v2188
      %v2190 = vsel %vm1100, %v2187, 0.0
      %2191 = vadd.xlane.f32.xlu0 %v2190
      %v2192 = vpop.xlane.xlu0 %2191
      %v2193 = vsel %vm1100, %v2189, 0.0
      %2194 = vadd.xlane.f32.xlu0 %v2193
      %v2195 = vpop.xlane.xlu0 %2194
      %v2196 = vrcp.pop %v2192
      %v2197 = vrcp.pop %v2195
      %v2198 = vmul.f32 %v2187, %v2196
      %v2199 = vmul.f32 %v2189, %v2197
      %v2201 = vsel %vm1100, %v2198, 0
      %v2204 = vsel %vm1100, %v2199, 0
      %2206 = vmatprep.subr.mxu0 0.0
      %2207 = vmatpush1.msra.mxu0 %v2081
      %2208 = vmatprep.subr.mxu0 0.0
      %2209 = vmatpush1.msra.mxu0 %v2086
      %2210 = vmatprep.subr.mxu0 0.0
      %2211 = vmatpush1.msra.mxu0 0.0
      %2212 = vmatprep.subr.mxu0 0.0
      %2213 = vmatpush1.msra.mxu0 0.0
      %2214 = vmatprep.subr.mxu0 0.0
      %2215 = vmatpush1.msra.mxu0 0.0
      %2216 = vmatprep.subr.mxu0 0.0
      %2217 = vmatpush1.msra.mxu0 0.0
      %2218 = vmatprep.subr.mxu0 0.0
      %2219 = vmatpush1.msra.mxu0 0.0
      %2220 = vmatprep.subr.mxu0 0.0
      %2221 = vmatpush1.msra.mxu0 0.0
      %2222 = vmatprep.subr.mxu0 0.0
      %2223 = vmatpush1.msra.mxu0 0.0
      %2224 = vmatprep.subr.mxu0 0.0
      %2225 = vmatpush1.msra.mxu0 0.0
      %2226 = vmatprep.subr.mxu0 0.0
      %2227 = vmatpush1.msra.mxu0 0.0
      %2228 = vmatprep.subr.mxu0 0.0
      %2229 = vmatpush1.msra.mxu0 0.0
      %2230 = vmatprep.subr.mxu0 0.0
      %2231 = vmatpush1.msra.mxu0 0.0
      %2232 = vmatprep.subr.mxu0 0.0
      %2233 = vmatpush1.msra.mxu0 0.0
      %2234 = vmatprep.subr.mxu0 0.0
      %2235 = vmatpush1.msra.mxu0 0.0
      %2236 = vmatprep.subr.mxu0 0.0
      %2237 = vmatpush1.msra.mxu0 0.0
      %2238 = vmatprep.subr.mxu0 0.0
      %2239 = vmatpush1.msra.mxu0 0.0
      %2240 = vmatprep.subr.mxu0 0.0
      %2241 = vmatpush1.msra.mxu0 0.0
      %2242 = vmatprep.subr.mxu0 0.0
      %2243 = vmatpush1.msra.mxu0 0.0
      %2244 = vmatprep.subr.mxu0 0.0
      %2245 = vmatpush1.msra.mxu0 0.0
      %2246 = vmatprep.subr.mxu0 0.0
      %2247 = vmatpush1.msra.mxu0 0.0
      %2248 = vmatprep.subr.mxu0 0.0
      %2249 = vmatpush1.msra.mxu0 0.0
      %2250 = vmatprep.subr.mxu0 0.0
      %2251 = vmatpush1.msra.mxu0 0.0
      %2252 = vmatprep.subr.mxu0 0.0
      %2253 = vmatpush1.msra.mxu0 0.0
      %2254 = vmatprep.subr.mxu0 0.0
      %2255 = vmatpush1.msra.mxu0 0.0
      %2256 = vmatprep.subr.mxu0 0.0
      %2257 = vmatpush1.msra.mxu0 0.0
      %2258 = vmatprep.subr.mxu0 0.0
      %2259 = vmatpush1.msra.mxu0 0.0
      %2260 = vmatprep.subr.mxu0 0.0
      %2261 = vmatpush1.msra.mxu0 0.0
      %2262 = vmatprep.subr.mxu0 0.0
      %2263 = vmatpush1.msra.mxu0 0.0
      %2264 = vmatprep.subr.mxu0 0.0
      %2265 = vmatpush1.msra.mxu0 0.0
      %2266 = vmatprep.subr.mxu0 0.0
      %2267 = vmatpush1.msra.mxu0 0.0
      %2268 = vmatprep.subr.mxu0 0.0
      %2269 = vmatpush1.msra.mxu0 0.0
      %2270 = vmatprep.mubr.f32.mxu0 0.0
      %2271 = vmatmul.mubr.f32.gmra.mrb[0].mxu0 %v2201
      %v2272 = vpop.f32.mrb[0].mxu0
      %v2273 = vadd.f32 0.0, %v2272
      %v2274 = vpop.f32.mrb[0].mxu0
      %2275 = vmatprep.mubr.f32.mxu0 0.0
      %2276 = vmatmul.mubr.f32.gmra.mrb[0].mxu0 %v2204
      %v2277 = vpop.f32.mrb[0].mxu0
      %v2278 = vadd.f32 0.0, %v2277
      %v2279 = vpop.f32.mrb[0].mxu0
      %2280 = vdwg.mxu0
      %s2281 = scalar_lea.vmem %s706, 16
      %v2282 = vld [vmem:[%s2281] sm:$0xff]
      %v2284 = vsel %vm1012, %v2273, 0
      %v2287 = vsel %vm1012, %v2278, 0
      %2289 = vmatprep.subr.mxu0 0.0
      %2290 = vmatpush1.msra.mxu0 %v2282
      %2291 = vmatprep.subr.mxu0 0.0
      %2292 = vmatpush1.msra.mxu0 0.0
      %2293 = vmatprep.subr.mxu0 0.0
      %2294 = vmatpush1.msra.mxu0 0.0
      %2295 = vmatprep.subr.mxu0 0.0
      %2296 = vmatpush1.msra.mxu0 0.0
      %2297 = vmatprep.subr.mxu0 0.0
      %2298 = vmatpush1.msra.mxu0 0.0
      %2299 = vmatprep.subr.mxu0 0.0
      %2300 = vmatpush1.msra.mxu0 0.0
      %2301 = vmatprep.subr.mxu0 0.0
      %2302 = vmatpush1.msra.mxu0 0.0
      %2303 = vmatprep.subr.mxu0 0.0
      %2304 = vmatpush1.msra.mxu0 0.0
      %2305 = vmatprep.subr.mxu0 0.0
      %2306 = vmatpush1.msra.mxu0 0.0
      %2307 = vmatprep.subr.mxu0 0.0
      %2308 = vmatpush1.msra.mxu0 0.0
      %2309 = vmatprep.subr.mxu0 0.0
      %2310 = vmatpush1.msra.mxu0 0.0
      %2311 = vmatprep.subr.mxu0 0.0
      %2312 = vmatpush1.msra.mxu0 0.0
      %2313 = vmatprep.subr.mxu0 0.0
      %2314 = vmatpush1.msra.mxu0 0.0
      %2315 = vmatprep.subr.mxu0 0.0
      %2316 = vmatpush1.msra.mxu0 0.0
      %2317 = vmatprep.subr.mxu0 0.0
      %2318 = vmatpush1.msra.mxu0 0.0
      %2319 = vmatprep.subr.mxu0 0.0
      %2320 = vmatpush1.msra.mxu0 0.0
      %2321 = vmatprep.subr.mxu0 0.0
      %2322 = vmatpush1.msra.mxu0 0.0
      %2323 = vmatprep.subr.mxu0 0.0
      %2324 = vmatpush1.msra.mxu0 0.0
      %2325 = vmatprep.subr.mxu0 0.0
      %2326 = vmatpush1.msra.mxu0 0.0
      %2327 = vmatprep.subr.mxu0 0.0
      %2328 = vmatpush1.msra.mxu0 0.0
      %2329 = vmatprep.subr.mxu0 0.0
      %2330 = vmatpush1.msra.mxu0 0.0
      %2331 = vmatprep.subr.mxu0 0.0
      %2332 = vmatpush1.msra.mxu0 0.0
      %2333 = vmatprep.subr.mxu0 0.0
      %2334 = vmatpush1.msra.mxu0 0.0
      %2335 = vmatprep.subr.mxu0 0.0
      %2336 = vmatpush1.msra.mxu0 0.0
      %2337 = vmatprep.subr.mxu0 0.0
      %2338 = vmatpush1.msra.mxu0 0.0
      %2339 = vmatprep.subr.mxu0 0.0
      %2340 = vmatpush1.msra.mxu0 0.0
      %2341 = vmatprep.subr.mxu0 0.0
      %2342 = vmatpush1.msra.mxu0 0.0
      %2343 = vmatprep.subr.mxu0 0.0
      %2344 = vmatpush1.msra.mxu0 0.0
      %2345 = vmatprep.subr.mxu0 0.0
      %2346 = vmatpush1.msra.mxu0 0.0
      %2347 = vmatprep.subr.mxu0 0.0
      %2348 = vmatpush1.msra.mxu0 0.0
      %2349 = vmatprep.subr.mxu0 0.0
      %2350 = vmatpush1.msra.mxu0 0.0
      %2351 = vmatprep.subr.mxu0 0.0
      %2352 = vmatpush1.msra.mxu0 0.0
      %2353 = vmatprep.mubr.f32.mxu0 0.0
      %2354 = vmatmul.mubr.f32.gmra.mrb[0].mxu0 %v2284
      %v2355 = vpop.f32.mrb[0].mxu0
      %v2356 = vadd.f32 0.0, %v2355
      %v2357 = vpop.f32.mrb[0].mxu0
      %2358 = vmatprep.mubr.f32.mxu0 0.0
      %2359 = vmatmul.mubr.f32.gmra.mrb[0].mxu0 %v2287
      %v2360 = vpop.f32.mrb[0].mxu0
      %v2361 = vadd.f32 0.0, %v2360
      %v2362 = vpop.f32.mrb[0].mxu0
      %2363 = vdwg.mxu0
      %v2364 = vadd.f32 %v1817, %v2356
      %v2365 = vadd.f32 %v1822, %v2361
      %s2366 = scalar_lea.vmem %s679, 96
      %v2367 = vld [vmem:[%s2366] sm:$0xff]
      %v2368 = vld [vmem:[%s2366 + $0x8] sm:$0xff]
      %v2369 = vld [vmem:[%s2366 + $0x10] sm:$0xff]
      %v2370 = vld [vmem:[%s2366 + $0x18] sm:$0xff]
      %s2371 = scalar_lea.vmem %s693, 3
      %v2372 = vld [vmem:[%s2371] sm:$0x1]
      %v2374 = vlaneseq
      %v2375 = vshrl.u32 %v2374, 7
      %v2376 = vsub.s32 0, %v2375
      %v2377 = vrot.slane %v2372, %v2376
      %2379 = vmatprep.subr.mxu0 0.0
      %2380 = vmatpush1.msra.mxu0 %v2367
      %2381 = vmatprep.subr.mxu0 0.0
      %2382 = vmatpush1.msra.mxu0 %v2368
      %2383 = vmatprep.subr.mxu0 0.0
      %2384 = vmatpush1.msra.mxu0 %v2369
      %2385 = vmatprep.subr.mxu0 0.0
      %2386 = vmatpush1.msra.mxu0 %v2370
      %2387 = vmatprep.subr.mxu0 0.0
      %2388 = vmatpush1.msra.mxu0 0.0
      %2389 = vmatprep.subr.mxu0 0.0
      %2390 = vmatpush1.msra.mxu0 0.0
      %2391 = vmatprep.subr.mxu0 0.0
      %2392 = vmatpush1.msra.mxu0 0.0
      %2393 = vmatprep.subr.mxu0 0.0
      %2394 = vmatpush1.msra.mxu0 0.0
      %2395 = vmatprep.subr.mxu0 0.0
      %2396 = vmatpush1.msra.mxu0 0.0
      %2397 = vmatprep.subr.mxu0 0.0
      %2398 = vmatpush1.msra.mxu0 0.0
      %2399 = vmatprep.subr.mxu0 0.0
      %2400 = vmatpush1.msra.mxu0 0.0
      %2401 = vmatprep.subr.mxu0 0.0
      %2402 = vmatpush1.msra.mxu0 0.0
      %2403 = vmatprep.subr.mxu0 0.0
      %2404 = vmatpush1.msra.mxu0 0.0
      %2405 = vmatprep.subr.mxu0 0.0
      %2406 = vmatpush1.msra.mxu0 0.0
      %2407 = vmatprep.subr.mxu0 0.0
      %2408 = vmatpush1.msra.mxu0 0.0
      %2409 = vmatprep.subr.mxu0 0.0
      %2410 = vmatpush1.msra.mxu0 0.0
      %2411 = vmatprep.subr.mxu0 0.0
      %2412 = vmatpush1.msra.mxu0 0.0
      %2413 = vmatprep.subr.mxu0 0.0
      %2414 = vmatpush1.msra.mxu0 0.0
      %2415 = vmatprep.subr.mxu0 0.0
      %2416 = vmatpush1.msra.mxu0 0.0
      %2417 = vmatprep.subr.mxu0 0.0
      %2418 = vmatpush1.msra.mxu0 0.0
      %2419 = vmatprep.subr.mxu0 0.0
      %2420 = vmatpush1.msra.mxu0 0.0
      %2421 = vmatprep.subr.mxu0 0.0
      %2422 = vmatpush1.msra.mxu0 0.0
      %2423 = vmatprep.subr.mxu0 0.0
      %2424 = vmatpush1.msra.mxu0 0.0
      %2425 = vmatprep.subr.mxu0 0.0
      %2426 = vmatpush1.msra.mxu0 0.0
      %2427 = vmatprep.subr.mxu0 0.0
      %2428 = vmatpush1.msra.mxu0 0.0
      %2429 = vmatprep.subr.mxu0 0.0
      %2430 = vmatpush1.msra.mxu0 0.0
      %2431 = vmatprep.subr.mxu0 0.0
      %2432 = vmatpush1.msra.mxu0 0.0
      %2433 = vmatprep.subr.mxu0 0.0
      %2434 = vmatpush1.msra.mxu0 0.0
      %2435 = vmatprep.subr.mxu0 0.0
      %2436 = vmatpush1.msra.mxu0 0.0
      %2437 = vmatprep.subr.mxu0 0.0
      %2438 = vmatpush1.msra.mxu0 0.0
      %2439 = vmatprep.subr.mxu0 0.0
      %2440 = vmatpush1.msra.mxu0 0.0
      %2441 = vmatprep.subr.mxu0 0.0
      %2442 = vmatpush1.msra.mxu0 0.0
      %2443 = vmatprep.mubr.f32.mxu0 0.0
      %2444 = vmatmul.mubr.f32.gmra.mrb[0].mxu0 %v758
      %v2445 = vpop.f32.mrb[0].mxu0
      %v2446 = vadd.f32 %v2377, %v2445
      %v2447 = vpop.f32.mrb[0].mxu0
      %2448 = vmatprep.mubr.f32.mxu0 0.0
      %2449 = vmatmul.mubr.f32.gmra.mrb[0].mxu0 %v761
      %v2450 = vpop.f32.mrb[0].mxu0
      %v2451 = vadd.f32 %v2377, %v2450
      %v2452 = vpop.f32.mrb[0].mxu0
      %2453 = vdwg.mxu0
      %s2454 = scalar_lea.vmem %s684, 96
      %v2455 = vld [vmem:[%s2454] sm:$0xff]
      %v2456 = vld [vmem:[%s2454 + $0x8] sm:$0xff]
      %v2457 = vld [vmem:[%s2454 + $0x10] sm:$0xff]
      %v2458 = vld [vmem:[%s2454 + $0x18] sm:$0xff]
      %s2459 = scalar_lea.vmem %s697, 3
      %v2460 = vld [vmem:[%s2459] sm:$0x1]
      %v2462 = vlaneseq
      %v2463 = vshrl.u32 %v2462, 7
      %v2464 = vsub.s32 0, %v2463
      %v2465 = vrot.slane %v2460, %v2464
      %2467 = vmatprep.subr.mxu0 0.0
      %2468 = vmatpush1.msra.mxu0 %v2455
      %2469 = vmatprep.subr.mxu0 0.0
      %2470 = vmatpush1.msra.mxu0 %v2456
      %2471 = vmatprep.subr.mxu0 0.0
      %2472 = vmatpush1.msra.mxu0 %v2457
      %2473 = vmatprep.subr.mxu0 0.0
      %2474 = vmatpush1.msra.mxu0 %v2458
      %2475 = vmatprep.subr.mxu0 0.0
      %2476 = vmatpush1.msra.mxu0 0.0
      %2477 = vmatprep.subr.mxu0 0.0
      %2478 = vmatpush1.msra.mxu0 0.0
      %2479 = vmatprep.subr.mxu0 0.0
      %2480 = vmatpush1.msra.mxu0 0.0
      %2481 = vmatprep.subr.mxu0 0.0
      %2482 = vmatpush1.msra.mxu0 0.0
      %2483 = vmatprep.subr.mxu0 0.0
      %2484 = vmatpush1.msra.mxu0 0.0
      %2485 = vmatprep.subr.mxu0 0.0
      %2486 = vmatpush1.msra.mxu0 0.0
      %2487 = vmatprep.subr.mxu0 0.0
      %2488 = vmatpush1.msra.mxu0 0.0
      %2489 = vmatprep.subr.mxu0 0.0
      %2490 = vmatpush1.msra.mxu0 0.0
      %2491 = vmatprep.subr.mxu0 0.0
      %2492 = vmatpush1.msra.mxu0 0.0
      %2493 = vmatprep.subr.mxu0 0.0
      %2494 = vmatpush1.msra.mxu0 0.0
      %2495 = vmatprep.subr.mxu0 0.0
      %2496 = vmatpush1.msra.mxu0 0.0
      %2497 = vmatprep.subr.mxu0 0.0
      %2498 = vmatpush1.msra.mxu0 0.0
      %2499 = vmatprep.subr.mxu0 0.0
      %2500 = vmatpush1.msra.mxu0 0.0
      %2501 = vmatprep.subr.mxu0 0.0
      %2502 = vmatpush1.msra.mxu0 0.0
      %2503 = vmatprep.subr.mxu0 0.0
      %2504 = vmatpush1.msra.mxu0 0.0
      %2505 = vmatprep.subr.mxu0 0.0
      %2506 = vmatpush1.msra.mxu0 0.0
      %2507 = vmatprep.subr.mxu0 0.0
      %2508 = vmatpush1.msra.mxu0 0.0
      %2509 = vmatprep.subr.mxu0 0.0
      %2510 = vmatpush1.msra.mxu0 0.0
      %2511 = vmatprep.subr.mxu0 0.0
      %2512 = vmatpush1.msra.mxu0 0.0
      %2513 = vmatprep.subr.mxu0 0.0
      %2514 = vmatpush1.msra.mxu0 0.0
      %2515 = vmatprep.subr.mxu0 0.0
      %2516 = vmatpush1.msra.mxu0 0.0
      %2517 = vmatprep.subr.mxu0 0.0
      %2518 = vmatpush1.msra.mxu0 0.0
      %2519 = vmatprep.subr.mxu0 0.0
      %2520 = vmatpush1.msra.mxu0 0.0
      %2521 = vmatprep.subr.mxu0 0.0
      %2522 = vmatpush1.msra.mxu0 0.0
      %2523 = vmatprep.subr.mxu0 0.0
      %2524 = vmatpush1.msra.mxu0 0.0
      %2525 = vmatprep.subr.mxu0 0.0
      %2526 = vmatpush1.msra.mxu0 0.0
      %2527 = vmatprep.subr.mxu0 0.0
      %2528 = vmatpush1.msra.mxu0 0.0
      %2529 = vmatprep.subr.mxu0 0.0
      %2530 = vmatpush1.msra.mxu0 0.0
      %2531 = vmatprep.mubr.f32.mxu0 0.0
      %2532 = vmatmul.mubr.f32.gmra.mrb[0].mxu0 %v758
      %v2533 = vpop.f32.mrb[0].mxu0
      %v2534 = vadd.f32 %v2465, %v2533
      %v2535 = vpop.f32.mrb[0].mxu0
      %2536 = vmatprep.mubr.f32.mxu0 0.0
      %2537 = vmatmul.mubr.f32.gmra.mrb[0].mxu0 %v761
      %v2538 = vpop.f32.mrb[0].mxu0
      %v2539 = vadd.f32 %v2465, %v2538
      %v2540 = vpop.f32.mrb[0].mxu0
      %2541 = vdwg.mxu0
      %s2542 = scalar_lea.vmem %s689, 96
      %v2543 = vld [vmem:[%s2542] sm:$0xff]
      %v2544 = vld [vmem:[%s2542 + $0x8] sm:$0xff]
      %v2545 = vld [vmem:[%s2542 + $0x10] sm:$0xff]
      %v2546 = vld [vmem:[%s2542 + $0x18] sm:$0xff]
      %s2547 = scalar_lea.vmem %s701, 3
      %v2548 = vld [vmem:[%s2547] sm:$0x1]
      %v2550 = vlaneseq
      %v2551 = vshrl.u32 %v2550, 7
      %v2552 = vsub.s32 0, %v2551
      %v2553 = vrot.slane %v2548, %v2552
      %2555 = vmatprep.subr.mxu0 0.0
      %2556 = vmatpush1.msra.mxu0 %v2543
      %2557 = vmatprep.subr.mxu0 0.0
      %2558 = vmatpush1.msra.mxu0 %v2544
      %2559 = vmatprep.subr.mxu0 0.0
      %2560 = vmatpush1.msra.mxu0 %v2545
      %2561 = vmatprep.subr.mxu0 0.0
      %2562 = vmatpush1.msra.mxu0 %v2546
      %2563 = vmatprep.subr.mxu0 0.0
      %2564 = vmatpush1.msra.mxu0 0.0
      %2565 = vmatprep.subr.mxu0 0.0
      %2566 = vmatpush1.msra.mxu0 0.0
      %2567 = vmatprep.subr.mxu0 0.0
      %2568 = vmatpush1.msra.mxu0 0.0
      %2569 = vmatprep.subr.mxu0 0.0
      %2570 = vmatpush1.msra.mxu0 0.0
      %2571 = vmatprep.subr.mxu0 0.0
      %2572 = vmatpush1.msra.mxu0 0.0
      %2573 = vmatprep.subr.mxu0 0.0
      %2574 = vmatpush1.msra.mxu0 0.0
      %2575 = vmatprep.subr.mxu0 0.0
      %2576 = vmatpush1.msra.mxu0 0.0
      %2577 = vmatprep.subr.mxu0 0.0
      %2578 = vmatpush1.msra.mxu0 0.0
      %2579 = vmatprep.subr.mxu0 0.0
      %2580 = vmatpush1.msra.mxu0 0.0
      %2581 = vmatprep.subr.mxu0 0.0
      %2582 = vmatpush1.msra.mxu0 0.0
      %2583 = vmatprep.subr.mxu0 0.0
      %2584 = vmatpush1.msra.mxu0 0.0
      %2585 = vmatprep.subr.mxu0 0.0
      %2586 = vmatpush1.msra.mxu0 0.0
      %2587 = vmatprep.subr.mxu0 0.0
      %2588 = vmatpush1.msra.mxu0 0.0
      %2589 = vmatprep.subr.mxu0 0.0
      %2590 = vmatpush1.msra.mxu0 0.0
      %2591 = vmatprep.subr.mxu0 0.0
      %2592 = vmatpush1.msra.mxu0 0.0
      %2593 = vmatprep.subr.mxu0 0.0
      %2594 = vmatpush1.msra.mxu0 0.0
      %2595 = vmatprep.subr.mxu0 0.0
      %2596 = vmatpush1.msra.mxu0 0.0
      %2597 = vmatprep.subr.mxu0 0.0
      %2598 = vmatpush1.msra.mxu0 0.0
      %2599 = vmatprep.subr.mxu0 0.0
      %2600 = vmatpush1.msra.mxu0 0.0
      %2601 = vmatprep.subr.mxu0 0.0
      %2602 = vmatpush1.msra.mxu0 0.0
      %2603 = vmatprep.subr.mxu0 0.0
      %2604 = vmatpush1.msra.mxu0 0.0
      %2605 = vmatprep.subr.mxu0 0.0
      %2606 = vmatpush1.msra.mxu0 0.0
      %2607 = vmatprep.subr.mxu0 0.0
      %2608 = vmatpush1.msra.mxu0 0.0
      %2609 = vmatprep.subr.mxu0 0.0
      %2610 = vmatpush1.msra.mxu0 0.0
      %2611 = vmatprep.subr.mxu0 0.0
      %2612 = vmatpush1.msra.mxu0 0.0
      %2613 = vmatprep.subr.mxu0 0.0
      %2614 = vmatpush1.msra.mxu0 0.0
      %2615 = vmatprep.subr.mxu0 0.0
      %2616 = vmatpush1.msra.mxu0 0.0
      %2617 = vmatprep.subr.mxu0 0.0
      %2618 = vmatpush1.msra.mxu0 0.0
      %2619 = vmatprep.mubr.f32.mxu0 0.0
      %2620 = vmatmul.mubr.f32.gmra.mrb[0].mxu0 %v758
      %v2621 = vpop.f32.mrb[0].mxu0
      %v2622 = vadd.f32 %v2553, %v2621
      %v2623 = vpop.f32.mrb[0].mxu0
      %2624 = vmatprep.mubr.f32.mxu0 0.0
      %2625 = vmatmul.mubr.f32.gmra.mrb[0].mxu0 %v761
      %v2626 = vpop.f32.mrb[0].mxu0
      %v2627 = vadd.f32 %v2553, %v2626
      %v2628 = vpop.f32.mrb[0].mxu0
      %2629 = vdwg.mxu0
      %v2630 = vmul.f32 %v2446, 0.35355338
      %v2631 = vmul.f32 %v2451, 0.35355338
      %v2633 = vsel %vm1012, %v2630, 0
      %v2636 = vsel %vm1012, %v2631, 0
      %v2639 = vsel %vm1012, %v2534, 0
      %v2642 = vsel %vm1012, %v2539, 0
      %2644 = vmatprep.subr.mxu0 0.0
      %2645 = vmatpush1.xpose.msra.mxu0 %v2639
      %2646 = vmatprep.subr.mxu0 0.0
      %2647 = vmatpush1.xpose.msra.mxu0 %v2642
      %2648 = vmatprep.subr.mxu0 0.0
      %2649 = vmatpush1.xpose.msra.mxu0 0.0
      %2650 = vmatprep.subr.mxu0 0.0
      %2651 = vmatpush1.xpose.msra.mxu0 0.0
      %2652 = vmatprep.subr.mxu0 0.0
      %2653 = vmatpush1.xpose.msra.mxu0 0.0
      %2654 = vmatprep.subr.mxu0 0.0
      %2655 = vmatpush1.xpose.msra.mxu0 0.0
      %2656 = vmatprep.subr.mxu0 0.0
      %2657 = vmatpush1.xpose.msra.mxu0 0.0
      %2658 = vmatprep.subr.mxu0 0.0
      %2659 = vmatpush1.xpose.msra.mxu0 0.0
      %2660 = vmatprep.subr.mxu0 0.0
      %2661 = vmatpush1.xpose.msra.mxu0 0.0
      %2662 = vmatprep.subr.mxu0 0.0
      %2663 = vmatpush1.xpose.msra.mxu0 0.0
      %2664 = vmatprep.subr.mxu0 0.0
      %2665 = vmatpush1.xpose.msra.mxu0 0.0
      %2666 = vmatprep.subr.mxu0 0.0
      %2667 = vmatpush1.xpose.msra.mxu0 0.0
      %2668 = vmatprep.subr.mxu0 0.0
      %2669 = vmatpush1.xpose.msra.mxu0 0.0
      %2670 = vmatprep.subr.mxu0 0.0
      %2671 = vmatpush1.xpose.msra.mxu0 0.0
      %2672 = vmatprep.subr.mxu0 0.0
      %2673 = vmatpush1.xpose.msra.mxu0 0.0
      %2674 = vmatprep.subr.mxu0 0.0
      %2675 = vmatpush1.xpose.msra.mxu0 0.0
      %2676 = vmatprep.subr.mxu0 0.0
      %2677 = vmatpush1.xpose.msra.mxu0 0.0
      %2678 = vmatprep.subr.mxu0 0.0
      %2679 = vmatpush1.xpose.msra.mxu0 0.0
      %2680 = vmatprep.subr.mxu0 0.0
      %2681 = vmatpush1.xpose.msra.mxu0 0.0
      %2682 = vmatprep.subr.mxu0 0.0
      %2683 = vmatpush1.xpose.msra.mxu0 0.0
      %2684 = vmatprep.subr.mxu0 0.0
      %2685 = vmatpush1.xpose.msra.mxu0 0.0
      %2686 = vmatprep.subr.mxu0 0.0
      %2687 = vmatpush1.xpose.msra.mxu0 0.0
      %2688 = vmatprep.subr.mxu0 0.0
      %2689 = vmatpush1.xpose.msra.mxu0 0.0
      %2690 = vmatprep.subr.mxu0 0.0
      %2691 = vmatpush1.xpose.msra.mxu0 0.0
      %2692 = vmatprep.subr.mxu0 0.0
      %2693 = vmatpush1.xpose.msra.mxu0 0.0
      %2694 = vmatprep.subr.mxu0 0.0
      %2695 = vmatpush1.xpose.msra.mxu0 0.0
      %2696 = vmatprep.subr.mxu0 0.0
      %2697 = vmatpush1.xpose.msra.mxu0 0.0
      %2698 = vmatprep.subr.mxu0 0.0
      %2699 = vmatpush1.xpose.msra.mxu0 0.0
      %2700 = vmatprep.subr.mxu0 0.0
      %2701 = vmatpush1.xpose.msra.mxu0 0.0
      %2702 = vmatprep.subr.mxu0 0.0
      %2703 = vmatpush1.xpose.msra.mxu0 0.0
      %2704 = vmatprep.subr.mxu0 0.0
      %2705 = vmatpush1.xpose.msra.mxu0 0.0
      %2706 = vmatprep.subr.mxu0 0.0
      %2707 = vmatpush1.xpose.msra.mxu0 0.0
      %2708 = vmatprep.mubr.f32.mxu0 0.0
      %2709 = vmatmul.mubr.f32.gmra.mrb[0].mxu0 %v2633
      %v2710 = vpop.f32.mrb[0].mxu0
      %v2711 = vadd.f32 0.0, %v2710
      %v2712 = vpop.f32.mrb[0].mxu0
      %2713 = vmatprep.mubr.f32.mxu0 0.0
      %2714 = vmatmul.mubr.f32.gmra.mrb[0].mxu0 %v2636
      %v2715 = vpop.f32.mrb[0].mxu0
      %v2716 = vadd.f32 0.0, %v2715
      %v2717 = vpop.f32.mrb[0].mxu0
      %2718 = vdwg.mxu0
      %v2719 = vsel %vm1100, %v2711, -inf
      %2720 = vmax.xlane.f32.xlu0 %v2719
      %v2721 = vpop.xlane.xlu0 %2720
      %v2722 = vsel %vm1100, %v2716, -inf
      %2723 = vmax.xlane.f32.xlu0 %v2722
      %v2724 = vpop.xlane.xlu0 %2723
      %v2725 = vsub.f32 %v2711, %v2721
      %v2726 = vsub.f32 %v2716, %v2724
      %v2727 = vmul.f32 %v2725, 1.442695
      %v2728 = vpow.pop %v2727
      %v2729 = vmul.f32 %v2726, 1.442695
      %v2730 = vpow.pop %v2729
      %v2731 = vsel %vm1100, %v2728, 0.0
      %2732 = vadd.xlane.f32.xlu0 %v2731
      %v2733 = vpop.xlane.xlu0 %2732
      %v2734 = vsel %vm1100, %v2730, 0.0
      %2735 = vadd.xlane.f32.xlu0 %v2734
      %v2736 = vpop.xlane.xlu0 %2735
      %v2737 = vrcp.pop %v2733
      %v2738 = vrcp.pop %v2736
      %v2739 = vmul.f32 %v2728, %v2737
      %v2740 = vmul.f32 %v2730, %v2738
      %v2742 = vsel %vm1100, %v2739, 0
      %v2745 = vsel %vm1100, %v2740, 0
      %2747 = vmatprep.subr.mxu0 0.0
      %2748 = vmatpush1.msra.mxu0 %v2622
      %2749 = vmatprep.subr.mxu0 0.0
      %2750 = vmatpush1.msra.mxu0 %v2627
      %2751 = vmatprep.subr.mxu0 0.0
      %2752 = vmatpush1.msra.mxu0 0.0
      %2753 = vmatprep.subr.mxu0 0.0
      %2754 = vmatpush1.msra.mxu0 0.0
      %2755 = vmatprep.subr.mxu0 0.0
      %2756 = vmatpush1.msra.mxu0 0.0
      %2757 = vmatprep.subr.mxu0 0.0
      %2758 = vmatpush1.msra.mxu0 0.0
      %2759 = vmatprep.subr.mxu0 0.0
      %2760 = vmatpush1.msra.mxu0 0.0
      %2761 = vmatprep.subr.mxu0 0.0
      %2762 = vmatpush1.msra.mxu0 0.0
      %2763 = vmatprep.subr.mxu0 0.0
      %2764 = vmatpush1.msra.mxu0 0.0
      %2765 = vmatprep.subr.mxu0 0.0
      %2766 = vmatpush1.msra.mxu0 0.0
      %2767 = vmatprep.subr.mxu0 0.0
      %2768 = vmatpush1.msra.mxu0 0.0
      %2769 = vmatprep.subr.mxu0 0.0
      %2770 = vmatpush1.msra.mxu0 0.0
      %2771 = vmatprep.subr.mxu0 0.0
      %2772 = vmatpush1.msra.mxu0 0.0
      %2773 = vmatprep.subr.mxu0 0.0
      %2774 = vmatpush1.msra.mxu0 0.0
      %2775 = vmatprep.subr.mxu0 0.0
      %2776 = vmatpush1.msra.mxu0 0.0
      %2777 = vmatprep.subr.mxu0 0.0
      %2778 = vmatpush1.msra.mxu0 0.0
      %2779 = vmatprep.subr.mxu0 0.0
      %2780 = vmatpush1.msra.mxu0 0.0
      %2781 = vmatprep.subr.mxu0 0.0
      %2782 = vmatpush1.msra.mxu0 0.0
      %2783 = vmatprep.subr.mxu0 0.0
      %2784 = vmatpush1.msra.mxu0 0.0
      %2785 = vmatprep.subr.mxu0 0.0
      %2786 = vmatpush1.msra.mxu0 0.0
      %2787 = vmatprep.subr.mxu0 0.0
      %2788 = vmatpush1.msra.mxu0 0.0
      %2789 = vmatprep.subr.mxu0 0.0
      %2790 = vmatpush1.msra.mxu0 0.0
      %2791 = vmatprep.subr.mxu0 0.0
      %2792 = vmatpush1.msra.mxu0 0.0
      %2793 = vmatprep.subr.mxu0 0.0
      %2794 = vmatpush1.msra.mxu0 0.0
      %2795 = vmatprep.subr.mxu0 0.0
      %2796 = vmatpush1.msra.mxu0 0.0
      %2797 = vmatprep.subr.mxu0 0.0
      %2798 = vmatpush1.msra.mxu0 0.0
      %2799 = vmatprep.subr.mxu0 0.0
      %2800 = vmatpush1.msra.mxu0 0.0
      %2801 = vmatprep.subr.mxu0 0.0
      %2802 = vmatpush1.msra.mxu0 0.0
      %2803 = vmatprep.subr.mxu0 0.0
      %2804 = vmatpush1.msra.mxu0 0.0
      %2805 = vmatprep.subr.mxu0 0.0
      %2806 = vmatpush1.msra.mxu0 0.0
      %2807 = vmatprep.subr.mxu0 0.0
      %2808 = vmatpush1.msra.mxu0 0.0
      %2809 = vmatprep.subr.mxu0 0.0
      %2810 = vmatpush1.msra.mxu0 0.0
      %2811 = vmatprep.mubr.f32.mxu0 0.0
      %2812 = vmatmul.mubr.f32.gmra.mrb[0].mxu0 %v2742
      %v2813 = vpop.f32.mrb[0].mxu0
      %v2814 = vadd.f32 0.0, %v2813
      %v2815 = vpop.f32.mrb[0].mxu0
      %2816 = vmatprep.mubr.f32.mxu0 0.0
      %2817 = vmatmul.mubr.f32.gmra.mrb[0].mxu0 %v2745
      %v2818 = vpop.f32.mrb[0].mxu0
      %v2819 = vadd.f32 0.0, %v2818
      %v2820 = vpop.f32.mrb[0].mxu0
      %2821 = vdwg.mxu0
      %s2822 = scalar_lea.vmem %s706, 24
      %v2823 = vld [vmem:[%s2822] sm:$0xff]
      %v2825 = vsel %vm1012, %v2814, 0
      %v2828 = vsel %vm1012, %v2819, 0
      %2830 = vmatprep.subr.mxu0 0.0
      %2831 = vmatpush1.msra.mxu0 %v2823
      %2832 = vmatprep.subr.mxu0 0.0
      %2833 = vmatpush1.msra.mxu0 0.0
      %2834 = vmatprep.subr.mxu0 0.0
      %2835 = vmatpush1.msra.mxu0 0.0
      %2836 = vmatprep.subr.mxu0 0.0
      %2837 = vmatpush1.msra.mxu0 0.0
      %2838 = vmatprep.subr.mxu0 0.0
      %2839 = vmatpush1.msra.mxu0 0.0
      %2840 = vmatprep.subr.mxu0 0.0
      %2841 = vmatpush1.msra.mxu0 0.0
      %2842 = vmatprep.subr.mxu0 0.0
      %2843 = vmatpush1.msra.mxu0 0.0
      %2844 = vmatprep.subr.mxu0 0.0
      %2845 = vmatpush1.msra.mxu0 0.0
      %2846 = vmatprep.subr.mxu0 0.0
      %2847 = vmatpush1.msra.mxu0 0.0
      %2848 = vmatprep.subr.mxu0 0.0
      %2849 = vmatpush1.msra.mxu0 0.0
      %2850 = vmatprep.subr.mxu0 0.0
      %2851 = vmatpush1.msra.mxu0 0.0
      %2852 = vmatprep.subr.mxu0 0.0
      %2853 = vmatpush1.msra.mxu0 0.0
      %2854 = vmatprep.subr.mxu0 0.0
      %2855 = vmatpush1.msra.mxu0 0.0
      %2856 = vmatprep.subr.mxu0 0.0
      %2857 = vmatpush1.msra.mxu0 0.0
      %2858 = vmatprep.subr.mxu0 0.0
      %2859 = vmatpush1.msra.mxu0 0.0
      %2860 = vmatprep.subr.mxu0 0.0
      %2861 = vmatpush1.msra.mxu0 0.0
      %2862 = vmatprep.subr.mxu0 0.0
      %2863 = vmatpush1.msra.mxu0 0.0
      %2864 = vmatprep.subr.mxu0 0.0
      %2865 = vmatpush1.msra.mxu0 0.0
      %2866 = vmatprep.subr.mxu0 0.0
      %2867 = vmatpush1.msra.mxu0 0.0
      %2868 = vmatprep.subr.mxu0 0.0
      %2869 = vmatpush1.msra.mxu0 0.0
      %2870 = vmatprep.subr.mxu0 0.0
      %2871 = vmatpush1.msra.mxu0 0.0
      %2872 = vmatprep.subr.mxu0 0.0
      %2873 = vmatpush1.msra.mxu0 0.0
      %2874 = vmatprep.subr.mxu0 0.0
      %2875 = vmatpush1.msra.mxu0 0.0
      %2876 = vmatprep.subr.mxu0 0.0
      %2877 = vmatpush1.msra.mxu0 0.0
      %2878 = vmatprep.subr.mxu0 0.0
      %2879 = vmatpush1.msra.mxu0 0.0
      %2880 = vmatprep.subr.mxu0 0.0
      %2881 = vmatpush1.msra.mxu0 0.0
      %2882 = vmatprep.subr.mxu0 0.0
      %2883 = vmatpush1.msra.mxu0 0.0
      %2884 = vmatprep.subr.mxu0 0.0
      %2885 = vmatpush1.msra.mxu0 0.0
      %2886 = vmatprep.subr.mxu0 0.0
      %2887 = vmatpush1.msra.mxu0 0.0
      %2888 = vmatprep.subr.mxu0 0.0
      %2889 = vmatpush1.msra.mxu0 0.0
      %2890 = vmatprep.subr.mxu0 0.0
      %2891 = vmatpush1.msra.mxu0 0.0
      %2892 = vmatprep.subr.mxu0 0.0
      %2893 = vmatpush1.msra.mxu0 0.0
      %2894 = vmatprep.mubr.f32.mxu0 0.0
      %2895 = vmatmul.mubr.f32.gmra.mrb[0].mxu0 %v2825
      %v2896 = vpop.f32.mrb[0].mxu0
      %v2897 = vadd.f32 0.0, %v2896
      %v2898 = vpop.f32.mrb[0].mxu0
      %2899 = vmatprep.mubr.f32.mxu0 0.0
      %2900 = vmatmul.mubr.f32.gmra.mrb[0].mxu0 %v2828
      %v2901 = vpop.f32.mrb[0].mxu0
      %v2902 = vadd.f32 0.0, %v2901
      %v2903 = vpop.f32.mrb[0].mxu0
      %2904 = vdwg.mxu0
      %v2905 = vadd.f32 %v2364, %v2897
      %v2906 = vadd.f32 %v2365, %v2902
      %v2907 = vld [vmem:[%s709] sm:$0x1]
      %v2909 = vlaneseq
      %v2910 = vshrl.u32 %v2909, 7
      %v2911 = vsub.s32 0, %v2910
      %v2912 = vrot.slane %v2907, %v2911
      %v2914 = vadd.f32 %v2905, %v2912
      %v2915 = vadd.f32 %v2906, %v2912
      %v2916 = vld [vmem:[%s713] sm:$0x3]
      %v2917 = vadd.f32 %v2914, %v743
      %v2918 = vadd.f32 %v2915, %v744
      %v2919 = vsel %vm756, %v2917, 0.0
      %2920 = vadd.xlane.f32.xlu0 %v2919
      %v2921 = vpop.xlane.xlu0 %2920
      %v2922 = vsel %vm756, %v2918, 0.0
      %2923 = vadd.xlane.f32.xlu0 %v2922
      %v2924 = vpop.xlane.xlu0 %2923
      %v2925 = vrcp.pop 32.0
      %v2926 = vmul.f32 %v2921, %v2925
      %v2927 = vmul.f32 %v2924, %v2925
      %v2928 = vsub.f32 %v2917, %v2926
      %v2929 = vsub.f32 %v2918, %v2927
      %v2930 = vmul.f32 %v2928, %v2928
      %v2931 = vmul.f32 %v2929, %v2929
      %v2932 = vsel %vm756, %v2930, 0.0
      %2933 = vadd.xlane.f32.xlu0 %v2932
      %v2934 = vpop.xlane.xlu0 %2933
      %v2935 = vsel %vm756, %v2931, 0.0
      %2936 = vadd.xlane.f32.xlu0 %v2935
      %v2937 = vpop.xlane.xlu0 %2936
      %v2938 = vmul.f32 %v2934, %v2925
      %v2939 = vmul.f32 %v2937, %v2925
      %v2940 = vadd.f32 %v2938, 1e-05
      %v2941 = vadd.f32 %v2939, 1e-05
      %v2942 = vrsqrt.pop %v2940
      %v2943 = vrsqrt.pop %v2941
      %v2944 = vmul.f32 %v2928, %v2942
      %v2945 = vmul.f32 %v2929, %v2943
      %v2946 = vlaneseq
      %v2947 = vshrl.u32 %v2946, 7
      %v2948 = vsub.s32 0, %v2947
      %v2949 = vrot.slane %v2916, %v2948
      %v2950 = vmul.f32 %v2944, %v2949
      %v2951 = vmul.f32 %v2945, %v2949
      %v2952 = vlaneseq
      %v2953 = vshrl.u32 %v2952, 7
      %v2954 = vsub.s32 1, %v2953
      %v2955 = vrot.slane %v2916, %v2954
      %v2956 = vadd.f32 %v2950, %v2955
      %v2957 = vadd.f32 %v2951, %v2955
      %v2958 = vld [vmem:[%s718] sm:$0xff]
      %v2959 = vld [vmem:[%s718 + $0x8] sm:$0xff]
      %v2960 = vld [vmem:[%s718 + $0x10] sm:$0xff]
      %v2961 = vld [vmem:[%s718 + $0x18] sm:$0xff]
      %v2962 = vld [vmem:[%s721] sm:$0x1]
      %v2964 = vlaneseq
      %v2965 = vshrl.u32 %v2964, 7
      %v2966 = vsub.s32 0, %v2965
      %v2967 = vrot.slane %v2962, %v2966
      %v2970 = vsel %vm756, %v2956, 0
      %v2973 = vsel %vm756, %v2957, 0
      %2975 = vmatprep.subr.mxu0 0.0
      %2976 = vmatpush1.msra.mxu0 %v2958
      %2977 = vmatprep.subr.mxu0 0.0
      %2978 = vmatpush1.msra.mxu0 %v2959
      %2979 = vmatprep.subr.mxu0 0.0
      %2980 = vmatpush1.msra.mxu0 %v2960
      %2981 = vmatprep.subr.mxu0 0.0
      %2982 = vmatpush1.msra.mxu0 %v2961
      %2983 = vmatprep.subr.mxu0 0.0
      %2984 = vmatpush1.msra.mxu0 0.0
      %2985 = vmatprep.subr.mxu0 0.0
      %2986 = vmatpush1.msra.mxu0 0.0
      %2987 = vmatprep.subr.mxu0 0.0
      %2988 = vmatpush1.msra.mxu0 0.0
      %2989 = vmatprep.subr.mxu0 0.0
      %2990 = vmatpush1.msra.mxu0 0.0
      %2991 = vmatprep.subr.mxu0 0.0
      %2992 = vmatpush1.msra.mxu0 0.0
      %2993 = vmatprep.subr.mxu0 0.0
      %2994 = vmatpush1.msra.mxu0 0.0
      %2995 = vmatprep.subr.mxu0 0.0
      %2996 = vmatpush1.msra.mxu0 0.0
      %2997 = vmatprep.subr.mxu0 0.0
      %2998 = vmatpush1.msra.mxu0 0.0
      %2999 = vmatprep.subr.mxu0 0.0
      %3000 = vmatpush1.msra.mxu0 0.0
      %3001 = vmatprep.subr.mxu0 0.0
      %3002 = vmatpush1.msra.mxu0 0.0
      %3003 = vmatprep.subr.mxu0 0.0
      %3004 = vmatpush1.msra.mxu0 0.0
      %3005 = vmatprep.subr.mxu0 0.0
      %3006 = vmatpush1.msra.mxu0 0.0
      %3007 = vmatprep.subr.mxu0 0.0
      %3008 = vmatpush1.msra.mxu0 0.0
      %3009 = vmatprep.subr.mxu0 0.0
      %3010 = vmatpush1.msra.mxu0 0.0
      %3011 = vmatprep.subr.mxu0 0.0
      %3012 = vmatpush1.msra.mxu0 0.0
      %3013 = vmatprep.subr.mxu0 0.0
      %3014 = vmatpush1.msra.mxu0 0.0
      %3015 = vmatprep.subr.mxu0 0.0
      %3016 = vmatpush1.msra.mxu0 0.0
      %3017 = vmatprep.subr.mxu0 0.0
      %3018 = vmatpush1.msra.mxu0 0.0
      %3019 = vmatprep.subr.mxu0 0.0
      %3020 = vmatpush1.msra.mxu0 0.0
      %3021 = vmatprep.subr.mxu0 0.0
      %3022 = vmatpush1.msra.mxu0 0.0
      %3023 = vmatprep.subr.mxu0 0.0
      %3024 = vmatpush1.msra.mxu0 0.0
      %3025 = vmatprep.subr.mxu0 0.0
      %3026 = vmatpush1.msra.mxu0 0.0
      %3027 = vmatprep.subr.mxu0 0.0
      %3028 = vmatpush1.msra.mxu0 0.0
      %3029 = vmatprep.subr.mxu0 0.0
      %3030 = vmatpush1.msra.mxu0 0.0
      %3031 = vmatprep.subr.mxu0 0.0
      %3032 = vmatpush1.msra.mxu0 0.0
      %3033 = vmatprep.subr.mxu0 0.0
      %3034 = vmatpush1.msra.mxu0 0.0
      %3035 = vmatprep.subr.mxu0 0.0
      %3036 = vmatpush1.msra.mxu0 0.0
      %3037 = vmatprep.subr.mxu0 0.0
      %3038 = vmatpush1.msra.mxu0 0.0
      %3039 = vmatprep.mubr.f32.mxu0 0.0
      %3040 = vmatmul.mubr.f32.gmra.mrb[0].mxu0 %v2970
      %v3041 = vpop.f32.mrb[0].mxu0
      %v3042 = vadd.f32 %v2967, %v3041
      %v3043 = vpop.f32.mrb[0].mxu0
      %3044 = vmatprep.mubr.f32.mxu0 0.0
      %3045 = vmatmul.mubr.f32.gmra.mrb[0].mxu0 %v2973
      %v3046 = vpop.f32.mrb[0].mxu0
      %v3047 = vadd.f32 %v2967, %v3046
      %v3048 = vpop.f32.mrb[0].mxu0
      %3049 = vdwg.mxu0
      %v3050 = vmax.f32 %v3042, 0.0
      %v3051 = vmax.f32 %v3047, 0.0
      %v3052 = vld [vmem:[%s726] sm:$0xff]
      %v3053 = vld [vmem:[%s726 + $0x8] sm:$0xff]
      %v3054 = vld [vmem:[%s726 + $0x10] sm:$0xff]
      %v3055 = vld [vmem:[%s726 + $0x18] sm:$0xff]
      %v3056 = vld [vmem:[%s726 + $0x20] sm:$0xff]
      %v3057 = vld [vmem:[%s726 + $0x28] sm:$0xff]
      %v3058 = vld [vmem:[%s726 + $0x30] sm:$0xff]
      %v3059 = vld [vmem:[%s726 + $0x38] sm:$0xff]
      %v3060 = vld [vmem:[%s729] sm:$0x1]
      %v3062 = vlaneseq
      %v3063 = vshrl.u32 %v3062, 7
      %v3064 = vsub.s32 0, %v3063
      %v3065 = vrot.slane %v3060, %v3064
      %vm3067 = vcmask 523264
      %v3069 = vsel %vm3067, %v3050, 0
      %v3072 = vsel %vm3067, %v3051, 0
      %3074 = vmatprep.subr.mxu0 0.0
      %3075 = vmatpush1.msra.mxu0 %v3052
      %3076 = vmatprep.subr.mxu0 0.0
      %3077 = vmatpush1.msra.mxu0 %v3053
      %3078 = vmatprep.subr.mxu0 0.0
      %3079 = vmatpush1.msra.mxu0 %v3054
      %3080 = vmatprep.subr.mxu0 0.0
      %3081 = vmatpush1.msra.mxu0 %v3055
      %3082 = vmatprep.subr.mxu0 0.0
      %3083 = vmatpush1.msra.mxu0 %v3056
      %3084 = vmatprep.subr.mxu0 0.0
      %3085 = vmatpush1.msra.mxu0 %v3057
      %3086 = vmatprep.subr.mxu0 0.0
      %3087 = vmatpush1.msra.mxu0 %v3058
      %3088 = vmatprep.subr.mxu0 0.0
      %3089 = vmatpush1.msra.mxu0 %v3059
      %3090 = vmatprep.subr.mxu0 0.0
      %3091 = vmatpush1.msra.mxu0 0.0
      %3092 = vmatprep.subr.mxu0 0.0
      %3093 = vmatpush1.msra.mxu0 0.0
      %3094 = vmatprep.subr.mxu0 0.0
      %3095 = vmatpush1.msra.mxu0 0.0
      %3096 = vmatprep.subr.mxu0 0.0
      %3097 = vmatpush1.msra.mxu0 0.0
      %3098 = vmatprep.subr.mxu0 0.0
      %3099 = vmatpush1.msra.mxu0 0.0
      %3100 = vmatprep.subr.mxu0 0.0
      %3101 = vmatpush1.msra.mxu0 0.0
      %3102 = vmatprep.subr.mxu0 0.0
      %3103 = vmatpush1.msra.mxu0 0.0
      %3104 = vmatprep.subr.mxu0 0.0
      %3105 = vmatpush1.msra.mxu0 0.0
      %3106 = vmatprep.subr.mxu0 0.0
      %3107 = vmatpush1.msra.mxu0 0.0
      %3108 = vmatprep.subr.mxu0 0.0
      %3109 = vmatpush1.msra.mxu0 0.0
      %3110 = vmatprep.subr.mxu0 0.0
      %3111 = vmatpush1.msra.mxu0 0.0
      %3112 = vmatprep.subr.mxu0 0.0
      %3113 = vmatpush1.msra.mxu0 0.0
      %3114 = vmatprep.subr.mxu0 0.0
      %3115 = vmatpush1.msra.mxu0 0.0
      %3116 = vmatprep.subr.mxu0 0.0
      %3117 = vmatpush1.msra.mxu0 0.0
      %3118 = vmatprep.subr.mxu0 0.0
      %3119 = vmatpush1.msra.mxu0 0.0
      %3120 = vmatprep.subr.mxu0 0.0
      %3121 = vmatpush1.msra.mxu0 0.0
      %3122 = vmatprep.subr.mxu0 0.0
      %3123 = vmatpush1.msra.mxu0 0.0
      %3124 = vmatprep.subr.mxu0 0.0
      %3125 = vmatpush1.msra.mxu0 0.0
      %3126 = vmatprep.subr.mxu0 0.0
      %3127 = vmatpush1.msra.mxu0 0.0
      %3128 = vmatprep.subr.mxu0 0.0
      %3129 = vmatpush1.msra.mxu0 0.0
      %3130 = vmatprep.subr.mxu0 0.0
      %3131 = vmatpush1.msra.mxu0 0.0
      %3132 = vmatprep.subr.mxu0 0.0
      %3133 = vmatpush1.msra.mxu0 0.0
      %3134 = vmatprep.subr.mxu0 0.0
      %3135 = vmatpush1.msra.mxu0 0.0
      %3136 = vmatprep.subr.mxu0 0.0
      %3137 = vmatpush1.msra.mxu0 0.0
      %3138 = vmatprep.mubr.f32.mxu0 0.0
      %3139 = vmatmul.mubr.f32.gmra.mrb[0].mxu0 %v3069
      %v3140 = vpop.f32.mrb[0].mxu0
      %v3141 = vadd.f32 %v3065, %v3140
      %v3142 = vpop.f32.mrb[0].mxu0
      %3143 = vmatprep.mubr.f32.mxu0 0.0
      %3144 = vmatmul.mubr.f32.gmra.mrb[0].mxu0 %v3072
      %v3145 = vpop.f32.mrb[0].mxu0
      %v3146 = vadd.f32 %v3065, %v3145
      %v3147 = vpop.f32.mrb[0].mxu0
      %3148 = vdwg.mxu0
      %v3149 = vld [vmem:[%s733] sm:$0x3]
      %v3150 = vadd.f32 %v3141, %v2956
      %v3151 = vadd.f32 %v3146, %v2957
      %v3152 = vsel %vm756, %v3150, 0.0
      %3153 = vadd.xlane.f32.xlu0 %v3152
      %v3154 = vpop.xlane.xlu0 %3153
      %v3155 = vsel %vm756, %v3151, 0.0
      %3156 = vadd.xlane.f32.xlu0 %v3155
      %v3157 = vpop.xlane.xlu0 %3156
      %v3158 = vmul.f32 %v3154, %v2925
      %v3159 = vmul.f32 %v3157, %v2925
      %v3160 = vsub.f32 %v3150, %v3158
      %v3161 = vsub.f32 %v3151, %v3159
      %v3162 = vmul.f32 %v3160, %v3160
      %v3163 = vmul.f32 %v3161, %v3161
      %v3164 = vsel %vm756, %v3162, 0.0
      %3165 = vadd.xlane.f32.xlu0 %v3164
      %v3166 = vpop.xlane.xlu0 %3165
      %v3167 = vsel %vm756, %v3163, 0.0
      %3168 = vadd.xlane.f32.xlu0 %v3167
      %v3169 = vpop.xlane.xlu0 %3168
      %v3170 = vmul.f32 %v3166, %v2925
      %v3171 = vmul.f32 %v3169, %v2925
      %v3172 = vadd.f32 %v3170, 1e-05
      %v3173 = vadd.f32 %v3171, 1e-05
      %v3174 = vrsqrt.pop %v3172
      %v3175 = vrsqrt.pop %v3173
      %v3176 = vmul.f32 %v3160, %v3174
      %v3177 = vmul.f32 %v3161, %v3175
      %v3178 = vlaneseq
      %v3179 = vshrl.u32 %v3178, 7
      %v3180 = vsub.s32 0, %v3179
      %v3181 = vrot.slane %v3149, %v3180
      %v3182 = vmul.f32 %v3176, %v3181
      %v3183 = vmul.f32 %v3177, %v3181
      %v3184 = vlaneseq
      %v3185 = vshrl.u32 %v3184, 7
      %v3186 = vsub.s32 1, %v3185
      %v3187 = vrot.slane %v3149, %v3186
      %v3188 = vadd.f32 %v3182, %v3187
      %v3189 = vadd.f32 %v3183, %v3187
      %3190 = vst.msk [vmem:[#allocation2] sm:$0xff] %vm756, %v3188
      %3191 = vst.msk [vmem:[#allocation2 + $0x8] sm:$0xff] %vm756, %v3189
      %p3192 = scmp.eq.s32.totalorder %s27, 5
      // Predicated region
      $region89: #{d3g_pair_transformer_px_forward.2} parent=83 // pred_check
        %p3193 = pneg %p3192
      $region90: #{d3g_pair_transformer_px_forward.2} parent=83 // pred_check_branch
        %3195 = sbr.rel (%p3193) target = $region92
      $region91: #{d3g_pair_transformer_px_forward.2} parent=83 // pred_region
        %v3196 = vld [vmem:[%s15] sm:$0x3]
        %v3197 = vsel %vm756, %v3188, 0.0
        %3198 = vadd.xlane.f32.xlu0 %v3197
        %v3199 = vpop.xlane.xlu0 %3198
        %v3200 = vsel %vm756, %v3189, 0.0
        %3201 = vadd.xlane.f32.xlu0 %v3200
        %v3202 = vpop.xlane.xlu0 %3201
        %v3203 = vmul.f32 %v3199, %v2925
        %v3204 = vmul.f32 %v3202, %v2925
        %v3205 = vsub.f32 %v3188, %v3203
        %v3206 = vsub.f32 %v3189, %v3204
        %v3207 = vmul.f32 %v3205, %v3205
        %v3208 = vmul.f32 %v3206, %v3206
        %v3209 = vsel %vm756, %v3207, 0.0
        %3210 = vadd.xlane.f32.xlu0 %v3209
        %v3211 = vpop.xlane.xlu0 %3210
        %v3212 = vsel %vm756, %v3208, 0.0
        %3213 = vadd.xlane.f32.xlu0 %v3212
        %v3214 = vpop.xlane.xlu0 %3213
        %v3215 = vmul.f32 %v3211, %v2925
        %v3216 = vmul.f32 %v3214, %v2925
        %v3217 = vadd.f32 %v3215, 1e-05
        %v3218 = vadd.f32 %v3216, 1e-05
        %v3219 = vrsqrt.pop %v3217
        %v3220 = vrsqrt.pop %v3218
        %v3221 = vmul.f32 %v3205, %v3219
        %v3222 = vmul.f32 %v3206, %v3220
        %v3223 = vlaneseq
        %v3224 = vshrl.u32 %v3223, 7
        %v3225 = vsub.s32 0, %v3224
        %v3226 = vrot.slane %v3196, %v3225
        %v3227 = vmul.f32 %v3221, %v3226
        %v3228 = vmul.f32 %v3222, %v3226
        %v3229 = vlaneseq
        %v3230 = vshrl.u32 %v3229, 7
        %v3231 = vsub.s32 1, %v3230
        %v3232 = vrot.slane %v3196, %v3231
        %v3233 = vadd.f32 %v3227, %v3232
        %v3234 = vadd.f32 %v3228, %v3232
        %3235 = vst.msk [vmem:[%s16] sm:$0xff] %vm756, %v3233
        %3236 = vst.msk [vmem:[%s16 + $0x8] sm:$0xff] %vm756, %v3234
      $region92: #{d3g_pair_transformer_px_forward.2} parent=83 // pred_fallthru
        _
      // Predicated region
      $region93: #{d3g_pair_transformer_px_forward.2} parent=83 // pred_check
        %p3237 = pneg %p446
      $region94: #{d3g_pair_transformer_px_forward.2} parent=83 // pred_check_branch
        %3239 = sbr.rel (%p3237) target = $region96
      $region95: #{d3g_pair_transformer_px_forward.2} parent=83 // pred_region
        _
      $region96: #{d3g_pair_transformer_px_forward.2} parent=83 // pred_fallthru
        _
      // Predicated region
      $region97: #{d3g_pair_transformer_px_forward.2} parent=83 // pred_check
        %p3240 = pneg %p446
      $region98: #{d3g_pair_transformer_px_forward.2} parent=83 // pred_check_branch
        %3242 = sbr.rel (%p3240) target = $region100
      $region99: #{d3g_pair_transformer_px_forward.2} parent=83 // pred_region
        _
      $region100: #{d3g_pair_transformer_px_forward.2} parent=83 // pred_fallthru
        _
    $region84: #{d3g_pair_transformer_px_forward.2} parent=5 // pred_fallthru
      _
    %p3243 = scmp.le.s32.totalorder 2, %s22
    // Predicated region
    $region101: #{d3g_pair_transformer_px_forward.2} parent=5 // pred_check
      %p3244 = pneg %p3243
    $region102: #{d3g_pair_transformer_px_forward.2} parent=5 // pred_check_branch
      %3246 = sbr.rel (%p3244) target = $region104
    $region103: #{d3g_pair_transformer_px_forward.2} parent=5 // pred_region
      %s3247 = ssub.s32 %s22, 2
    $region104: #{d3g_pair_transformer_px_forward.2} parent=5 // pred_fallthru
      _
  $region6: #{d3g_pair_transformer_px_forward.2} parent=0 // loop_footer
    %s26 = sadd.s32 1, %s22
  $region7: #{d3g_pair_transformer_px_forward.2} parent=0 // loop_footer_branch
    %21 = sbr.rel target = $region3
  $region8: #{d3g_pair_transformer_px_forward.2} parent=0 // loop_exit
    _

// kernel: d3g_pair_transformer_px_forward.3
$region0: #{d3g_pair_transformer_px_forward.3}
  #allocation0 [shape = 'u32[]', space=smem, size = 0x4, offset = 0x4, fixed_abs, tag = 'smem constant byte address 0x4 - core index']
  #allocation1 [shape = 'u32[144,128]{1,0:T(1,128)}', space=vmem, size = 0x12000, scoped, tag = 'internal scratch']
  #allocation2 [shape = 'f32[8,32]{1,0:T(8,128)}', space=vmem, size = 0x1000, scoped, tag = 'scratch operand']
  %s0 = inlined_call_operand.smem [shape: u32[31], index: -1, kind: input, shape index: {}]
  %s1 = sld [smem:[%s0]]
  %s2 = scalar_lea.smem %s0, 1
  %s3 = sld [smem:[%s2]]
  %s4 = scalar_lea.smem %s0, 2
  %s5 = sld [smem:[%s4]]
  %s6 = scalar_lea.smem %s0, 3
  %s7 = sld [smem:[%s6]]
  %s8 = scalar_lea.smem %s0, 4
  %s9 = sld [smem:[%s8]]
  %s10 = scalar_lea.smem %s0, 5
  %s11 = sld [smem:[%s10]]
  %s12 = scalar_lea.smem %s0, 6
  %s13 = sld [smem:[%s12]]
  %s14 = scalar_lea.smem %s0, 7
  %s15 = sld [smem:[%s14]]
  %s16 = scalar_lea.smem %s0, 8
  %s17 = sld [smem:[%s16]]
  %s18 = scalar_lea.smem %s0, 9
  %s19 = sld [smem:[%s18]]
  %s20 = scalar_lea.smem %s0, 10
  %s21 = sld [smem:[%s20]]
  %s22 = scalar_lea.smem %s0, 11
  %s23 = sld [smem:[%s22]]
  %s24 = scalar_lea.smem %s0, 12
  %s25 = sld [smem:[%s24]]
  %s26 = scalar_lea.smem %s0, 13
  %s27 = sld [smem:[%s26]]
  %s28 = scalar_lea.smem %s0, 14
  %s29 = sld [smem:[%s28]]
  %s30 = scalar_lea.smem %s0, 15
  %s31 = sld [smem:[%s30]]
  %s32 = scalar_lea.smem %s0, 16
  %s33 = sld [smem:[%s32]]
  %s34 = scalar_lea.smem %s0, 17
  %s35 = sld [smem:[%s34]]
  %s36 = scalar_lea.smem %s0, 18
  %s37 = sld [smem:[%s36]]
  %s38 = scalar_lea.smem %s0, 19
  %s39 = sld [smem:[%s38]]
  %s40 = scalar_lea.smem %s0, 20
  %s41 = sld [smem:[%s40]]
  %s42 = scalar_lea.smem %s0, 21
  %s43 = sld [smem:[%s42]]
  %s44 = scalar_lea.smem %s0, 22
  %s45 = sld [smem:[%s44]]
  %s46 = scalar_lea.smem %s0, 23
  %s47 = sld [smem:[%s46]]
  %s48 = scalar_lea.smem %s0, 24
  %s49 = sld [smem:[%s48]]
  %s50 = scalar_lea.smem %s0, 25
  %s51 = sld [smem:[%s50]]
  %s52 = scalar_lea.smem %s0, 26
  %s53 = sld [smem:[%s52]]
  %s54 = scalar_lea.smem %s0, 27
  %s55 = sld [smem:[%s54]]
  %s56 = scalar_lea.smem %s0, 28
  %s57 = sld [smem:[%s56]]
  %s58 = scalar_lea.smem %s0, 29
  %s59 = sld [smem:[%s58]]
  %s60 = scalar_lea.smem %s0, 30
  %s61 = sld [smem:[%s60]]
  %s62 = sld [smem:[#allocation0]]
  $region161: #{d3g_pair_transformer_px_forward.3} parent=0
    _
  %s64 = ssub.s32 1, %s62
  %s65 = scalar_select 0, %s64, %s62
  loop: start=0, step=1, limit=8
  $region2: #{d3g_pair_transformer_px_forward.3} parent=0 // loop_pre_header
    _
  $region3: #{d3g_pair_transformer_px_forward.3} parent=0 // loop_header
    %s67 = sphi 0, %s71
    %p68 = scmp.ge.s32.totalorder %s67, 8
    %s75 = sphi 0, %s75
    %s77 = sphi 0, %s75
    %s78 = sphi 0, %s77
    %s92 = sphi 0, %s78
    %s96 = sphi 0, %s96
    %s98 = sphi 0, %s96
    %s99 = sphi 0, %s98
    %s113 = sphi 0, %s99
    %s119 = sphi 0, %s121
    %s122 = sphi 0, %s119
    %s123 = sphi 0, %s122
    %s139 = sphi 0, %s123
    %s145 = sphi 0, %s147
    %s148 = sphi 0, %s145
    %s149 = sphi 0, %s148
    %s165 = sphi 0, %s149
    %s171 = sphi 0, %s173
    %s174 = sphi 0, %s171
    %s175 = sphi 0, %s174
    %s191 = sphi 0, %s175
    %s197 = sphi 0, %s199
    %s200 = sphi 0, %s197
    %s201 = sphi 0, %s200
    %s217 = sphi 0, %s201
    %s223 = sphi 0, %s225
    %s226 = sphi 0, %s223
    %s227 = sphi 0, %s226
    %s243 = sphi 0, %s227
    %s249 = sphi 0, %s251
    %s252 = sphi 0, %s249
    %s253 = sphi 0, %s252
    %s269 = sphi 0, %s253
    %s275 = sphi 0, %s277
    %s278 = sphi 0, %s275
    %s279 = sphi 0, %s278
    %s295 = sphi 0, %s279
    %s301 = sphi 0, %s303
    %s304 = sphi 0, %s301
    %s305 = sphi 0, %s304
    %s321 = sphi 0, %s305
    %s327 = sphi 0, %s329
    %s330 = sphi 0, %s327
    %s331 = sphi 0, %s330
    %s347 = sphi 0, %s331
    %s353 = sphi 0, %s355
    %s356 = sphi 0, %s353
    %s357 = sphi 0, %s356
    %s373 = sphi 0, %s357
    %s379 = sphi 0, %s381
    %s382 = sphi 0, %s379
    %s383 = sphi 0, %s382
    %s399 = sphi 0, %s383
    %s405 = sphi 0, %s407
    %s408 = sphi 0, %s405
    %s409 = sphi 0, %s408
    %s425 = sphi 0, %s409
    %s431 = sphi 0, %s433
    %s434 = sphi 0, %s431
    %s435 = sphi 0, %s434
    %s451 = sphi 0, %s435
    %s457 = sphi 0, %s459
    %s460 = sphi 0, %s457
    %s461 = sphi 0, %s460
    %s477 = sphi 0, %s461
    %s483 = sphi 0, %s485
    %s486 = sphi 0, %s483
    %s487 = sphi 0, %s486
    %s503 = sphi 0, %s487
    %s509 = sphi 0, %s511
    %s512 = sphi 0, %s509
    %s513 = sphi 0, %s512
    %s529 = sphi 0, %s513
    %s535 = sphi 0, %s537
    %s538 = sphi 0, %s535
    %s539 = sphi 0, %s538
    %s555 = sphi 0, %s539
    %s561 = sphi 0, %s563
    %s564 = sphi 0, %s561
    %s565 = sphi 0, %s564
    %s581 = sphi 0, %s565
    %s587 = sphi 0, %s589
    %s590 = sphi 0, %s587
    %s591 = sphi 0, %s590
    %s607 = sphi 0, %s591
    %s613 = sphi 0, %s615
    %s616 = sphi 0, %s613
    %s617 = sphi 0, %s616
    %s633 = sphi 0, %s617
    %s639 = sphi 0, %s641
    %s642 = sphi 0, %s639
    %s643 = sphi 0, %s642
    %s659 = sphi 0, %s643
    %s665 = sphi 0, %s667
    %s668 = sphi 0, %s665
    %s669 = sphi 0, %s668
    %s685 = sphi 0, %s669
    %s691 = sphi 0, %s693
    %s694 = sphi 0, %s691
    %s695 = sphi 0, %s694
    %s711 = sphi 0, %s695
    %s715 = sphi 0, %s715
    %s717 = sphi 0, %s715
    %s718 = sphi 0, %s717
    %s732 = sphi 0, %s718
    %s736 = sphi 0, %s736
    %s738 = sphi 0, %s736
    %s739 = sphi 0, %s738
    %s753 = sphi 0, %s739
    %s757 = sphi 0, %s757
    %s759 = sphi 0, %s757
    %s760 = sphi 0, %s759
    %s774 = sphi 0, %s760
    %s778 = sphi 0, %s778
    %s780 = sphi 0, %s778
    %s781 = sphi 0, %s780
    %s795 = sphi 0, %s781
    %s799 = sphi 0, %s799
    %s801 = sphi 0, %s799
    %s802 = sphi 0, %s801
    %s816 = sphi 0, %s802
    %s820 = sphi 0, %s820
    %s822 = sphi 0, %s820
    %s823 = sphi 0, %s822
    %s837 = sphi 0, %s823
  $region4: #{d3g_pair_transformer_px_forward.3} parent=0 // loop_header_branch
    %70 = sbr.rel (%p68) target = $region8
  $region5: #{d3g_pair_transformer_px_forward.3} parent=0 // loop_body
    %s72 = ssub.s32 %s67, 1
    %s73 = ssub.s32 %s67, 2
    %s74 = sadd.s32 %s67, 1
    %s76 = sadd.s32 %s75, 1
    %p79 = scmp.eq.s32.totalorder %s67, 5
    %p80 = scmp.ne.s32.totalorder %s75, %s77
    %p81 = scmp.eq.s32.totalorder %s67, 0
    %p82 = por %p80, %p81
    %p83 = scmp.ne.s32.totalorder %s75, %s77
    %p84 = scmp.eq.s32.totalorder %s72, 5
    %p85 = por %p83, %p84
    %p86 = scmp.ne.s32.totalorder %s77, %s78
    %p87 = scmp.eq.s32.totalorder %s72, 0
    %p88 = por %p86, %p87
    %p89 = scmp.ne.s32.totalorder %s77, %s78
    %p90 = scmp.eq.s32.totalorder %s73, 5
    %p91 = por %p89, %p90
    %p93 = scmp.ne.s32.totalorder %s78, %s92
    %p94 = scmp.eq.s32.totalorder %s73, 0
    %p95 = por %p93, %p94
    %s97 = sadd.s32 %s96, 1
    %p100 = scmp.eq.s32.totalorder %s67, 5
    %p101 = scmp.ne.s32.totalorder %s96, %s98
    %p102 = scmp.eq.s32.totalorder %s67, 0
    %p103 = por %p101, %p102
    %p104 = scmp.ne.s32.totalorder %s96, %s98
    %p105 = scmp.eq.s32.totalorder %s72, 5
    %p106 = por %p104, %p105
    %p107 = scmp.ne.s32.totalorder %s98, %s99
    %p108 = scmp.eq.s32.totalorder %s72, 0
    %p109 = por %p107, %p108
    %p110 = scmp.ne.s32.totalorder %s98, %s99
    %p111 = scmp.eq.s32.totalorder %s73, 5
    %p112 = por %p110, %p111
    %p114 = scmp.ne.s32.totalorder %s99, %s113
    %p115 = scmp.eq.s32.totalorder %s73, 0
    %p116 = por %p114, %p115
    %s117 = ssub.s32 %s67, %s74
    %p118 = scmp.eq.s32.totalorder %s117, 0
    %s120 = sadd.s32 %s119, 1
    %s121 = scalar_select %p118, %s119, %s120
    %p124 = pneg %p118
    %p125 = scmp.eq.s32.totalorder %s67, 5
    %p126 = por %p124, %p125
    %p127 = scmp.ne.s32.totalorder %s119, %s122
    %p128 = scmp.eq.s32.totalorder %s67, 0
    %p129 = por %p127, %p128
    %p130 = scmp.ne.s32.totalorder %s119, %s122
    %p131 = scmp.eq.s32.totalorder %s72, 5
    %p132 = por %p130, %p131
    %p133 = scmp.ne.s32.totalorder %s122, %s123
    %p134 = scmp.eq.s32.totalorder %s72, 0
    %p135 = por %p133, %p134
    %p136 = scmp.ne.s32.totalorder %s122, %s123
    %p137 = scmp.eq.s32.totalorder %s73, 5
    %p138 = por %p136, %p137
    %p140 = scmp.ne.s32.totalorder %s123, %s139
    %p141 = scmp.eq.s32.totalorder %s73, 0
    %p142 = por %p140, %p141
    %s143 = ssub.s32 %s67, %s74
    %p144 = scmp.eq.s32.totalorder %s143, 0
    %s146 = sadd.s32 %s145, 1
    %s147 = scalar_select %p144, %s145, %s146
    %p150 = pneg %p144
    %p151 = scmp.eq.s32.totalorder %s67, 5
    %p152 = por %p150, %p151
    %p153 = scmp.ne.s32.totalorder %s145, %s148
    %p154 = scmp.eq.s32.totalorder %s67, 0
    %p155 = por %p153, %p154
    %p156 = scmp.ne.s32.totalorder %s145, %s148
    %p157 = scmp.eq.s32.totalorder %s72, 5
    %p158 = por %p156, %p157
    %p159 = scmp.ne.s32.totalorder %s148, %s149
    %p160 = scmp.eq.s32.totalorder %s72, 0
    %p161 = por %p159, %p160
    %p162 = scmp.ne.s32.totalorder %s148, %s149
    %p163 = scmp.eq.s32.totalorder %s73, 5
    %p164 = por %p162, %p163
    %p166 = scmp.ne.s32.totalorder %s149, %s165
    %p167 = scmp.eq.s32.totalorder %s73, 0
    %p168 = por %p166, %p167
    %s169 = ssub.s32 %s67, %s74
    %p170 = scmp.eq.s32.totalorder %s169, 0
    %s172 = sadd.s32 %s171, 1
    %s173 = scalar_select %p170, %s171, %s172
    %p176 = pneg %p170
    %p177 = scmp.eq.s32.totalorder %s67, 5
    %p178 = por %p176, %p177
    %p179 = scmp.ne.s32.totalorder %s171, %s174
    %p180 = scmp.eq.s32.totalorder %s67, 0
    %p181 = por %p179, %p180
    %p182 = scmp.ne.s32.totalorder %s171, %s174
    %p183 = scmp.eq.s32.totalorder %s72, 5
    %p184 = por %p182, %p183
    %p185 = scmp.ne.s32.totalorder %s174, %s175
    %p186 = scmp.eq.s32.totalorder %s72, 0
    %p187 = por %p185, %p186
    %p188 = scmp.ne.s32.totalorder %s174, %s175
    %p189 = scmp.eq.s32.totalorder %s73, 5
    %p190 = por %p188, %p189
    %p192 = scmp.ne.s32.totalorder %s175, %s191
    %p193 = scmp.eq.s32.totalorder %s73, 0
    %p194 = por %p192, %p193
    %s195 = ssub.s32 %s67, %s74
    %p196 = scmp.eq.s32.totalorder %s195, 0
    %s198 = sadd.s32 %s197, 1
    %s199 = scalar_select %p196, %s197, %s198
    %p202 = pneg %p196
    %p203 = scmp.eq.s32.totalorder %s67, 5
    %p204 = por %p202, %p203
    %p205 = scmp.ne.s32.totalorder %s197, %s200
    %p206 = scmp.eq.s32.totalorder %s67, 0
    %p207 = por %p205, %p206
    %p208 = scmp.ne.s32.totalorder %s197, %s200
    %p209 = scmp.eq.s32.totalorder %s72, 5
    %p210 = por %p208, %p209
    %p211 = scmp.ne.s32.totalorder %s200, %s201
    %p212 = scmp.eq.s32.totalorder %s72, 0
    %p213 = por %p211, %p212
    %p214 = scmp.ne.s32.totalorder %s200, %s201
    %p215 = scmp.eq.s32.totalorder %s73, 5
    %p216 = por %p214, %p215
    %p218 = scmp.ne.s32.totalorder %s201, %s217
    %p219 = scmp.eq.s32.totalorder %s73, 0
    %p220 = por %p218, %p219
    %s221 = ssub.s32 %s67, %s74
    %p222 = scmp.eq.s32.totalorder %s221, 0
    %s224 = sadd.s32 %s223, 1
    %s225 = scalar_select %p222, %s223, %s224
    %p228 = pneg %p222
    %p229 = scmp.eq.s32.totalorder %s67, 5
    %p230 = por %p228, %p229
    %p231 = scmp.ne.s32.totalorder %s223, %s226
    %p232 = scmp.eq.s32.totalorder %s67, 0
    %p233 = por %p231, %p232
    %p234 = scmp.ne.s32.totalorder %s223, %s226
    %p235 = scmp.eq.s32.totalorder %s72, 5
    %p236 = por %p234, %p235
    %p237 = scmp.ne.s32.totalorder %s226, %s227
    %p238 = scmp.eq.s32.totalorder %s72, 0
    %p239 = por %p237, %p238
    %p240 = scmp.ne.s32.totalorder %s226, %s227
    %p241 = scmp.eq.s32.totalorder %s73, 5
    %p242 = por %p240, %p241
    %p244 = scmp.ne.s32.totalorder %s227, %s243
    %p245 = scmp.eq.s32.totalorder %s73, 0
    %p246 = por %p244, %p245
    %s247 = ssub.s32 %s67, %s74
    %p248 = scmp.eq.s32.totalorder %s247, 0
    %s250 = sadd.s32 %s249, 1
    %s251 = scalar_select %p248, %s249, %s250
    %p254 = pneg %p248
    %p255 = scmp.eq.s32.totalorder %s67, 5
    %p256 = por %p254, %p255
    %p257 = scmp.ne.s32.totalorder %s249, %s252
    %p258 = scmp.eq.s32.totalorder %s67, 0
    %p259 = por %p257, %p258
    %p260 = scmp.ne.s32.totalorder %s249, %s252
    %p261 = scmp.eq.s32.totalorder %s72, 5
    %p262 = por %p260, %p261
    %p263 = scmp.ne.s32.totalorder %s252, %s253
    %p264 = scmp.eq.s32.totalorder %s72, 0
    %p265 = por %p263, %p264
    %p266 = scmp.ne.s32.totalorder %s252, %s253
    %p267 = scmp.eq.s32.totalorder %s73, 5
    %p268 = por %p266, %p267
    %p270 = scmp.ne.s32.totalorder %s253, %s269
    %p271 = scmp.eq.s32.totalorder %s73, 0
    %p272 = por %p270, %p271
    %s273 = ssub.s32 %s67, %s74
    %p274 = scmp.eq.s32.totalorder %s273, 0
    %s276 = sadd.s32 %s275, 1
    %s277 = scalar_select %p274, %s275, %s276
    %p280 = pneg %p274
    %p281 = scmp.eq.s32.totalorder %s67, 5
    %p282 = por %p280, %p281
    %p283 = scmp.ne.s32.totalorder %s275, %s278
    %p284 = scmp.eq.s32.totalorder %s67, 0
    %p285 = por %p283, %p284
    %p286 = scmp.ne.s32.totalorder %s275, %s278
    %p287 = scmp.eq.s32.totalorder %s72, 5
    %p288 = por %p286, %p287
    %p289 = scmp.ne.s32.totalorder %s278, %s279
    %p290 = scmp.eq.s32.totalorder %s72, 0
    %p291 = por %p289, %p290
    %p292 = scmp.ne.s32.totalorder %s278, %s279
    %p293 = scmp.eq.s32.totalorder %s73, 5
    %p294 = por %p292, %p293
    %p296 = scmp.ne.s32.totalorder %s279, %s295
    %p297 = scmp.eq.s32.totalorder %s73, 0
    %p298 = por %p296, %p297
    %s299 = ssub.s32 %s67, %s74
    %p300 = scmp.eq.s32.totalorder %s299, 0
    %s302 = sadd.s32 %s301, 1
    %s303 = scalar_select %p300, %s301, %s302
    %p306 = pneg %p300
    %p307 = scmp.eq.s32.totalorder %s67, 5
    %p308 = por %p306, %p307
    %p309 = scmp.ne.s32.totalorder %s301, %s304
    %p310 = scmp.eq.s32.totalorder %s67, 0
    %p311 = por %p309, %p310
    %p312 = scmp.ne.s32.totalorder %s301, %s304
    %p313 = scmp.eq.s32.totalorder %s72, 5
    %p314 = por %p312, %p313
    %p315 = scmp.ne.s32.totalorder %s304, %s305
    %p316 = scmp.eq.s32.totalorder %s72, 0
    %p317 = por %p315, %p316
    %p318 = scmp.ne.s32.totalorder %s304, %s305
    %p319 = scmp.eq.s32.totalorder %s73, 5
    %p320 = por %p318, %p319
    %p322 = scmp.ne.s32.totalorder %s305, %s321
    %p323 = scmp.eq.s32.totalorder %s73, 0
    %p324 = por %p322, %p323
    %s325 = ssub.s32 %s67, %s74
    %p326 = scmp.eq.s32.totalorder %s325, 0
    %s328 = sadd.s32 %s327, 1
    %s329 = scalar_select %p326, %s327, %s328
    %p332 = pneg %p326
    %p333 = scmp.eq.s32.totalorder %s67, 5
    %p334 = por %p332, %p333
    %p335 = scmp.ne.s32.totalorder %s327, %s330
    %p336 = scmp.eq.s32.totalorder %s67, 0
    %p337 = por %p335, %p336
    %p338 = scmp.ne.s32.totalorder %s327, %s330
    %p339 = scmp.eq.s32.totalorder %s72, 5
    %p340 = por %p338, %p339
    %p341 = scmp.ne.s32.totalorder %s330, %s331
    %p342 = scmp.eq.s32.totalorder %s72, 0
    %p343 = por %p341, %p342
    %p344 = scmp.ne.s32.totalorder %s330, %s331
    %p345 = scmp.eq.s32.totalorder %s73, 5
    %p346 = por %p344, %p345
    %p348 = scmp.ne.s32.totalorder %s331, %s347
    %p349 = scmp.eq.s32.totalorder %s73, 0
    %p350 = por %p348, %p349
    %s351 = ssub.s32 %s67, %s74
    %p352 = scmp.eq.s32.totalorder %s351, 0
    %s354 = sadd.s32 %s353, 1
    %s355 = scalar_select %p352, %s353, %s354
    %p358 = pneg %p352
    %p359 = scmp.eq.s32.totalorder %s67, 5
    %p360 = por %p358, %p359
    %p361 = scmp.ne.s32.totalorder %s353, %s356
    %p362 = scmp.eq.s32.totalorder %s67, 0
    %p363 = por %p361, %p362
    %p364 = scmp.ne.s32.totalorder %s353, %s356
    %p365 = scmp.eq.s32.totalorder %s72, 5
    %p366 = por %p364, %p365
    %p367 = scmp.ne.s32.totalorder %s356, %s357
    %p368 = scmp.eq.s32.totalorder %s72, 0
    %p369 = por %p367, %p368
    %p370 = scmp.ne.s32.totalorder %s356, %s357
    %p371 = scmp.eq.s32.totalorder %s73, 5
    %p372 = por %p370, %p371
    %p374 = scmp.ne.s32.totalorder %s357, %s373
    %p375 = scmp.eq.s32.totalorder %s73, 0
    %p376 = por %p374, %p375
    %s377 = ssub.s32 %s67, %s74
    %p378 = scmp.eq.s32.totalorder %s377, 0
    %s380 = sadd.s32 %s379, 1
    %s381 = scalar_select %p378, %s379, %s380
    %p384 = pneg %p378
    %p385 = scmp.eq.s32.totalorder %s67, 5
    %p386 = por %p384, %p385
    %p387 = scmp.ne.s32.totalorder %s379, %s382
    %p388 = scmp.eq.s32.totalorder %s67, 0
    %p389 = por %p387, %p388
    %p390 = scmp.ne.s32.totalorder %s379, %s382
    %p391 = scmp.eq.s32.totalorder %s72, 5
    %p392 = por %p390, %p391
    %p393 = scmp.ne.s32.totalorder %s382, %s383
    %p394 = scmp.eq.s32.totalorder %s72, 0
    %p395 = por %p393, %p394
    %p396 = scmp.ne.s32.totalorder %s382, %s383
    %p397 = scmp.eq.s32.totalorder %s73, 5
    %p398 = por %p396, %p397
    %p400 = scmp.ne.s32.totalorder %s383, %s399
    %p401 = scmp.eq.s32.totalorder %s73, 0
    %p402 = por %p400, %p401
    %s403 = ssub.s32 %s67, %s74
    %p404 = scmp.eq.s32.totalorder %s403, 0
    %s406 = sadd.s32 %s405, 1
    %s407 = scalar_select %p404, %s405, %s406
    %p410 = pneg %p404
    %p411 = scmp.eq.s32.totalorder %s67, 5
    %p412 = por %p410, %p411
    %p413 = scmp.ne.s32.totalorder %s405, %s408
    %p414 = scmp.eq.s32.totalorder %s67, 0
    %p415 = por %p413, %p414
    %p416 = scmp.ne.s32.totalorder %s405, %s408
    %p417 = scmp.eq.s32.totalorder %s72, 5
    %p418 = por %p416, %p417
    %p419 = scmp.ne.s32.totalorder %s408, %s409
    %p420 = scmp.eq.s32.totalorder %s72, 0
    %p421 = por %p419, %p420
    %p422 = scmp.ne.s32.totalorder %s408, %s409
    %p423 = scmp.eq.s32.totalorder %s73, 5
    %p424 = por %p422, %p423
    %p426 = scmp.ne.s32.totalorder %s409, %s425
    %p427 = scmp.eq.s32.totalorder %s73, 0
    %p428 = por %p426, %p427
    %s429 = ssub.s32 %s67, %s74
    %p430 = scmp.eq.s32.totalorder %s429, 0
    %s432 = sadd.s32 %s431, 1
    %s433 = scalar_select %p430, %s431, %s432
    %p436 = pneg %p430
    %p437 = scmp.eq.s32.totalorder %s67, 5
    %p438 = por %p436, %p437
    %p439 = scmp.ne.s32.totalorder %s431, %s434
    %p440 = scmp.eq.s32.totalorder %s67, 0
    %p441 = por %p439, %p440
    %p442 = scmp.ne.s32.totalorder %s431, %s434
    %p443 = scmp.eq.s32.totalorder %s72, 5
    %p444 = por %p442, %p443
    %p445 = scmp.ne.s32.totalorder %s434, %s435
    %p446 = scmp.eq.s32.totalorder %s72, 0
    %p447 = por %p445, %p446
    %p448 = scmp.ne.s32.totalorder %s434, %s435
    %p449 = scmp.eq.s32.totalorder %s73, 5
    %p450 = por %p448, %p449
    %p452 = scmp.ne.s32.totalorder %s435, %s451
    %p453 = scmp.eq.s32.totalorder %s73, 0
    %p454 = por %p452, %p453
    %s455 = ssub.s32 %s67, %s74
    %p456 = scmp.eq.s32.totalorder %s455, 0
    %s458 = sadd.s32 %s457, 1
    %s459 = scalar_select %p456, %s457, %s458
    %p462 = pneg %p456
    %p463 = scmp.eq.s32.totalorder %s67, 5
    %p464 = por %p462, %p463
    %p465 = scmp.ne.s32.totalorder %s457, %s460
    %p466 = scmp.eq.s32.totalorder %s67, 0
    %p467 = por %p465, %p466
    %p468 = scmp.ne.s32.totalorder %s457, %s460
    %p469 = scmp.eq.s32.totalorder %s72, 5
    %p470 = por %p468, %p469
    %p471 = scmp.ne.s32.totalorder %s460, %s461
    %p472 = scmp.eq.s32.totalorder %s72, 0
    %p473 = por %p471, %p472
    %p474 = scmp.ne.s32.totalorder %s460, %s461
    %p475 = scmp.eq.s32.totalorder %s73, 5
    %p476 = por %p474, %p475
    %p478 = scmp.ne.s32.totalorder %s461, %s477
    %p479 = scmp.eq.s32.totalorder %s73, 0
    %p480 = por %p478, %p479
    %s481 = ssub.s32 %s67, %s74
    %p482 = scmp.eq.s32.totalorder %s481, 0
    %s484 = sadd.s32 %s483, 1
    %s485 = scalar_select %p482, %s483, %s484
    %p488 = pneg %p482
    %p489 = scmp.eq.s32.totalorder %s67, 5
    %p490 = por %p488, %p489
    %p491 = scmp.ne.s32.totalorder %s483, %s486
    %p492 = scmp.eq.s32.totalorder %s67, 0
    %p493 = por %p491, %p492
    %p494 = scmp.ne.s32.totalorder %s483, %s486
    %p495 = scmp.eq.s32.totalorder %s72, 5
    %p496 = por %p494, %p495
    %p497 = scmp.ne.s32.totalorder %s486, %s487
    %p498 = scmp.eq.s32.totalorder %s72, 0
    %p499 = por %p497, %p498
    %p500 = scmp.ne.s32.totalorder %s486, %s487
    %p501 = scmp.eq.s32.totalorder %s73, 5
    %p502 = por %p500, %p501
    %p504 = scmp.ne.s32.totalorder %s487, %s503
    %p505 = scmp.eq.s32.totalorder %s73, 0
    %p506 = por %p504, %p505
    %s507 = ssub.s32 %s67, %s74
    %p508 = scmp.eq.s32.totalorder %s507, 0
    %s510 = sadd.s32 %s509, 1
    %s511 = scalar_select %p508, %s509, %s510
    %p514 = pneg %p508
    %p515 = scmp.eq.s32.totalorder %s67, 5
    %p516 = por %p514, %p515
    %p517 = scmp.ne.s32.totalorder %s509, %s512
    %p518 = scmp.eq.s32.totalorder %s67, 0
    %p519 = por %p517, %p518
    %p520 = scmp.ne.s32.totalorder %s509, %s512
    %p521 = scmp.eq.s32.totalorder %s72, 5
    %p522 = por %p520, %p521
    %p523 = scmp.ne.s32.totalorder %s512, %s513
    %p524 = scmp.eq.s32.totalorder %s72, 0
    %p525 = por %p523, %p524
    %p526 = scmp.ne.s32.totalorder %s512, %s513
    %p527 = scmp.eq.s32.totalorder %s73, 5
    %p528 = por %p526, %p527
    %p530 = scmp.ne.s32.totalorder %s513, %s529
    %p531 = scmp.eq.s32.totalorder %s73, 0
    %p532 = por %p530, %p531
    %s533 = ssub.s32 %s67, %s74
    %p534 = scmp.eq.s32.totalorder %s533, 0
    %s536 = sadd.s32 %s535, 1
    %s537 = scalar_select %p534, %s535, %s536
    %p540 = pneg %p534
    %p541 = scmp.eq.s32.totalorder %s67, 5
    %p542 = por %p540, %p541
    %p543 = scmp.ne.s32.totalorder %s535, %s538
    %p544 = scmp.eq.s32.totalorder %s67, 0
    %p545 = por %p543, %p544
    %p546 = scmp.ne.s32.totalorder %s535, %s538
    %p547 = scmp.eq.s32.totalorder %s72, 5
    %p548 = por %p546, %p547
    %p549 = scmp.ne.s32.totalorder %s538, %s539
    %p550 = scmp.eq.s32.totalorder %s72, 0
    %p551 = por %p549, %p550
    %p552 = scmp.ne.s32.totalorder %s538, %s539
    %p553 = scmp.eq.s32.totalorder %s73, 5
    %p554 = por %p552, %p553
    %p556 = scmp.ne.s32.totalorder %s539, %s555
    %p557 = scmp.eq.s32.totalorder %s73, 0
    %p558 = por %p556, %p557
    %s559 = ssub.s32 %s67, %s74
    %p560 = scmp.eq.s32.totalorder %s559, 0
    %s562 = sadd.s32 %s561, 1
    %s563 = scalar_select %p560, %s561, %s562
    %p566 = pneg %p560
    %p567 = scmp.eq.s32.totalorder %s67, 5
    %p568 = por %p566, %p567
    %p569 = scmp.ne.s32.totalorder %s561, %s564
    %p570 = scmp.eq.s32.totalorder %s67, 0
    %p571 = por %p569, %p570
    %p572 = scmp.ne.s32.totalorder %s561, %s564
    %p573 = scmp.eq.s32.totalorder %s72, 5
    %p574 = por %p572, %p573
    %p575 = scmp.ne.s32.totalorder %s564, %s565
    %p576 = scmp.eq.s32.totalorder %s72, 0
    %p577 = por %p575, %p576
    %p578 = scmp.ne.s32.totalorder %s564, %s565
    %p579 = scmp.eq.s32.totalorder %s73, 5
    %p580 = por %p578, %p579
    %p582 = scmp.ne.s32.totalorder %s565, %s581
    %p583 = scmp.eq.s32.totalorder %s73, 0
    %p584 = por %p582, %p583
    %s585 = ssub.s32 %s67, %s74
    %p586 = scmp.eq.s32.totalorder %s585, 0
    %s588 = sadd.s32 %s587, 1
    %s589 = scalar_select %p586, %s587, %s588
    %p592 = pneg %p586
    %p593 = scmp.eq.s32.totalorder %s67, 5
    %p594 = por %p592, %p593
    %p595 = scmp.ne.s32.totalorder %s587, %s590
    %p596 = scmp.eq.s32.totalorder %s67, 0
    %p597 = por %p595, %p596
    %p598 = scmp.ne.s32.totalorder %s587, %s590
    %p599 = scmp.eq.s32.totalorder %s72, 5
    %p600 = por %p598, %p599
    %p601 = scmp.ne.s32.totalorder %s590, %s591
    %p602 = scmp.eq.s32.totalorder %s72, 0
    %p603 = por %p601, %p602
    %p604 = scmp.ne.s32.totalorder %s590, %s591
    %p605 = scmp.eq.s32.totalorder %s73, 5
    %p606 = por %p604, %p605
    %p608 = scmp.ne.s32.totalorder %s591, %s607
    %p609 = scmp.eq.s32.totalorder %s73, 0
    %p610 = por %p608, %p609
    %s611 = ssub.s32 %s67, %s74
    %p612 = scmp.eq.s32.totalorder %s611, 0
    %s614 = sadd.s32 %s613, 1
    %s615 = scalar_select %p612, %s613, %s614
    %p618 = pneg %p612
    %p619 = scmp.eq.s32.totalorder %s67, 5
    %p620 = por %p618, %p619
    %p621 = scmp.ne.s32.totalorder %s613, %s616
    %p622 = scmp.eq.s32.totalorder %s67, 0
    %p623 = por %p621, %p622
    %p624 = scmp.ne.s32.totalorder %s613, %s616
    %p625 = scmp.eq.s32.totalorder %s72, 5
    %p626 = por %p624, %p625
    %p627 = scmp.ne.s32.totalorder %s616, %s617
    %p628 = scmp.eq.s32.totalorder %s72, 0
    %p629 = por %p627, %p628
    %p630 = scmp.ne.s32.totalorder %s616, %s617
    %p631 = scmp.eq.s32.totalorder %s73, 5
    %p632 = por %p630, %p631
    %p634 = scmp.ne.s32.totalorder %s617, %s633
    %p635 = scmp.eq.s32.totalorder %s73, 0
    %p636 = por %p634, %p635
    %s637 = ssub.s32 %s67, %s74
    %p638 = scmp.eq.s32.totalorder %s637, 0
    %s640 = sadd.s32 %s639, 1
    %s641 = scalar_select %p638, %s639, %s640
    %p644 = pneg %p638
    %p645 = scmp.eq.s32.totalorder %s67, 5
    %p646 = por %p644, %p645
    %p647 = scmp.ne.s32.totalorder %s639, %s642
    %p648 = scmp.eq.s32.totalorder %s67, 0
    %p649 = por %p647, %p648
    %p650 = scmp.ne.s32.totalorder %s639, %s642
    %p651 = scmp.eq.s32.totalorder %s72, 5
    %p652 = por %p650, %p651
    %p653 = scmp.ne.s32.totalorder %s642, %s643
    %p654 = scmp.eq.s32.totalorder %s72, 0
    %p655 = por %p653, %p654
    %p656 = scmp.ne.s32.totalorder %s642, %s643
    %p657 = scmp.eq.s32.totalorder %s73, 5
    %p658 = por %p656, %p657
    %p660 = scmp.ne.s32.totalorder %s643, %s659
    %p661 = scmp.eq.s32.totalorder %s73, 0
    %p662 = por %p660, %p661
    %s663 = ssub.s32 %s67, %s74
    %p664 = scmp.eq.s32.totalorder %s663, 0
    %s666 = sadd.s32 %s665, 1
    %s667 = scalar_select %p664, %s665, %s666
    %p670 = pneg %p664
    %p671 = scmp.eq.s32.totalorder %s67, 5
    %p672 = por %p670, %p671
    %p673 = scmp.ne.s32.totalorder %s665, %s668
    %p674 = scmp.eq.s32.totalorder %s67, 0
    %p675 = por %p673, %p674
    %p676 = scmp.ne.s32.totalorder %s665, %s668
    %p677 = scmp.eq.s32.totalorder %s72, 5
    %p678 = por %p676, %p677
    %p679 = scmp.ne.s32.totalorder %s668, %s669
    %p680 = scmp.eq.s32.totalorder %s72, 0
    %p681 = por %p679, %p680
    %p682 = scmp.ne.s32.totalorder %s668, %s669
    %p683 = scmp.eq.s32.totalorder %s73, 5
    %p684 = por %p682, %p683
    %p686 = scmp.ne.s32.totalorder %s669, %s685
    %p687 = scmp.eq.s32.totalorder %s73, 0
    %p688 = por %p686, %p687
    %s689 = ssub.s32 %s67, %s74
    %p690 = scmp.eq.s32.totalorder %s689, 0
    %s692 = sadd.s32 %s691, 1
    %s693 = scalar_select %p690, %s691, %s692
    %p696 = pneg %p690
    %p697 = scmp.eq.s32.totalorder %s67, 5
    %p698 = por %p696, %p697
    %p699 = scmp.ne.s32.totalorder %s691, %s694
    %p700 = scmp.eq.s32.totalorder %s67, 0
    %p701 = por %p699, %p700
    %p702 = scmp.ne.s32.totalorder %s691, %s694
    %p703 = scmp.eq.s32.totalorder %s72, 5
    %p704 = por %p702, %p703
    %p705 = scmp.ne.s32.totalorder %s694, %s695
    %p706 = scmp.eq.s32.totalorder %s72, 0
    %p707 = por %p705, %p706
    %p708 = scmp.ne.s32.totalorder %s694, %s695
    %p709 = scmp.eq.s32.totalorder %s73, 5
    %p710 = por %p708, %p709
    %p712 = scmp.ne.s32.totalorder %s695, %s711
    %p713 = scmp.eq.s32.totalorder %s73, 0
    %p714 = por %p712, %p713
    %s716 = sadd.s32 %s715, 1
    %p719 = scmp.eq.s32.totalorder %s67, 5
    %p720 = scmp.ne.s32.totalorder %s715, %s717
    %p721 = scmp.eq.s32.totalorder %s67, 0
    %p722 = por %p720, %p721
    %p723 = scmp.ne.s32.totalorder %s715, %s717
    %p724 = scmp.eq.s32.totalorder %s72, 5
    %p725 = por %p723, %p724
    %p726 = scmp.ne.s32.totalorder %s717, %s718
    %p727 = scmp.eq.s32.totalorder %s72, 0
    %p728 = por %p726, %p727
    %p729 = scmp.ne.s32.totalorder %s717, %s718
    %p730 = scmp.eq.s32.totalorder %s73, 5
    %p731 = por %p729, %p730
    %p733 = scmp.ne.s32.totalorder %s718, %s732
    %p734 = scmp.eq.s32.totalorder %s73, 0
    %p735 = por %p733, %p734
    %s737 = sadd.s32 %s736, 1
    %p740 = scmp.eq.s32.totalorder %s67, 5
    %p741 = scmp.ne.s32.totalorder %s736, %s738
    %p742 = scmp.eq.s32.totalorder %s67, 0
    %p743 = por %p741, %p742
    %p744 = scmp.ne.s32.totalorder %s736, %s738
    %p745 = scmp.eq.s32.totalorder %s72, 5
    %p746 = por %p744, %p745
    %p747 = scmp.ne.s32.totalorder %s738, %s739
    %p748 = scmp.eq.s32.totalorder %s72, 0
    %p749 = por %p747, %p748
    %p750 = scmp.ne.s32.totalorder %s738, %s739
    %p751 = scmp.eq.s32.totalorder %s73, 5
    %p752 = por %p750, %p751
    %p754 = scmp.ne.s32.totalorder %s739, %s753
    %p755 = scmp.eq.s32.totalorder %s73, 0
    %p756 = por %p754, %p755
    %s758 = sadd.s32 %s757, 1
    %p761 = scmp.eq.s32.totalorder %s67, 5
    %p762 = scmp.ne.s32.totalorder %s757, %s759
    %p763 = scmp.eq.s32.totalorder %s67, 0
    %p764 = por %p762, %p763
    %p765 = scmp.ne.s32.totalorder %s757, %s759
    %p766 = scmp.eq.s32.totalorder %s72, 5
    %p767 = por %p765, %p766
    %p768 = scmp.ne.s32.totalorder %s759, %s760
    %p769 = scmp.eq.s32.totalorder %s72, 0
    %p770 = por %p768, %p769
    %p771 = scmp.ne.s32.totalorder %s759, %s760
    %p772 = scmp.eq.s32.totalorder %s73, 5
    %p773 = por %p771, %p772
    %p775 = scmp.ne.s32.totalorder %s760, %s774
    %p776 = scmp.eq.s32.totalorder %s73, 0
    %p777 = por %p775, %p776
    %s779 = sadd.s32 %s778, 1
    %p782 = scmp.eq.s32.totalorder %s67, 5
    %p783 = scmp.ne.s32.totalorder %s778, %s780
    %p784 = scmp.eq.s32.totalorder %s67, 0
    %p785 = por %p783, %p784
    %p786 = scmp.ne.s32.totalorder %s778, %s780
    %p787 = scmp.eq.s32.totalorder %s72, 5
    %p788 = por %p786, %p787
    %p789 = scmp.ne.s32.totalorder %s780, %s781
    %p790 = scmp.eq.s32.totalorder %s72, 0
    %p791 = por %p789, %p790
    %p792 = scmp.ne.s32.totalorder %s780, %s781
    %p793 = scmp.eq.s32.totalorder %s73, 5
    %p794 = por %p792, %p793
    %p796 = scmp.ne.s32.totalorder %s781, %s795
    %p797 = scmp.eq.s32.totalorder %s73, 0
    %p798 = por %p796, %p797
    %s800 = sadd.s32 %s799, 1
    %p803 = scmp.eq.s32.totalorder %s67, 5
    %p804 = scmp.ne.s32.totalorder %s799, %s801
    %p805 = scmp.eq.s32.totalorder %s67, 0
    %p806 = por %p804, %p805
    %p807 = scmp.ne.s32.totalorder %s799, %s801
    %p808 = scmp.eq.s32.totalorder %s72, 5
    %p809 = por %p807, %p808
    %p810 = scmp.ne.s32.totalorder %s801, %s802
    %p811 = scmp.eq.s32.totalorder %s72, 0
    %p812 = por %p810, %p811
    %p813 = scmp.ne.s32.totalorder %s801, %s802
    %p814 = scmp.eq.s32.totalorder %s73, 5
    %p815 = por %p813, %p814
    %p817 = scmp.ne.s32.totalorder %s802, %s816
    %p818 = scmp.eq.s32.totalorder %s73, 0
    %p819 = por %p817, %p818
    %s821 = sadd.s32 %s820, 1
    %p824 = scmp.eq.s32.totalorder %s67, 5
    %p825 = scmp.ne.s32.totalorder %s820, %s822
    %p826 = scmp.eq.s32.totalorder %s67, 0
    %p827 = por %p825, %p826
    %p828 = scmp.ne.s32.totalorder %s820, %s822
    %p829 = scmp.eq.s32.totalorder %s72, 5
    %p830 = por %p828, %p829
    %p831 = scmp.ne.s32.totalorder %s822, %s823
    %p832 = scmp.eq.s32.totalorder %s72, 0
    %p833 = por %p831, %p832
    %p834 = scmp.ne.s32.totalorder %s822, %s823
    %p835 = scmp.eq.s32.totalorder %s73, 5
    %p836 = por %p834, %p835
    %p838 = scmp.ne.s32.totalorder %s823, %s837
    %p839 = scmp.eq.s32.totalorder %s73, 0
    %p840 = por %p838, %p839
    %p841 = scmp.le.s32.totalorder 1, %s67
    %p842 = scmp.lt.s32.totalorder %s67, 7
    %p843 = pnand %p841, %p842
    %p844 = pneg %p843
    // Predicated region
    $region9: #{d3g_pair_transformer_px_forward.3} parent=5 // pred_check
      _
    $region10: #{d3g_pair_transformer_px_forward.3} parent=5 // pred_check_branch
      %846 = sbr.rel (%p843) target = $region12
    $region11: #{d3g_pair_transformer_px_forward.3} parent=5 // pred_region
      %s847 = ssub.s32 %s67, 1
      // Predicated region
      $region13: #{d3g_pair_transformer_px_forward.3} parent=11 // pred_check
        %p848 = pneg %p88
      $region14: #{d3g_pair_transformer_px_forward.3} parent=11 // pred_check_branch
        %850 = sbr.rel (%p848) target = $region16
      $region15: #{d3g_pair_transformer_px_forward.3} parent=11 // pred_region
        _
      $region16: #{d3g_pair_transformer_px_forward.3} parent=11 // pred_fallthru
        _
      // Predicated region
      $region17: #{d3g_pair_transformer_px_forward.3} parent=11 // pred_check
        %p851 = pneg %p109
      $region18: #{d3g_pair_transformer_px_forward.3} parent=11 // pred_check_branch
        %853 = sbr.rel (%p851) target = $region20
      $region19: #{d3g_pair_transformer_px_forward.3} parent=11 // pred_region
        _
      $region20: #{d3g_pair_transformer_px_forward.3} parent=11 // pred_fallthru
        _
      // Predicated region
      $region21: #{d3g_pair_transformer_px_forward.3} parent=11 // pred_check
        %p854 = pneg %p728
      $region22: #{d3g_pair_transformer_px_forward.3} parent=11 // pred_check_branch
        %856 = sbr.rel (%p854) target = $region24
      $region23: #{d3g_pair_transformer_px_forward.3} parent=11 // pred_region
        _
      $region24: #{d3g_pair_transformer_px_forward.3} parent=11 // pred_fallthru
        _
      // Predicated region
      $region25: #{d3g_pair_transformer_px_forward.3} parent=11 // pred_check
        %p857 = pneg %p749
      $region26: #{d3g_pair_transformer_px_forward.3} parent=11 // pred_check_branch
        %859 = sbr.rel (%p857) target = $region28
      $region27: #{d3g_pair_transformer_px_forward.3} parent=11 // pred_region
        _
      $region28: #{d3g_pair_transformer_px_forward.3} parent=11 // pred_fallthru
        _
      // Predicated region
      $region29: #{d3g_pair_transformer_px_forward.3} parent=11 // pred_check
        %p860 = pneg %p770
      $region30: #{d3g_pair_transformer_px_forward.3} parent=11 // pred_check_branch
        %862 = sbr.rel (%p860) target = $region32
      $region31: #{d3g_pair_transformer_px_forward.3} parent=11 // pred_region
        _
      $region32: #{d3g_pair_transformer_px_forward.3} parent=11 // pred_fallthru
        _
      // Predicated region
      $region33: #{d3g_pair_transformer_px_forward.3} parent=11 // pred_check
        %p863 = pneg %p791
      $region34: #{d3g_pair_transformer_px_forward.3} parent=11 // pred_check_branch
        %865 = sbr.rel (%p863) target = $region36
      $region35: #{d3g_pair_transformer_px_forward.3} parent=11 // pred_region
        _
      $region36: #{d3g_pair_transformer_px_forward.3} parent=11 // pred_fallthru
        _
      // Predicated region
      $region37: #{d3g_pair_transformer_px_forward.3} parent=11 // pred_check
        %p866 = pneg %p812
      $region38: #{d3g_pair_transformer_px_forward.3} parent=11 // pred_check_branch
        %868 = sbr.rel (%p866) target = $region40
      $region39: #{d3g_pair_transformer_px_forward.3} parent=11 // pred_region
        _
      $region40: #{d3g_pair_transformer_px_forward.3} parent=11 // pred_fallthru
        _
    $region12: #{d3g_pair_transformer_px_forward.3} parent=5 // pred_fallthru
      _
    %p869 = scmp.lt.s32.totalorder %s67, 6
    // Predicated region
    $region41: #{d3g_pair_transformer_px_forward.3} parent=5 // pred_check
      %p870 = pneg %p869
    $region42: #{d3g_pair_transformer_px_forward.3} parent=5 // pred_check_branch
      %872 = sbr.rel (%p870) target = $region44
    $region43: #{d3g_pair_transformer_px_forward.3} parent=5 // pred_region
      // Predicated region
      $region45: #{d3g_pair_transformer_px_forward.3} parent=43 // pred_check
        %p873 = pneg %p129
      $region46: #{d3g_pair_transformer_px_forward.3} parent=43 // pred_check_branch
        %875 = sbr.rel (%p873) target = $region48
      $region47: #{d3g_pair_transformer_px_forward.3} parent=43 // pred_region
        %p876 = scmp.lt.s32.totalorder %s67, 5
        %s877 = scalar_select %p876, %s67, 5
        %s878 = smul.addr %s877, 16
        %s879 = smul.addr %s878, 8
        %s880 = scalar_lea.vmem %s5, %s879
      $region48: #{d3g_pair_transformer_px_forward.3} parent=43 // pred_fallthru
        _
      // Predicated region
      $region49: #{d3g_pair_transformer_px_forward.3} parent=43 // pred_check
        %p881 = pneg %p155
      $region50: #{d3g_pair_transformer_px_forward.3} parent=43 // pred_check_branch
        %883 = sbr.rel (%p881) target = $region52
      $region51: #{d3g_pair_transformer_px_forward.3} parent=43 // pred_region
        %p884 = scmp.lt.s32.totalorder %s67, 5
        %s885 = scalar_select %p884, %s67, 5
        %s886 = smul.addr %s885, 16
        %s887 = smul.addr %s886, 8
        %s888 = scalar_lea.vmem %s7, %s887
      $region52: #{d3g_pair_transformer_px_forward.3} parent=43 // pred_fallthru
        _
      // Predicated region
      $region53: #{d3g_pair_transformer_px_forward.3} parent=43 // pred_check
        %p889 = pneg %p181
      $region54: #{d3g_pair_transformer_px_forward.3} parent=43 // pred_check_branch
        %891 = sbr.rel (%p889) target = $region56
      $region55: #{d3g_pair_transformer_px_forward.3} parent=43 // pred_region
        %p892 = scmp.lt.s32.totalorder %s67, 5
        %s893 = scalar_select %p892, %s67, 5
        %s894 = smul.addr %s893, 16
        %s895 = smul.addr %s894, 8
        %s896 = scalar_lea.vmem %s9, %s895
      $region56: #{d3g_pair_transformer_px_forward.3} parent=43 // pred_fallthru
        _
      // Predicated region
      $region57: #{d3g_pair_transformer_px_forward.3} parent=43 // pred_check
        %p897 = pneg %p207
      $region58: #{d3g_pair_transformer_px_forward.3} parent=43 // pred_check_branch
        %899 = sbr.rel (%p897) target = $region60
      $region59: #{d3g_pair_transformer_px_forward.3} parent=43 // pred_region
        %p900 = scmp.lt.s32.totalorder %s67, 5
        %s901 = scalar_select %p900, %s67, 5
        %s902 = smul.addr %s901, 4
        %s903 = scalar_lea.vmem %s11, %s902
      $region60: #{d3g_pair_transformer_px_forward.3} parent=43 // pred_fallthru
        _
      // Predicated region
      $region61: #{d3g_pair_transformer_px_forward.3} parent=43 // pred_check
        %p904 = pneg %p233
      $region62: #{d3g_pair_transformer_px_forward.3} parent=43 // pred_check_branch
        %906 = sbr.rel (%p904) target = $region64
      $region63: #{d3g_pair_transformer_px_forward.3} parent=43 // pred_region
        %p907 = scmp.lt.s32.totalorder %s67, 5
        %s908 = scalar_select %p907, %s67, 5
        %s909 = smul.addr %s908, 4
        %s910 = scalar_lea.vmem %s13, %s909
      $region64: #{d3g_pair_transformer_px_forward.3} parent=43 // pred_fallthru
        _
      // Predicated region
      $region65: #{d3g_pair_transformer_px_forward.3} parent=43 // pred_check
        %p911 = pneg %p259
      $region66: #{d3g_pair_transformer_px_forward.3} parent=43 // pred_check_branch
        %913 = sbr.rel (%p911) target = $region68
      $region67: #{d3g_pair_transformer_px_forward.3} parent=43 // pred_region
        %p914 = scmp.lt.s32.totalorder %s67, 5
        %s915 = scalar_select %p914, %s67, 5
        %s916 = smul.addr %s915, 4
        %s917 = scalar_lea.vmem %s15, %s916
      $region68: #{d3g_pair_transformer_px_forward.3} parent=43 // pred_fallthru
        _
      // Predicated region
      $region69: #{d3g_pair_transformer_px_forward.3} parent=43 // pred_check
        %p918 = pneg %p285
      $region70: #{d3g_pair_transformer_px_forward.3} parent=43 // pred_check_branch
        %920 = sbr.rel (%p918) target = $region72
      $region71: #{d3g_pair_transformer_px_forward.3} parent=43 // pred_region
        %p921 = scmp.lt.s32.totalorder %s67, 5
        %s922 = scalar_select %p921, %s67, 5
        %s923 = smul.addr %s922, 4
        %s924 = smul.addr %s923, 8
        %s925 = scalar_lea.vmem %s17, %s924
      $region72: #{d3g_pair_transformer_px_forward.3} parent=43 // pred_fallthru
        _
      // Predicated region
      $region73: #{d3g_pair_transformer_px_forward.3} parent=43 // pred_check
        %p926 = pneg %p311
      $region74: #{d3g_pair_transformer_px_forward.3} parent=43 // pred_check_branch
        %928 = sbr.rel (%p926) target = $region76
      $region75: #{d3g_pair_transformer_px_forward.3} parent=43 // pred_region
        %p929 = scmp.lt.s32.totalorder %s67, 5
        %s930 = scalar_select %p929, %s67, 5
        %s931 = scalar_lea.vmem %s19, %s930
      $region76: #{d3g_pair_transformer_px_forward.3} parent=43 // pred_fallthru
        _
      // Predicated region
      $region77: #{d3g_pair_transformer_px_forward.3} parent=43 // pred_check
        %p932 = pneg %p337
      $region78: #{d3g_pair_transformer_px_forward.3} parent=43 // pred_check_branch
        %934 = sbr.rel (%p932) target = $region80
      $region79: #{d3g_pair_transformer_px_forward.3} parent=43 // pred_region
        %p935 = scmp.lt.s32.totalorder %s67, 5
        %s936 = scalar_select %p935, %s67, 5
        %s937 = smul.addr %s936, 2
        %s938 = scalar_lea.vmem %s21, %s937
      $region80: #{d3g_pair_transformer_px_forward.3} parent=43 // pred_fallthru
        _
      // Predicated region
      $region81: #{d3g_pair_transformer_px_forward.3} parent=43 // pred_check
        %p939 = pneg %p363
      $region82: #{d3g_pair_transformer_px_forward.3} parent=43 // pred_check_branch
        %941 = sbr.rel (%p939) target = $region84
      $region83: #{d3g_pair_transformer_px_forward.3} parent=43 // pred_region
        %p942 = scmp.lt.s32.totalorder %s67, 5
        %s943 = scalar_select %p942, %s67, 5
        %s944 = smul.addr %s943, 16
        %s945 = smul.addr %s944, 8
        %s946 = scalar_lea.vmem %s23, %s945
      $region84: #{d3g_pair_transformer_px_forward.3} parent=43 // pred_fallthru
        _
      // Predicated region
      $region85: #{d3g_pair_transformer_px_forward.3} parent=43 // pred_check
        %p947 = pneg %p389
      $region86: #{d3g_pair_transformer_px_forward.3} parent=43 // pred_check_branch
        %949 = sbr.rel (%p947) target = $region88
      $region87: #{d3g_pair_transformer_px_forward.3} parent=43 // pred_region
        %p950 = scmp.lt.s32.totalorder %s67, 5
        %s951 = scalar_select %p950, %s67, 5
        %s952 = smul.addr %s951, 16
        %s953 = smul.addr %s952, 8
        %s954 = scalar_lea.vmem %s25, %s953
      $region88: #{d3g_pair_transformer_px_forward.3} parent=43 // pred_fallthru
        _
      // Predicated region
      $region89: #{d3g_pair_transformer_px_forward.3} parent=43 // pred_check
        %p955 = pneg %p415
      $region90: #{d3g_pair_transformer_px_forward.3} parent=43 // pred_check_branch
        %957 = sbr.rel (%p955) target = $region92
      $region91: #{d3g_pair_transformer_px_forward.3} parent=43 // pred_region
        %p958 = scmp.lt.s32.totalorder %s67, 5
        %s959 = scalar_select %p958, %s67, 5
        %s960 = smul.addr %s959, 16
        %s961 = smul.addr %s960, 8
        %s962 = scalar_lea.vmem %s27, %s961
      $region92: #{d3g_pair_transformer_px_forward.3} parent=43 // pred_fallthru
        _
      // Predicated region
      $region93: #{d3g_pair_transformer_px_forward.3} parent=43 // pred_check
        %p963 = pneg %p441
      $region94: #{d3g_pair_transformer_px_forward.3} parent=43 // pred_check_branch
        %965 = sbr.rel (%p963) target = $region96
      $region95: #{d3g_pair_transformer_px_forward.3} parent=43 // pred_region
        %p966 = scmp.lt.s32.totalorder %s67, 5
        %s967 = scalar_select %p966, %s67, 5
        %s968 = smul.addr %s967, 4
        %s969 = scalar_lea.vmem %s29, %s968
      $region96: #{d3g_pair_transformer_px_forward.3} parent=43 // pred_fallthru
        _
      // Predicated region
      $region97: #{d3g_pair_transformer_px_forward.3} parent=43 // pred_check
        %p970 = pneg %p467
      $region98: #{d3g_pair_transformer_px_forward.3} parent=43 // pred_check_branch
        %972 = sbr.rel (%p970) target = $region100
      $region99: #{d3g_pair_transformer_px_forward.3} parent=43 // pred_region
        %p973 = scmp.lt.s32.totalorder %s67, 5
        %s974 = scalar_select %p973, %s67, 5
        %s975 = smul.addr %s974, 4
        %s976 = scalar_lea.vmem %s31, %s975
      $region100: #{d3g_pair_transformer_px_forward.3} parent=43 // pred_fallthru
        _
      // Predicated region
      $region101: #{d3g_pair_transformer_px_forward.3} parent=43 // pred_check
        %p977 = pneg %p493
      $region102: #{d3g_pair_transformer_px_forward.3} parent=43 // pred_check_branch
        %979 = sbr.rel (%p977) target = $region104
      $region103: #{d3g_pair_transformer_px_forward.3} parent=43 // pred_region
        %p980 = scmp.lt.s32.totalorder %s67, 5
        %s981 = scalar_select %p980, %s67, 5
        %s982 = smul.addr %s981, 4
        %s983 = scalar_lea.vmem %s33, %s982
      $region104: #{d3g_pair_transformer_px_forward.3} parent=43 // pred_fallthru
        _
      // Predicated region
      $region105: #{d3g_pair_transformer_px_forward.3} parent=43 // pred_check
        %p984 = pneg %p519
      $region106: #{d3g_pair_transformer_px_forward.3} parent=43 // pred_check_branch
        %986 = sbr.rel (%p984) target = $region108
      $region107: #{d3g_pair_transformer_px_forward.3} parent=43 // pred_region
        %p987 = scmp.lt.s32.totalorder %s67, 5
        %s988 = scalar_select %p987, %s67, 5
        %s989 = smul.addr %s988, 4
        %s990 = smul.addr %s989, 8
        %s991 = scalar_lea.vmem %s35, %s990
      $region108: #{d3g_pair_transformer_px_forward.3} parent=43 // pred_fallthru
        _
      // Predicated region
      $region109: #{d3g_pair_transformer_px_forward.3} parent=43 // pred_check
        %p992 = pneg %p545
      $region110: #{d3g_pair_transformer_px_forward.3} parent=43 // pred_check_branch
        %994 = sbr.rel (%p992) target = $region112
      $region111: #{d3g_pair_transformer_px_forward.3} parent=43 // pred_region
        %p995 = scmp.lt.s32.totalorder %s67, 5
        %s996 = scalar_select %p995, %s67, 5
        %s997 = scalar_lea.vmem %s37, %s996
      $region112: #{d3g_pair_transformer_px_forward.3} parent=43 // pred_fallthru
        _
      // Predicated region
      $region113: #{d3g_pair_transformer_px_forward.3} parent=43 // pred_check
        %p998 = pneg %p571
      $region114: #{d3g_pair_transformer_px_forward.3} parent=43 // pred_check_branch
        %1000 = sbr.rel (%p998) target = $region116
      $region115: #{d3g_pair_transformer_px_forward.3} parent=43 // pred_region
        %p1001 = scmp.lt.s32.totalorder %s67, 5
        %s1002 = scalar_select %p1001, %s67, 5
        %s1003 = smul.addr %s1002, 2
        %s1004 = scalar_lea.vmem %s39, %s1003
      $region116: #{d3g_pair_transformer_px_forward.3} parent=43 // pred_fallthru
        _
      // Predicated region
      $region117: #{d3g_pair_transformer_px_forward.3} parent=43 // pred_check
        %p1005 = pneg %p597
      $region118: #{d3g_pair_transformer_px_forward.3} parent=43 // pred_check_branch
        %1007 = sbr.rel (%p1005) target = $region120
      $region119: #{d3g_pair_transformer_px_forward.3} parent=43 // pred_region
        %p1008 = scmp.lt.s32.totalorder %s67, 5
        %s1009 = scalar_select %p1008, %s67, 5
        %s1010 = smul.addr %s1009, 4
        %s1011 = smul.addr %s1010, 8
        %s1012 = scalar_lea.vmem %s41, %s1011
      $region120: #{d3g_pair_transformer_px_forward.3} parent=43 // pred_fallthru
        _
      // Predicated region
      $region121: #{d3g_pair_transformer_px_forward.3} parent=43 // pred_check
        %p1013 = pneg %p623
      $region122: #{d3g_pair_transformer_px_forward.3} parent=43 // pred_check_branch
        %1015 = sbr.rel (%p1013) target = $region124
      $region123: #{d3g_pair_transformer_px_forward.3} parent=43 // pred_region
        %p1016 = scmp.lt.s32.totalorder %s67, 5
        %s1017 = scalar_select %p1016, %s67, 5
        %s1018 = scalar_lea.vmem %s43, %s1017
      $region124: #{d3g_pair_transformer_px_forward.3} parent=43 // pred_fallthru
        _
      // Predicated region
      $region125: #{d3g_pair_transformer_px_forward.3} parent=43 // pred_check
        %p1019 = pneg %p649
      $region126: #{d3g_pair_transformer_px_forward.3} parent=43 // pred_check_branch
        %1021 = sbr.rel (%p1019) target = $region128
      $region127: #{d3g_pair_transformer_px_forward.3} parent=43 // pred_region
        %p1022 = scmp.lt.s32.totalorder %s67, 5
        %s1023 = scalar_select %p1022, %s67, 5
        %s1024 = smul.addr %s1023, 8
        %s1025 = smul.addr %s1024, 8
        %s1026 = scalar_lea.vmem %s45, %s1025
      $region128: #{d3g_pair_transformer_px_forward.3} parent=43 // pred_fallthru
        _
      // Predicated region
      $region129: #{d3g_pair_transformer_px_forward.3} parent=43 // pred_check
        %p1027 = pneg %p675
      $region130: #{d3g_pair_transformer_px_forward.3} parent=43 // pred_check_branch
        %1029 = sbr.rel (%p1027) target = $region132
      $region131: #{d3g_pair_transformer_px_forward.3} parent=43 // pred_region
        %p1030 = scmp.lt.s32.totalorder %s67, 5
        %s1031 = scalar_select %p1030, %s67, 5
        %s1032 = scalar_lea.vmem %s47, %s1031
      $region132: #{d3g_pair_transformer_px_forward.3} parent=43 // pred_fallthru
        _
      // Predicated region
      $region133: #{d3g_pair_transformer_px_forward.3} parent=43 // pred_check
        %p1033 = pneg %p701
      $region134: #{d3g_pair_transformer_px_forward.3} parent=43 // pred_check_branch
        %1035 = sbr.rel (%p1033) target = $region136
      $region135: #{d3g_pair_transformer_px_forward.3} parent=43 // pred_region
        %p1036 = scmp.lt.s32.totalorder %s67, 5
        %s1037 = scalar_select %p1036, %s67, 5
        %s1038 = smul.addr %s1037, 2
        %s1039 = scalar_lea.vmem %s49, %s1038
      $region136: #{d3g_pair_transformer_px_forward.3} parent=43 // pred_fallthru
        _
    $region44: #{d3g_pair_transformer_px_forward.3} parent=5 // pred_fallthru
      _
    %p1040 = scmp.le.s32.totalorder 1, %s67
    %p1041 = scmp.lt.s32.totalorder %s67, 7
    %p1042 = pnand %p1040, %p1041
    %p1043 = pneg %p1042
    // Predicated region
    $region137: #{d3g_pair_transformer_px_forward.3} parent=5 // pred_check
      _
    $region138: #{d3g_pair_transformer_px_forward.3} parent=5 // pred_check_branch
      %1045 = sbr.rel (%p1042) target = $region140
    $region139: #{d3g_pair_transformer_px_forward.3} parent=5 // pred_region
      %s1046 = ssub.s32 %s67, 1
      %p1047 = pneg %p88
      %p1048 = pneg %p85
      %p1049 = pneg %p109
      %p1050 = pneg %p106
      %p1051 = scmp.lt.s32.totalorder %s72, 5
      %s1052 = scalar_select %p1051, %s72, 5
      %s1053 = smul.addr %s1052, 16
      %s1054 = smul.addr %s1053, 8
      %s1055 = scalar_lea.vmem %s5, %s1054
      %p1056 = pneg %p135
      %p1057 = pneg %p132
      %p1058 = scmp.lt.s32.totalorder %s72, 5
      %s1059 = scalar_select %p1058, %s72, 5
      %s1060 = smul.addr %s1059, 16
      %s1061 = smul.addr %s1060, 8
      %s1062 = scalar_lea.vmem %s7, %s1061
      %p1063 = pneg %p161
      %p1064 = pneg %p158
      %p1065 = scmp.lt.s32.totalorder %s72, 5
      %s1066 = scalar_select %p1065, %s72, 5
      %s1067 = smul.addr %s1066, 16
      %s1068 = smul.addr %s1067, 8
      %s1069 = scalar_lea.vmem %s9, %s1068
      %p1070 = pneg %p187
      %p1071 = pneg %p184
      %p1072 = scmp.lt.s32.totalorder %s72, 5
      %s1073 = scalar_select %p1072, %s72, 5
      %s1074 = smul.addr %s1073, 4
      %s1075 = scalar_lea.vmem %s11, %s1074
      %p1076 = pneg %p213
      %p1077 = pneg %p210
      %p1078 = scmp.lt.s32.totalorder %s72, 5
      %s1079 = scalar_select %p1078, %s72, 5
      %s1080 = smul.addr %s1079, 4
      %s1081 = scalar_lea.vmem %s13, %s1080
      %p1082 = pneg %p239
      %p1083 = pneg %p236
      %p1084 = scmp.lt.s32.totalorder %s72, 5
      %s1085 = scalar_select %p1084, %s72, 5
      %s1086 = smul.addr %s1085, 4
      %s1087 = scalar_lea.vmem %s15, %s1086
      %p1088 = pneg %p265
      %p1089 = pneg %p262
      %p1090 = scmp.lt.s32.totalorder %s72, 5
      %s1091 = scalar_select %p1090, %s72, 5
      %s1092 = smul.addr %s1091, 4
      %s1093 = smul.addr %s1092, 8
      %s1094 = scalar_lea.vmem %s17, %s1093
      %p1095 = pneg %p291
      %p1096 = pneg %p288
      %p1097 = scmp.lt.s32.totalorder %s72, 5
      %s1098 = scalar_select %p1097, %s72, 5
      %s1099 = scalar_lea.vmem %s19, %s1098
      %p1100 = pneg %p317
      %p1101 = pneg %p314
      %p1102 = scmp.lt.s32.totalorder %s72, 5
      %s1103 = scalar_select %p1102, %s72, 5
      %s1104 = smul.addr %s1103, 2
      %s1105 = scalar_lea.vmem %s21, %s1104
      %p1106 = pneg %p343
      %p1107 = pneg %p340
      %p1108 = scmp.lt.s32.totalorder %s72, 5
      %s1109 = scalar_select %p1108, %s72, 5
      %s1110 = smul.addr %s1109, 16
      %s1111 = smul.addr %s1110, 8
      %s1112 = scalar_lea.vmem %s23, %s1111
      %p1113 = pneg %p369
      %p1114 = pneg %p366
      %p1115 = scmp.lt.s32.totalorder %s72, 5
      %s1116 = scalar_select %p1115, %s72, 5
      %s1117 = smul.addr %s1116, 16
      %s1118 = smul.addr %s1117, 8
      %s1119 = scalar_lea.vmem %s25, %s1118
      %p1120 = pneg %p395
      %p1121 = pneg %p392
      %p1122 = scmp.lt.s32.totalorder %s72, 5
      %s1123 = scalar_select %p1122, %s72, 5
      %s1124 = smul.addr %s1123, 16
      %s1125 = smul.addr %s1124, 8
      %s1126 = scalar_lea.vmem %s27, %s1125
      %p1127 = pneg %p421
      %p1128 = pneg %p418
      %p1129 = scmp.lt.s32.totalorder %s72, 5
      %s1130 = scalar_select %p1129, %s72, 5
      %s1131 = smul.addr %s1130, 4
      %s1132 = scalar_lea.vmem %s29, %s1131
      %p1133 = pneg %p447
      %p1134 = pneg %p444
      %p1135 = scmp.lt.s32.totalorder %s72, 5
      %s1136 = scalar_select %p1135, %s72, 5
      %s1137 = smul.addr %s1136, 4
      %s1138 = scalar_lea.vmem %s31, %s1137
      %p1139 = pneg %p473
      %p1140 = pneg %p470
      %p1141 = scmp.lt.s32.totalorder %s72, 5
      %s1142 = scalar_select %p1141, %s72, 5
      %s1143 = smul.addr %s1142, 4
      %s1144 = scalar_lea.vmem %s33, %s1143
      %p1145 = pneg %p499
      %p1146 = pneg %p496
      %p1147 = scmp.lt.s32.totalorder %s72, 5
      %s1148 = scalar_select %p1147, %s72, 5
      %s1149 = smul.addr %s1148, 4
      %s1150 = smul.addr %s1149, 8
      %s1151 = scalar_lea.vmem %s35, %s1150
      %p1152 = pneg %p525
      %p1153 = pneg %p522
      %p1154 = scmp.lt.s32.totalorder %s72, 5
      %s1155 = scalar_select %p1154, %s72, 5
      %s1156 = scalar_lea.vmem %s37, %s1155
      %p1157 = pneg %p551
      %p1158 = pneg %p548
      %p1159 = scmp.lt.s32.totalorder %s72, 5
      %s1160 = scalar_select %p1159, %s72, 5
      %s1161 = smul.addr %s1160, 2
      %s1162 = scalar_lea.vmem %s39, %s1161
      %p1163 = pneg %p577
      %p1164 = pneg %p574
      %p1165 = scmp.lt.s32.totalorder %s72, 5
      %s1166 = scalar_select %p1165, %s72, 5
      %s1167 = smul.addr %s1166, 4
      %s1168 = smul.addr %s1167, 8
      %s1169 = scalar_lea.vmem %s41, %s1168
      %p1170 = pneg %p603
      %p1171 = pneg %p600
      %p1172 = scmp.lt.s32.totalorder %s72, 5
      %s1173 = scalar_select %p1172, %s72, 5
      %s1174 = scalar_lea.vmem %s43, %s1173
      %p1175 = pneg %p629
      %p1176 = pneg %p626
      %p1177 = scmp.lt.s32.totalorder %s72, 5
      %s1178 = scalar_select %p1177, %s72, 5
      %s1179 = smul.addr %s1178, 8
      %s1180 = smul.addr %s1179, 8
      %s1181 = scalar_lea.vmem %s45, %s1180
      %p1182 = pneg %p655
      %p1183 = pneg %p652
      %p1184 = scmp.lt.s32.totalorder %s72, 5
      %s1185 = scalar_select %p1184, %s72, 5
      %s1186 = scalar_lea.vmem %s47, %s1185
      %p1187 = pneg %p681
      %p1188 = pneg %p678
      %p1189 = scmp.lt.s32.totalorder %s72, 5
      %s1190 = scalar_select %p1189, %s72, 5
      %s1191 = smul.addr %s1190, 2
      %s1192 = scalar_lea.vmem %s49, %s1191
      %p1193 = pneg %p707
      %p1194 = pneg %p704
      %p1195 = pneg %p728
      %p1196 = pneg %p725
      %p1197 = pneg %p749
      %p1198 = pneg %p746
      %p1199 = pneg %p770
      %p1200 = pneg %p767
      %p1201 = pneg %p791
      %p1202 = pneg %p788
      %p1203 = pneg %p812
      %p1204 = pneg %p809
      %p1205 = pneg %p833
      %p1206 = pneg %p830
      %p1207 = scmp.lt.s32.totalorder %s72, 5
      %s1208 = scalar_select %p1207, %s72, 5
      %s1209 = smul.addr %s1208, 16
      %s1210 = smul.addr %s1209, 8
      %s1211 = scalar_lea.vmem %s5, %s1210
      %p1212 = scmp.lt.s32.totalorder %s72, 5
      %s1213 = scalar_select %p1212, %s72, 5
      %s1214 = smul.addr %s1213, 16
      %s1215 = smul.addr %s1214, 8
      %s1216 = scalar_lea.vmem %s7, %s1215
      %p1217 = scmp.lt.s32.totalorder %s72, 5
      %s1218 = scalar_select %p1217, %s72, 5
      %s1219 = smul.addr %s1218, 16
      %s1220 = smul.addr %s1219, 8
      %s1221 = scalar_lea.vmem %s9, %s1220
      %p1222 = scmp.lt.s32.totalorder %s72, 5
      %s1223 = scalar_select %p1222, %s72, 5
      %s1224 = smul.addr %s1223, 4
      %s1225 = scalar_lea.vmem %s11, %s1224
      %p1226 = scmp.lt.s32.totalorder %s72, 5
      %s1227 = scalar_select %p1226, %s72, 5
      %s1228 = smul.addr %s1227, 4
      %s1229 = scalar_lea.vmem %s13, %s1228
      %p1230 = scmp.lt.s32.totalorder %s72, 5
      %s1231 = scalar_select %p1230, %s72, 5
      %s1232 = smul.addr %s1231, 4
      %s1233 = scalar_lea.vmem %s15, %s1232
      %p1234 = scmp.lt.s32.totalorder %s72, 5
      %s1235 = scalar_select %p1234, %s72, 5
      %s1236 = smul.addr %s1235, 4
      %s1237 = smul.addr %s1236, 8
      %s1238 = scalar_lea.vmem %s17, %s1237
      %p1239 = scmp.lt.s32.totalorder %s72, 5
      %s1240 = scalar_select %p1239, %s72, 5
      %s1241 = scalar_lea.vmem %s19, %s1240
      %p1242 = scmp.lt.s32.totalorder %s72, 5
      %s1243 = scalar_select %p1242, %s72, 5
      %s1244 = smul.addr %s1243, 2
      %s1245 = scalar_lea.vmem %s21, %s1244
      %p1246 = scmp.lt.s32.totalorder %s72, 5
      %s1247 = scalar_select %p1246, %s72, 5
      %s1248 = smul.addr %s1247, 16
      %s1249 = smul.addr %s1248, 8
      %s1250 = scalar_lea.vmem %s23, %s1249
      %p1251 = scmp.lt.s32.totalorder %s72, 5
      %s1252 = scalar_select %p1251, %s72, 5
      %s1253 = smul.addr %s1252, 16
      %s1254 = smul.addr %s1253, 8
      %s1255 = scalar_lea.vmem %s25, %s1254
      %p1256 = scmp.lt.s32.totalorder %s72, 5
      %s1257 = scalar_select %p1256, %s72, 5
      %s1258 = smul.addr %s1257, 16
      %s1259 = smul.addr %s1258, 8
      %s1260 = scalar_lea.vmem %s27, %s1259
      %p1261 = scmp.lt.s32.totalorder %s72, 5
      %s1262 = scalar_select %p1261, %s72, 5
      %s1263 = smul.addr %s1262, 4
      %s1264 = scalar_lea.vmem %s29, %s1263
      %p1265 = scmp.lt.s32.totalorder %s72, 5
      %s1266 = scalar_select %p1265, %s72, 5
      %s1267 = smul.addr %s1266, 4
      %s1268 = scalar_lea.vmem %s31, %s1267
      %p1269 = scmp.lt.s32.totalorder %s72, 5
      %s1270 = scalar_select %p1269, %s72, 5
      %s1271 = smul.addr %s1270, 4
      %s1272 = scalar_lea.vmem %s33, %s1271
      %p1273 = scmp.lt.s32.totalorder %s72, 5
      %s1274 = scalar_select %p1273, %s72, 5
      %s1275 = smul.addr %s1274, 4
      %s1276 = smul.addr %s1275, 8
      %s1277 = scalar_lea.vmem %s35, %s1276
      %p1278 = scmp.lt.s32.totalorder %s72, 5
      %s1279 = scalar_select %p1278, %s72, 5
      %s1280 = scalar_lea.vmem %s37, %s1279
      %p1281 = scmp.lt.s32.totalorder %s72, 5
      %s1282 = scalar_select %p1281, %s72, 5
      %s1283 = smul.addr %s1282, 2
      %s1284 = scalar_lea.vmem %s39, %s1283
      %p1285 = scmp.lt.s32.totalorder %s72, 5
      %s1286 = scalar_select %p1285, %s72, 5
      %s1287 = smul.addr %s1286, 4
      %s1288 = smul.addr %s1287, 8
      %s1289 = scalar_lea.vmem %s41, %s1288
      %p1290 = scmp.lt.s32.totalorder %s72, 5
      %s1291 = scalar_select %p1290, %s72, 5
      %s1292 = scalar_lea.vmem %s43, %s1291
      %p1293 = scmp.lt.s32.totalorder %s72, 5
      %s1294 = scalar_select %p1293, %s72, 5
      %s1295 = smul.addr %s1294, 8
      %s1296 = smul.addr %s1295, 8
      %s1297 = scalar_lea.vmem %s45, %s1296
      %p1298 = scmp.lt.s32.totalorder %s72, 5
      %s1299 = scalar_select %p1298, %s72, 5
      %s1300 = scalar_lea.vmem %s47, %s1299
      %p1301 = scmp.lt.s32.totalorder %s72, 5
      %s1302 = scalar_select %p1301, %s72, 5
      %s1303 = smul.addr %s1302, 2
      %s1304 = scalar_lea.vmem %s49, %s1303
      %p1305 = scmp.eq.s32.totalorder %s72, 0
      // Predicated region
      $region141: #{d3g_pair_transformer_px_forward.3} parent=139 // pred_check
        %p1306 = pneg %p1305
      $region142: #{d3g_pair_transformer_px_forward.3} parent=139 // pred_check_branch
        %1308 = sbr.rel (%p1306) target = $region144
      $region143: #{d3g_pair_transformer_px_forward.3} parent=139 // pred_region
        %v1309 = vld [vmem:[%s1] sm:$0xff]
        %vm1310 = vcmask 261120
        %1311 = vst.msk [vmem:[#allocation2] sm:$0xff] %vm1310, %v1309
      $region144: #{d3g_pair_transformer_px_forward.3} parent=139 // pred_fallthru
        _
      %v1312 = vld [vmem:[#allocation2] sm:$0xff]
      %v1313 = vld [vmem:[%s3] sm:$0xff]
      %v1314 = vld [vmem:[%s3 + $0x8] sm:$0xff]
      %v1315 = vld [vmem:[%s1211] sm:$0xff]
      %v1316 = vld [vmem:[%s1211 + $0x8] sm:$0xff]
      %v1317 = vld [vmem:[%s1211 + $0x10] sm:$0xff]
      %v1318 = vld [vmem:[%s1211 + $0x18] sm:$0xff]
      %v1319 = vld [vmem:[%s1225] sm:$0x1]
      %v1321 = vlaneseq
      %v1322 = vshrl.u32 %v1321, 7
      %v1323 = vsub.s32 0, %v1322
      %v1324 = vrot.slane %v1319, %v1323
      %vm1326 = vcmask 261120
      %v1328 = vsel %vm1326, %v1312, 0
      %1330 = vmatprep.subr.mxu0 0.0
      %1331 = vmatpush1.msra.mxu0 %v1315
      %1332 = vmatprep.subr.mxu0 0.0
      %1333 = vmatpush1.msra.mxu0 %v1316
      %1334 = vmatprep.subr.mxu0 0.0
      %1335 = vmatpush1.msra.mxu0 %v1317
      %1336 = vmatprep.subr.mxu0 0.0
      %1337 = vmatpush1.msra.mxu0 %v1318
      %1338 = vmatprep.subr.mxu0 0.0
      %1339 = vmatpush1.msra.mxu0 0.0
      %1340 = vmatprep.subr.mxu0 0.0
      %1341 = vmatpush1.msra.mxu0 0.0
      %1342 = vmatprep.subr.mxu0 0.0
      %1343 = vmatpush1.msra.mxu0 0.0
      %1344 = vmatprep.subr.mxu0 0.0
      %1345 = vmatpush1.msra.mxu0 0.0
      %1346 = vmatprep.subr.mxu0 0.0
      %1347 = vmatpush1.msra.mxu0 0.0
      %1348 = vmatprep.subr.mxu0 0.0
      %1349 = vmatpush1.msra.mxu0 0.0
      %1350 = vmatprep.subr.mxu0 0.0
      %1351 = vmatpush1.msra.mxu0 0.0
      %1352 = vmatprep.subr.mxu0 0.0
      %1353 = vmatpush1.msra.mxu0 0.0
      %1354 = vmatprep.subr.mxu0 0.0
      %1355 = vmatpush1.msra.mxu0 0.0
      %1356 = vmatprep.subr.mxu0 0.0
      %1357 = vmatpush1.msra.mxu0 0.0
      %1358 = vmatprep.subr.mxu0 0.0
      %1359 = vmatpush1.msra.mxu0 0.0
      %1360 = vmatprep.subr.mxu0 0.0
      %1361 = vmatpush1.msra.mxu0 0.0
      %1362 = vmatprep.subr.mxu0 0.0
      %1363 = vmatpush1.msra.mxu0 0.0
      %1364 = vmatprep.subr.mxu0 0.0
      %1365 = vmatpush1.msra.mxu0 0.0
      %1366 = vmatprep.subr.mxu0 0.0
      %1367 = vmatpush1.msra.mxu0 0.0
      %1368 = vmatprep.subr.mxu0 0.0
      %1369 = vmatpush1.msra.mxu0 0.0
      %1370 = vmatprep.subr.mxu0 0.0
      %1371 = vmatpush1.msra.mxu0 0.0
      %1372 = vmatprep.subr.mxu0 0.0
      %1373 = vmatpush1.msra.mxu0 0.0
      %1374 = vmatprep.subr.mxu0 0.0
      %1375 = vmatpush1.msra.mxu0 0.0
      %1376 = vmatprep.subr.mxu0 0.0
      %1377 = vmatpush1.msra.mxu0 0.0
      %1378 = vmatprep.subr.mxu0 0.0
      %1379 = vmatpush1.msra.mxu0 0.0
      %1380 = vmatprep.subr.mxu0 0.0
      %1381 = vmatpush1.msra.mxu0 0.0
      %1382 = vmatprep.subr.mxu0 0.0
      %1383 = vmatpush1.msra.mxu0 0.0
      %1384 = vmatprep.subr.mxu0 0.0
      %1385 = vmatpush1.msra.mxu0 0.0
      %1386 = vmatprep.subr.mxu0 0.0
      %1387 = vmatpush1.msra.mxu0 0.0
      %1388 = vmatprep.subr.mxu0 0.0
      %1389 = vmatpush1.msra.mxu0 0.0
      %1390 = vmatprep.subr.mxu0 0.0
      %1391 = vmatpush1.msra.mxu0 0.0
      %1392 = vmatprep.subr.mxu0 0.0
      %1393 = vmatpush1.msra.mxu0 0.0
      %1394 = vmatprep.mubr.f32.mxu0 0.0
      %1395 = vmatmul.mubr.f32.gmra.mrb[0].mxu0 %v1328
      %v1396 = vpop.f32.mrb[0].mxu0
      %v1397 = vadd.f32 %v1324, %v1396
      %v1398 = vpop.f32.mrb[0].mxu0
      %1399 = vdwg.mxu0
      %v1400 = vld [vmem:[%s1216] sm:$0xff]
      %v1401 = vld [vmem:[%s1216 + $0x8] sm:$0xff]
      %v1402 = vld [vmem:[%s1216 + $0x10] sm:$0xff]
      %v1403 = vld [vmem:[%s1216 + $0x18] sm:$0xff]
      %v1404 = vld [vmem:[%s1229] sm:$0x1]
      %v1406 = vlaneseq
      %v1407 = vshrl.u32 %v1406, 7
      %v1408 = vsub.s32 0, %v1407
      %v1409 = vrot.slane %v1404, %v1408
      %1411 = vmatprep.subr.mxu0 0.0
      %1412 = vmatpush1.msra.mxu0 %v1400
      %1413 = vmatprep.subr.mxu0 0.0
      %1414 = vmatpush1.msra.mxu0 %v1401
      %1415 = vmatprep.subr.mxu0 0.0
      %1416 = vmatpush1.msra.mxu0 %v1402
      %1417 = vmatprep.subr.mxu0 0.0
      %1418 = vmatpush1.msra.mxu0 %v1403
      %1419 = vmatprep.subr.mxu0 0.0
      %1420 = vmatpush1.msra.mxu0 0.0
      %1421 = vmatprep.subr.mxu0 0.0
      %1422 = vmatpush1.msra.mxu0 0.0
      %1423 = vmatprep.subr.mxu0 0.0
      %1424 = vmatpush1.msra.mxu0 0.0
      %1425 = vmatprep.subr.mxu0 0.0
      %1426 = vmatpush1.msra.mxu0 0.0
      %1427 = vmatprep.subr.mxu0 0.0
      %1428 = vmatpush1.msra.mxu0 0.0
      %1429 = vmatprep.subr.mxu0 0.0
      %1430 = vmatpush1.msra.mxu0 0.0
      %1431 = vmatprep.subr.mxu0 0.0
      %1432 = vmatpush1.msra.mxu0 0.0
      %1433 = vmatprep.subr.mxu0 0.0
      %1434 = vmatpush1.msra.mxu0 0.0
      %1435 = vmatprep.subr.mxu0 0.0
      %1436 = vmatpush1.msra.mxu0 0.0
      %1437 = vmatprep.subr.mxu0 0.0
      %1438 = vmatpush1.msra.mxu0 0.0
      %1439 = vmatprep.subr.mxu0 0.0
      %1440 = vmatpush1.msra.mxu0 0.0
      %1441 = vmatprep.subr.mxu0 0.0
      %1442 = vmatpush1.msra.mxu0 0.0
      %1443 = vmatprep.subr.mxu0 0.0
      %1444 = vmatpush1.msra.mxu0 0.0
      %1445 = vmatprep.subr.mxu0 0.0
      %1446 = vmatpush1.msra.mxu0 0.0
      %1447 = vmatprep.subr.mxu0 0.0
      %1448 = vmatpush1.msra.mxu0 0.0
      %1449 = vmatprep.subr.mxu0 0.0
      %1450 = vmatpush1.msra.mxu0 0.0
      %1451 = vmatprep.subr.mxu0 0.0
      %1452 = vmatpush1.msra.mxu0 0.0
      %1453 = vmatprep.subr.mxu0 0.0
      %1454 = vmatpush1.msra.mxu0 0.0
      %1455 = vmatprep.subr.mxu0 0.0
      %1456 = vmatpush1.msra.mxu0 0.0
      %1457 = vmatprep.subr.mxu0 0.0
      %1458 = vmatpush1.msra.mxu0 0.0
      %1459 = vmatprep.subr.mxu0 0.0
      %1460 = vmatpush1.msra.mxu0 0.0
      %1461 = vmatprep.subr.mxu0 0.0
      %1462 = vmatpush1.msra.mxu0 0.0
      %1463 = vmatprep.subr.mxu0 0.0
      %1464 = vmatpush1.msra.mxu0 0.0
      %1465 = vmatprep.subr.mxu0 0.0
      %1466 = vmatpush1.msra.mxu0 0.0
      %1467 = vmatprep.subr.mxu0 0.0
      %1468 = vmatpush1.msra.mxu0 0.0
      %1469 = vmatprep.subr.mxu0 0.0
      %1470 = vmatpush1.msra.mxu0 0.0
      %1471 = vmatprep.subr.mxu0 0.0
      %1472 = vmatpush1.msra.mxu0 0.0
      %1473 = vmatprep.subr.mxu0 0.0
      %1474 = vmatpush1.msra.mxu0 0.0
      %1475 = vmatprep.mubr.f32.mxu0 0.0
      %1476 = vmatmul.mubr.f32.gmra.mrb[0].mxu0 %v1328
      %v1477 = vpop.f32.mrb[0].mxu0
      %v1478 = vadd.f32 %v1409, %v1477
      %v1479 = vpop.f32.mrb[0].mxu0
      %1480 = vdwg.mxu0
      %v1481 = vld [vmem:[%s1221] sm:$0xff]
      %v1482 = vld [vmem:[%s1221 + $0x8] sm:$0xff]
      %v1483 = vld [vmem:[%s1221 + $0x10] sm:$0xff]
      %v1484 = vld [vmem:[%s1221 + $0x18] sm:$0xff]
      %v1485 = vld [vmem:[%s1233] sm:$0x1]
      %v1487 = vlaneseq
      %v1488 = vshrl.u32 %v1487, 7
      %v1489 = vsub.s32 0, %v1488
      %v1490 = vrot.slane %v1485, %v1489
      %1492 = vmatprep.subr.mxu0 0.0
      %1493 = vmatpush1.msra.mxu0 %v1481
      %1494 = vmatprep.subr.mxu0 0.0
      %1495 = vmatpush1.msra.mxu0 %v1482
      %1496 = vmatprep.subr.mxu0 0.0
      %1497 = vmatpush1.msra.mxu0 %v1483
      %1498 = vmatprep.subr.mxu0 0.0
      %1499 = vmatpush1.msra.mxu0 %v1484
      %1500 = vmatprep.subr.mxu0 0.0
      %1501 = vmatpush1.msra.mxu0 0.0
      %1502 = vmatprep.subr.mxu0 0.0
      %1503 = vmatpush1.msra.mxu0 0.0
      %1504 = vmatprep.subr.mxu0 0.0
      %1505 = vmatpush1.msra.mxu0 0.0
      %1506 = vmatprep.subr.mxu0 0.0
      %1507 = vmatpush1.msra.mxu0 0.0
      %1508 = vmatprep.subr.mxu0 0.0
      %1509 = vmatpush1.msra.mxu0 0.0
      %1510 = vmatprep.subr.mxu0 0.0
      %1511 = vmatpush1.msra.mxu0 0.0
      %1512 = vmatprep.subr.mxu0 0.0
      %1513 = vmatpush1.msra.mxu0 0.0
      %1514 = vmatprep.subr.mxu0 0.0
      %1515 = vmatpush1.msra.mxu0 0.0
      %1516 = vmatprep.subr.mxu0 0.0
      %1517 = vmatpush1.msra.mxu0 0.0
      %1518 = vmatprep.subr.mxu0 0.0
      %1519 = vmatpush1.msra.mxu0 0.0
      %1520 = vmatprep.subr.mxu0 0.0
      %1521 = vmatpush1.msra.mxu0 0.0
      %1522 = vmatprep.subr.mxu0 0.0
      %1523 = vmatpush1.msra.mxu0 0.0
      %1524 = vmatprep.subr.mxu0 0.0
      %1525 = vmatpush1.msra.mxu0 0.0
      %1526 = vmatprep.subr.mxu0 0.0
      %1527 = vmatpush1.msra.mxu0 0.0
      %1528 = vmatprep.subr.mxu0 0.0
      %1529 = vmatpush1.msra.mxu0 0.0
      %1530 = vmatprep.subr.mxu0 0.0
      %1531 = vmatpush1.msra.mxu0 0.0
      %1532 = vmatprep.subr.mxu0 0.0
      %1533 = vmatpush1.msra.mxu0 0.0
      %1534 = vmatprep.subr.mxu0 0.0
      %1535 = vmatpush1.msra.mxu0 0.0
      %1536 = vmatprep.subr.mxu0 0.0
      %1537 = vmatpush1.msra.mxu0 0.0
      %1538 = vmatprep.subr.mxu0 0.0
      %1539 = vmatpush1.msra.mxu0 0.0
      %1540 = vmatprep.subr.mxu0 0.0
      %1541 = vmatpush1.msra.mxu0 0.0
      %1542 = vmatprep.subr.mxu0 0.0
      %1543 = vmatpush1.msra.mxu0 0.0
      %1544 = vmatprep.subr.mxu0 0.0
      %1545 = vmatpush1.msra.mxu0 0.0
      %1546 = vmatprep.subr.mxu0 0.0
      %1547 = vmatpush1.msra.mxu0 0.0
      %1548 = vmatprep.subr.mxu0 0.0
      %1549 = vmatpush1.msra.mxu0 0.0
      %1550 = vmatprep.subr.mxu0 0.0
      %1551 = vmatpush1.msra.mxu0 0.0
      %1552 = vmatprep.subr.mxu0 0.0
      %1553 = vmatpush1.msra.mxu0 0.0
      %1554 = vmatprep.subr.mxu0 0.0
      %1555 = vmatpush1.msra.mxu0 0.0
      %1556 = vmatprep.mubr.f32.mxu0 0.0
      %1557 = vmatmul.mubr.f32.gmra.mrb[0].mxu0 %v1328
      %v1558 = vpop.f32.mrb[0].mxu0
      %v1559 = vadd.f32 %v1490, %v1558
      %v1560 = vpop.f32.mrb[0].mxu0
      %1561 = vdwg.mxu0
      %v1562 = vmul.f32 %v1397, 0.35355338
      %vm1563 = vcmask 64512
      %v1565 = vsel %vm1563, %v1562, 0
      %v1568 = vsel %vm1563, %v1478, 0
      %1570 = vmatprep.subr.mxu0 0.0
      %1571 = vmatpush1.xpose.msra.mxu0 %v1568
      %1572 = vmatprep.subr.mxu0 0.0
      %1573 = vmatpush1.xpose.msra.mxu0 0.0
      %1574 = vmatprep.subr.mxu0 0.0
      %1575 = vmatpush1.xpose.msra.mxu0 0.0
      %1576 = vmatprep.subr.mxu0 0.0
      %1577 = vmatpush1.xpose.msra.mxu0 0.0
      %1578 = vmatprep.subr.mxu0 0.0
      %1579 = vmatpush1.xpose.msra.mxu0 0.0
      %1580 = vmatprep.subr.mxu0 0.0
      %1581 = vmatpush1.xpose.msra.mxu0 0.0
      %1582 = vmatprep.subr.mxu0 0.0
      %1583 = vmatpush1.xpose.msra.mxu0 0.0
      %1584 = vmatprep.subr.mxu0 0.0
      %1585 = vmatpush1.xpose.msra.mxu0 0.0
      %1586 = vmatprep.subr.mxu0 0.0
      %1587 = vmatpush1.xpose.msra.mxu0 0.0
      %1588 = vmatprep.subr.mxu0 0.0
      %1589 = vmatpush1.xpose.msra.mxu0 0.0
      %1590 = vmatprep.subr.mxu0 0.0
      %1591 = vmatpush1.xpose.msra.mxu0 0.0
      %1592 = vmatprep.subr.mxu0 0.0
      %1593 = vmatpush1.xpose.msra.mxu0 0.0
      %1594 = vmatprep.subr.mxu0 0.0
      %1595 = vmatpush1.xpose.msra.mxu0 0.0
      %1596 = vmatprep.subr.mxu0 0.0
      %1597 = vmatpush1.xpose.msra.mxu0 0.0
      %1598 = vmatprep.subr.mxu0 0.0
      %1599 = vmatpush1.xpose.msra.mxu0 0.0
      %1600 = vmatprep.subr.mxu0 0.0
      %1601 = vmatpush1.xpose.msra.mxu0 0.0
      %1602 = vmatprep.subr.mxu0 0.0
      %1603 = vmatpush1.xpose.msra.mxu0 0.0
      %1604 = vmatprep.subr.mxu0 0.0
      %1605 = vmatpush1.xpose.msra.mxu0 0.0
      %1606 = vmatprep.subr.mxu0 0.0
      %1607 = vmatpush1.xpose.msra.mxu0 0.0
      %1608 = vmatprep.subr.mxu0 0.0
      %1609 = vmatpush1.xpose.msra.mxu0 0.0
      %1610 = vmatprep.subr.mxu0 0.0
      %1611 = vmatpush1.xpose.msra.mxu0 0.0
      %1612 = vmatprep.subr.mxu0 0.0
      %1613 = vmatpush1.xpose.msra.mxu0 0.0
      %1614 = vmatprep.subr.mxu0 0.0
      %1615 = vmatpush1.xpose.msra.mxu0 0.0
      %1616 = vmatprep.subr.mxu0 0.0
      %1617 = vmatpush1.xpose.msra.mxu0 0.0
      %1618 = vmatprep.subr.mxu0 0.0
      %1619 = vmatpush1.xpose.msra.mxu0 0.0
      %1620 = vmatprep.subr.mxu0 0.0
      %1621 = vmatpush1.xpose.msra.mxu0 0.0
      %1622 = vmatprep.subr.mxu0 0.0
      %1623 = vmatpush1.xpose.msra.mxu0 0.0
      %1624 = vmatprep.subr.mxu0 0.0
      %1625 = vmatpush1.xpose.msra.mxu0 0.0
      %1626 = vmatprep.subr.mxu0 0.0
      %1627 = vmatpush1.xpose.msra.mxu0 0.0
      %1628 = vmatprep.subr.mxu0 0.0
      %1629 = vmatpush1.xpose.msra.mxu0 0.0
      %1630 = vmatprep.subr.mxu0 0.0
      %1631 = vmatpush1.xpose.msra.mxu0 0.0
      %1632 = vmatprep.subr.mxu0 0.0
      %1633 = vmatpush1.xpose.msra.mxu0 0.0
      %1634 = vmatprep.mubr.f32.mxu0 0.0
      %1635 = vmatmul.mubr.f32.gmra.mrb[0].mxu0 %v1565
      %v1636 = vpop.f32.mrb[0].mxu0
      %v1637 = vadd.f32 0.0, %v1636
      %v1638 = vpop.f32.mrb[0].mxu0
      %1639 = vdwg.mxu0
      %v1640 = vsel %vm1563, %v1637, -inf
      %1641 = vmax.xlane.f32.xlu0 %v1640
      %v1642 = vpop.xlane.xlu0 %1641
      %v1643 = vsub.f32 %v1637, %v1642
      %v1644 = vmul.f32 %v1643, 1.442695
      %v1645 = vpow.pop %v1644
      %v1646 = vsel %vm1563, %v1645, 0.0
      %1647 = vadd.xlane.f32.xlu0 %v1646
      %v1648 = vpop.xlane.xlu0 %1647
      %v1649 = vrcp.pop %v1648
      %v1650 = vmul.f32 %v1645, %v1649
      %v1652 = vsel %vm1563, %v1650, 0
      %1654 = vmatprep.subr.mxu0 0.0
      %1655 = vmatpush1.msra.mxu0 %v1559
      %1656 = vmatprep.subr.mxu0 0.0
      %1657 = vmatpush1.msra.mxu0 0.0
      %1658 = vmatprep.subr.mxu0 0.0
      %1659 = vmatpush1.msra.mxu0 0.0
      %1660 = vmatprep.subr.mxu0 0.0
      %1661 = vmatpush1.msra.mxu0 0.0
      %1662 = vmatprep.subr.mxu0 0.0
      %1663 = vmatpush1.msra.mxu0 0.0
      %1664 = vmatprep.subr.mxu0 0.0
      %1665 = vmatpush1.msra.mxu0 0.0
      %1666 = vmatprep.subr.mxu0 0.0
      %1667 = vmatpush1.msra.mxu0 0.0
      %1668 = vmatprep.subr.mxu0 0.0
      %1669 = vmatpush1.msra.mxu0 0.0
      %1670 = vmatprep.subr.mxu0 0.0
      %1671 = vmatpush1.msra.mxu0 0.0
      %1672 = vmatprep.subr.mxu0 0.0
      %1673 = vmatpush1.msra.mxu0 0.0
      %1674 = vmatprep.subr.mxu0 0.0
      %1675 = vmatpush1.msra.mxu0 0.0
      %1676 = vmatprep.subr.mxu0 0.0
      %1677 = vmatpush1.msra.mxu0 0.0
      %1678 = vmatprep.subr.mxu0 0.0
      %1679 = vmatpush1.msra.mxu0 0.0
      %1680 = vmatprep.subr.mxu0 0.0
      %1681 = vmatpush1.msra.mxu0 0.0
      %1682 = vmatprep.subr.mxu0 0.0
      %1683 = vmatpush1.msra.mxu0 0.0
      %1684 = vmatprep.subr.mxu0 0.0
      %1685 = vmatpush1.msra.mxu0 0.0
      %1686 = vmatprep.subr.mxu0 0.0
      %1687 = vmatpush1.msra.mxu0 0.0
      %1688 = vmatprep.subr.mxu0 0.0
      %1689 = vmatpush1.msra.mxu0 0.0
      %1690 = vmatprep.subr.mxu0 0.0
      %1691 = vmatpush1.msra.mxu0 0.0
      %1692 = vmatprep.subr.mxu0 0.0
      %1693 = vmatpush1.msra.mxu0 0.0
      %1694 = vmatprep.subr.mxu0 0.0
      %1695 = vmatpush1.msra.mxu0 0.0
      %1696 = vmatprep.subr.mxu0 0.0
      %1697 = vmatpush1.msra.mxu0 0.0
      %1698 = vmatprep.subr.mxu0 0.0
      %1699 = vmatpush1.msra.mxu0 0.0
      %1700 = vmatprep.subr.mxu0 0.0
      %1701 = vmatpush1.msra.mxu0 0.0
      %1702 = vmatprep.subr.mxu0 0.0
      %1703 = vmatpush1.msra.mxu0 0.0
      %1704 = vmatprep.subr.mxu0 0.0
      %1705 = vmatpush1.msra.mxu0 0.0
      %1706 = vmatprep.subr.mxu0 0.0
      %1707 = vmatpush1.msra.mxu0 0.0
      %1708 = vmatprep.subr.mxu0 0.0
      %1709 = vmatpush1.msra.mxu0 0.0
      %1710 = vmatprep.subr.mxu0 0.0
      %1711 = vmatpush1.msra.mxu0 0.0
      %1712 = vmatprep.subr.mxu0 0.0
      %1713 = vmatpush1.msra.mxu0 0.0
      %1714 = vmatprep.subr.mxu0 0.0
      %1715 = vmatpush1.msra.mxu0 0.0
      %1716 = vmatprep.subr.mxu0 0.0
      %1717 = vmatpush1.msra.mxu0 0.0
      %1718 = vmatprep.mubr.f32.mxu0 0.0
      %1719 = vmatmul.mubr.f32.gmra.mrb[0].mxu0 %v1652
      %v1720 = vpop.f32.mrb[0].mxu0
      %v1721 = vadd.f32 0.0, %v1720
      %v1722 = vpop.f32.mrb[0].mxu0
      %1723 = vdwg.mxu0
      %v1724 = vld [vmem:[%s1238] sm:$0xff]
      %s1725 = scalar_lea.vmem %s1211, 32
      %v1726 = vld [vmem:[%s1725] sm:$0xff]
      %v1727 = vld [vmem:[%s1725 + $0x8] sm:$0xff]
      %v1728 = vld [vmem:[%s1725 + $0x10] sm:$0xff]
      %v1729 = vld [vmem:[%s1725 + $0x18] sm:$0xff]
      %s1730 = scalar_lea.vmem %s1225, 1
      %v1731 = vld [vmem:[%s1730] sm:$0x1]
      %v1733 = vlaneseq
      %v1734 = vshrl.u32 %v1733, 7
      %v1735 = vsub.s32 0, %v1734
      %v1736 = vrot.slane %v1731, %v1735
      %1738 = vmatprep.subr.mxu0 0.0
      %1739 = vmatpush1.msra.mxu0 %v1726
      %1740 = vmatprep.subr.mxu0 0.0
      %1741 = vmatpush1.msra.mxu0 %v1727
      %1742 = vmatprep.subr.mxu0 0.0
      %1743 = vmatpush1.msra.mxu0 %v1728
      %1744 = vmatprep.subr.mxu0 0.0
      %1745 = vmatpush1.msra.mxu0 %v1729
      %1746 = vmatprep.subr.mxu0 0.0
      %1747 = vmatpush1.msra.mxu0 0.0
      %1748 = vmatprep.subr.mxu0 0.0
      %1749 = vmatpush1.msra.mxu0 0.0
      %1750 = vmatprep.subr.mxu0 0.0
      %1751 = vmatpush1.msra.mxu0 0.0
      %1752 = vmatprep.subr.mxu0 0.0
      %1753 = vmatpush1.msra.mxu0 0.0
      %1754 = vmatprep.subr.mxu0 0.0
      %1755 = vmatpush1.msra.mxu0 0.0
      %1756 = vmatprep.subr.mxu0 0.0
      %1757 = vmatpush1.msra.mxu0 0.0
      %1758 = vmatprep.subr.mxu0 0.0
      %1759 = vmatpush1.msra.mxu0 0.0
      %1760 = vmatprep.subr.mxu0 0.0
      %1761 = vmatpush1.msra.mxu0 0.0
      %1762 = vmatprep.subr.mxu0 0.0
      %1763 = vmatpush1.msra.mxu0 0.0
      %1764 = vmatprep.subr.mxu0 0.0
      %1765 = vmatpush1.msra.mxu0 0.0
      %1766 = vmatprep.subr.mxu0 0.0
      %1767 = vmatpush1.msra.mxu0 0.0
      %1768 = vmatprep.subr.mxu0 0.0
      %1769 = vmatpush1.msra.mxu0 0.0
      %1770 = vmatprep.subr.mxu0 0.0
      %1771 = vmatpush1.msra.mxu0 0.0
      %1772 = vmatprep.subr.mxu0 0.0
      %1773 = vmatpush1.msra.mxu0 0.0
      %1774 = vmatprep.subr.mxu0 0.0
      %1775 = vmatpush1.msra.mxu0 0.0
      %1776 = vmatprep.subr.mxu0 0.0
      %1777 = vmatpush1.msra.mxu0 0.0
      %1778 = vmatprep.subr.mxu0 0.0
      %1779 = vmatpush1.msra.mxu0 0.0
      %1780 = vmatprep.subr.mxu0 0.0
      %1781 = vmatpush1.msra.mxu0 0.0
      %1782 = vmatprep.subr.mxu0 0.0
      %1783 = vmatpush1.msra.mxu0 0.0
      %1784 = vmatprep.subr.mxu0 0.0
      %1785 = vmatpush1.msra.mxu0 0.0
      %1786 = vmatprep.subr.mxu0 0.0
      %1787 = vmatpush1.msra.mxu0 0.0
      %1788 = vmatprep.subr.mxu0 0.0
      %1789 = vmatpush1.msra.mxu0 0.0
      %1790 = vmatprep.subr.mxu0 0.0
      %1791 = vmatpush1.msra.mxu0 0.0
      %1792 = vmatprep.subr.mxu0 0.0
      %1793 = vmatpush1.msra.mxu0 0.0
      %1794 = vmatprep.subr.mxu0 0.0
      %1795 = vmatpush1.msra.mxu0 0.0
      %1796 = vmatprep.subr.mxu0 0.0
      %1797 = vmatpush1.msra.mxu0 0.0
      %1798 = vmatprep.subr.mxu0 0.0
      %1799 = vmatpush1.msra.mxu0 0.0
      %1800 = vmatprep.subr.mxu0 0.0
      %1801 = vmatpush1.msra.mxu0 0.0
      %1802 = vmatprep.mubr.f32.mxu0 0.0
      %1803 = vmatmul.mubr.f32.gmra.mrb[0].mxu0 %v1328
      %v1804 = vpop.f32.mrb[0].mxu0
      %v1805 = vadd.f32 %v1736, %v1804
      %v1806 = vpop.f32.mrb[0].mxu0
      %1807 = vdwg.mxu0
      %s1808 = scalar_lea.vmem %s1216, 32
      %v1809 = vld [vmem:[%s1808] sm:$0xff]
      %v1810 = vld [vmem:[%s1808 + $0x8] sm:$0xff]
      %v1811 = vld [vmem:[%s1808 + $0x10] sm:$0xff]
      %v1812 = vld [vmem:[%s1808 + $0x18] sm:$0xff]
      %s1813 = scalar_lea.vmem %s1229, 1
      %v1814 = vld [vmem:[%s1813] sm:$0x1]
      %v1816 = vlaneseq
      %v1817 = vshrl.u32 %v1816, 7
      %v1818 = vsub.s32 0, %v1817
      %v1819 = vrot.slane %v1814, %v1818
      %1821 = vmatprep.subr.mxu0 0.0
      %1822 = vmatpush1.msra.mxu0 %v1809
      %1823 = vmatprep.subr.mxu0 0.0
      %1824 = vmatpush1.msra.mxu0 %v1810
      %1825 = vmatprep.subr.mxu0 0.0
      %1826 = vmatpush1.msra.mxu0 %v1811
      %1827 = vmatprep.subr.mxu0 0.0
      %1828 = vmatpush1.msra.mxu0 %v1812
      %1829 = vmatprep.subr.mxu0 0.0
      %1830 = vmatpush1.msra.mxu0 0.0
      %1831 = vmatprep.subr.mxu0 0.0
      %1832 = vmatpush1.msra.mxu0 0.0
      %1833 = vmatprep.subr.mxu0 0.0
      %1834 = vmatpush1.msra.mxu0 0.0
      %1835 = vmatprep.subr.mxu0 0.0
      %1836 = vmatpush1.msra.mxu0 0.0
      %1837 = vmatprep.subr.mxu0 0.0
      %1838 = vmatpush1.msra.mxu0 0.0
      %1839 = vmatprep.subr.mxu0 0.0
      %1840 = vmatpush1.msra.mxu0 0.0
      %1841 = vmatprep.subr.mxu0 0.0
      %1842 = vmatpush1.msra.mxu0 0.0
      %1843 = vmatprep.subr.mxu0 0.0
      %1844 = vmatpush1.msra.mxu0 0.0
      %1845 = vmatprep.subr.mxu0 0.0
      %1846 = vmatpush1.msra.mxu0 0.0
      %1847 = vmatprep.subr.mxu0 0.0
      %1848 = vmatpush1.msra.mxu0 0.0
      %1849 = vmatprep.subr.mxu0 0.0
      %1850 = vmatpush1.msra.mxu0 0.0
      %1851 = vmatprep.subr.mxu0 0.0
      %1852 = vmatpush1.msra.mxu0 0.0
      %1853 = vmatprep.subr.mxu0 0.0
      %1854 = vmatpush1.msra.mxu0 0.0
      %1855 = vmatprep.subr.mxu0 0.0
      %1856 = vmatpush1.msra.mxu0 0.0
      %1857 = vmatprep.subr.mxu0 0.0
      %1858 = vmatpush1.msra.mxu0 0.0
      %1859 = vmatprep.subr.mxu0 0.0
      %1860 = vmatpush1.msra.mxu0 0.0
      %1861 = vmatprep.subr.mxu0 0.0
      %1862 = vmatpush1.msra.mxu0 0.0
      %1863 = vmatprep.subr.mxu0 0.0
      %1864 = vmatpush1.msra.mxu0 0.0
      %1865 = vmatprep.subr.mxu0 0.0
      %1866 = vmatpush1.msra.mxu0 0.0
      %1867 = vmatprep.subr.mxu0 0.0
      %1868 = vmatpush1.msra.mxu0 0.0
      %1869 = vmatprep.subr.mxu0 0.0
      %1870 = vmatpush1.msra.mxu0 0.0
      %1871 = vmatprep.subr.mxu0 0.0
      %1872 = vmatpush1.msra.mxu0 0.0
      %1873 = vmatprep.subr.mxu0 0.0
      %1874 = vmatpush1.msra.mxu0 0.0
      %1875 = vmatprep.subr.mxu0 0.0
      %1876 = vmatpush1.msra.mxu0 0.0
      %1877 = vmatprep.subr.mxu0 0.0
      %1878 = vmatpush1.msra.mxu0 0.0
      %1879 = vmatprep.subr.mxu0 0.0
      %1880 = vmatpush1.msra.mxu0 0.0
      %1881 = vmatprep.subr.mxu0 0.0
      %1882 = vmatpush1.msra.mxu0 0.0
      %1883 = vmatprep.subr.mxu0 0.0
      %1884 = vmatpush1.msra.mxu0 0.0
      %1885 = vmatprep.mubr.f32.mxu0 0.0
      %1886 = vmatmul.mubr.f32.gmra.mrb[0].mxu0 %v1328
      %v1887 = vpop.f32.mrb[0].mxu0
      %v1888 = vadd.f32 %v1819, %v1887
      %v1889 = vpop.f32.mrb[0].mxu0
      %1890 = vdwg.mxu0
      %s1891 = scalar_lea.vmem %s1221, 32
      %v1892 = vld [vmem:[%s1891] sm:$0xff]
      %v1893 = vld [vmem:[%s1891 + $0x8] sm:$0xff]
      %v1894 = vld [vmem:[%s1891 + $0x10] sm:$0xff]
      %v1895 = vld [vmem:[%s1891 + $0x18] sm:$0xff]
      %s1896 = scalar_lea.vmem %s1233, 1
      %v1897 = vld [vmem:[%s1896] sm:$0x1]
      %v1899 = vlaneseq
      %v1900 = vshrl.u32 %v1899, 7
      %v1901 = vsub.s32 0, %v1900
      %v1902 = vrot.slane %v1897, %v1901
      %1904 = vmatprep.subr.mxu0 0.0
      %1905 = vmatpush1.msra.mxu0 %v1892
      %1906 = vmatprep.subr.mxu0 0.0
      %1907 = vmatpush1.msra.mxu0 %v1893
      %1908 = vmatprep.subr.mxu0 0.0
      %1909 = vmatpush1.msra.mxu0 %v1894
      %1910 = vmatprep.subr.mxu0 0.0
      %1911 = vmatpush1.msra.mxu0 %v1895
      %1912 = vmatprep.subr.mxu0 0.0
      %1913 = vmatpush1.msra.mxu0 0.0
      %1914 = vmatprep.subr.mxu0 0.0
      %1915 = vmatpush1.msra.mxu0 0.0
      %1916 = vmatprep.subr.mxu0 0.0
      %1917 = vmatpush1.msra.mxu0 0.0
      %1918 = vmatprep.subr.mxu0 0.0
      %1919 = vmatpush1.msra.mxu0 0.0
      %1920 = vmatprep.subr.mxu0 0.0
      %1921 = vmatpush1.msra.mxu0 0.0
      %1922 = vmatprep.subr.mxu0 0.0
      %1923 = vmatpush1.msra.mxu0 0.0
      %1924 = vmatprep.subr.mxu0 0.0
      %1925 = vmatpush1.msra.mxu0 0.0
      %1926 = vmatprep.subr.mxu0 0.0
      %1927 = vmatpush1.msra.mxu0 0.0
      %1928 = vmatprep.subr.mxu0 0.0
      %1929 = vmatpush1.msra.mxu0 0.0
      %1930 = vmatprep.subr.mxu0 0.0
      %1931 = vmatpush1.msra.mxu0 0.0
      %1932 = vmatprep.subr.mxu0 0.0
      %1933 = vmatpush1.msra.mxu0 0.0
      %1934 = vmatprep.subr.mxu0 0.0
      %1935 = vmatpush1.msra.mxu0 0.0
      %1936 = vmatprep.subr.mxu0 0.0
      %1937 = vmatpush1.msra.mxu0 0.0
      %1938 = vmatprep.subr.mxu0 0.0
      %1939 = vmatpush1.msra.mxu0 0.0
      %1940 = vmatprep.subr.mxu0 0.0
      %1941 = vmatpush1.msra.mxu0 0.0
      %1942 = vmatprep.subr.mxu0 0.0
      %1943 = vmatpush1.msra.mxu0 0.0
      %1944 = vmatprep.subr.mxu0 0.0
      %1945 = vmatpush1.msra.mxu0 0.0
      %1946 = vmatprep.subr.mxu0 0.0
      %1947 = vmatpush1.msra.mxu0 0.0
      %1948 = vmatprep.subr.mxu0 0.0
      %1949 = vmatpush1.msra.mxu0 0.0
      %1950 = vmatprep.subr.mxu0 0.0
      %1951 = vmatpush1.msra.mxu0 0.0
      %1952 = vmatprep.subr.mxu0 0.0
      %1953 = vmatpush1.msra.mxu0 0.0
      %1954 = vmatprep.subr.mxu0 0.0
      %1955 = vmatpush1.msra.mxu0 0.0
      %1956 = vmatprep.subr.mxu0 0.0
      %1957 = vmatpush1.msra.mxu0 0.0
      %1958 = vmatprep.subr.mxu0 0.0
      %1959 = vmatpush1.msra.mxu0 0.0
      %1960 = vmatprep.subr.mxu0 0.0
      %1961 = vmatpush1.msra.mxu0 0.0
      %1962 = vmatprep.subr.mxu0 0.0
      %1963 = vmatpush1.msra.mxu0 0.0
      %1964 = vmatprep.subr.mxu0 0.0
      %1965 = vmatpush1.msra.mxu0 0.0
      %1966 = vmatprep.subr.mxu0 0.0
      %1967 = vmatpush1.msra.mxu0 0.0
      %1968 = vmatprep.mubr.f32.mxu0 0.0
      %1969 = vmatmul.mubr.f32.gmra.mrb[0].mxu0 %v1328
      %v1970 = vpop.f32.mrb[0].mxu0
      %v1971 = vadd.f32 %v1902, %v1970
      %v1972 = vpop.f32.mrb[0].mxu0
      %1973 = vdwg.mxu0
      %v1974 = vmul.f32 %v1805, 0.35355338
      %v1976 = vsel %vm1563, %v1974, 0
      %v1979 = vsel %vm1563, %v1888, 0
      %1981 = vmatprep.subr.mxu0 0.0
      %1982 = vmatpush1.xpose.msra.mxu0 %v1979
      %1983 = vmatprep.subr.mxu0 0.0
      %1984 = vmatpush1.xpose.msra.mxu0 0.0
      %1985 = vmatprep.subr.mxu0 0.0
      %1986 = vmatpush1.xpose.msra.mxu0 0.0
      %1987 = vmatprep.subr.mxu0 0.0
      %1988 = vmatpush1.xpose.msra.mxu0 0.0
      %1989 = vmatprep.subr.mxu0 0.0
      %1990 = vmatpush1.xpose.msra.mxu0 0.0
      %1991 = vmatprep.subr.mxu0 0.0
      %1992 = vmatpush1.xpose.msra.mxu0 0.0
      %1993 = vmatprep.subr.mxu0 0.0
      %1994 = vmatpush1.xpose.msra.mxu0 0.0
      %1995 = vmatprep.subr.mxu0 0.0
      %1996 = vmatpush1.xpose.msra.mxu0 0.0
      %1997 = vmatprep.subr.mxu0 0.0
      %1998 = vmatpush1.xpose.msra.mxu0 0.0
      %1999 = vmatprep.subr.mxu0 0.0
      %2000 = vmatpush1.xpose.msra.mxu0 0.0
      %2001 = vmatprep.subr.mxu0 0.0
      %2002 = vmatpush1.xpose.msra.mxu0 0.0
      %2003 = vmatprep.subr.mxu0 0.0
      %2004 = vmatpush1.xpose.msra.mxu0 0.0
      %2005 = vmatprep.subr.mxu0 0.0
      %2006 = vmatpush1.xpose.msra.mxu0 0.0
      %2007 = vmatprep.subr.mxu0 0.0
      %2008 = vmatpush1.xpose.msra.mxu0 0.0
      %2009 = vmatprep.subr.mxu0 0.0
      %2010 = vmatpush1.xpose.msra.mxu0 0.0
      %2011 = vmatprep.subr.mxu0 0.0
      %2012 = vmatpush1.xpose.msra.mxu0 0.0
      %2013 = vmatprep.subr.mxu0 0.0
      %2014 = vmatpush1.xpose.msra.mxu0 0.0
      %2015 = vmatprep.subr.mxu0 0.0
      %2016 = vmatpush1.xpose.msra.mxu0 0.0
      %2017 = vmatprep.subr.mxu0 0.0
      %2018 = vmatpush1.xpose.msra.mxu0 0.0
      %2019 = vmatprep.subr.mxu0 0.0
      %2020 = vmatpush1.xpose.msra.mxu0 0.0
      %2021 = vmatprep.subr.mxu0 0.0
      %2022 = vmatpush1.xpose.msra.mxu0 0.0
      %2023 = vmatprep.subr.mxu0 0.0
      %2024 = vmatpush1.xpose.msra.mxu0 0.0
      %2025 = vmatprep.subr.mxu0 0.0
      %2026 = vmatpush1.xpose.msra.mxu0 0.0
      %2027 = vmatprep.subr.mxu0 0.0
      %2028 = vmatpush1.xpose.msra.mxu0 0.0
      %2029 = vmatprep.subr.mxu0 0.0
      %2030 = vmatpush1.xpose.msra.mxu0 0.0
      %2031 = vmatprep.subr.mxu0 0.0
      %2032 = vmatpush1.xpose.msra.mxu0 0.0
      %2033 = vmatprep.subr.mxu0 0.0
      %2034 = vmatpush1.xpose.msra.mxu0 0.0
      %2035 = vmatprep.subr.mxu0 0.0
      %2036 = vmatpush1.xpose.msra.mxu0 0.0
      %2037 = vmatprep.subr.mxu0 0.0
      %2038 = vmatpush1.xpose.msra.mxu0 0.0
      %2039 = vmatprep.subr.mxu0 0.0
      %2040 = vmatpush1.xpose.msra.mxu0 0.0
      %2041 = vmatprep.subr.mxu0 0.0
      %2042 = vmatpush1.xpose.msra.mxu0 0.0
      %2043 = vmatprep.subr.mxu0 0.0
      %2044 = vmatpush1.xpose.msra.mxu0 0.0
      %2045 = vmatprep.mubr.f32.mxu0 0.0
      %2046 = vmatmul.mubr.f32.gmra.mrb[0].mxu0 %v1976
      %v2047 = vpop.f32.mrb[0].mxu0
      %v2048 = vadd.f32 0.0, %v2047
      %v2049 = vpop.f32.mrb[0].mxu0
      %2050 = vdwg.mxu0
      %v2051 = vsel %vm1563, %v2048, -inf
      %2052 = vmax.xlane.f32.xlu0 %v2051
      %v2053 = vpop.xlane.xlu0 %2052
      %v2054 = vsub.f32 %v2048, %v2053
      %v2055 = vmul.f32 %v2054, 1.442695
      %v2056 = vpow.pop %v2055
      %v2057 = vsel %vm1563, %v2056, 0.0
      %2058 = vadd.xlane.f32.xlu0 %v2057
      %v2059 = vpop.xlane.xlu0 %2058
      %v2060 = vrcp.pop %v2059
      %v2061 = vmul.f32 %v2056, %v2060
      %v2063 = vsel %vm1563, %v2061, 0
      %2065 = vmatprep.subr.mxu0 0.0
      %2066 = vmatpush1.msra.mxu0 %v1971
      %2067 = vmatprep.subr.mxu0 0.0
      %2068 = vmatpush1.msra.mxu0 0.0
      %2069 = vmatprep.subr.mxu0 0.0
      %2070 = vmatpush1.msra.mxu0 0.0
      %2071 = vmatprep.subr.mxu0 0.0
      %2072 = vmatpush1.msra.mxu0 0.0
      %2073 = vmatprep.subr.mxu0 0.0
      %2074 = vmatpush1.msra.mxu0 0.0
      %2075 = vmatprep.subr.mxu0 0.0
      %2076 = vmatpush1.msra.mxu0 0.0
      %2077 = vmatprep.subr.mxu0 0.0
      %2078 = vmatpush1.msra.mxu0 0.0
      %2079 = vmatprep.subr.mxu0 0.0
      %2080 = vmatpush1.msra.mxu0 0.0
      %2081 = vmatprep.subr.mxu0 0.0
      %2082 = vmatpush1.msra.mxu0 0.0
      %2083 = vmatprep.subr.mxu0 0.0
      %2084 = vmatpush1.msra.mxu0 0.0
      %2085 = vmatprep.subr.mxu0 0.0
      %2086 = vmatpush1.msra.mxu0 0.0
      %2087 = vmatprep.subr.mxu0 0.0
      %2088 = vmatpush1.msra.mxu0 0.0
      %2089 = vmatprep.subr.mxu0 0.0
      %2090 = vmatpush1.msra.mxu0 0.0
      %2091 = vmatprep.subr.mxu0 0.0
      %2092 = vmatpush1.msra.mxu0 0.0
      %2093 = vmatprep.subr.mxu0 0.0
      %2094 = vmatpush1.msra.mxu0 0.0
      %2095 = vmatprep.subr.mxu0 0.0
      %2096 = vmatpush1.msra.mxu0 0.0
      %2097 = vmatprep.subr.mxu0 0.0
      %2098 = vmatpush1.msra.mxu0 0.0
      %2099 = vmatprep.subr.mxu0 0.0
      %2100 = vmatpush1.msra.mxu0 0.0
      %2101 = vmatprep.subr.mxu0 0.0
      %2102 = vmatpush1.msra.mxu0 0.0
      %2103 = vmatprep.subr.mxu0 0.0
      %2104 = vmatpush1.msra.mxu0 0.0
      %2105 = vmatprep.subr.mxu0 0.0
      %2106 = vmatpush1.msra.mxu0 0.0
      %2107 = vmatprep.subr.mxu0 0.0
      %2108 = vmatpush1.msra.mxu0 0.0
      %2109 = vmatprep.subr.mxu0 0.0
      %2110 = vmatpush1.msra.mxu0 0.0
      %2111 = vmatprep.subr.mxu0 0.0
      %2112 = vmatpush1.msra.mxu0 0.0
      %2113 = vmatprep.subr.mxu0 0.0
      %2114 = vmatpush1.msra.mxu0 0.0
      %2115 = vmatprep.subr.mxu0 0.0
      %2116 = vmatpush1.msra.mxu0 0.0
      %2117 = vmatprep.subr.mxu0 0.0
      %2118 = vmatpush1.msra.mxu0 0.0
      %2119 = vmatprep.subr.mxu0 0.0
      %2120 = vmatpush1.msra.mxu0 0.0
      %2121 = vmatprep.subr.mxu0 0.0
      %2122 = vmatpush1.msra.mxu0 0.0
      %2123 = vmatprep.subr.mxu0 0.0
      %2124 = vmatpush1.msra.mxu0 0.0
      %2125 = vmatprep.subr.mxu0 0.0
      %2126 = vmatpush1.msra.mxu0 0.0
      %2127 = vmatprep.subr.mxu0 0.0
      %2128 = vmatpush1.msra.mxu0 0.0
      %2129 = vmatprep.mubr.f32.mxu0 0.0
      %2130 = vmatmul.mubr.f32.gmra.mrb[0].mxu0 %v2063
      %v2131 = vpop.f32.mrb[0].mxu0
      %v2132 = vadd.f32 0.0, %v2131
      %v2133 = vpop.f32.mrb[0].mxu0
      %2134 = vdwg.mxu0
      %s2135 = scalar_lea.vmem %s1238, 8
      %v2136 = vld [vmem:[%s2135] sm:$0xff]
      %v2138 = vsel %vm1563, %v2132, 0
      %2140 = vmatprep.subr.mxu0 0.0
      %2141 = vmatpush1.msra.mxu0 %v2136
      %2142 = vmatprep.subr.mxu0 0.0
      %2143 = vmatpush1.msra.mxu0 0.0
      %2144 = vmatprep.subr.mxu0 0.0
      %2145 = vmatpush1.msra.mxu0 0.0
      %2146 = vmatprep.subr.mxu0 0.0
      %2147 = vmatpush1.msra.mxu0 0.0
      %2148 = vmatprep.subr.mxu0 0.0
      %2149 = vmatpush1.msra.mxu0 0.0
      %2150 = vmatprep.subr.mxu0 0.0
      %2151 = vmatpush1.msra.mxu0 0.0
      %2152 = vmatprep.subr.mxu0 0.0
      %2153 = vmatpush1.msra.mxu0 0.0
      %2154 = vmatprep.subr.mxu0 0.0
      %2155 = vmatpush1.msra.mxu0 0.0
      %2156 = vmatprep.subr.mxu0 0.0
      %2157 = vmatpush1.msra.mxu0 0.0
      %2158 = vmatprep.subr.mxu0 0.0
      %2159 = vmatpush1.msra.mxu0 0.0
      %2160 = vmatprep.subr.mxu0 0.0
      %2161 = vmatpush1.msra.mxu0 0.0
      %2162 = vmatprep.subr.mxu0 0.0
      %2163 = vmatpush1.msra.mxu0 0.0
      %2164 = vmatprep.subr.mxu0 0.0
      %2165 = vmatpush1.msra.mxu0 0.0
      %2166 = vmatprep.subr.mxu0 0.0
      %2167 = vmatpush1.msra.mxu0 0.0
      %2168 = vmatprep.subr.mxu0 0.0
      %2169 = vmatpush1.msra.mxu0 0.0
      %2170 = vmatprep.subr.mxu0 0.0
      %2171 = vmatpush1.msra.mxu0 0.0
      %2172 = vmatprep.subr.mxu0 0.0
      %2173 = vmatpush1.msra.mxu0 0.0
      %2174 = vmatprep.subr.mxu0 0.0
      %2175 = vmatpush1.msra.mxu0 0.0
      %2176 = vmatprep.subr.mxu0 0.0
      %2177 = vmatpush1.msra.mxu0 0.0
      %2178 = vmatprep.subr.mxu0 0.0
      %2179 = vmatpush1.msra.mxu0 0.0
      %2180 = vmatprep.subr.mxu0 0.0
      %2181 = vmatpush1.msra.mxu0 0.0
      %2182 = vmatprep.subr.mxu0 0.0
      %2183 = vmatpush1.msra.mxu0 0.0
      %2184 = vmatprep.subr.mxu0 0.0
      %2185 = vmatpush1.msra.mxu0 0.0
      %2186 = vmatprep.subr.mxu0 0.0
      %2187 = vmatpush1.msra.mxu0 0.0
      %2188 = vmatprep.subr.mxu0 0.0
      %2189 = vmatpush1.msra.mxu0 0.0
      %2190 = vmatprep.subr.mxu0 0.0
      %2191 = vmatpush1.msra.mxu0 0.0
      %2192 = vmatprep.subr.mxu0 0.0
      %2193 = vmatpush1.msra.mxu0 0.0
      %2194 = vmatprep.subr.mxu0 0.0
      %2195 = vmatpush1.msra.mxu0 0.0
      %2196 = vmatprep.subr.mxu0 0.0
      %2197 = vmatpush1.msra.mxu0 0.0
      %2198 = vmatprep.subr.mxu0 0.0
      %2199 = vmatpush1.msra.mxu0 0.0
      %2200 = vmatprep.subr.mxu0 0.0
      %2201 = vmatpush1.msra.mxu0 0.0
      %2202 = vmatprep.subr.mxu0 0.0
      %2203 = vmatpush1.msra.mxu0 0.0
      %2204 = vmatprep.mubr.f32.mxu0 0.0
      %2205 = vmatmul.mubr.f32.gmra.mrb[0].mxu0 %v2138
      %v2206 = vpop.f32.mrb[0].mxu0
      %v2207 = vadd.f32 0.0, %v2206
      %v2208 = vpop.f32.mrb[0].mxu0
      %2209 = vdwg.mxu0
      %v2211 = vsel %vm1563, %v1721, 0
      %2213 = vmatprep.subr.mxu0 0.0
      %2214 = vmatpush1.msra.mxu0 %v1724
      %2215 = vmatprep.subr.mxu0 0.0
      %2216 = vmatpush1.msra.mxu0 0.0
      %2217 = vmatprep.subr.mxu0 0.0
      %2218 = vmatpush1.msra.mxu0 0.0
      %2219 = vmatprep.subr.mxu0 0.0
      %2220 = vmatpush1.msra.mxu0 0.0
      %2221 = vmatprep.subr.mxu0 0.0
      %2222 = vmatpush1.msra.mxu0 0.0
      %2223 = vmatprep.subr.mxu0 0.0
      %2224 = vmatpush1.msra.mxu0 0.0
      %2225 = vmatprep.subr.mxu0 0.0
      %2226 = vmatpush1.msra.mxu0 0.0
      %2227 = vmatprep.subr.mxu0 0.0
      %2228 = vmatpush1.msra.mxu0 0.0
      %2229 = vmatprep.subr.mxu0 0.0
      %2230 = vmatpush1.msra.mxu0 0.0
      %2231 = vmatprep.subr.mxu0 0.0
      %2232 = vmatpush1.msra.mxu0 0.0
      %2233 = vmatprep.subr.mxu0 0.0
      %2234 = vmatpush1.msra.mxu0 0.0
      %2235 = vmatprep.subr.mxu0 0.0
      %2236 = vmatpush1.msra.mxu0 0.0
      %2237 = vmatprep.subr.mxu0 0.0
      %2238 = vmatpush1.msra.mxu0 0.0
      %2239 = vmatprep.subr.mxu0 0.0
      %2240 = vmatpush1.msra.mxu0 0.0
      %2241 = vmatprep.subr.mxu0 0.0
      %2242 = vmatpush1.msra.mxu0 0.0
      %2243 = vmatprep.subr.mxu0 0.0
      %2244 = vmatpush1.msra.mxu0 0.0
      %2245 = vmatprep.subr.mxu0 0.0
      %2246 = vmatpush1.msra.mxu0 0.0
      %2247 = vmatprep.subr.mxu0 0.0
      %2248 = vmatpush1.msra.mxu0 0.0
      %2249 = vmatprep.subr.mxu0 0.0
      %2250 = vmatpush1.msra.mxu0 0.0
      %2251 = vmatprep.subr.mxu0 0.0
      %2252 = vmatpush1.msra.mxu0 0.0
      %2253 = vmatprep.subr.mxu0 0.0
      %2254 = vmatpush1.msra.mxu0 0.0
      %2255 = vmatprep.subr.mxu0 0.0
      %2256 = vmatpush1.msra.mxu0 0.0
      %2257 = vmatprep.subr.mxu0 0.0
      %2258 = vmatpush1.msra.mxu0 0.0
      %2259 = vmatprep.subr.mxu0 0.0
      %2260 = vmatpush1.msra.mxu0 0.0
      %2261 = vmatprep.subr.mxu0 0.0
      %2262 = vmatpush1.msra.mxu0 0.0
      %2263 = vmatprep.subr.mxu0 0.0
      %2264 = vmatpush1.msra.mxu0 0.0
      %2265 = vmatprep.subr.mxu0 0.0
      %2266 = vmatpush1.msra.mxu0 0.0
      %2267 = vmatprep.subr.mxu0 0.0
      %2268 = vmatpush1.msra.mxu0 0.0
      %2269 = vmatprep.subr.mxu0 0.0
      %2270 = vmatpush1.msra.mxu0 0.0
      %2271 = vmatprep.subr.mxu0 0.0
      %2272 = vmatpush1.msra.mxu0 0.0
      %2273 = vmatprep.subr.mxu0 0.0
      %2274 = vmatpush1.msra.mxu0 0.0
      %2275 = vmatprep.subr.mxu0 0.0
      %2276 = vmatpush1.msra.mxu0 0.0
      %2277 = vmatprep.mubr.f32.mxu0 0.0
      %2278 = vmatmul.mubr.f32.gmra.mrb[0].mxu0 %v2211
      %v2279 = vpop.f32.mrb[0].mxu0
      %v2280 = vadd.f32 %v2207, %v2279
      %v2281 = vpop.f32.mrb[0].mxu0
      %2282 = vdwg.mxu0
      %s2283 = scalar_lea.vmem %s1211, 64
      %v2284 = vld [vmem:[%s2283] sm:$0xff]
      %v2285 = vld [vmem:[%s2283 + $0x8] sm:$0xff]
      %v2286 = vld [vmem:[%s2283 + $0x10] sm:$0xff]
      %v2287 = vld [vmem:[%s2283 + $0x18] sm:$0xff]
      %s2288 = scalar_lea.vmem %s1225, 2
      %v2289 = vld [vmem:[%s2288] sm:$0x1]
      %v2291 = vlaneseq
      %v2292 = vshrl.u32 %v2291, 7
      %v2293 = vsub.s32 0, %v2292
      %v2294 = vrot.slane %v2289, %v2293
      %2296 = vmatprep.subr.mxu0 0.0
      %2297 = vmatpush1.msra.mxu0 %v2284
      %2298 = vmatprep.subr.mxu0 0.0
      %2299 = vmatpush1.msra.mxu0 %v2285
      %2300 = vmatprep.subr.mxu0 0.0
      %2301 = vmatpush1.msra.mxu0 %v2286
      %2302 = vmatprep.subr.mxu0 0.0
      %2303 = vmatpush1.msra.mxu0 %v2287
      %2304 = vmatprep.subr.mxu0 0.0
      %2305 = vmatpush1.msra.mxu0 0.0
      %2306 = vmatprep.subr.mxu0 0.0
      %2307 = vmatpush1.msra.mxu0 0.0
      %2308 = vmatprep.subr.mxu0 0.0
      %2309 = vmatpush1.msra.mxu0 0.0
      %2310 = vmatprep.subr.mxu0 0.0
      %2311 = vmatpush1.msra.mxu0 0.0
      %2312 = vmatprep.subr.mxu0 0.0
      %2313 = vmatpush1.msra.mxu0 0.0
      %2314 = vmatprep.subr.mxu0 0.0
      %2315 = vmatpush1.msra.mxu0 0.0
      %2316 = vmatprep.subr.mxu0 0.0
      %2317 = vmatpush1.msra.mxu0 0.0
      %2318 = vmatprep.subr.mxu0 0.0
      %2319 = vmatpush1.msra.mxu0 0.0
      %2320 = vmatprep.subr.mxu0 0.0
      %2321 = vmatpush1.msra.mxu0 0.0
      %2322 = vmatprep.subr.mxu0 0.0
      %2323 = vmatpush1.msra.mxu0 0.0
      %2324 = vmatprep.subr.mxu0 0.0
      %2325 = vmatpush1.msra.mxu0 0.0
      %2326 = vmatprep.subr.mxu0 0.0
      %2327 = vmatpush1.msra.mxu0 0.0
      %2328 = vmatprep.subr.mxu0 0.0
      %2329 = vmatpush1.msra.mxu0 0.0
      %2330 = vmatprep.subr.mxu0 0.0
      %2331 = vmatpush1.msra.mxu0 0.0
      %2332 = vmatprep.subr.mxu0 0.0
      %2333 = vmatpush1.msra.mxu0 0.0
      %2334 = vmatprep.subr.mxu0 0.0
      %2335 = vmatpush1.msra.mxu0 0.0
      %2336 = vmatprep.subr.mxu0 0.0
      %2337 = vmatpush1.msra.mxu0 0.0
      %2338 = vmatprep.subr.mxu0 0.0
      %2339 = vmatpush1.msra.mxu0 0.0
      %2340 = vmatprep.subr.mxu0 0.0
      %2341 = vmatpush1.msra.mxu0 0.0
      %2342 = vmatprep.subr.mxu0 0.0
      %2343 = vmatpush1.msra.mxu0 0.0
      %2344 = vmatprep.subr.mxu0 0.0
      %2345 = vmatpush1.msra.mxu0 0.0
      %2346 = vmatprep.subr.mxu0 0.0
      %2347 = vmatpush1.msra.mxu0 0.0
      %2348 = vmatprep.subr.mxu0 0.0
      %2349 = vmatpush1.msra.mxu0 0.0
      %2350 = vmatprep.subr.mxu0 0.0
      %2351 = vmatpush1.msra.mxu0 0.0
      %2352 = vmatprep.subr.mxu0 0.0
      %2353 = vmatpush1.msra.mxu0 0.0
      %2354 = vmatprep.subr.mxu0 0.0
      %2355 = vmatpush1.msra.mxu0 0.0
      %2356 = vmatprep.subr.mxu0 0.0
      %2357 = vmatpush1.msra.mxu0 0.0
      %2358 = vmatprep.subr.mxu0 0.0
      %2359 = vmatpush1.msra.mxu0 0.0
      %2360 = vmatprep.mubr.f32.mxu0 0.0
      %2361 = vmatmul.mubr.f32.gmra.mrb[0].mxu0 %v1328
      %v2362 = vpop.f32.mrb[0].mxu0
      %v2363 = vadd.f32 %v2294, %v2362
      %v2364 = vpop.f32.mrb[0].mxu0
      %2365 = vdwg.mxu0
      %s2366 = scalar_lea.vmem %s1216, 64
      %v2367 = vld [vmem:[%s2366] sm:$0xff]
      %v2368 = vld [vmem:[%s2366 + $0x8] sm:$0xff]
      %v2369 = vld [vmem:[%s2366 + $0x10] sm:$0xff]
      %v2370 = vld [vmem:[%s2366 + $0x18] sm:$0xff]
      %s2371 = scalar_lea.vmem %s1229, 2
      %v2372 = vld [vmem:[%s2371] sm:$0x1]
      %v2374 = vlaneseq
      %v2375 = vshrl.u32 %v2374, 7
      %v2376 = vsub.s32 0, %v2375
      %v2377 = vrot.slane %v2372, %v2376
      %2379 = vmatprep.subr.mxu0 0.0
      %2380 = vmatpush1.msra.mxu0 %v2367
      %2381 = vmatprep.subr.mxu0 0.0
      %2382 = vmatpush1.msra.mxu0 %v2368
      %2383 = vmatprep.subr.mxu0 0.0
      %2384 = vmatpush1.msra.mxu0 %v2369
      %2385 = vmatprep.subr.mxu0 0.0
      %2386 = vmatpush1.msra.mxu0 %v2370
      %2387 = vmatprep.subr.mxu0 0.0
      %2388 = vmatpush1.msra.mxu0 0.0
      %2389 = vmatprep.subr.mxu0 0.0
      %2390 = vmatpush1.msra.mxu0 0.0
      %2391 = vmatprep.subr.mxu0 0.0
      %2392 = vmatpush1.msra.mxu0 0.0
      %2393 = vmatprep.subr.mxu0 0.0
      %2394 = vmatpush1.msra.mxu0 0.0
      %2395 = vmatprep.subr.mxu0 0.0
      %2396 = vmatpush1.msra.mxu0 0.0
      %2397 = vmatprep.subr.mxu0 0.0
      %2398 = vmatpush1.msra.mxu0 0.0
      %2399 = vmatprep.subr.mxu0 0.0
      %2400 = vmatpush1.msra.mxu0 0.0
      %2401 = vmatprep.subr.mxu0 0.0
      %2402 = vmatpush1.msra.mxu0 0.0
      %2403 = vmatprep.subr.mxu0 0.0
      %2404 = vmatpush1.msra.mxu0 0.0
      %2405 = vmatprep.subr.mxu0 0.0
      %2406 = vmatpush1.msra.mxu0 0.0
      %2407 = vmatprep.subr.mxu0 0.0
      %2408 = vmatpush1.msra.mxu0 0.0
      %2409 = vmatprep.subr.mxu0 0.0
      %2410 = vmatpush1.msra.mxu0 0.0
      %2411 = vmatprep.subr.mxu0 0.0
      %2412 = vmatpush1.msra.mxu0 0.0
      %2413 = vmatprep.subr.mxu0 0.0
      %2414 = vmatpush1.msra.mxu0 0.0
      %2415 = vmatprep.subr.mxu0 0.0
      %2416 = vmatpush1.msra.mxu0 0.0
      %2417 = vmatprep.subr.mxu0 0.0
      %2418 = vmatpush1.msra.mxu0 0.0
      %2419 = vmatprep.subr.mxu0 0.0
      %2420 = vmatpush1.msra.mxu0 0.0
      %2421 = vmatprep.subr.mxu0 0.0
      %2422 = vmatpush1.msra.mxu0 0.0
      %2423 = vmatprep.subr.mxu0 0.0
      %2424 = vmatpush1.msra.mxu0 0.0
      %2425 = vmatprep.subr.mxu0 0.0
      %2426 = vmatpush1.msra.mxu0 0.0
      %2427 = vmatprep.subr.mxu0 0.0
      %2428 = vmatpush1.msra.mxu0 0.0
      %2429 = vmatprep.subr.mxu0 0.0
      %2430 = vmatpush1.msra.mxu0 0.0
      %2431 = vmatprep.subr.mxu0 0.0
      %2432 = vmatpush1.msra.mxu0 0.0
      %2433 = vmatprep.subr.mxu0 0.0
      %2434 = vmatpush1.msra.mxu0 0.0
      %2435 = vmatprep.subr.mxu0 0.0
      %2436 = vmatpush1.msra.mxu0 0.0
      %2437 = vmatprep.subr.mxu0 0.0
      %2438 = vmatpush1.msra.mxu0 0.0
      %2439 = vmatprep.subr.mxu0 0.0
      %2440 = vmatpush1.msra.mxu0 0.0
      %2441 = vmatprep.subr.mxu0 0.0
      %2442 = vmatpush1.msra.mxu0 0.0
      %2443 = vmatprep.mubr.f32.mxu0 0.0
      %2444 = vmatmul.mubr.f32.gmra.mrb[0].mxu0 %v1328
      %v2445 = vpop.f32.mrb[0].mxu0
      %v2446 = vadd.f32 %v2377, %v2445
      %v2447 = vpop.f32.mrb[0].mxu0
      %2448 = vdwg.mxu0
      %s2449 = scalar_lea.vmem %s1221, 64
      %v2450 = vld [vmem:[%s2449] sm:$0xff]
      %v2451 = vld [vmem:[%s2449 + $0x8] sm:$0xff]
      %v2452 = vld [vmem:[%s2449 + $0x10] sm:$0xff]
      %v2453 = vld [vmem:[%s2449 + $0x18] sm:$0xff]
      %s2454 = scalar_lea.vmem %s1233, 2
      %v2455 = vld [vmem:[%s2454] sm:$0x1]
      %v2457 = vlaneseq
      %v2458 = vshrl.u32 %v2457, 7
      %v2459 = vsub.s32 0, %v2458
      %v2460 = vrot.slane %v2455, %v2459
      %2462 = vmatprep.subr.mxu0 0.0
      %2463 = vmatpush1.msra.mxu0 %v2450
      %2464 = vmatprep.subr.mxu0 0.0
      %2465 = vmatpush1.msra.mxu0 %v2451
      %2466 = vmatprep.subr.mxu0 0.0
      %2467 = vmatpush1.msra.mxu0 %v2452
      %2468 = vmatprep.subr.mxu0 0.0
      %2469 = vmatpush1.msra.mxu0 %v2453
      %2470 = vmatprep.subr.mxu0 0.0
      %2471 = vmatpush1.msra.mxu0 0.0
      %2472 = vmatprep.subr.mxu0 0.0
      %2473 = vmatpush1.msra.mxu0 0.0
      %2474 = vmatprep.subr.mxu0 0.0
      %2475 = vmatpush1.msra.mxu0 0.0
      %2476 = vmatprep.subr.mxu0 0.0
      %2477 = vmatpush1.msra.mxu0 0.0
      %2478 = vmatprep.subr.mxu0 0.0
      %2479 = vmatpush1.msra.mxu0 0.0
      %2480 = vmatprep.subr.mxu0 0.0
      %2481 = vmatpush1.msra.mxu0 0.0
      %2482 = vmatprep.subr.mxu0 0.0
      %2483 = vmatpush1.msra.mxu0 0.0
      %2484 = vmatprep.subr.mxu0 0.0
      %2485 = vmatpush1.msra.mxu0 0.0
      %2486 = vmatprep.subr.mxu0 0.0
      %2487 = vmatpush1.msra.mxu0 0.0
      %2488 = vmatprep.subr.mxu0 0.0
      %2489 = vmatpush1.msra.mxu0 0.0
      %2490 = vmatprep.subr.mxu0 0.0
      %2491 = vmatpush1.msra.mxu0 0.0
      %2492 = vmatprep.subr.mxu0 0.0
      %2493 = vmatpush1.msra.mxu0 0.0
      %2494 = vmatprep.subr.mxu0 0.0
      %2495 = vmatpush1.msra.mxu0 0.0
      %2496 = vmatprep.subr.mxu0 0.0
      %2497 = vmatpush1.msra.mxu0 0.0
      %2498 = vmatprep.subr.mxu0 0.0
      %2499 = vmatpush1.msra.mxu0 0.0
      %2500 = vmatprep.subr.mxu0 0.0
      %2501 = vmatpush1.msra.mxu0 0.0
      %2502 = vmatprep.subr.mxu0 0.0
      %2503 = vmatpush1.msra.mxu0 0.0
      %2504 = vmatprep.subr.mxu0 0.0
      %2505 = vmatpush1.msra.mxu0 0.0
      %2506 = vmatprep.subr.mxu0 0.0
      %2507 = vmatpush1.msra.mxu0 0.0
      %2508 = vmatprep.subr.mxu0 0.0
      %2509 = vmatpush1.msra.mxu0 0.0
      %2510 = vmatprep.subr.mxu0 0.0
      %2511 = vmatpush1.msra.mxu0 0.0
      %2512 = vmatprep.subr.mxu0 0.0
      %2513 = vmatpush1.msra.mxu0 0.0
      %2514 = vmatprep.subr.mxu0 0.0
      %2515 = vmatpush1.msra.mxu0 0.0
      %2516 = vmatprep.subr.mxu0 0.0
      %2517 = vmatpush1.msra.mxu0 0.0
      %2518 = vmatprep.subr.mxu0 0.0
      %2519 = vmatpush1.msra.mxu0 0.0
      %2520 = vmatprep.subr.mxu0 0.0
      %2521 = vmatpush1.msra.mxu0 0.0
      %2522 = vmatprep.subr.mxu0 0.0
      %2523 = vmatpush1.msra.mxu0 0.0
      %2524 = vmatprep.subr.mxu0 0.0
      %2525 = vmatpush1.msra.mxu0 0.0
      %2526 = vmatprep.mubr.f32.mxu0 0.0
      %2527 = vmatmul.mubr.f32.gmra.mrb[0].mxu0 %v1328
      %v2528 = vpop.f32.mrb[0].mxu0
      %v2529 = vadd.f32 %v2460, %v2528
      %v2530 = vpop.f32.mrb[0].mxu0
      %2531 = vdwg.mxu0
      %v2532 = vmul.f32 %v2363, 0.35355338
      %v2534 = vsel %vm1563, %v2532, 0
      %v2537 = vsel %vm1563, %v2446, 0
      %2539 = vmatprep.subr.mxu0 0.0
      %2540 = vmatpush1.xpose.msra.mxu0 %v2537
      %2541 = vmatprep.subr.mxu0 0.0
      %2542 = vmatpush1.xpose.msra.mxu0 0.0
      %2543 = vmatprep.subr.mxu0 0.0
      %2544 = vmatpush1.xpose.msra.mxu0 0.0
      %2545 = vmatprep.subr.mxu0 0.0
      %2546 = vmatpush1.xpose.msra.mxu0 0.0
      %2547 = vmatprep.subr.mxu0 0.0
      %2548 = vmatpush1.xpose.msra.mxu0 0.0
      %2549 = vmatprep.subr.mxu0 0.0
      %2550 = vmatpush1.xpose.msra.mxu0 0.0
      %2551 = vmatprep.subr.mxu0 0.0
      %2552 = vmatpush1.xpose.msra.mxu0 0.0
      %2553 = vmatprep.subr.mxu0 0.0
      %2554 = vmatpush1.xpose.msra.mxu0 0.0
      %2555 = vmatprep.subr.mxu0 0.0
      %2556 = vmatpush1.xpose.msra.mxu0 0.0
      %2557 = vmatprep.subr.mxu0 0.0
      %2558 = vmatpush1.xpose.msra.mxu0 0.0
      %2559 = vmatprep.subr.mxu0 0.0
      %2560 = vmatpush1.xpose.msra.mxu0 0.0
      %2561 = vmatprep.subr.mxu0 0.0
      %2562 = vmatpush1.xpose.msra.mxu0 0.0
      %2563 = vmatprep.subr.mxu0 0.0
      %2564 = vmatpush1.xpose.msra.mxu0 0.0
      %2565 = vmatprep.subr.mxu0 0.0
      %2566 = vmatpush1.xpose.msra.mxu0 0.0
      %2567 = vmatprep.subr.mxu0 0.0
      %2568 = vmatpush1.xpose.msra.mxu0 0.0
      %2569 = vmatprep.subr.mxu0 0.0
      %2570 = vmatpush1.xpose.msra.mxu0 0.0
      %2571 = vmatprep.subr.mxu0 0.0
      %2572 = vmatpush1.xpose.msra.mxu0 0.0
      %2573 = vmatprep.subr.mxu0 0.0
      %2574 = vmatpush1.xpose.msra.mxu0 0.0
      %2575 = vmatprep.subr.mxu0 0.0
      %2576 = vmatpush1.xpose.msra.mxu0 0.0
      %2577 = vmatprep.subr.mxu0 0.0
      %2578 = vmatpush1.xpose.msra.mxu0 0.0
      %2579 = vmatprep.subr.mxu0 0.0
      %2580 = vmatpush1.xpose.msra.mxu0 0.0
      %2581 = vmatprep.subr.mxu0 0.0
      %2582 = vmatpush1.xpose.msra.mxu0 0.0
      %2583 = vmatprep.subr.mxu0 0.0
      %2584 = vmatpush1.xpose.msra.mxu0 0.0
      %2585 = vmatprep.subr.mxu0 0.0
      %2586 = vmatpush1.xpose.msra.mxu0 0.0
      %2587 = vmatprep.subr.mxu0 0.0
      %2588 = vmatpush1.xpose.msra.mxu0 0.0
      %2589 = vmatprep.subr.mxu0 0.0
      %2590 = vmatpush1.xpose.msra.mxu0 0.0
      %2591 = vmatprep.subr.mxu0 0.0
      %2592 = vmatpush1.xpose.msra.mxu0 0.0
      %2593 = vmatprep.subr.mxu0 0.0
      %2594 = vmatpush1.xpose.msra.mxu0 0.0
      %2595 = vmatprep.subr.mxu0 0.0
      %2596 = vmatpush1.xpose.msra.mxu0 0.0
      %2597 = vmatprep.subr.mxu0 0.0
      %2598 = vmatpush1.xpose.msra.mxu0 0.0
      %2599 = vmatprep.subr.mxu0 0.0
      %2600 = vmatpush1.xpose.msra.mxu0 0.0
      %2601 = vmatprep.subr.mxu0 0.0
      %2602 = vmatpush1.xpose.msra.mxu0 0.0
      %2603 = vmatprep.mubr.f32.mxu0 0.0
      %2604 = vmatmul.mubr.f32.gmra.mrb[0].mxu0 %v2534
      %v2605 = vpop.f32.mrb[0].mxu0
      %v2606 = vadd.f32 0.0, %v2605
      %v2607 = vpop.f32.mrb[0].mxu0
      %2608 = vdwg.mxu0
      %v2609 = vsel %vm1563, %v2606, -inf
      %2610 = vmax.xlane.f32.xlu0 %v2609
      %v2611 = vpop.xlane.xlu0 %2610
      %v2612 = vsub.f32 %v2606, %v2611
      %v2613 = vmul.f32 %v2612, 1.442695
      %v2614 = vpow.pop %v2613
      %v2615 = vsel %vm1563, %v2614, 0.0
      %2616 = vadd.xlane.f32.xlu0 %v2615
      %v2617 = vpop.xlane.xlu0 %2616
      %v2618 = vrcp.pop %v2617
      %v2619 = vmul.f32 %v2614, %v2618
      %v2621 = vsel %vm1563, %v2619, 0
      %2623 = vmatprep.subr.mxu0 0.0
      %2624 = vmatpush1.msra.mxu0 %v2529
      %2625 = vmatprep.subr.mxu0 0.0
      %2626 = vmatpush1.msra.mxu0 0.0
      %2627 = vmatprep.subr.mxu0 0.0
      %2628 = vmatpush1.msra.mxu0 0.0
      %2629 = vmatprep.subr.mxu0 0.0
      %2630 = vmatpush1.msra.mxu0 0.0
      %2631 = vmatprep.subr.mxu0 0.0
      %2632 = vmatpush1.msra.mxu0 0.0
      %2633 = vmatprep.subr.mxu0 0.0
      %2634 = vmatpush1.msra.mxu0 0.0
      %2635 = vmatprep.subr.mxu0 0.0
      %2636 = vmatpush1.msra.mxu0 0.0
      %2637 = vmatprep.subr.mxu0 0.0
      %2638 = vmatpush1.msra.mxu0 0.0
      %2639 = vmatprep.subr.mxu0 0.0
      %2640 = vmatpush1.msra.mxu0 0.0
      %2641 = vmatprep.subr.mxu0 0.0
      %2642 = vmatpush1.msra.mxu0 0.0
      %2643 = vmatprep.subr.mxu0 0.0
      %2644 = vmatpush1.msra.mxu0 0.0
      %2645 = vmatprep.subr.mxu0 0.0
      %2646 = vmatpush1.msra.mxu0 0.0
      %2647 = vmatprep.subr.mxu0 0.0
      %2648 = vmatpush1.msra.mxu0 0.0
      %2649 = vmatprep.subr.mxu0 0.0
      %2650 = vmatpush1.msra.mxu0 0.0
      %2651 = vmatprep.subr.mxu0 0.0
      %2652 = vmatpush1.msra.mxu0 0.0
      %2653 = vmatprep.subr.mxu0 0.0
      %2654 = vmatpush1.msra.mxu0 0.0
      %2655 = vmatprep.subr.mxu0 0.0
      %2656 = vmatpush1.msra.mxu0 0.0
      %2657 = vmatprep.subr.mxu0 0.0
      %2658 = vmatpush1.msra.mxu0 0.0
      %2659 = vmatprep.subr.mxu0 0.0
      %2660 = vmatpush1.msra.mxu0 0.0
      %2661 = vmatprep.subr.mxu0 0.0
      %2662 = vmatpush1.msra.mxu0 0.0
      %2663 = vmatprep.subr.mxu0 0.0
      %2664 = vmatpush1.msra.mxu0 0.0
      %2665 = vmatprep.subr.mxu0 0.0
      %2666 = vmatpush1.msra.mxu0 0.0
      %2667 = vmatprep.subr.mxu0 0.0
      %2668 = vmatpush1.msra.mxu0 0.0
      %2669 = vmatprep.subr.mxu0 0.0
      %2670 = vmatpush1.msra.mxu0 0.0
      %2671 = vmatprep.subr.mxu0 0.0
      %2672 = vmatpush1.msra.mxu0 0.0
      %2673 = vmatprep.subr.mxu0 0.0
      %2674 = vmatpush1.msra.mxu0 0.0
      %2675 = vmatprep.subr.mxu0 0.0
      %2676 = vmatpush1.msra.mxu0 0.0
      %2677 = vmatprep.subr.mxu0 0.0
      %2678 = vmatpush1.msra.mxu0 0.0
      %2679 = vmatprep.subr.mxu0 0.0
      %2680 = vmatpush1.msra.mxu0 0.0
      %2681 = vmatprep.subr.mxu0 0.0
      %2682 = vmatpush1.msra.mxu0 0.0
      %2683 = vmatprep.subr.mxu0 0.0
      %2684 = vmatpush1.msra.mxu0 0.0
      %2685 = vmatprep.subr.mxu0 0.0
      %2686 = vmatpush1.msra.mxu0 0.0
      %2687 = vmatprep.mubr.f32.mxu0 0.0
      %2688 = vmatmul.mubr.f32.gmra.mrb[0].mxu0 %v2621
      %v2689 = vpop.f32.mrb[0].mxu0
      %v2690 = vadd.f32 0.0, %v2689
      %v2691 = vpop.f32.mrb[0].mxu0
      %2692 = vdwg.mxu0
      %s2693 = scalar_lea.vmem %s1238, 16
      %v2694 = vld [vmem:[%s2693] sm:$0xff]
      %v2696 = vsel %vm1563, %v2690, 0
      %2698 = vmatprep.subr.mxu0 0.0
      %2699 = vmatpush1.msra.mxu0 %v2694
      %2700 = vmatprep.subr.mxu0 0.0
      %2701 = vmatpush1.msra.mxu0 0.0
      %2702 = vmatprep.subr.mxu0 0.0
      %2703 = vmatpush1.msra.mxu0 0.0
      %2704 = vmatprep.subr.mxu0 0.0
      %2705 = vmatpush1.msra.mxu0 0.0
      %2706 = vmatprep.subr.mxu0 0.0
      %2707 = vmatpush1.msra.mxu0 0.0
      %2708 = vmatprep.subr.mxu0 0.0
      %2709 = vmatpush1.msra.mxu0 0.0
      %2710 = vmatprep.subr.mxu0 0.0
      %2711 = vmatpush1.msra.mxu0 0.0
      %2712 = vmatprep.subr.mxu0 0.0
      %2713 = vmatpush1.msra.mxu0 0.0
      %2714 = vmatprep.subr.mxu0 0.0
      %2715 = vmatpush1.msra.mxu0 0.0
      %2716 = vmatprep.subr.mxu0 0.0
      %2717 = vmatpush1.msra.mxu0 0.0
      %2718 = vmatprep.subr.mxu0 0.0
      %2719 = vmatpush1.msra.mxu0 0.0
      %2720 = vmatprep.subr.mxu0 0.0
      %2721 = vmatpush1.msra.mxu0 0.0
      %2722 = vmatprep.subr.mxu0 0.0
      %2723 = vmatpush1.msra.mxu0 0.0
      %2724 = vmatprep.subr.mxu0 0.0
      %2725 = vmatpush1.msra.mxu0 0.0
      %2726 = vmatprep.subr.mxu0 0.0
      %2727 = vmatpush1.msra.mxu0 0.0
      %2728 = vmatprep.subr.mxu0 0.0
      %2729 = vmatpush1.msra.mxu0 0.0
      %2730 = vmatprep.subr.mxu0 0.0
      %2731 = vmatpush1.msra.mxu0 0.0
      %2732 = vmatprep.subr.mxu0 0.0
      %2733 = vmatpush1.msra.mxu0 0.0
      %2734 = vmatprep.subr.mxu0 0.0
      %2735 = vmatpush1.msra.mxu0 0.0
      %2736 = vmatprep.subr.mxu0 0.0
      %2737 = vmatpush1.msra.mxu0 0.0
      %2738 = vmatprep.subr.mxu0 0.0
      %2739 = vmatpush1.msra.mxu0 0.0
      %2740 = vmatprep.subr.mxu0 0.0
      %2741 = vmatpush1.msra.mxu0 0.0
      %2742 = vmatprep.subr.mxu0 0.0
      %2743 = vmatpush1.msra.mxu0 0.0
      %2744 = vmatprep.subr.mxu0 0.0
      %2745 = vmatpush1.msra.mxu0 0.0
      %2746 = vmatprep.subr.mxu0 0.0
      %2747 = vmatpush1.msra.mxu0 0.0
      %2748 = vmatprep.subr.mxu0 0.0
      %2749 = vmatpush1.msra.mxu0 0.0
      %2750 = vmatprep.subr.mxu0 0.0
      %2751 = vmatpush1.msra.mxu0 0.0
      %2752 = vmatprep.subr.mxu0 0.0
      %2753 = vmatpush1.msra.mxu0 0.0
      %2754 = vmatprep.subr.mxu0 0.0
      %2755 = vmatpush1.msra.mxu0 0.0
      %2756 = vmatprep.subr.mxu0 0.0
      %2757 = vmatpush1.msra.mxu0 0.0
      %2758 = vmatprep.subr.mxu0 0.0
      %2759 = vmatpush1.msra.mxu0 0.0
      %2760 = vmatprep.subr.mxu0 0.0
      %2761 = vmatpush1.msra.mxu0 0.0
      %2762 = vmatprep.mubr.f32.mxu0 0.0
      %2763 = vmatmul.mubr.f32.gmra.mrb[0].mxu0 %v2696
      %v2764 = vpop.f32.mrb[0].mxu0
      %v2765 = vadd.f32 0.0, %v2764
      %v2766 = vpop.f32.mrb[0].mxu0
      %2767 = vdwg.mxu0
      %v2768 = vadd.f32 %v2280, %v2765
      %s2769 = scalar_lea.vmem %s1211, 96
      %v2770 = vld [vmem:[%s2769] sm:$0xff]
      %v2771 = vld [vmem:[%s2769 + $0x8] sm:$0xff]
      %v2772 = vld [vmem:[%s2769 + $0x10] sm:$0xff]
      %v2773 = vld [vmem:[%s2769 + $0x18] sm:$0xff]
      %s2774 = scalar_lea.vmem %s1225, 3
      %v2775 = vld [vmem:[%s2774] sm:$0x1]
      %v2777 = vlaneseq
      %v2778 = vshrl.u32 %v2777, 7
      %v2779 = vsub.s32 0, %v2778
      %v2780 = vrot.slane %v2775, %v2779
      %2782 = vmatprep.subr.mxu0 0.0
      %2783 = vmatpush1.msra.mxu0 %v2770
      %2784 = vmatprep.subr.mxu0 0.0
      %2785 = vmatpush1.msra.mxu0 %v2771
      %2786 = vmatprep.subr.mxu0 0.0
      %2787 = vmatpush1.msra.mxu0 %v2772
      %2788 = vmatprep.subr.mxu0 0.0
      %2789 = vmatpush1.msra.mxu0 %v2773
      %2790 = vmatprep.subr.mxu0 0.0
      %2791 = vmatpush1.msra.mxu0 0.0
      %2792 = vmatprep.subr.mxu0 0.0
      %2793 = vmatpush1.msra.mxu0 0.0
      %2794 = vmatprep.subr.mxu0 0.0
      %2795 = vmatpush1.msra.mxu0 0.0
      %2796 = vmatprep.subr.mxu0 0.0
      %2797 = vmatpush1.msra.mxu0 0.0
      %2798 = vmatprep.subr.mxu0 0.0
      %2799 = vmatpush1.msra.mxu0 0.0
      %2800 = vmatprep.subr.mxu0 0.0
      %2801 = vmatpush1.msra.mxu0 0.0
      %2802 = vmatprep.subr.mxu0 0.0
      %2803 = vmatpush1.msra.mxu0 0.0
      %2804 = vmatprep.subr.mxu0 0.0
      %2805 = vmatpush1.msra.mxu0 0.0
      %2806 = vmatprep.subr.mxu0 0.0
      %2807 = vmatpush1.msra.mxu0 0.0
      %2808 = vmatprep.subr.mxu0 0.0
      %2809 = vmatpush1.msra.mxu0 0.0
      %2810 = vmatprep.subr.mxu0 0.0
      %2811 = vmatpush1.msra.mxu0 0.0
      %2812 = vmatprep.subr.mxu0 0.0
      %2813 = vmatpush1.msra.mxu0 0.0
      %2814 = vmatprep.subr.mxu0 0.0
      %2815 = vmatpush1.msra.mxu0 0.0
      %2816 = vmatprep.subr.mxu0 0.0
      %2817 = vmatpush1.msra.mxu0 0.0
      %2818 = vmatprep.subr.mxu0 0.0
      %2819 = vmatpush1.msra.mxu0 0.0
      %2820 = vmatprep.subr.mxu0 0.0
      %2821 = vmatpush1.msra.mxu0 0.0
      %2822 = vmatprep.subr.mxu0 0.0
      %2823 = vmatpush1.msra.mxu0 0.0
      %2824 = vmatprep.subr.mxu0 0.0
      %2825 = vmatpush1.msra.mxu0 0.0
      %2826 = vmatprep.subr.mxu0 0.0
      %2827 = vmatpush1.msra.mxu0 0.0
      %2828 = vmatprep.subr.mxu0 0.0
      %2829 = vmatpush1.msra.mxu0 0.0
      %2830 = vmatprep.subr.mxu0 0.0
      %2831 = vmatpush1.msra.mxu0 0.0
      %2832 = vmatprep.subr.mxu0 0.0
      %2833 = vmatpush1.msra.mxu0 0.0
      %2834 = vmatprep.subr.mxu0 0.0
      %2835 = vmatpush1.msra.mxu0 0.0
      %2836 = vmatprep.subr.mxu0 0.0
      %2837 = vmatpush1.msra.mxu0 0.0
      %2838 = vmatprep.subr.mxu0 0.0
      %2839 = vmatpush1.msra.mxu0 0.0
      %2840 = vmatprep.subr.mxu0 0.0
      %2841 = vmatpush1.msra.mxu0 0.0
      %2842 = vmatprep.subr.mxu0 0.0
      %2843 = vmatpush1.msra.mxu0 0.0
      %2844 = vmatprep.subr.mxu0 0.0
      %2845 = vmatpush1.msra.mxu0 0.0
      %2846 = vmatprep.mubr.f32.mxu0 0.0
      %2847 = vmatmul.mubr.f32.gmra.mrb[0].mxu0 %v1328
      %v2848 = vpop.f32.mrb[0].mxu0
      %v2849 = vadd.f32 %v2780, %v2848
      %v2850 = vpop.f32.mrb[0].mxu0
      %2851 = vdwg.mxu0
      %s2852 = scalar_lea.vmem %s1216, 96
      %v2853 = vld [vmem:[%s2852] sm:$0xff]
      %v2854 = vld [vmem:[%s2852 + $0x8] sm:$0xff]
      %v2855 = vld [vmem:[%s2852 + $0x10] sm:$0xff]
      %v2856 = vld [vmem:[%s2852 + $0x18] sm:$0xff]
      %s2857 = scalar_lea.vmem %s1229, 3
      %v2858 = vld [vmem:[%s2857] sm:$0x1]
      %v2860 = vlaneseq
      %v2861 = vshrl.u32 %v2860, 7
      %v2862 = vsub.s32 0, %v2861
      %v2863 = vrot.slane %v2858, %v2862
      %2865 = vmatprep.subr.mxu0 0.0
      %2866 = vmatpush1.msra.mxu0 %v2853
      %2867 = vmatprep.subr.mxu0 0.0
      %2868 = vmatpush1.msra.mxu0 %v2854
      %2869 = vmatprep.subr.mxu0 0.0
      %2870 = vmatpush1.msra.mxu0 %v2855
      %2871 = vmatprep.subr.mxu0 0.0
      %2872 = vmatpush1.msra.mxu0 %v2856
      %2873 = vmatprep.subr.mxu0 0.0
      %2874 = vmatpush1.msra.mxu0 0.0
      %2875 = vmatprep.subr.mxu0 0.0
      %2876 = vmatpush1.msra.mxu0 0.0
      %2877 = vmatprep.subr.mxu0 0.0
      %2878 = vmatpush1.msra.mxu0 0.0
      %2879 = vmatprep.subr.mxu0 0.0
      %2880 = vmatpush1.msra.mxu0 0.0
      %2881 = vmatprep.subr.mxu0 0.0
      %2882 = vmatpush1.msra.mxu0 0.0
      %2883 = vmatprep.subr.mxu0 0.0
      %2884 = vmatpush1.msra.mxu0 0.0
      %2885 = vmatprep.subr.mxu0 0.0
      %2886 = vmatpush1.msra.mxu0 0.0
      %2887 = vmatprep.subr.mxu0 0.0
      %2888 = vmatpush1.msra.mxu0 0.0
      %2889 = vmatprep.subr.mxu0 0.0
      %2890 = vmatpush1.msra.mxu0 0.0
      %2891 = vmatprep.subr.mxu0 0.0
      %2892 = vmatpush1.msra.mxu0 0.0
      %2893 = vmatprep.subr.mxu0 0.0
      %2894 = vmatpush1.msra.mxu0 0.0
      %2895 = vmatprep.subr.mxu0 0.0
      %2896 = vmatpush1.msra.mxu0 0.0
      %2897 = vmatprep.subr.mxu0 0.0
      %2898 = vmatpush1.msra.mxu0 0.0
      %2899 = vmatprep.subr.mxu0 0.0
      %2900 = vmatpush1.msra.mxu0 0.0
      %2901 = vmatprep.subr.mxu0 0.0
      %2902 = vmatpush1.msra.mxu0 0.0
      %2903 = vmatprep.subr.mxu0 0.0
      %2904 = vmatpush1.msra.mxu0 0.0
      %2905 = vmatprep.subr.mxu0 0.0
      %2906 = vmatpush1.msra.mxu0 0.0
      %2907 = vmatprep.subr.mxu0 0.0
      %2908 = vmatpush1.msra.mxu0 0.0
      %2909 = vmatprep.subr.mxu0 0.0
      %2910 = vmatpush1.msra.mxu0 0.0
      %2911 = vmatprep.subr.mxu0 0.0
      %2912 = vmatpush1.msra.mxu0 0.0
      %2913 = vmatprep.subr.mxu0 0.0
      %2914 = vmatpush1.msra.mxu0 0.0
      %2915 = vmatprep.subr.mxu0 0.0
      %2916 = vmatpush1.msra.mxu0 0.0
      %2917 = vmatprep.subr.mxu0 0.0
      %2918 = vmatpush1.msra.mxu0 0.0
      %2919 = vmatprep.subr.mxu0 0.0
      %2920 = vmatpush1.msra.mxu0 0.0
      %2921 = vmatprep.subr.mxu0 0.0
      %2922 = vmatpush1.msra.mxu0 0.0
      %2923 = vmatprep.subr.mxu0 0.0
      %2924 = vmatpush1.msra.mxu0 0.0
      %2925 = vmatprep.subr.mxu0 0.0
      %2926 = vmatpush1.msra.mxu0 0.0
      %2927 = vmatprep.subr.mxu0 0.0
      %2928 = vmatpush1.msra.mxu0 0.0
      %2929 = vmatprep.mubr.f32.mxu0 0.0
      %2930 = vmatmul.mubr.f32.gmra.mrb[0].mxu0 %v1328
      %v2931 = vpop.f32.mrb[0].mxu0
      %v2932 = vadd.f32 %v2863, %v2931
      %v2933 = vpop.f32.mrb[0].mxu0
      %2934 = vdwg.mxu0
      %s2935 = scalar_lea.vmem %s1221, 96
      %v2936 = vld [vmem:[%s2935] sm:$0xff]
      %v2937 = vld [vmem:[%s2935 + $0x8] sm:$0xff]
      %v2938 = vld [vmem:[%s2935 + $0x10] sm:$0xff]
      %v2939 = vld [vmem:[%s2935 + $0x18] sm:$0xff]
      %s2940 = scalar_lea.vmem %s1233, 3
      %v2941 = vld [vmem:[%s2940] sm:$0x1]
      %v2943 = vlaneseq
      %v2944 = vshrl.u32 %v2943, 7
      %v2945 = vsub.s32 0, %v2944
      %v2946 = vrot.slane %v2941, %v2945
      %2948 = vmatprep.subr.mxu0 0.0
      %2949 = vmatpush1.msra.mxu0 %v2936
      %2950 = vmatprep.subr.mxu0 0.0
      %2951 = vmatpush1.msra.mxu0 %v2937
      %2952 = vmatprep.subr.mxu0 0.0
      %2953 = vmatpush1.msra.mxu0 %v2938
      %2954 = vmatprep.subr.mxu0 0.0
      %2955 = vmatpush1.msra.mxu0 %v2939
      %2956 = vmatprep.subr.mxu0 0.0
      %2957 = vmatpush1.msra.mxu0 0.0
      %2958 = vmatprep.subr.mxu0 0.0
      %2959 = vmatpush1.msra.mxu0 0.0
      %2960 = vmatprep.subr.mxu0 0.0
      %2961 = vmatpush1.msra.mxu0 0.0
      %2962 = vmatprep.subr.mxu0 0.0
      %2963 = vmatpush1.msra.mxu0 0.0
      %2964 = vmatprep.subr.mxu0 0.0
      %2965 = vmatpush1.msra.mxu0 0.0
      %2966 = vmatprep.subr.mxu0 0.0
      %2967 = vmatpush1.msra.mxu0 0.0
      %2968 = vmatprep.subr.mxu0 0.0
      %2969 = vmatpush1.msra.mxu0 0.0
      %2970 = vmatprep.subr.mxu0 0.0
      %2971 = vmatpush1.msra.mxu0 0.0
      %2972 = vmatprep.subr.mxu0 0.0
      %2973 = vmatpush1.msra.mxu0 0.0
      %2974 = vmatprep.subr.mxu0 0.0
      %2975 = vmatpush1.msra.mxu0 0.0
      %2976 = vmatprep.subr.mxu0 0.0
      %2977 = vmatpush1.msra.mxu0 0.0
      %2978 = vmatprep.subr.mxu0 0.0
      %2979 = vmatpush1.msra.mxu0 0.0
      %2980 = vmatprep.subr.mxu0 0.0
      %2981 = vmatpush1.msra.mxu0 0.0
      %2982 = vmatprep.subr.mxu0 0.0
      %2983 = vmatpush1.msra.mxu0 0.0
      %2984 = vmatprep.subr.mxu0 0.0
      %2985 = vmatpush1.msra.mxu0 0.0
      %2986 = vmatprep.subr.mxu0 0.0
      %2987 = vmatpush1.msra.mxu0 0.0
      %2988 = vmatprep.subr.mxu0 0.0
      %2989 = vmatpush1.msra.mxu0 0.0
      %2990 = vmatprep.subr.mxu0 0.0
      %2991 = vmatpush1.msra.mxu0 0.0
      %2992 = vmatprep.subr.mxu0 0.0
      %2993 = vmatpush1.msra.mxu0 0.0
      %2994 = vmatprep.subr.mxu0 0.0
      %2995 = vmatpush1.msra.mxu0 0.0
      %2996 = vmatprep.subr.mxu0 0.0
      %2997 = vmatpush1.msra.mxu0 0.0
      %2998 = vmatprep.subr.mxu0 0.0
      %2999 = vmatpush1.msra.mxu0 0.0
      %3000 = vmatprep.subr.mxu0 0.0
      %3001 = vmatpush1.msra.mxu0 0.0
      %3002 = vmatprep.subr.mxu0 0.0
      %3003 = vmatpush1.msra.mxu0 0.0
      %3004 = vmatprep.subr.mxu0 0.0
      %3005 = vmatpush1.msra.mxu0 0.0
      %3006 = vmatprep.subr.mxu0 0.0
      %3007 = vmatpush1.msra.mxu0 0.0
      %3008 = vmatprep.subr.mxu0 0.0
      %3009 = vmatpush1.msra.mxu0 0.0
      %3010 = vmatprep.subr.mxu0 0.0
      %3011 = vmatpush1.msra.mxu0 0.0
      %3012 = vmatprep.mubr.f32.mxu0 0.0
      %3013 = vmatmul.mubr.f32.gmra.mrb[0].mxu0 %v1328
      %v3014 = vpop.f32.mrb[0].mxu0
      %v3015 = vadd.f32 %v2946, %v3014
      %v3016 = vpop.f32.mrb[0].mxu0
      %3017 = vdwg.mxu0
      %v3018 = vmul.f32 %v2849, 0.35355338
      %v3020 = vsel %vm1563, %v3018, 0
      %v3023 = vsel %vm1563, %v2932, 0
      %3025 = vmatprep.subr.mxu0 0.0
      %3026 = vmatpush1.xpose.msra.mxu0 %v3023
      %3027 = vmatprep.subr.mxu0 0.0
      %3028 = vmatpush1.xpose.msra.mxu0 0.0
      %3029 = vmatprep.subr.mxu0 0.0
      %3030 = vmatpush1.xpose.msra.mxu0 0.0
      %3031 = vmatprep.subr.mxu0 0.0
      %3032 = vmatpush1.xpose.msra.mxu0 0.0
      %3033 = vmatprep.subr.mxu0 0.0
      %3034 = vmatpush1.xpose.msra.mxu0 0.0
      %3035 = vmatprep.subr.mxu0 0.0
      %3036 = vmatpush1.xpose.msra.mxu0 0.0
      %3037 = vmatprep.subr.mxu0 0.0
      %3038 = vmatpush1.xpose.msra.mxu0 0.0
      %3039 = vmatprep.subr.mxu0 0.0
      %3040 = vmatpush1.xpose.msra.mxu0 0.0
      %3041 = vmatprep.subr.mxu0 0.0
      %3042 = vmatpush1.xpose.msra.mxu0 0.0
      %3043 = vmatprep.subr.mxu0 0.0
      %3044 = vmatpush1.xpose.msra.mxu0 0.0
      %3045 = vmatprep.subr.mxu0 0.0
      %3046 = vmatpush1.xpose.msra.mxu0 0.0
      %3047 = vmatprep.subr.mxu0 0.0
      %3048 = vmatpush1.xpose.msra.mxu0 0.0
      %3049 = vmatprep.subr.mxu0 0.0
      %3050 = vmatpush1.xpose.msra.mxu0 0.0
      %3051 = vmatprep.subr.mxu0 0.0
      %3052 = vmatpush1.xpose.msra.mxu0 0.0
      %3053 = vmatprep.subr.mxu0 0.0
      %3054 = vmatpush1.xpose.msra.mxu0 0.0
      %3055 = vmatprep.subr.mxu0 0.0
      %3056 = vmatpush1.xpose.msra.mxu0 0.0
      %3057 = vmatprep.subr.mxu0 0.0
      %3058 = vmatpush1.xpose.msra.mxu0 0.0
      %3059 = vmatprep.subr.mxu0 0.0
      %3060 = vmatpush1.xpose.msra.mxu0 0.0
      %3061 = vmatprep.subr.mxu0 0.0
      %3062 = vmatpush1.xpose.msra.mxu0 0.0
      %3063 = vmatprep.subr.mxu0 0.0
      %3064 = vmatpush1.xpose.msra.mxu0 0.0
      %3065 = vmatprep.subr.mxu0 0.0
      %3066 = vmatpush1.xpose.msra.mxu0 0.0
      %3067 = vmatprep.subr.mxu0 0.0
      %3068 = vmatpush1.xpose.msra.mxu0 0.0
      %3069 = vmatprep.subr.mxu0 0.0
      %3070 = vmatpush1.xpose.msra.mxu0 0.0
      %3071 = vmatprep.subr.mxu0 0.0
      %3072 = vmatpush1.xpose.msra.mxu0 0.0
      %3073 = vmatprep.subr.mxu0 0.0
      %3074 = vmatpush1.xpose.msra.mxu0 0.0
      %3075 = vmatprep.subr.mxu0 0.0
      %3076 = vmatpush1.xpose.msra.mxu0 0.0
      %3077 = vmatprep.subr.mxu0 0.0
      %3078 = vmatpush1.xpose.msra.mxu0 0.0
      %3079 = vmatprep.subr.mxu0 0.0
      %3080 = vmatpush1.xpose.msra.mxu0 0.0
      %3081 = vmatprep.subr.mxu0 0.0
      %3082 = vmatpush1.xpose.msra.mxu0 0.0
      %3083 = vmatprep.subr.mxu0 0.0
      %3084 = vmatpush1.xpose.msra.mxu0 0.0
      %3085 = vmatprep.subr.mxu0 0.0
      %3086 = vmatpush1.xpose.msra.mxu0 0.0
      %3087 = vmatprep.subr.mxu0 0.0
      %3088 = vmatpush1.xpose.msra.mxu0 0.0
      %3089 = vmatprep.mubr.f32.mxu0 0.0
      %3090 = vmatmul.mubr.f32.gmra.mrb[0].mxu0 %v3020
      %v3091 = vpop.f32.mrb[0].mxu0
      %v3092 = vadd.f32 0.0, %v3091
      %v3093 = vpop.f32.mrb[0].mxu0
      %3094 = vdwg.mxu0
      %v3095 = vsel %vm1563, %v3092, -inf
      %3096 = vmax.xlane.f32.xlu0 %v3095
      %v3097 = vpop.xlane.xlu0 %3096
      %v3098 = vsub.f32 %v3092, %v3097
      %v3099 = vmul.f32 %v3098, 1.442695
      %v3100 = vpow.pop %v3099
      %v3101 = vsel %vm1563, %v3100, 0.0
      %3102 = vadd.xlane.f32.xlu0 %v3101
      %v3103 = vpop.xlane.xlu0 %3102
      %v3104 = vrcp.pop %v3103
      %v3105 = vmul.f32 %v3100, %v3104
      %v3107 = vsel %vm1563, %v3105, 0
      %3109 = vmatprep.subr.mxu0 0.0
      %3110 = vmatpush1.msra.mxu0 %v3015
      %3111 = vmatprep.subr.mxu0 0.0
      %3112 = vmatpush1.msra.mxu0 0.0
      %3113 = vmatprep.subr.mxu0 0.0
      %3114 = vmatpush1.msra.mxu0 0.0
      %3115 = vmatprep.subr.mxu0 0.0
      %3116 = vmatpush1.msra.mxu0 0.0
      %3117 = vmatprep.subr.mxu0 0.0
      %3118 = vmatpush1.msra.mxu0 0.0
      %3119 = vmatprep.subr.mxu0 0.0
      %3120 = vmatpush1.msra.mxu0 0.0
      %3121 = vmatprep.subr.mxu0 0.0
      %3122 = vmatpush1.msra.mxu0 0.0
      %3123 = vmatprep.subr.mxu0 0.0
      %3124 = vmatpush1.msra.mxu0 0.0
      %3125 = vmatprep.subr.mxu0 0.0
      %3126 = vmatpush1.msra.mxu0 0.0
      %3127 = vmatprep.subr.mxu0 0.0
      %3128 = vmatpush1.msra.mxu0 0.0
      %3129 = vmatprep.subr.mxu0 0.0
      %3130 = vmatpush1.msra.mxu0 0.0
      %3131 = vmatprep.subr.mxu0 0.0
      %3132 = vmatpush1.msra.mxu0 0.0
      %3133 = vmatprep.subr.mxu0 0.0
      %3134 = vmatpush1.msra.mxu0 0.0
      %3135 = vmatprep.subr.mxu0 0.0
      %3136 = vmatpush1.msra.mxu0 0.0
      %3137 = vmatprep.subr.mxu0 0.0
      %3138 = vmatpush1.msra.mxu0 0.0
      %3139 = vmatprep.subr.mxu0 0.0
      %3140 = vmatpush1.msra.mxu0 0.0
      %3141 = vmatprep.subr.mxu0 0.0
      %3142 = vmatpush1.msra.mxu0 0.0
      %3143 = vmatprep.subr.mxu0 0.0
      %3144 = vmatpush1.msra.mxu0 0.0
      %3145 = vmatprep.subr.mxu0 0.0
      %3146 = vmatpush1.msra.mxu0 0.0
      %3147 = vmatprep.subr.mxu0 0.0
      %3148 = vmatpush1.msra.mxu0 0.0
      %3149 = vmatprep.subr.mxu0 0.0
      %3150 = vmatpush1.msra.mxu0 0.0
      %3151 = vmatprep.subr.mxu0 0.0
      %3152 = vmatpush1.msra.mxu0 0.0
      %3153 = vmatprep.subr.mxu0 0.0
      %3154 = vmatpush1.msra.mxu0 0.0
      %3155 = vmatprep.subr.mxu0 0.0
      %3156 = vmatpush1.msra.mxu0 0.0
      %3157 = vmatprep.subr.mxu0 0.0
      %3158 = vmatpush1.msra.mxu0 0.0
      %3159 = vmatprep.subr.mxu0 0.0
      %3160 = vmatpush1.msra.mxu0 0.0
      %3161 = vmatprep.subr.mxu0 0.0
      %3162 = vmatpush1.msra.mxu0 0.0
      %3163 = vmatprep.subr.mxu0 0.0
      %3164 = vmatpush1.msra.mxu0 0.0
      %3165 = vmatprep.subr.mxu0 0.0
      %3166 = vmatpush1.msra.mxu0 0.0
      %3167 = vmatprep.subr.mxu0 0.0
      %3168 = vmatpush1.msra.mxu0 0.0
      %3169 = vmatprep.subr.mxu0 0.0
      %3170 = vmatpush1.msra.mxu0 0.0
      %3171 = vmatprep.subr.mxu0 0.0
      %3172 = vmatpush1.msra.mxu0 0.0
      %3173 = vmatprep.mubr.f32.mxu0 0.0
      %3174 = vmatmul.mubr.f32.gmra.mrb[0].mxu0 %v3107
      %v3175 = vpop.f32.mrb[0].mxu0
      %v3176 = vadd.f32 0.0, %v3175
      %v3177 = vpop.f32.mrb[0].mxu0
      %3178 = vdwg.mxu0
      %s3179 = scalar_lea.vmem %s1238, 24
      %v3180 = vld [vmem:[%s3179] sm:$0xff]
      %v3182 = vsel %vm1563, %v3176, 0
      %3184 = vmatprep.subr.mxu0 0.0
      %3185 = vmatpush1.msra.mxu0 %v3180
      %3186 = vmatprep.subr.mxu0 0.0
      %3187 = vmatpush1.msra.mxu0 0.0
      %3188 = vmatprep.subr.mxu0 0.0
      %3189 = vmatpush1.msra.mxu0 0.0
      %3190 = vmatprep.subr.mxu0 0.0
      %3191 = vmatpush1.msra.mxu0 0.0
      %3192 = vmatprep.subr.mxu0 0.0
      %3193 = vmatpush1.msra.mxu0 0.0
      %3194 = vmatprep.subr.mxu0 0.0
      %3195 = vmatpush1.msra.mxu0 0.0
      %3196 = vmatprep.subr.mxu0 0.0
      %3197 = vmatpush1.msra.mxu0 0.0
      %3198 = vmatprep.subr.mxu0 0.0
      %3199 = vmatpush1.msra.mxu0 0.0
      %3200 = vmatprep.subr.mxu0 0.0
      %3201 = vmatpush1.msra.mxu0 0.0
      %3202 = vmatprep.subr.mxu0 0.0
      %3203 = vmatpush1.msra.mxu0 0.0
      %3204 = vmatprep.subr.mxu0 0.0
      %3205 = vmatpush1.msra.mxu0 0.0
      %3206 = vmatprep.subr.mxu0 0.0
      %3207 = vmatpush1.msra.mxu0 0.0
      %3208 = vmatprep.subr.mxu0 0.0
      %3209 = vmatpush1.msra.mxu0 0.0
      %3210 = vmatprep.subr.mxu0 0.0
      %3211 = vmatpush1.msra.mxu0 0.0
      %3212 = vmatprep.subr.mxu0 0.0
      %3213 = vmatpush1.msra.mxu0 0.0
      %3214 = vmatprep.subr.mxu0 0.0
      %3215 = vmatpush1.msra.mxu0 0.0
      %3216 = vmatprep.subr.mxu0 0.0
      %3217 = vmatpush1.msra.mxu0 0.0
      %3218 = vmatprep.subr.mxu0 0.0
      %3219 = vmatpush1.msra.mxu0 0.0
      %3220 = vmatprep.subr.mxu0 0.0
      %3221 = vmatpush1.msra.mxu0 0.0
      %3222 = vmatprep.subr.mxu0 0.0
      %3223 = vmatpush1.msra.mxu0 0.0
      %3224 = vmatprep.subr.mxu0 0.0
      %3225 = vmatpush1.msra.mxu0 0.0
      %3226 = vmatprep.subr.mxu0 0.0
      %3227 = vmatpush1.msra.mxu0 0.0
      %3228 = vmatprep.subr.mxu0 0.0
      %3229 = vmatpush1.msra.mxu0 0.0
      %3230 = vmatprep.subr.mxu0 0.0
      %3231 = vmatpush1.msra.mxu0 0.0
      %3232 = vmatprep.subr.mxu0 0.0
      %3233 = vmatpush1.msra.mxu0 0.0
      %3234 = vmatprep.subr.mxu0 0.0
      %3235 = vmatpush1.msra.mxu0 0.0
      %3236 = vmatprep.subr.mxu0 0.0
      %3237 = vmatpush1.msra.mxu0 0.0
      %3238 = vmatprep.subr.mxu0 0.0
      %3239 = vmatpush1.msra.mxu0 0.0
      %3240 = vmatprep.subr.mxu0 0.0
      %3241 = vmatpush1.msra.mxu0 0.0
      %3242 = vmatprep.subr.mxu0 0.0
      %3243 = vmatpush1.msra.mxu0 0.0
      %3244 = vmatprep.subr.mxu0 0.0
      %3245 = vmatpush1.msra.mxu0 0.0
      %3246 = vmatprep.subr.mxu0 0.0
      %3247 = vmatpush1.msra.mxu0 0.0
      %3248 = vmatprep.mubr.f32.mxu0 0.0
      %3249 = vmatmul.mubr.f32.gmra.mrb[0].mxu0 %v3182
      %v3250 = vpop.f32.mrb[0].mxu0
      %v3251 = vadd.f32 0.0, %v3250
      %v3252 = vpop.f32.mrb[0].mxu0
      %3253 = vdwg.mxu0
      %v3254 = vadd.f32 %v2768, %v3251
      %v3255 = vld [vmem:[%s1241] sm:$0x1]
      %v3257 = vlaneseq
      %v3258 = vshrl.u32 %v3257, 7
      %v3259 = vsub.s32 0, %v3258
      %v3260 = vrot.slane %v3255, %v3259
      %v3262 = vadd.f32 %v3254, %v3260
      %v3263 = vld [vmem:[%s1245] sm:$0x3]
      %v3264 = vadd.f32 %v3262, %v1312
      %v3265 = vsel %vm1326, %v3264, 0.0
      %3266 = vadd.xlane.f32.xlu0 %v3265
      %v3267 = vpop.xlane.xlu0 %3266
      %v3268 = vrcp.pop 32.0
      %v3269 = vmul.f32 %v3267, %v3268
      %v3270 = vsub.f32 %v3264, %v3269
      %v3271 = vmul.f32 %v3270, %v3270
      %v3272 = vsel %vm1326, %v3271, 0.0
      %3273 = vadd.xlane.f32.xlu0 %v3272
      %v3274 = vpop.xlane.xlu0 %3273
      %v3275 = vmul.f32 %v3274, %v3268
      %v3276 = vadd.f32 %v3275, 1e-05
      %v3277 = vrsqrt.pop %v3276
      %v3278 = vmul.f32 %v3270, %v3277
      %v3279 = vlaneseq
      %v3280 = vshrl.u32 %v3279, 7
      %v3281 = vsub.s32 0, %v3280
      %v3282 = vrot.slane %v3263, %v3281
      %v3283 = vmul.f32 %v3278, %v3282
      %v3284 = vlaneseq
      %v3285 = vshrl.u32 %v3284, 7
      %v3286 = vsub.s32 1, %v3285
      %v3287 = vrot.slane %v3263, %v3286
      %v3288 = vadd.f32 %v3283, %v3287
      %v3289 = vld [vmem:[%s1250] sm:$0xff]
      %v3290 = vld [vmem:[%s1250 + $0x8] sm:$0xff]
      %v3291 = vld [vmem:[%s1250 + $0x10] sm:$0xff]
      %v3292 = vld [vmem:[%s1250 + $0x18] sm:$0xff]
      %v3293 = vld [vmem:[%s1264] sm:$0x1]
      %v3295 = vlaneseq
      %v3296 = vshrl.u32 %v3295, 7
      %v3297 = vsub.s32 0, %v3296
      %v3298 = vrot.slane %v3293, %v3297
      %v3301 = vsel %vm1326, %v3288, 0
      %3303 = vmatprep.subr.mxu0 0.0
      %3304 = vmatpush1.msra.mxu0 %v3289
      %3305 = vmatprep.subr.mxu0 0.0
      %3306 = vmatpush1.msra.mxu0 %v3290
      %3307 = vmatprep.subr.mxu0 0.0
      %3308 = vmatpush1.msra.mxu0 %v3291
      %3309 = vmatprep.subr.mxu0 0.0
      %3310 = vmatpush1.msra.mxu0 %v3292
      %3311 = vmatprep.subr.mxu0 0.0
      %3312 = vmatpush1.msra.mxu0 0.0
      %3313 = vmatprep.subr.mxu0 0.0
      %3314 = vmatpush1.msra.mxu0 0.0
      %3315 = vmatprep.subr.mxu0 0.0
      %3316 = vmatpush1.msra.mxu0 0.0
      %3317 = vmatprep.subr.mxu0 0.0
      %3318 = vmatpush1.msra.mxu0 0.0
      %3319 = vmatprep.subr.mxu0 0.0
      %3320 = vmatpush1.msra.mxu0 0.0
      %3321 = vmatprep.subr.mxu0 0.0
      %3322 = vmatpush1.msra.mxu0 0.0
      %3323 = vmatprep.subr.mxu0 0.0
      %3324 = vmatpush1.msra.mxu0 0.0
      %3325 = vmatprep.subr.mxu0 0.0
      %3326 = vmatpush1.msra.mxu0 0.0
      %3327 = vmatprep.subr.mxu0 0.0
      %3328 = vmatpush1.msra.mxu0 0.0
      %3329 = vmatprep.subr.mxu0 0.0
      %3330 = vmatpush1.msra.mxu0 0.0
      %3331 = vmatprep.subr.mxu0 0.0
      %3332 = vmatpush1.msra.mxu0 0.0
      %3333 = vmatprep.subr.mxu0 0.0
      %3334 = vmatpush1.msra.mxu0 0.0
      %3335 = vmatprep.subr.mxu0 0.0
      %3336 = vmatpush1.msra.mxu0 0.0
      %3337 = vmatprep.subr.mxu0 0.0
      %3338 = vmatpush1.msra.mxu0 0.0
      %3339 = vmatprep.subr.mxu0 0.0
      %3340 = vmatpush1.msra.mxu0 0.0
      %3341 = vmatprep.subr.mxu0 0.0
      %3342 = vmatpush1.msra.mxu0 0.0
      %3343 = vmatprep.subr.mxu0 0.0
      %3344 = vmatpush1.msra.mxu0 0.0
      %3345 = vmatprep.subr.mxu0 0.0
      %3346 = vmatpush1.msra.mxu0 0.0
      %3347 = vmatprep.subr.mxu0 0.0
      %3348 = vmatpush1.msra.mxu0 0.0
      %3349 = vmatprep.subr.mxu0 0.0
      %3350 = vmatpush1.msra.mxu0 0.0
      %3351 = vmatprep.subr.mxu0 0.0
      %3352 = vmatpush1.msra.mxu0 0.0
      %3353 = vmatprep.subr.mxu0 0.0
      %3354 = vmatpush1.msra.mxu0 0.0
      %3355 = vmatprep.subr.mxu0 0.0
      %3356 = vmatpush1.msra.mxu0 0.0
      %3357 = vmatprep.subr.mxu0 0.0
      %3358 = vmatpush1.msra.mxu0 0.0
      %3359 = vmatprep.subr.mxu0 0.0
      %3360 = vmatpush1.msra.mxu0 0.0
      %3361 = vmatprep.subr.mxu0 0.0
      %3362 = vmatpush1.msra.mxu0 0.0
      %3363 = vmatprep.subr.mxu0 0.0
      %3364 = vmatpush1.msra.mxu0 0.0
      %3365 = vmatprep.subr.mxu0 0.0
      %3366 = vmatpush1.msra.mxu0 0.0
      %3367 = vmatprep.mubr.f32.mxu0 0.0
      %3368 = vmatmul.mubr.f32.gmra.mrb[0].mxu0 %v3301
      %v3369 = vpop.f32.mrb[0].mxu0
      %v3370 = vadd.f32 %v3298, %v3369
      %v3371 = vpop.f32.mrb[0].mxu0
      %3372 = vdwg.mxu0
      %v3373 = vld [vmem:[%s1255] sm:$0xff]
      %v3374 = vld [vmem:[%s1255 + $0x8] sm:$0xff]
      %v3375 = vld [vmem:[%s1255 + $0x10] sm:$0xff]
      %v3376 = vld [vmem:[%s1255 + $0x18] sm:$0xff]
      %v3377 = vld [vmem:[%s1268] sm:$0x1]
      %v3379 = vlaneseq
      %v3380 = vshrl.u32 %v3379, 7
      %v3381 = vsub.s32 0, %v3380
      %v3382 = vrot.slane %v3377, %v3381
      %v3385 = vsel %vm1326, %v1313, 0
      %v3388 = vsel %vm1326, %v1314, 0
      %3390 = vmatprep.subr.mxu0 0.0
      %3391 = vmatpush1.msra.mxu0 %v3373
      %3392 = vmatprep.subr.mxu0 0.0
      %3393 = vmatpush1.msra.mxu0 %v3374
      %3394 = vmatprep.subr.mxu0 0.0
      %3395 = vmatpush1.msra.mxu0 %v3375
      %3396 = vmatprep.subr.mxu0 0.0
      %3397 = vmatpush1.msra.mxu0 %v3376
      %3398 = vmatprep.subr.mxu0 0.0
      %3399 = vmatpush1.msra.mxu0 0.0
      %3400 = vmatprep.subr.mxu0 0.0
      %3401 = vmatpush1.msra.mxu0 0.0
      %3402 = vmatprep.subr.mxu0 0.0
      %3403 = vmatpush1.msra.mxu0 0.0
      %3404 = vmatprep.subr.mxu0 0.0
      %3405 = vmatpush1.msra.mxu0 0.0
      %3406 = vmatprep.subr.mxu0 0.0
      %3407 = vmatpush1.msra.mxu0 0.0
      %3408 = vmatprep.subr.mxu0 0.0
      %3409 = vmatpush1.msra.mxu0 0.0
      %3410 = vmatprep.subr.mxu0 0.0
      %3411 = vmatpush1.msra.mxu0 0.0
      %3412 = vmatprep.subr.mxu0 0.0
      %3413 = vmatpush1.msra.mxu0 0.0
      %3414 = vmatprep.subr.mxu0 0.0
      %3415 = vmatpush1.msra.mxu0 0.0
      %3416 = vmatprep.subr.mxu0 0.0
      %3417 = vmatpush1.msra.mxu0 0.0
      %3418 = vmatprep.subr.mxu0 0.0
      %3419 = vmatpush1.msra.mxu0 0.0
      %3420 = vmatprep.subr.mxu0 0.0
      %3421 = vmatpush1.msra.mxu0 0.0
      %3422 = vmatprep.subr.mxu0 0.0
      %3423 = vmatpush1.msra.mxu0 0.0
      %3424 = vmatprep.subr.mxu0 0.0
      %3425 = vmatpush1.msra.mxu0 0.0
      %3426 = vmatprep.subr.mxu0 0.0
      %3427 = vmatpush1.msra.mxu0 0.0
      %3428 = vmatprep.subr.mxu0 0.0
      %3429 = vmatpush1.msra.mxu0 0.0
      %3430 = vmatprep.subr.mxu0 0.0
      %3431 = vmatpush1.msra.mxu0 0.0
      %3432 = vmatprep.subr.mxu0 0.0
      %3433 = vmatpush1.msra.mxu0 0.0
      %3434 = vmatprep.subr.mxu0 0.0
      %3435 = vmatpush1.msra.mxu0 0.0
      %3436 = vmatprep.subr.mxu0 0.0
      %3437 = vmatpush1.msra.mxu0 0.0
      %3438 = vmatprep.subr.mxu0 0.0
      %3439 = vmatpush1.msra.mxu0 0.0
      %3440 = vmatprep.subr.mxu0 0.0
      %3441 = vmatpush1.msra.mxu0 0.0
      %3442 = vmatprep.subr.mxu0 0.0
      %3443 = vmatpush1.msra.mxu0 0.0
      %3444 = vmatprep.subr.mxu0 0.0
      %3445 = vmatpush1.msra.mxu0 0.0
      %3446 = vmatprep.subr.mxu0 0.0
      %3447 = vmatpush1.msra.mxu0 0.0
      %3448 = vmatprep.subr.mxu0 0.0
      %3449 = vmatpush1.msra.mxu0 0.0
      %3450 = vmatprep.subr.mxu0 0.0
      %3451 = vmatpush1.msra.mxu0 0.0
      %3452 = vmatprep.subr.mxu0 0.0
      %3453 = vmatpush1.msra.mxu0 0.0
      %3454 = vmatprep.mubr.f32.mxu0 0.0
      %3455 = vmatmul.mubr.f32.gmra.mrb[0].mxu0 %v3385
      %v3456 = vpop.f32.mrb[0].mxu0
      %v3457 = vadd.f32 %v3382, %v3456
      %v3458 = vpop.f32.mrb[0].mxu0
      %3459 = vmatprep.mubr.f32.mxu0 0.0
      %3460 = vmatmul.mubr.f32.gmra.mrb[0].mxu0 %v3388
      %v3461 = vpop.f32.mrb[0].mxu0
      %v3462 = vadd.f32 %v3382, %v3461
      %v3463 = vpop.f32.mrb[0].mxu0
      %3464 = vdwg.mxu0
      %v3465 = vld [vmem:[%s1260] sm:$0xff]
      %v3466 = vld [vmem:[%s1260 + $0x8] sm:$0xff]
      %v3467 = vld [vmem:[%s1260 + $0x10] sm:$0xff]
      %v3468 = vld [vmem:[%s1260 + $0x18] sm:$0xff]
      %v3469 = vld [vmem:[%s1272] sm:$0x1]
      %v3471 = vlaneseq
      %v3472 = vshrl.u32 %v3471, 7
      %v3473 = vsub.s32 0, %v3472
      %v3474 = vrot.slane %v3469, %v3473
      %3476 = vmatprep.subr.mxu0 0.0
      %3477 = vmatpush1.msra.mxu0 %v3465
      %3478 = vmatprep.subr.mxu0 0.0
      %3479 = vmatpush1.msra.mxu0 %v3466
      %3480 = vmatprep.subr.mxu0 0.0
      %3481 = vmatpush1.msra.mxu0 %v3467
      %3482 = vmatprep.subr.mxu0 0.0
      %3483 = vmatpush1.msra.mxu0 %v3468
      %3484 = vmatprep.subr.mxu0 0.0
      %3485 = vmatpush1.msra.mxu0 0.0
      %3486 = vmatprep.subr.mxu0 0.0
      %3487 = vmatpush1.msra.mxu0 0.0
      %3488 = vmatprep.subr.mxu0 0.0
      %3489 = vmatpush1.msra.mxu0 0.0
      %3490 = vmatprep.subr.mxu0 0.0
      %3491 = vmatpush1.msra.mxu0 0.0
      %3492 = vmatprep.subr.mxu0 0.0
      %3493 = vmatpush1.msra.mxu0 0.0
      %3494 = vmatprep.subr.mxu0 0.0
      %3495 = vmatpush1.msra.mxu0 0.0
      %3496 = vmatprep.subr.mxu0 0.0
      %3497 = vmatpush1.msra.mxu0 0.0
      %3498 = vmatprep.subr.mxu0 0.0
      %3499 = vmatpush1.msra.mxu0 0.0
      %3500 = vmatprep.subr.mxu0 0.0
      %3501 = vmatpush1.msra.mxu0 0.0
      %3502 = vmatprep.subr.mxu0 0.0
      %3503 = vmatpush1.msra.mxu0 0.0
      %3504 = vmatprep.subr.mxu0 0.0
      %3505 = vmatpush1.msra.mxu0 0.0
      %3506 = vmatprep.subr.mxu0 0.0
      %3507 = vmatpush1.msra.mxu0 0.0
      %3508 = vmatprep.subr.mxu0 0.0
      %3509 = vmatpush1.msra.mxu0 0.0
      %3510 = vmatprep.subr.mxu0 0.0
      %3511 = vmatpush1.msra.mxu0 0.0
      %3512 = vmatprep.subr.mxu0 0.0
      %3513 = vmatpush1.msra.mxu0 0.0
      %3514 = vmatprep.subr.mxu0 0.0
      %3515 = vmatpush1.msra.mxu0 0.0
      %3516 = vmatprep.subr.mxu0 0.0
      %3517 = vmatpush1.msra.mxu0 0.0
      %3518 = vmatprep.subr.mxu0 0.0
      %3519 = vmatpush1.msra.mxu0 0.0
      %3520 = vmatprep.subr.mxu0 0.0
      %3521 = vmatpush1.msra.mxu0 0.0
      %3522 = vmatprep.subr.mxu0 0.0
      %3523 = vmatpush1.msra.mxu0 0.0
      %3524 = vmatprep.subr.mxu0 0.0
      %3525 = vmatpush1.msra.mxu0 0.0
      %3526 = vmatprep.subr.mxu0 0.0
      %3527 = vmatpush1.msra.mxu0 0.0
      %3528 = vmatprep.subr.mxu0 0.0
      %3529 = vmatpush1.msra.mxu0 0.0
      %3530 = vmatprep.subr.mxu0 0.0
      %3531 = vmatpush1.msra.mxu0 0.0
      %3532 = vmatprep.subr.mxu0 0.0
      %3533 = vmatpush1.msra.mxu0 0.0
      %3534 = vmatprep.subr.mxu0 0.0
      %3535 = vmatpush1.msra.mxu0 0.0
      %3536 = vmatprep.subr.mxu0 0.0
      %3537 = vmatpush1.msra.mxu0 0.0
      %3538 = vmatprep.subr.mxu0 0.0
      %3539 = vmatpush1.msra.mxu0 0.0
      %3540 = vmatprep.mubr.f32.mxu0 0.0
      %3541 = vmatmul.mubr.f32.gmra.mrb[0].mxu0 %v3385
      %v3542 = vpop.f32.mrb[0].mxu0
      %v3543 = vadd.f32 %v3474, %v3542
      %v3544 = vpop.f32.mrb[0].mxu0
      %3545 = vmatprep.mubr.f32.mxu0 0.0
      %3546 = vmatmul.mubr.f32.gmra.mrb[0].mxu0 %v3388
      %v3547 = vpop.f32.mrb[0].mxu0
      %v3548 = vadd.f32 %v3474, %v3547
      %v3549 = vpop.f32.mrb[0].mxu0
      %3550 = vdwg.mxu0
      %v3551 = vmul.f32 %v3370, 0.35355338
      %v3553 = vsel %vm1563, %v3551, 0
      %v3556 = vsel %vm1563, %v3457, 0
      %v3559 = vsel %vm1563, %v3462, 0
      %3561 = vmatprep.subr.mxu0 0.0
      %3562 = vmatpush1.xpose.msra.mxu0 %v3556
      %3563 = vmatprep.subr.mxu0 0.0
      %3564 = vmatpush1.xpose.msra.mxu0 %v3559
      %3565 = vmatprep.subr.mxu0 0.0
      %3566 = vmatpush1.xpose.msra.mxu0 0.0
      %3567 = vmatprep.subr.mxu0 0.0
      %3568 = vmatpush1.xpose.msra.mxu0 0.0
      %3569 = vmatprep.subr.mxu0 0.0
      %3570 = vmatpush1.xpose.msra.mxu0 0.0
      %3571 = vmatprep.subr.mxu0 0.0
      %3572 = vmatpush1.xpose.msra.mxu0 0.0
      %3573 = vmatprep.subr.mxu0 0.0
      %3574 = vmatpush1.xpose.msra.mxu0 0.0
      %3575 = vmatprep.subr.mxu0 0.0
      %3576 = vmatpush1.xpose.msra.mxu0 0.0
      %3577 = vmatprep.subr.mxu0 0.0
      %3578 = vmatpush1.xpose.msra.mxu0 0.0
      %3579 = vmatprep.subr.mxu0 0.0
      %3580 = vmatpush1.xpose.msra.mxu0 0.0
      %3581 = vmatprep.subr.mxu0 0.0
      %3582 = vmatpush1.xpose.msra.mxu0 0.0
      %3583 = vmatprep.subr.mxu0 0.0
      %3584 = vmatpush1.xpose.msra.mxu0 0.0
      %3585 = vmatprep.subr.mxu0 0.0
      %3586 = vmatpush1.xpose.msra.mxu0 0.0
      %3587 = vmatprep.subr.mxu0 0.0
      %3588 = vmatpush1.xpose.msra.mxu0 0.0
      %3589 = vmatprep.subr.mxu0 0.0
      %3590 = vmatpush1.xpose.msra.mxu0 0.0
      %3591 = vmatprep.subr.mxu0 0.0
      %3592 = vmatpush1.xpose.msra.mxu0 0.0
      %3593 = vmatprep.subr.mxu0 0.0
      %3594 = vmatpush1.xpose.msra.mxu0 0.0
      %3595 = vmatprep.subr.mxu0 0.0
      %3596 = vmatpush1.xpose.msra.mxu0 0.0
      %3597 = vmatprep.subr.mxu0 0.0
      %3598 = vmatpush1.xpose.msra.mxu0 0.0
      %3599 = vmatprep.subr.mxu0 0.0
      %3600 = vmatpush1.xpose.msra.mxu0 0.0
      %3601 = vmatprep.subr.mxu0 0.0
      %3602 = vmatpush1.xpose.msra.mxu0 0.0
      %3603 = vmatprep.subr.mxu0 0.0
      %3604 = vmatpush1.xpose.msra.mxu0 0.0
      %3605 = vmatprep.subr.mxu0 0.0
      %3606 = vmatpush1.xpose.msra.mxu0 0.0
      %3607 = vmatprep.subr.mxu0 0.0
      %3608 = vmatpush1.xpose.msra.mxu0 0.0
      %3609 = vmatprep.subr.mxu0 0.0
      %3610 = vmatpush1.xpose.msra.mxu0 0.0
      %3611 = vmatprep.subr.mxu0 0.0
      %3612 = vmatpush1.xpose.msra.mxu0 0.0
      %3613 = vmatprep.subr.mxu0 0.0
      %3614 = vmatpush1.xpose.msra.mxu0 0.0
      %3615 = vmatprep.subr.mxu0 0.0
      %3616 = vmatpush1.xpose.msra.mxu0 0.0
      %3617 = vmatprep.subr.mxu0 0.0
      %3618 = vmatpush1.xpose.msra.mxu0 0.0
      %3619 = vmatprep.subr.mxu0 0.0
      %3620 = vmatpush1.xpose.msra.mxu0 0.0
      %3621 = vmatprep.subr.mxu0 0.0
      %3622 = vmatpush1.xpose.msra.mxu0 0.0
      %3623 = vmatprep.subr.mxu0 0.0
      %3624 = vmatpush1.xpose.msra.mxu0 0.0
      %3625 = vmatprep.mubr.f32.mxu0 0.0
      %3626 = vmatmul.mubr.f32.gmra.mrb[0].mxu0 %v3553
      %v3627 = vpop.f32.mrb[0].mxu0
      %v3628 = vadd.f32 0.0, %v3627
      %v3629 = vpop.f32.mrb[0].mxu0
      %3630 = vdwg.mxu0
      %vm3631 = vcmask 130048
      %v3632 = vsel %vm3631, %v3628, -inf
      %3633 = vmax.xlane.f32.xlu0 %v3632
      %v3634 = vpop.xlane.xlu0 %3633
      %v3635 = vsub.f32 %v3628, %v3634
      %v3636 = vmul.f32 %v3635, 1.442695
      %v3637 = vpow.pop %v3636
      %v3638 = vsel %vm3631, %v3637, 0.0
      %3639 = vadd.xlane.f32.xlu0 %v3638
      %v3640 = vpop.xlane.xlu0 %3639
      %v3641 = vrcp.pop %v3640
      %v3642 = vmul.f32 %v3637, %v3641
      %v3644 = vsel %vm3631, %v3642, 0
      %3646 = vmatprep.subr.mxu0 0.0
      %3647 = vmatpush1.msra.mxu0 %v3543
      %3648 = vmatprep.subr.mxu0 0.0
      %3649 = vmatpush1.msra.mxu0 %v3548
      %3650 = vmatprep.subr.mxu0 0.0
      %3651 = vmatpush1.msra.mxu0 0.0
      %3652 = vmatprep.subr.mxu0 0.0
      %3653 = vmatpush1.msra.mxu0 0.0
      %3654 = vmatprep.subr.mxu0 0.0
      %3655 = vmatpush1.msra.mxu0 0.0
      %3656 = vmatprep.subr.mxu0 0.0
      %3657 = vmatpush1.msra.mxu0 0.0
      %3658 = vmatprep.subr.mxu0 0.0
      %3659 = vmatpush1.msra.mxu0 0.0
      %3660 = vmatprep.subr.mxu0 0.0
      %3661 = vmatpush1.msra.mxu0 0.0
      %3662 = vmatprep.subr.mxu0 0.0
      %3663 = vmatpush1.msra.mxu0 0.0
      %3664 = vmatprep.subr.mxu0 0.0
      %3665 = vmatpush1.msra.mxu0 0.0
      %3666 = vmatprep.subr.mxu0 0.0
      %3667 = vmatpush1.msra.mxu0 0.0
      %3668 = vmatprep.subr.mxu0 0.0
      %3669 = vmatpush1.msra.mxu0 0.0
      %3670 = vmatprep.subr.mxu0 0.0
      %3671 = vmatpush1.msra.mxu0 0.0
      %3672 = vmatprep.subr.mxu0 0.0
      %3673 = vmatpush1.msra.mxu0 0.0
      %3674 = vmatprep.subr.mxu0 0.0
      %3675 = vmatpush1.msra.mxu0 0.0
      %3676 = vmatprep.subr.mxu0 0.0
      %3677 = vmatpush1.msra.mxu0 0.0
      %3678 = vmatprep.subr.mxu0 0.0
      %3679 = vmatpush1.msra.mxu0 0.0
      %3680 = vmatprep.subr.mxu0 0.0
      %3681 = vmatpush1.msra.mxu0 0.0
      %3682 = vmatprep.subr.mxu0 0.0
      %3683 = vmatpush1.msra.mxu0 0.0
      %3684 = vmatprep.subr.mxu0 0.0
      %3685 = vmatpush1.msra.mxu0 0.0
      %3686 = vmatprep.subr.mxu0 0.0
      %3687 = vmatpush1.msra.mxu0 0.0
      %3688 = vmatprep.subr.mxu0 0.0
      %3689 = vmatpush1.msra.mxu0 0.0
      %3690 = vmatprep.subr.mxu0 0.0
      %3691 = vmatpush1.msra.mxu0 0.0
      %3692 = vmatprep.subr.mxu0 0.0
      %3693 = vmatpush1.msra.mxu0 0.0
      %3694 = vmatprep.subr.mxu0 0.0
      %3695 = vmatpush1.msra.mxu0 0.0
      %3696 = vmatprep.subr.mxu0 0.0
      %3697 = vmatpush1.msra.mxu0 0.0
      %3698 = vmatprep.subr.mxu0 0.0
      %3699 = vmatpush1.msra.mxu0 0.0
      %3700 = vmatprep.subr.mxu0 0.0
      %3701 = vmatpush1.msra.mxu0 0.0
      %3702 = vmatprep.subr.mxu0 0.0
      %3703 = vmatpush1.msra.mxu0 0.0
      %3704 = vmatprep.subr.mxu0 0.0
      %3705 = vmatpush1.msra.mxu0 0.0
      %3706 = vmatprep.subr.mxu0 0.0
      %3707 = vmatpush1.msra.mxu0 0.0
      %3708 = vmatprep.subr.mxu0 0.0
      %3709 = vmatpush1.msra.mxu0 0.0
      %3710 = vmatprep.mubr.f32.mxu0 0.0
      %3711 = vmatmul.mubr.f32.gmra.mrb[0].mxu0 %v3644
      %v3712 = vpop.f32.mrb[0].mxu0
      %v3713 = vadd.f32 0.0, %v3712
      %v3714 = vpop.f32.mrb[0].mxu0
      %3715 = vdwg.mxu0
      %v3716 = vld [vmem:[%s1277] sm:$0xff]
      %s3717 = scalar_lea.vmem %s1250, 32
      %v3718 = vld [vmem:[%s3717] sm:$0xff]
      %v3719 = vld [vmem:[%s3717 + $0x8] sm:$0xff]
      %v3720 = vld [vmem:[%s3717 + $0x10] sm:$0xff]
      %v3721 = vld [vmem:[%s3717 + $0x18] sm:$0xff]
      %s3722 = scalar_lea.vmem %s1264, 1
      %v3723 = vld [vmem:[%s3722] sm:$0x1]
      %v3725 = vlaneseq
      %v3726 = vshrl.u32 %v3725, 7
      %v3727 = vsub.s32 0, %v3726
      %v3728 = vrot.slane %v3723, %v3727
      %3730 = vmatprep.subr.mxu0 0.0
      %3731 = vmatpush1.msra.mxu0 %v3718
      %3732 = vmatprep.subr.mxu0 0.0
      %3733 = vmatpush1.msra.mxu0 %v3719
      %3734 = vmatprep.subr.mxu0 0.0
      %3735 = vmatpush1.msra.mxu0 %v3720
      %3736 = vmatprep.subr.mxu0 0.0
      %3737 = vmatpush1.msra.mxu0 %v3721
      %3738 = vmatprep.subr.mxu0 0.0
      %3739 = vmatpush1.msra.mxu0 0.0
      %3740 = vmatprep.subr.mxu0 0.0
      %3741 = vmatpush1.msra.mxu0 0.0
      %3742 = vmatprep.subr.mxu0 0.0
      %3743 = vmatpush1.msra.mxu0 0.0
      %3744 = vmatprep.subr.mxu0 0.0
      %3745 = vmatpush1.msra.mxu0 0.0
      %3746 = vmatprep.subr.mxu0 0.0
      %3747 = vmatpush1.msra.mxu0 0.0
      %3748 = vmatprep.subr.mxu0 0.0
      %3749 = vmatpush1.msra.mxu0 0.0
      %3750 = vmatprep.subr.mxu0 0.0
      %3751 = vmatpush1.msra.mxu0 0.0
      %3752 = vmatprep.subr.mxu0 0.0
      %3753 = vmatpush1.msra.mxu0 0.0
      %3754 = vmatprep.subr.mxu0 0.0
      %3755 = vmatpush1.msra.mxu0 0.0
      %3756 = vmatprep.subr.mxu0 0.0
      %3757 = vmatpush1.msra.mxu0 0.0
      %3758 = vmatprep.subr.mxu0 0.0
      %3759 = vmatpush1.msra.mxu0 0.0
      %3760 = vmatprep.subr.mxu0 0.0
      %3761 = vmatpush1.msra.mxu0 0.0
      %3762 = vmatprep.subr.mxu0 0.0
      %3763 = vmatpush1.msra.mxu0 0.0
      %3764 = vmatprep.subr.mxu0 0.0
      %3765 = vmatpush1.msra.mxu0 0.0
      %3766 = vmatprep.subr.mxu0 0.0
      %3767 = vmatpush1.msra.mxu0 0.0
      %3768 = vmatprep.subr.mxu0 0.0
      %3769 = vmatpush1.msra.mxu0 0.0
      %3770 = vmatprep.subr.mxu0 0.0
      %3771 = vmatpush1.msra.mxu0 0.0
      %3772 = vmatprep.subr.mxu0 0.0
      %3773 = vmatpush1.msra.mxu0 0.0
      %3774 = vmatprep.subr.mxu0 0.0
      %3775 = vmatpush1.msra.mxu0 0.0
      %3776 = vmatprep.subr.mxu0 0.0
      %3777 = vmatpush1.msra.mxu0 0.0
      %3778 = vmatprep.subr.mxu0 0.0
      %3779 = vmatpush1.msra.mxu0 0.0
      %3780 = vmatprep.subr.mxu0 0.0
      %3781 = vmatpush1.msra.mxu0 0.0
      %3782 = vmatprep.subr.mxu0 0.0
      %3783 = vmatpush1.msra.mxu0 0.0
      %3784 = vmatprep.subr.mxu0 0.0
      %3785 = vmatpush1.msra.mxu0 0.0
      %3786 = vmatprep.subr.mxu0 0.0
      %3787 = vmatpush1.msra.mxu0 0.0
      %3788 = vmatprep.subr.mxu0 0.0
      %3789 = vmatpush1.msra.mxu0 0.0
      %3790 = vmatprep.subr.mxu0 0.0
      %3791 = vmatpush1.msra.mxu0 0.0
      %3792 = vmatprep.subr.mxu0 0.0
      %3793 = vmatpush1.msra.mxu0 0.0
      %3794 = vmatprep.mubr.f32.mxu0 0.0
      %3795 = vmatmul.mubr.f32.gmra.mrb[0].mxu0 %v3301
      %v3796 = vpop.f32.mrb[0].mxu0
      %v3797 = vadd.f32 %v3728, %v3796
      %v3798 = vpop.f32.mrb[0].mxu0
      %3799 = vdwg.mxu0
      %s3800 = scalar_lea.vmem %s1255, 32
      %v3801 = vld [vmem:[%s3800] sm:$0xff]
      %v3802 = vld [vmem:[%s3800 + $0x8] sm:$0xff]
      %v3803 = vld [vmem:[%s3800 + $0x10] sm:$0xff]
      %v3804 = vld [vmem:[%s3800 + $0x18] sm:$0xff]
      %s3805 = scalar_lea.vmem %s1268, 1
      %v3806 = vld [vmem:[%s3805] sm:$0x1]
      %v3808 = vlaneseq
      %v3809 = vshrl.u32 %v3808, 7
      %v3810 = vsub.s32 0, %v3809
      %v3811 = vrot.slane %v3806, %v3810
      %3813 = vmatprep.subr.mxu0 0.0
      %3814 = vmatpush1.msra.mxu0 %v3801
      %3815 = vmatprep.subr.mxu0 0.0
      %3816 = vmatpush1.msra.mxu0 %v3802
      %3817 = vmatprep.subr.mxu0 0.0
      %3818 = vmatpush1.msra.mxu0 %v3803
      %3819 = vmatprep.subr.mxu0 0.0
      %3820 = vmatpush1.msra.mxu0 %v3804
      %3821 = vmatprep.subr.mxu0 0.0
      %3822 = vmatpush1.msra.mxu0 0.0
      %3823 = vmatprep.subr.mxu0 0.0
      %3824 = vmatpush1.msra.mxu0 0.0
      %3825 = vmatprep.subr.mxu0 0.0
      %3826 = vmatpush1.msra.mxu0 0.0
      %3827 = vmatprep.subr.mxu0 0.0
      %3828 = vmatpush1.msra.mxu0 0.0
      %3829 = vmatprep.subr.mxu0 0.0
      %3830 = vmatpush1.msra.mxu0 0.0
      %3831 = vmatprep.subr.mxu0 0.0
      %3832 = vmatpush1.msra.mxu0 0.0
      %3833 = vmatprep.subr.mxu0 0.0
      %3834 = vmatpush1.msra.mxu0 0.0
      %3835 = vmatprep.subr.mxu0 0.0
      %3836 = vmatpush1.msra.mxu0 0.0
      %3837 = vmatprep.subr.mxu0 0.0
      %3838 = vmatpush1.msra.mxu0 0.0
      %3839 = vmatprep.subr.mxu0 0.0
      %3840 = vmatpush1.msra.mxu0 0.0
      %3841 = vmatprep.subr.mxu0 0.0
      %3842 = vmatpush1.msra.mxu0 0.0
      %3843 = vmatprep.subr.mxu0 0.0
      %3844 = vmatpush1.msra.mxu0 0.0
      %3845 = vmatprep.subr.mxu0 0.0
      %3846 = vmatpush1.msra.mxu0 0.0
      %3847 = vmatprep.subr.mxu0 0.0
      %3848 = vmatpush1.msra.mxu0 0.0
      %3849 = vmatprep.subr.mxu0 0.0
      %3850 = vmatpush1.msra.mxu0 0.0
      %3851 = vmatprep.subr.mxu0 0.0
      %3852 = vmatpush1.msra.mxu0 0.0
      %3853 = vmatprep.subr.mxu0 0.0
      %3854 = vmatpush1.msra.mxu0 0.0
      %3855 = vmatprep.subr.mxu0 0.0
      %3856 = vmatpush1.msra.mxu0 0.0
      %3857 = vmatprep.subr.mxu0 0.0
      %3858 = vmatpush1.msra.mxu0 0.0
      %3859 = vmatprep.subr.mxu0 0.0
      %3860 = vmatpush1.msra.mxu0 0.0
      %3861 = vmatprep.subr.mxu0 0.0
      %3862 = vmatpush1.msra.mxu0 0.0
      %3863 = vmatprep.subr.mxu0 0.0
      %3864 = vmatpush1.msra.mxu0 0.0
      %3865 = vmatprep.subr.mxu0 0.0
      %3866 = vmatpush1.msra.mxu0 0.0
      %3867 = vmatprep.subr.mxu0 0.0
      %3868 = vmatpush1.msra.mxu0 0.0
      %3869 = vmatprep.subr.mxu0 0.0
      %3870 = vmatpush1.msra.mxu0 0.0
      %3871 = vmatprep.subr.mxu0 0.0
      %3872 = vmatpush1.msra.mxu0 0.0
      %3873 = vmatprep.subr.mxu0 0.0
      %3874 = vmatpush1.msra.mxu0 0.0
      %3875 = vmatprep.subr.mxu0 0.0
      %3876 = vmatpush1.msra.mxu0 0.0
      %3877 = vmatprep.mubr.f32.mxu0 0.0
      %3878 = vmatmul.mubr.f32.gmra.mrb[0].mxu0 %v3385
      %v3879 = vpop.f32.mrb[0].mxu0
      %v3880 = vadd.f32 %v3811, %v3879
      %v3881 = vpop.f32.mrb[0].mxu0
      %3882 = vmatprep.mubr.f32.mxu0 0.0
      %3883 = vmatmul.mubr.f32.gmra.mrb[0].mxu0 %v3388
      %v3884 = vpop.f32.mrb[0].mxu0
      %v3885 = vadd.f32 %v3811, %v3884
      %v3886 = vpop.f32.mrb[0].mxu0
      %3887 = vdwg.mxu0
      %s3888 = scalar_lea.vmem %s1260, 32
      %v3889 = vld [vmem:[%s3888] sm:$0xff]
      %v3890 = vld [vmem:[%s3888 + $0x8] sm:$0xff]
      %v3891 = vld [vmem:[%s3888 + $0x10] sm:$0xff]
      %v3892 = vld [vmem:[%s3888 + $0x18] sm:$0xff]
      %s3893 = scalar_lea.vmem %s1272, 1
      %v3894 = vld [vmem:[%s3893] sm:$0x1]
      %v3896 = vlaneseq
      %v3897 = vshrl.u32 %v3896, 7
      %v3898 = vsub.s32 0, %v3897
      %v3899 = vrot.slane %v3894, %v3898
      %3901 = vmatprep.subr.mxu0 0.0
      %3902 = vmatpush1.msra.mxu0 %v3889
      %3903 = vmatprep.subr.mxu0 0.0
      %3904 = vmatpush1.msra.mxu0 %v3890
      %3905 = vmatprep.subr.mxu0 0.0
      %3906 = vmatpush1.msra.mxu0 %v3891
      %3907 = vmatprep.subr.mxu0 0.0
      %3908 = vmatpush1.msra.mxu0 %v3892
      %3909 = vmatprep.subr.mxu0 0.0
      %3910 = vmatpush1.msra.mxu0 0.0
      %3911 = vmatprep.subr.mxu0 0.0
      %3912 = vmatpush1.msra.mxu0 0.0
      %3913 = vmatprep.subr.mxu0 0.0
      %3914 = vmatpush1.msra.mxu0 0.0
      %3915 = vmatprep.subr.mxu0 0.0
      %3916 = vmatpush1.msra.mxu0 0.0
      %3917 = vmatprep.subr.mxu0 0.0
      %3918 = vmatpush1.msra.mxu0 0.0
      %3919 = vmatprep.subr.mxu0 0.0
      %3920 = vmatpush1.msra.mxu0 0.0
      %3921 = vmatprep.subr.mxu0 0.0
      %3922 = vmatpush1.msra.mxu0 0.0
      %3923 = vmatprep.subr.mxu0 0.0
      %3924 = vmatpush1.msra.mxu0 0.0
      %3925 = vmatprep.subr.mxu0 0.0
      %3926 = vmatpush1.msra.mxu0 0.0
      %3927 = vmatprep.subr.mxu0 0.0
      %3928 = vmatpush1.msra.mxu0 0.0
      %3929 = vmatprep.subr.mxu0 0.0
      %3930 = vmatpush1.msra.mxu0 0.0
      %3931 = vmatprep.subr.mxu0 0.0
      %3932 = vmatpush1.msra.mxu0 0.0
      %3933 = vmatprep.subr.mxu0 0.0
      %3934 = vmatpush1.msra.mxu0 0.0
      %3935 = vmatprep.subr.mxu0 0.0
      %3936 = vmatpush1.msra.mxu0 0.0
      %3937 = vmatprep.subr.mxu0 0.0
      %3938 = vmatpush1.msra.mxu0 0.0
      %3939 = vmatprep.subr.mxu0 0.0
      %3940 = vmatpush1.msra.mxu0 0.0
      %3941 = vmatprep.subr.mxu0 0.0
      %3942 = vmatpush1.msra.mxu0 0.0
      %3943 = vmatprep.subr.mxu0 0.0
      %3944 = vmatpush1.msra.mxu0 0.0
      %3945 = vmatprep.subr.mxu0 0.0
      %3946 = vmatpush1.msra.mxu0 0.0
      %3947 = vmatprep.subr.mxu0 0.0
      %3948 = vmatpush1.msra.mxu0 0.0
      %3949 = vmatprep.subr.mxu0 0.0
      %3950 = vmatpush1.msra.mxu0 0.0
      %3951 = vmatprep.subr.mxu0 0.0
      %3952 = vmatpush1.msra.mxu0 0.0
      %3953 = vmatprep.subr.mxu0 0.0
      %3954 = vmatpush1.msra.mxu0 0.0
      %3955 = vmatprep.subr.mxu0 0.0
      %3956 = vmatpush1.msra.mxu0 0.0
      %3957 = vmatprep.subr.mxu0 0.0
      %3958 = vmatpush1.msra.mxu0 0.0
      %3959 = vmatprep.subr.mxu0 0.0
      %3960 = vmatpush1.msra.mxu0 0.0
      %3961 = vmatprep.subr.mxu0 0.0
      %3962 = vmatpush1.msra.mxu0 0.0
      %3963 = vmatprep.subr.mxu0 0.0
      %3964 = vmatpush1.msra.mxu0 0.0
      %3965 = vmatprep.mubr.f32.mxu0 0.0
      %3966 = vmatmul.mubr.f32.gmra.mrb[0].mxu0 %v3385
      %v3967 = vpop.f32.mrb[0].mxu0
      %v3968 = vadd.f32 %v3899, %v3967
      %v3969 = vpop.f32.mrb[0].mxu0
      %3970 = vmatprep.mubr.f32.mxu0 0.0
      %3971 = vmatmul.mubr.f32.gmra.mrb[0].mxu0 %v3388
      %v3972 = vpop.f32.mrb[0].mxu0
      %v3973 = vadd.f32 %v3899, %v3972
      %v3974 = vpop.f32.mrb[0].mxu0
      %3975 = vdwg.mxu0
      %v3976 = vmul.f32 %v3797, 0.35355338
      %v3978 = vsel %vm1563, %v3976, 0
      %v3981 = vsel %vm1563, %v3880, 0
      %v3984 = vsel %vm1563, %v3885, 0
      %3986 = vmatprep.subr.mxu0 0.0
      %3987 = vmatpush1.xpose.msra.mxu0 %v3981
      %3988 = vmatprep.subr.mxu0 0.0
      %3989 = vmatpush1.xpose.msra.mxu0 %v3984
      %3990 = vmatprep.subr.mxu0 0.0
      %3991 = vmatpush1.xpose.msra.mxu0 0.0
      %3992 = vmatprep.subr.mxu0 0.0
      %3993 = vmatpush1.xpose.msra.mxu0 0.0
      %3994 = vmatprep.subr.mxu0 0.0
      %3995 = vmatpush1.xpose.msra.mxu0 0.0
      %3996 = vmatprep.subr.mxu0 0.0
      %3997 = vmatpush1.xpose.msra.mxu0 0.0
      %3998 = vmatprep.subr.mxu0 0.0
      %3999 = vmatpush1.xpose.msra.mxu0 0.0
      %4000 = vmatprep.subr.mxu0 0.0
      %4001 = vmatpush1.xpose.msra.mxu0 0.0
      %4002 = vmatprep.subr.mxu0 0.0
      %4003 = vmatpush1.xpose.msra.mxu0 0.0
      %4004 = vmatprep.subr.mxu0 0.0
      %4005 = vmatpush1.xpose.msra.mxu0 0.0
      %4006 = vmatprep.subr.mxu0 0.0
      %4007 = vmatpush1.xpose.msra.mxu0 0.0
      %4008 = vmatprep.subr.mxu0 0.0
      %4009 = vmatpush1.xpose.msra.mxu0 0.0
      %4010 = vmatprep.subr.mxu0 0.0
      %4011 = vmatpush1.xpose.msra.mxu0 0.0
      %4012 = vmatprep.subr.mxu0 0.0
      %4013 = vmatpush1.xpose.msra.mxu0 0.0
      %4014 = vmatprep.subr.mxu0 0.0
      %4015 = vmatpush1.xpose.msra.mxu0 0.0
      %4016 = vmatprep.subr.mxu0 0.0
      %4017 = vmatpush1.xpose.msra.mxu0 0.0
      %4018 = vmatprep.subr.mxu0 0.0
      %4019 = vmatpush1.xpose.msra.mxu0 0.0
      %4020 = vmatprep.subr.mxu0 0.0
      %4021 = vmatpush1.xpose.msra.mxu0 0.0
      %4022 = vmatprep.subr.mxu0 0.0
      %4023 = vmatpush1.xpose.msra.mxu0 0.0
      %4024 = vmatprep.subr.mxu0 0.0
      %4025 = vmatpush1.xpose.msra.mxu0 0.0
      %4026 = vmatprep.subr.mxu0 0.0
      %4027 = vmatpush1.xpose.msra.mxu0 0.0
      %4028 = vmatprep.subr.mxu0 0.0
      %4029 = vmatpush1.xpose.msra.mxu0 0.0
      %4030 = vmatprep.subr.mxu0 0.0
      %4031 = vmatpush1.xpose.msra.mxu0 0.0
      %4032 = vmatprep.subr.mxu0 0.0
      %4033 = vmatpush1.xpose.msra.mxu0 0.0
      %4034 = vmatprep.subr.mxu0 0.0
      %4035 = vmatpush1.xpose.msra.mxu0 0.0
      %4036 = vmatprep.subr.mxu0 0.0
      %4037 = vmatpush1.xpose.msra.mxu0 0.0
      %4038 = vmatprep.subr.mxu0 0.0
      %4039 = vmatpush1.xpose.msra.mxu0 0.0
      %4040 = vmatprep.subr.mxu0 0.0
      %4041 = vmatpush1.xpose.msra.mxu0 0.0
      %4042 = vmatprep.subr.mxu0 0.0
      %4043 = vmatpush1.xpose.msra.mxu0 0.0
      %4044 = vmatprep.subr.mxu0 0.0
      %4045 = vmatpush1.xpose.msra.mxu0 0.0
      %4046 = vmatprep.subr.mxu0 0.0
      %4047 = vmatpush1.xpose.msra.mxu0 0.0
      %4048 = vmatprep.subr.mxu0 0.0
      %4049 = vmatpush1.xpose.msra.mxu0 0.0
      %4050 = vmatprep.mubr.f32.mxu0 0.0
      %4051 = vmatmul.mubr.f32.gmra.mrb[0].mxu0 %v3978
      %v4052 = vpop.f32.mrb[0].mxu0
      %v4053 = vadd.f32 0.0, %v4052
      %v4054 = vpop.f32.mrb[0].mxu0
      %4055 = vdwg.mxu0
      %v4056 = vsel %vm3631, %v4053, -inf
      %4057 = vmax.xlane.f32.xlu0 %v4056
      %v4058 = vpop.xlane.xlu0 %4057
      %v4059 = vsub.f32 %v4053, %v4058
      %v4060 = vmul.f32 %v4059, 1.442695
      %v4061 = vpow.pop %v4060
      %v4062 = vsel %vm3631, %v4061, 0.0
      %4063 = vadd.xlane.f32.xlu0 %v4062
      %v4064 = vpop.xlane.xlu0 %4063
      %v4065 = vrcp.pop %v4064
      %v4066 = vmul.f32 %v4061, %v4065
      %v4068 = vsel %vm3631, %v4066, 0
      %4070 = vmatprep.subr.mxu0 0.0
      %4071 = vmatpush1.msra.mxu0 %v3968
      %4072 = vmatprep.subr.mxu0 0.0
      %4073 = vmatpush1.msra.mxu0 %v3973
      %4074 = vmatprep.subr.mxu0 0.0
      %4075 = vmatpush1.msra.mxu0 0.0
      %4076 = vmatprep.subr.mxu0 0.0
      %4077 = vmatpush1.msra.mxu0 0.0
      %4078 = vmatprep.subr.mxu0 0.0
      %4079 = vmatpush1.msra.mxu0 0.0
      %4080 = vmatprep.subr.mxu0 0.0
      %4081 = vmatpush1.msra.mxu0 0.0
      %4082 = vmatprep.subr.mxu0 0.0
      %4083 = vmatpush1.msra.mxu0 0.0
      %4084 = vmatprep.subr.mxu0 0.0
      %4085 = vmatpush1.msra.mxu0 0.0
      %4086 = vmatprep.subr.mxu0 0.0
      %4087 = vmatpush1.msra.mxu0 0.0
      %4088 = vmatprep.subr.mxu0 0.0
      %4089 = vmatpush1.msra.mxu0 0.0
      %4090 = vmatprep.subr.mxu0 0.0
      %4091 = vmatpush1.msra.mxu0 0.0
      %4092 = vmatprep.subr.mxu0 0.0
      %4093 = vmatpush1.msra.mxu0 0.0
      %4094 = vmatprep.subr.mxu0 0.0
      %4095 = vmatpush1.msra.mxu0 0.0
      %4096 = vmatprep.subr.mxu0 0.0
      %4097 = vmatpush1.msra.mxu0 0.0
      %4098 = vmatprep.subr.mxu0 0.0
      %4099 = vmatpush1.msra.mxu0 0.0
      %4100 = vmatprep.subr.mxu0 0.0
      %4101 = vmatpush1.msra.mxu0 0.0
      %4102 = vmatprep.subr.mxu0 0.0
      %4103 = vmatpush1.msra.mxu0 0.0
      %4104 = vmatprep.subr.mxu0 0.0
      %4105 = vmatpush1.msra.mxu0 0.0
      %4106 = vmatprep.subr.mxu0 0.0
      %4107 = vmatpush1.msra.mxu0 0.0
      %4108 = vmatprep.subr.mxu0 0.0
      %4109 = vmatpush1.msra.mxu0 0.0
      %4110 = vmatprep.subr.mxu0 0.0
      %4111 = vmatpush1.msra.mxu0 0.0
      %4112 = vmatprep.subr.mxu0 0.0
      %4113 = vmatpush1.msra.mxu0 0.0
      %4114 = vmatprep.subr.mxu0 0.0
      %4115 = vmatpush1.msra.mxu0 0.0
      %4116 = vmatprep.subr.mxu0 0.0
      %4117 = vmatpush1.msra.mxu0 0.0
      %4118 = vmatprep.subr.mxu0 0.0
      %4119 = vmatpush1.msra.mxu0 0.0
      %4120 = vmatprep.subr.mxu0 0.0
      %4121 = vmatpush1.msra.mxu0 0.0
      %4122 = vmatprep.subr.mxu0 0.0
      %4123 = vmatpush1.msra.mxu0 0.0
      %4124 = vmatprep.subr.mxu0 0.0
      %4125 = vmatpush1.msra.mxu0 0.0
      %4126 = vmatprep.subr.mxu0 0.0
      %4127 = vmatpush1.msra.mxu0 0.0
      %4128 = vmatprep.subr.mxu0 0.0
      %4129 = vmatpush1.msra.mxu0 0.0
      %4130 = vmatprep.subr.mxu0 0.0
      %4131 = vmatpush1.msra.mxu0 0.0
      %4132 = vmatprep.subr.mxu0 0.0
      %4133 = vmatpush1.msra.mxu0 0.0
      %4134 = vmatprep.mubr.f32.mxu0 0.0
      %4135 = vmatmul.mubr.f32.gmra.mrb[0].mxu0 %v4068
      %v4136 = vpop.f32.mrb[0].mxu0
      %v4137 = vadd.f32 0.0, %v4136
      %v4138 = vpop.f32.mrb[0].mxu0
      %4139 = vdwg.mxu0
      %s4140 = scalar_lea.vmem %s1277, 8
      %v4141 = vld [vmem:[%s4140] sm:$0xff]
      %v4143 = vsel %vm1563, %v4137, 0
      %4145 = vmatprep.subr.mxu0 0.0
      %4146 = vmatpush1.msra.mxu0 %v4141
      %4147 = vmatprep.subr.mxu0 0.0
      %4148 = vmatpush1.msra.mxu0 0.0
      %4149 = vmatprep.subr.mxu0 0.0
      %4150 = vmatpush1.msra.mxu0 0.0
      %4151 = vmatprep.subr.mxu0 0.0
      %4152 = vmatpush1.msra.mxu0 0.0
      %4153 = vmatprep.subr.mxu0 0.0
      %4154 = vmatpush1.msra.mxu0 0.0
      %4155 = vmatprep.subr.mxu0 0.0
      %4156 = vmatpush1.msra.mxu0 0.0
      %4157 = vmatprep.subr.mxu0 0.0
      %4158 = vmatpush1.msra.mxu0 0.0
      %4159 = vmatprep.subr.mxu0 0.0
      %4160 = vmatpush1.msra.mxu0 0.0
      %4161 = vmatprep.subr.mxu0 0.0
      %4162 = vmatpush1.msra.mxu0 0.0
      %4163 = vmatprep.subr.mxu0 0.0
      %4164 = vmatpush1.msra.mxu0 0.0
      %4165 = vmatprep.subr.mxu0 0.0
      %4166 = vmatpush1.msra.mxu0 0.0
      %4167 = vmatprep.subr.mxu0 0.0
      %4168 = vmatpush1.msra.mxu0 0.0
      %4169 = vmatprep.subr.mxu0 0.0
      %4170 = vmatpush1.msra.mxu0 0.0
      %4171 = vmatprep.subr.mxu0 0.0
      %4172 = vmatpush1.msra.mxu0 0.0
      %4173 = vmatprep.subr.mxu0 0.0
      %4174 = vmatpush1.msra.mxu0 0.0
      %4175 = vmatprep.subr.mxu0 0.0
      %4176 = vmatpush1.msra.mxu0 0.0
      %4177 = vmatprep.subr.mxu0 0.0
      %4178 = vmatpush1.msra.mxu0 0.0
      %4179 = vmatprep.subr.mxu0 0.0
      %4180 = vmatpush1.msra.mxu0 0.0
      %4181 = vmatprep.subr.mxu0 0.0
      %4182 = vmatpush1.msra.mxu0 0.0
      %4183 = vmatprep.subr.mxu0 0.0
      %4184 = vmatpush1.msra.mxu0 0.0
      %4185 = vmatprep.subr.mxu0 0.0
      %4186 = vmatpush1.msra.mxu0 0.0
      %4187 = vmatprep.subr.mxu0 0.0
      %4188 = vmatpush1.msra.mxu0 0.0
      %4189 = vmatprep.subr.mxu0 0.0
      %4190 = vmatpush1.msra.mxu0 0.0
      %4191 = vmatprep.subr.mxu0 0.0
      %4192 = vmatpush1.msra.mxu0 0.0
      %4193 = vmatprep.subr.mxu0 0.0
      %4194 = vmatpush1.msra.mxu0 0.0
      %4195 = vmatprep.subr.mxu0 0.0
      %4196 = vmatpush1.msra.mxu0 0.0
      %4197 = vmatprep.subr.mxu0 0.0
      %4198 = vmatpush1.msra.mxu0 0.0
      %4199 = vmatprep.subr.mxu0 0.0
      %4200 = vmatpush1.msra.mxu0 0.0
      %4201 = vmatprep.subr.mxu0 0.0
      %4202 = vmatpush1.msra.mxu0 0.0
      %4203 = vmatprep.subr.mxu0 0.0
      %4204 = vmatpush1.msra.mxu0 0.0
      %4205 = vmatprep.subr.mxu0 0.0
      %4206 = vmatpush1.msra.mxu0 0.0
      %4207 = vmatprep.subr.mxu0 0.0
      %4208 = vmatpush1.msra.mxu0 0.0
      %4209 = vmatprep.mubr.f32.mxu0 0.0
      %4210 = vmatmul.mubr.f32.gmra.mrb[0].mxu0 %v4143
      %v4211 = vpop.f32.mrb[0].mxu0
      %v4212 = vadd.f32 0.0, %v4211
      %v4213 = vpop.f32.mrb[0].mxu0
      %4214 = vdwg.mxu0
      %v4216 = vsel %vm1563, %v3713, 0
      %4218 = vmatprep.subr.mxu0 0.0
      %4219 = vmatpush1.msra.mxu0 %v3716
      %4220 = vmatprep.subr.mxu0 0.0
      %4221 = vmatpush1.msra.mxu0 0.0
      %4222 = vmatprep.subr.mxu0 0.0
      %4223 = vmatpush1.msra.mxu0 0.0
      %4224 = vmatprep.subr.mxu0 0.0
      %4225 = vmatpush1.msra.mxu0 0.0
      %4226 = vmatprep.subr.mxu0 0.0
      %4227 = vmatpush1.msra.mxu0 0.0
      %4228 = vmatprep.subr.mxu0 0.0
      %4229 = vmatpush1.msra.mxu0 0.0
      %4230 = vmatprep.subr.mxu0 0.0
      %4231 = vmatpush1.msra.mxu0 0.0
      %4232 = vmatprep.subr.mxu0 0.0
      %4233 = vmatpush1.msra.mxu0 0.0
      %4234 = vmatprep.subr.mxu0 0.0
      %4235 = vmatpush1.msra.mxu0 0.0
      %4236 = vmatprep.subr.mxu0 0.0
      %4237 = vmatpush1.msra.mxu0 0.0
      %4238 = vmatprep.subr.mxu0 0.0
      %4239 = vmatpush1.msra.mxu0 0.0
      %4240 = vmatprep.subr.mxu0 0.0
      %4241 = vmatpush1.msra.mxu0 0.0
      %4242 = vmatprep.subr.mxu0 0.0
      %4243 = vmatpush1.msra.mxu0 0.0
      %4244 = vmatprep.subr.mxu0 0.0
      %4245 = vmatpush1.msra.mxu0 0.0
      %4246 = vmatprep.subr.mxu0 0.0
      %4247 = vmatpush1.msra.mxu0 0.0
      %4248 = vmatprep.subr.mxu0 0.0
      %4249 = vmatpush1.msra.mxu0 0.0
      %4250 = vmatprep.subr.mxu0 0.0
      %4251 = vmatpush1.msra.mxu0 0.0
      %4252 = vmatprep.subr.mxu0 0.0
      %4253 = vmatpush1.msra.mxu0 0.0
      %4254 = vmatprep.subr.mxu0 0.0
      %4255 = vmatpush1.msra.mxu0 0.0
      %4256 = vmatprep.subr.mxu0 0.0
      %4257 = vmatpush1.msra.mxu0 0.0
      %4258 = vmatprep.subr.mxu0 0.0
      %4259 = vmatpush1.msra.mxu0 0.0
      %4260 = vmatprep.subr.mxu0 0.0
      %4261 = vmatpush1.msra.mxu0 0.0
      %4262 = vmatprep.subr.mxu0 0.0
      %4263 = vmatpush1.msra.mxu0 0.0
      %4264 = vmatprep.subr.mxu0 0.0
      %4265 = vmatpush1.msra.mxu0 0.0
      %4266 = vmatprep.subr.mxu0 0.0
      %4267 = vmatpush1.msra.mxu0 0.0
      %4268 = vmatprep.subr.mxu0 0.0
      %4269 = vmatpush1.msra.mxu0 0.0
      %4270 = vmatprep.subr.mxu0 0.0
      %4271 = vmatpush1.msra.mxu0 0.0
      %4272 = vmatprep.subr.mxu0 0.0
      %4273 = vmatpush1.msra.mxu0 0.0
      %4274 = vmatprep.subr.mxu0 0.0
      %4275 = vmatpush1.msra.mxu0 0.0
      %4276 = vmatprep.subr.mxu0 0.0
      %4277 = vmatpush1.msra.mxu0 0.0
      %4278 = vmatprep.subr.mxu0 0.0
      %4279 = vmatpush1.msra.mxu0 0.0
      %4280 = vmatprep.subr.mxu0 0.0
      %4281 = vmatpush1.msra.mxu0 0.0
      %4282 = vmatprep.mubr.f32.mxu0 0.0
      %4283 = vmatmul.mubr.f32.gmra.mrb[0].mxu0 %v4216
      %v4284 = vpop.f32.mrb[0].mxu0
      %v4285 = vadd.f32 %v4212, %v4284
      %v4286 = vpop.f32.mrb[0].mxu0
      %4287 = vdwg.mxu0
      %s4288 = scalar_lea.vmem %s1250, 64
      %v4289 = vld [vmem:[%s4288] sm:$0xff]
      %v4290 = vld [vmem:[%s4288 + $0x8] sm:$0xff]
      %v4291 = vld [vmem:[%s4288 + $0x10] sm:$0xff]
      %v4292 = vld [vmem:[%s4288 + $0x18] sm:$0xff]
      %s4293 = scalar_lea.vmem %s1264, 2
      %v4294 = vld [vmem:[%s4293] sm:$0x1]
      %v4296 = vlaneseq
      %v4297 = vshrl.u32 %v4296, 7
      %v4298 = vsub.s32 0, %v4297
      %v4299 = vrot.slane %v4294, %v4298
      %4301 = vmatprep.subr.mxu0 0.0
      %4302 = vmatpush1.msra.mxu0 %v4289
      %4303 = vmatprep.subr.mxu0 0.0
      %4304 = vmatpush1.msra.mxu0 %v4290
      %4305 = vmatprep.subr.mxu0 0.0
      %4306 = vmatpush1.msra.mxu0 %v4291
      %4307 = vmatprep.subr.mxu0 0.0
      %4308 = vmatpush1.msra.mxu0 %v4292
      %4309 = vmatprep.subr.mxu0 0.0
      %4310 = vmatpush1.msra.mxu0 0.0
      %4311 = vmatprep.subr.mxu0 0.0
      %4312 = vmatpush1.msra.mxu0 0.0
      %4313 = vmatprep.subr.mxu0 0.0
      %4314 = vmatpush1.msra.mxu0 0.0
      %4315 = vmatprep.subr.mxu0 0.0
      %4316 = vmatpush1.msra.mxu0 0.0
      %4317 = vmatprep.subr.mxu0 0.0
      %4318 = vmatpush1.msra.mxu0 0.0
      %4319 = vmatprep.subr.mxu0 0.0
      %4320 = vmatpush1.msra.mxu0 0.0
      %4321 = vmatprep.subr.mxu0 0.0
      %4322 = vmatpush1.msra.mxu0 0.0
      %4323 = vmatprep.subr.mxu0 0.0
      %4324 = vmatpush1.msra.mxu0 0.0
      %4325 = vmatprep.subr.mxu0 0.0
      %4326 = vmatpush1.msra.mxu0 0.0
      %4327 = vmatprep.subr.mxu0 0.0
      %4328 = vmatpush1.msra.mxu0 0.0
      %4329 = vmatprep.subr.mxu0 0.0
      %4330 = vmatpush1.msra.mxu0 0.0
      %4331 = vmatprep.subr.mxu0 0.0
      %4332 = vmatpush1.msra.mxu0 0.0
      %4333 = vmatprep.subr.mxu0 0.0
      %4334 = vmatpush1.msra.mxu0 0.0
      %4335 = vmatprep.subr.mxu0 0.0
      %4336 = vmatpush1.msra.mxu0 0.0
      %4337 = vmatprep.subr.mxu0 0.0
      %4338 = vmatpush1.msra.mxu0 0.0
      %4339 = vmatprep.subr.mxu0 0.0
      %4340 = vmatpush1.msra.mxu0 0.0
      %4341 = vmatprep.subr.mxu0 0.0
      %4342 = vmatpush1.msra.mxu0 0.0
      %4343 = vmatprep.subr.mxu0 0.0
      %4344 = vmatpush1.msra.mxu0 0.0
      %4345 = vmatprep.subr.mxu0 0.0
      %4346 = vmatpush1.msra.mxu0 0.0
      %4347 = vmatprep.subr.mxu0 0.0
      %4348 = vmatpush1.msra.mxu0 0.0
      %4349 = vmatprep.subr.mxu0 0.0
      %4350 = vmatpush1.msra.mxu0 0.0
      %4351 = vmatprep.subr.mxu0 0.0
      %4352 = vmatpush1.msra.mxu0 0.0
      %4353 = vmatprep.subr.mxu0 0.0
      %4354 = vmatpush1.msra.mxu0 0.0
      %4355 = vmatprep.subr.mxu0 0.0
      %4356 = vmatpush1.msra.mxu0 0.0
      %4357 = vmatprep.subr.mxu0 0.0
      %4358 = vmatpush1.msra.mxu0 0.0
      %4359 = vmatprep.subr.mxu0 0.0
      %4360 = vmatpush1.msra.mxu0 0.0
      %4361 = vmatprep.subr.mxu0 0.0
      %4362 = vmatpush1.msra.mxu0 0.0
      %4363 = vmatprep.subr.mxu0 0.0
      %4364 = vmatpush1.msra.mxu0 0.0
      %4365 = vmatprep.mubr.f32.mxu0 0.0
      %4366 = vmatmul.mubr.f32.gmra.mrb[0].mxu0 %v3301
      %v4367 = vpop.f32.mrb[0].mxu0
      %v4368 = vadd.f32 %v4299, %v4367
      %v4369 = vpop.f32.mrb[0].mxu0
      %4370 = vdwg.mxu0
      %s4371 = scalar_lea.vmem %s1255, 64
      %v4372 = vld [vmem:[%s4371] sm:$0xff]
      %v4373 = vld [vmem:[%s4371 + $0x8] sm:$0xff]
      %v4374 = vld [vmem:[%s4371 + $0x10] sm:$0xff]
      %v4375 = vld [vmem:[%s4371 + $0x18] sm:$0xff]
      %s4376 = scalar_lea.vmem %s1268, 2
      %v4377 = vld [vmem:[%s4376] sm:$0x1]
      %v4379 = vlaneseq
      %v4380 = vshrl.u32 %v4379, 7
      %v4381 = vsub.s32 0, %v4380
      %v4382 = vrot.slane %v4377, %v4381
      %4384 = vmatprep.subr.mxu0 0.0
      %4385 = vmatpush1.msra.mxu0 %v4372
      %4386 = vmatprep.subr.mxu0 0.0
      %4387 = vmatpush1.msra.mxu0 %v4373
      %4388 = vmatprep.subr.mxu0 0.0
      %4389 = vmatpush1.msra.mxu0 %v4374
      %4390 = vmatprep.subr.mxu0 0.0
      %4391 = vmatpush1.msra.mxu0 %v4375
      %4392 = vmatprep.subr.mxu0 0.0
      %4393 = vmatpush1.msra.mxu0 0.0
      %4394 = vmatprep.subr.mxu0 0.0
      %4395 = vmatpush1.msra.mxu0 0.0
      %4396 = vmatprep.subr.mxu0 0.0
      %4397 = vmatpush1.msra.mxu0 0.0
      %4398 = vmatprep.subr.mxu0 0.0
      %4399 = vmatpush1.msra.mxu0 0.0
      %4400 = vmatprep.subr.mxu0 0.0
      %4401 = vmatpush1.msra.mxu0 0.0
      %4402 = vmatprep.subr.mxu0 0.0
      %4403 = vmatpush1.msra.mxu0 0.0
      %4404 = vmatprep.subr.mxu0 0.0
      %4405 = vmatpush1.msra.mxu0 0.0
      %4406 = vmatprep.subr.mxu0 0.0
      %4407 = vmatpush1.msra.mxu0 0.0
      %4408 = vmatprep.subr.mxu0 0.0
      %4409 = vmatpush1.msra.mxu0 0.0
      %4410 = vmatprep.subr.mxu0 0.0
      %4411 = vmatpush1.msra.mxu0 0.0
      %4412 = vmatprep.subr.mxu0 0.0
      %4413 = vmatpush1.msra.mxu0 0.0
      %4414 = vmatprep.subr.mxu0 0.0
      %4415 = vmatpush1.msra.mxu0 0.0
      %4416 = vmatprep.subr.mxu0 0.0
      %4417 = vmatpush1.msra.mxu0 0.0
      %4418 = vmatprep.subr.mxu0 0.0
      %4419 = vmatpush1.msra.mxu0 0.0
      %4420 = vmatprep.subr.mxu0 0.0
      %4421 = vmatpush1.msra.mxu0 0.0
      %4422 = vmatprep.subr.mxu0 0.0
      %4423 = vmatpush1.msra.mxu0 0.0
      %4424 = vmatprep.subr.mxu0 0.0
      %4425 = vmatpush1.msra.mxu0 0.0
      %4426 = vmatprep.subr.mxu0 0.0
      %4427 = vmatpush1.msra.mxu0 0.0
      %4428 = vmatprep.subr.mxu0 0.0
      %4429 = vmatpush1.msra.mxu0 0.0
      %4430 = vmatprep.subr.mxu0 0.0
      %4431 = vmatpush1.msra.mxu0 0.0
      %4432 = vmatprep.subr.mxu0 0.0
      %4433 = vmatpush1.msra.mxu0 0.0
      %4434 = vmatprep.subr.mxu0 0.0
      %4435 = vmatpush1.msra.mxu0 0.0
      %4436 = vmatprep.subr.mxu0 0.0
      %4437 = vmatpush1.msra.mxu0 0.0
      %4438 = vmatprep.subr.mxu0 0.0
      %4439 = vmatpush1.msra.mxu0 0.0
      %4440 = vmatprep.subr.mxu0 0.0
      %4441 = vmatpush1.msra.mxu0 0.0
      %4442 = vmatprep.subr.mxu0 0.0
      %4443 = vmatpush1.msra.mxu0 0.0
      %4444 = vmatprep.subr.mxu0 0.0
      %4445 = vmatpush1.msra.mxu0 0.0
      %4446 = vmatprep.subr.mxu0 0.0
      %4447 = vmatpush1.msra.mxu0 0.0
      %4448 = vmatprep.mubr.f32.mxu0 0.0
      %4449 = vmatmul.mubr.f32.gmra.mrb[0].mxu0 %v3385
      %v4450 = vpop.f32.mrb[0].mxu0
      %v4451 = vadd.f32 %v4382, %v4450
      %v4452 = vpop.f32.mrb[0].mxu0
      %4453 = vmatprep.mubr.f32.mxu0 0.0
      %4454 = vmatmul.mubr.f32.gmra.mrb[0].mxu0 %v3388
      %v4455 = vpop.f32.mrb[0].mxu0
      %v4456 = vadd.f32 %v4382, %v4455
      %v4457 = vpop.f32.mrb[0].mxu0
      %4458 = vdwg.mxu0
      %s4459 = scalar_lea.vmem %s1260, 64
      %v4460 = vld [vmem:[%s4459] sm:$0xff]
      %v4461 = vld [vmem:[%s4459 + $0x8] sm:$0xff]
      %v4462 = vld [vmem:[%s4459 + $0x10] sm:$0xff]
      %v4463 = vld [vmem:[%s4459 + $0x18] sm:$0xff]
      %s4464 = scalar_lea.vmem %s1272, 2
      %v4465 = vld [vmem:[%s4464] sm:$0x1]
      %v4467 = vlaneseq
      %v4468 = vshrl.u32 %v4467, 7
      %v4469 = vsub.s32 0, %v4468
      %v4470 = vrot.slane %v4465, %v4469
      %4472 = vmatprep.subr.mxu0 0.0
      %4473 = vmatpush1.msra.mxu0 %v4460
      %4474 = vmatprep.subr.mxu0 0.0
      %4475 = vmatpush1.msra.mxu0 %v4461
      %4476 = vmatprep.subr.mxu0 0.0
      %4477 = vmatpush1.msra.mxu0 %v4462
      %4478 = vmatprep.subr.mxu0 0.0
      %4479 = vmatpush1.msra.mxu0 %v4463
      %4480 = vmatprep.subr.mxu0 0.0
      %4481 = vmatpush1.msra.mxu0 0.0
      %4482 = vmatprep.subr.mxu0 0.0
      %4483 = vmatpush1.msra.mxu0 0.0
      %4484 = vmatprep.subr.mxu0 0.0
      %4485 = vmatpush1.msra.mxu0 0.0
      %4486 = vmatprep.subr.mxu0 0.0
      %4487 = vmatpush1.msra.mxu0 0.0
      %4488 = vmatprep.subr.mxu0 0.0
      %4489 = vmatpush1.msra.mxu0 0.0
      %4490 = vmatprep.subr.mxu0 0.0
      %4491 = vmatpush1.msra.mxu0 0.0
      %4492 = vmatprep.subr.mxu0 0.0
      %4493 = vmatpush1.msra.mxu0 0.0
      %4494 = vmatprep.subr.mxu0 0.0
      %4495 = vmatpush1.msra.mxu0 0.0
      %4496 = vmatprep.subr.mxu0 0.0
      %4497 = vmatpush1.msra.mxu0 0.0
      %4498 = vmatprep.subr.mxu0 0.0
      %4499 = vmatpush1.msra.mxu0 0.0
      %4500 = vmatprep.subr.mxu0 0.0
      %4501 = vmatpush1.msra.mxu0 0.0
      %4502 = vmatprep.subr.mxu0 0.0
      %4503 = vmatpush1.msra.mxu0 0.0
      %4504 = vmatprep.subr.mxu0 0.0
      %4505 = vmatpush1.msra.mxu0 0.0
      %4506 = vmatprep.subr.mxu0 0.0
      %4507 = vmatpush1.msra.mxu0 0.0
      %4508 = vmatprep.subr.mxu0 0.0
      %4509 = vmatpush1.msra.mxu0 0.0
      %4510 = vmatprep.subr.mxu0 0.0
      %4511 = vmatpush1.msra.mxu0 0.0
      %4512 = vmatprep.subr.mxu0 0.0
      %4513 = vmatpush1.msra.mxu0 0.0
      %4514 = vmatprep.subr.mxu0 0.0
      %4515 = vmatpush1.msra.mxu0 0.0
      %4516 = vmatprep.subr.mxu0 0.0
      %4517 = vmatpush1.msra.mxu0 0.0
      %4518 = vmatprep.subr.mxu0 0.0
      %4519 = vmatpush1.msra.mxu0 0.0
      %4520 = vmatprep.subr.mxu0 0.0
      %4521 = vmatpush1.msra.mxu0 0.0
      %4522 = vmatprep.subr.mxu0 0.0
      %4523 = vmatpush1.msra.mxu0 0.0
      %4524 = vmatprep.subr.mxu0 0.0
      %4525 = vmatpush1.msra.mxu0 0.0
      %4526 = vmatprep.subr.mxu0 0.0
      %4527 = vmatpush1.msra.mxu0 0.0
      %4528 = vmatprep.subr.mxu0 0.0
      %4529 = vmatpush1.msra.mxu0 0.0
      %4530 = vmatprep.subr.mxu0 0.0
      %4531 = vmatpush1.msra.mxu0 0.0
      %4532 = vmatprep.subr.mxu0 0.0
      %4533 = vmatpush1.msra.mxu0 0.0
      %4534 = vmatprep.subr.mxu0 0.0
      %4535 = vmatpush1.msra.mxu0 0.0
      %4536 = vmatprep.mubr.f32.mxu0 0.0
      %4537 = vmatmul.mubr.f32.gmra.mrb[0].mxu0 %v3385
      %v4538 = vpop.f32.mrb[0].mxu0
      %v4539 = vadd.f32 %v4470, %v4538
      %v4540 = vpop.f32.mrb[0].mxu0
      %4541 = vmatprep.mubr.f32.mxu0 0.0
      %4542 = vmatmul.mubr.f32.gmra.mrb[0].mxu0 %v3388
      %v4543 = vpop.f32.mrb[0].mxu0
      %v4544 = vadd.f32 %v4470, %v4543
      %v4545 = vpop.f32.mrb[0].mxu0
      %4546 = vdwg.mxu0
      %v4547 = vmul.f32 %v4368, 0.35355338
      %v4549 = vsel %vm1563, %v4547, 0
      %v4552 = vsel %vm1563, %v4451, 0
      %v4555 = vsel %vm1563, %v4456, 0
      %4557 = vmatprep.subr.mxu0 0.0
      %4558 = vmatpush1.xpose.msra.mxu0 %v4552
      %4559 = vmatprep.subr.mxu0 0.0
      %4560 = vmatpush1.xpose.msra.mxu0 %v4555
      %4561 = vmatprep.subr.mxu0 0.0
      %4562 = vmatpush1.xpose.msra.mxu0 0.0
      %4563 = vmatprep.subr.mxu0 0.0
      %4564 = vmatpush1.xpose.msra.mxu0 0.0
      %4565 = vmatprep.subr.mxu0 0.0
      %4566 = vmatpush1.xpose.msra.mxu0 0.0
      %4567 = vmatprep.subr.mxu0 0.0
      %4568 = vmatpush1.xpose.msra.mxu0 0.0
      %4569 = vmatprep.subr.mxu0 0.0
      %4570 = vmatpush1.xpose.msra.mxu0 0.0
      %4571 = vmatprep.subr.mxu0 0.0
      %4572 = vmatpush1.xpose.msra.mxu0 0.0
      %4573 = vmatprep.subr.mxu0 0.0
      %4574 = vmatpush1.xpose.msra.mxu0 0.0
      %4575 = vmatprep.subr.mxu0 0.0
      %4576 = vmatpush1.xpose.msra.mxu0 0.0
      %4577 = vmatprep.subr.mxu0 0.0
      %4578 = vmatpush1.xpose.msra.mxu0 0.0
      %4579 = vmatprep.subr.mxu0 0.0
      %4580 = vmatpush1.xpose.msra.mxu0 0.0
      %4581 = vmatprep.subr.mxu0 0.0
      %4582 = vmatpush1.xpose.msra.mxu0 0.0
      %4583 = vmatprep.subr.mxu0 0.0
      %4584 = vmatpush1.xpose.msra.mxu0 0.0
      %4585 = vmatprep.subr.mxu0 0.0
      %4586 = vmatpush1.xpose.msra.mxu0 0.0
      %4587 = vmatprep.subr.mxu0 0.0
      %4588 = vmatpush1.xpose.msra.mxu0 0.0
      %4589 = vmatprep.subr.mxu0 0.0
      %4590 = vmatpush1.xpose.msra.mxu0 0.0
      %4591 = vmatprep.subr.mxu0 0.0
      %4592 = vmatpush1.xpose.msra.mxu0 0.0
      %4593 = vmatprep.subr.mxu0 0.0
      %4594 = vmatpush1.xpose.msra.mxu0 0.0
      %4595 = vmatprep.subr.mxu0 0.0
      %4596 = vmatpush1.xpose.msra.mxu0 0.0
      %4597 = vmatprep.subr.mxu0 0.0
      %4598 = vmatpush1.xpose.msra.mxu0 0.0
      %4599 = vmatprep.subr.mxu0 0.0
      %4600 = vmatpush1.xpose.msra.mxu0 0.0
      %4601 = vmatprep.subr.mxu0 0.0
      %4602 = vmatpush1.xpose.msra.mxu0 0.0
      %4603 = vmatprep.subr.mxu0 0.0
      %4604 = vmatpush1.xpose.msra.mxu0 0.0
      %4605 = vmatprep.subr.mxu0 0.0
      %4606 = vmatpush1.xpose.msra.mxu0 0.0
      %4607 = vmatprep.subr.mxu0 0.0
      %4608 = vmatpush1.xpose.msra.mxu0 0.0
      %4609 = vmatprep.subr.mxu0 0.0
      %4610 = vmatpush1.xpose.msra.mxu0 0.0
      %4611 = vmatprep.subr.mxu0 0.0
      %4612 = vmatpush1.xpose.msra.mxu0 0.0
      %4613 = vmatprep.subr.mxu0 0.0
      %4614 = vmatpush1.xpose.msra.mxu0 0.0
      %4615 = vmatprep.subr.mxu0 0.0
      %4616 = vmatpush1.xpose.msra.mxu0 0.0
      %4617 = vmatprep.subr.mxu0 0.0
      %4618 = vmatpush1.xpose.msra.mxu0 0.0
      %4619 = vmatprep.subr.mxu0 0.0
      %4620 = vmatpush1.xpose.msra.mxu0 0.0
      %4621 = vmatprep.mubr.f32.mxu0 0.0
      %4622 = vmatmul.mubr.f32.gmra.mrb[0].mxu0 %v4549
      %v4623 = vpop.f32.mrb[0].mxu0
      %v4624 = vadd.f32 0.0, %v4623
      %v4625 = vpop.f32.mrb[0].mxu0
      %4626 = vdwg.mxu0
      %v4627 = vsel %vm3631, %v4624, -inf
      %4628 = vmax.xlane.f32.xlu0 %v4627
      %v4629 = vpop.xlane.xlu0 %4628
      %v4630 = vsub.f32 %v4624, %v4629
      %v4631 = vmul.f32 %v4630, 1.442695
      %v4632 = vpow.pop %v4631
      %v4633 = vsel %vm3631, %v4632, 0.0
      %4634 = vadd.xlane.f32.xlu0 %v4633
      %v4635 = vpop.xlane.xlu0 %4634
      %v4636 = vrcp.pop %v4635
      %v4637 = vmul.f32 %v4632, %v4636
      %v4639 = vsel %vm3631, %v4637, 0
      %4641 = vmatprep.subr.mxu0 0.0
      %4642 = vmatpush1.msra.mxu0 %v4539
      %4643 = vmatprep.subr.mxu0 0.0
      %4644 = vmatpush1.msra.mxu0 %v4544
      %4645 = vmatprep.subr.mxu0 0.0
      %4646 = vmatpush1.msra.mxu0 0.0
      %4647 = vmatprep.subr.mxu0 0.0
      %4648 = vmatpush1.msra.mxu0 0.0
      %4649 = vmatprep.subr.mxu0 0.0
      %4650 = vmatpush1.msra.mxu0 0.0
      %4651 = vmatprep.subr.mxu0 0.0
      %4652 = vmatpush1.msra.mxu0 0.0
      %4653 = vmatprep.subr.mxu0 0.0
      %4654 = vmatpush1.msra.mxu0 0.0
      %4655 = vmatprep.subr.mxu0 0.0
      %4656 = vmatpush1.msra.mxu0 0.0
      %4657 = vmatprep.subr.mxu0 0.0
      %4658 = vmatpush1.msra.mxu0 0.0
      %4659 = vmatprep.subr.mxu0 0.0
      %4660 = vmatpush1.msra.mxu0 0.0
      %4661 = vmatprep.subr.mxu0 0.0
      %4662 = vmatpush1.msra.mxu0 0.0
      %4663 = vmatprep.subr.mxu0 0.0
      %4664 = vmatpush1.msra.mxu0 0.0
      %4665 = vmatprep.subr.mxu0 0.0
      %4666 = vmatpush1.msra.mxu0 0.0
      %4667 = vmatprep.subr.mxu0 0.0
      %4668 = vmatpush1.msra.mxu0 0.0
      %4669 = vmatprep.subr.mxu0 0.0
      %4670 = vmatpush1.msra.mxu0 0.0
      %4671 = vmatprep.subr.mxu0 0.0
      %4672 = vmatpush1.msra.mxu0 0.0
      %4673 = vmatprep.subr.mxu0 0.0
      %4674 = vmatpush1.msra.mxu0 0.0
      %4675 = vmatprep.subr.mxu0 0.0
      %4676 = vmatpush1.msra.mxu0 0.0
      %4677 = vmatprep.subr.mxu0 0.0
      %4678 = vmatpush1.msra.mxu0 0.0
      %4679 = vmatprep.subr.mxu0 0.0
      %4680 = vmatpush1.msra.mxu0 0.0
      %4681 = vmatprep.subr.mxu0 0.0
      %4682 = vmatpush1.msra.mxu0 0.0
      %4683 = vmatprep.subr.mxu0 0.0
      %4684 = vmatpush1.msra.mxu0 0.0
      %4685 = vmatprep.subr.mxu0 0.0
      %4686 = vmatpush1.msra.mxu0 0.0
      %4687 = vmatprep.subr.mxu0 0.0
      %4688 = vmatpush1.msra.mxu0 0.0
      %4689 = vmatprep.subr.mxu0 0.0
      %4690 = vmatpush1.msra.mxu0 0.0
      %4691 = vmatprep.subr.mxu0 0.0
      %4692 = vmatpush1.msra.mxu0 0.0
      %4693 = vmatprep.subr.mxu0 0.0
      %4694 = vmatpush1.msra.mxu0 0.0
      %4695 = vmatprep.subr.mxu0 0.0
      %4696 = vmatpush1.msra.mxu0 0.0
      %4697 = vmatprep.subr.mxu0 0.0
      %4698 = vmatpush1.msra.mxu0 0.0
      %4699 = vmatprep.subr.mxu0 0.0
      %4700 = vmatpush1.msra.mxu0 0.0
      %4701 = vmatprep.subr.mxu0 0.0
      %4702 = vmatpush1.msra.mxu0 0.0
      %4703 = vmatprep.subr.mxu0 0.0
      %4704 = vmatpush1.msra.mxu0 0.0
      %4705 = vmatprep.mubr.f32.mxu0 0.0
      %4706 = vmatmul.mubr.f32.gmra.mrb[0].mxu0 %v4639
      %v4707 = vpop.f32.mrb[0].mxu0
      %v4708 = vadd.f32 0.0, %v4707
      %v4709 = vpop.f32.mrb[0].mxu0
      %4710 = vdwg.mxu0
      %s4711 = scalar_lea.vmem %s1277, 16
      %v4712 = vld [vmem:[%s4711] sm:$0xff]
      %v4714 = vsel %vm1563, %v4708, 0
      %4716 = vmatprep.subr.mxu0 0.0
      %4717 = vmatpush1.msra.mxu0 %v4712
      %4718 = vmatprep.subr.mxu0 0.0
      %4719 = vmatpush1.msra.mxu0 0.0
      %4720 = vmatprep.subr.mxu0 0.0
      %4721 = vmatpush1.msra.mxu0 0.0
      %4722 = vmatprep.subr.mxu0 0.0
      %4723 = vmatpush1.msra.mxu0 0.0
      %4724 = vmatprep.subr.mxu0 0.0
      %4725 = vmatpush1.msra.mxu0 0.0
      %4726 = vmatprep.subr.mxu0 0.0
      %4727 = vmatpush1.msra.mxu0 0.0
      %4728 = vmatprep.subr.mxu0 0.0
      %4729 = vmatpush1.msra.mxu0 0.0
      %4730 = vmatprep.subr.mxu0 0.0
      %4731 = vmatpush1.msra.mxu0 0.0
      %4732 = vmatprep.subr.mxu0 0.0
      %4733 = vmatpush1.msra.mxu0 0.0
      %4734 = vmatprep.subr.mxu0 0.0
      %4735 = vmatpush1.msra.mxu0 0.0
      %4736 = vmatprep.subr.mxu0 0.0
      %4737 = vmatpush1.msra.mxu0 0.0
      %4738 = vmatprep.subr.mxu0 0.0
      %4739 = vmatpush1.msra.mxu0 0.0
      %4740 = vmatprep.subr.mxu0 0.0
      %4741 = vmatpush1.msra.mxu0 0.0
      %4742 = vmatprep.subr.mxu0 0.0
      %4743 = vmatpush1.msra.mxu0 0.0
      %4744 = vmatprep.subr.mxu0 0.0
      %4745 = vmatpush1.msra.mxu0 0.0
      %4746 = vmatprep.subr.mxu0 0.0
      %4747 = vmatpush1.msra.mxu0 0.0
      %4748 = vmatprep.subr.mxu0 0.0
      %4749 = vmatpush1.msra.mxu0 0.0
      %4750 = vmatprep.subr.mxu0 0.0
      %4751 = vmatpush1.msra.mxu0 0.0
      %4752 = vmatprep.subr.mxu0 0.0
      %4753 = vmatpush1.msra.mxu0 0.0
      %4754 = vmatprep.subr.mxu0 0.0
      %4755 = vmatpush1.msra.mxu0 0.0
      %4756 = vmatprep.subr.mxu0 0.0
      %4757 = vmatpush1.msra.mxu0 0.0
      %4758 = vmatprep.subr.mxu0 0.0
      %4759 = vmatpush1.msra.mxu0 0.0
      %4760 = vmatprep.subr.mxu0 0.0
      %4761 = vmatpush1.msra.mxu0 0.0
      %4762 = vmatprep.subr.mxu0 0.0
      %4763 = vmatpush1.msra.mxu0 0.0
      %4764 = vmatprep.subr.mxu0 0.0
      %4765 = vmatpush1.msra.mxu0 0.0
      %4766 = vmatprep.subr.mxu0 0.0
      %4767 = vmatpush1.msra.mxu0 0.0
      %4768 = vmatprep.subr.mxu0 0.0
      %4769 = vmatpush1.msra.mxu0 0.0
      %4770 = vmatprep.subr.mxu0 0.0
      %4771 = vmatpush1.msra.mxu0 0.0
      %4772 = vmatprep.subr.mxu0 0.0
      %4773 = vmatpush1.msra.mxu0 0.0
      %4774 = vmatprep.subr.mxu0 0.0
      %4775 = vmatpush1.msra.mxu0 0.0
      %4776 = vmatprep.subr.mxu0 0.0
      %4777 = vmatpush1.msra.mxu0 0.0
      %4778 = vmatprep.subr.mxu0 0.0
      %4779 = vmatpush1.msra.mxu0 0.0
      %4780 = vmatprep.mubr.f32.mxu0 0.0
      %4781 = vmatmul.mubr.f32.gmra.mrb[0].mxu0 %v4714
      %v4782 = vpop.f32.mrb[0].mxu0
      %v4783 = vadd.f32 0.0, %v4782
      %v4784 = vpop.f32.mrb[0].mxu0
      %4785 = vdwg.mxu0
      %v4786 = vadd.f32 %v4285, %v4783
      %s4787 = scalar_lea.vmem %s1250, 96
      %v4788 = vld [vmem:[%s4787] sm:$0xff]
      %v4789 = vld [vmem:[%s4787 + $0x8] sm:$0xff]
      %v4790 = vld [vmem:[%s4787 + $0x10] sm:$0xff]
      %v4791 = vld [vmem:[%s4787 + $0x18] sm:$0xff]
      %s4792 = scalar_lea.vmem %s1264, 3
      %v4793 = vld [vmem:[%s4792] sm:$0x1]
      %v4795 = vlaneseq
      %v4796 = vshrl.u32 %v4795, 7
      %v4797 = vsub.s32 0, %v4796
      %v4798 = vrot.slane %v4793, %v4797
      %4800 = vmatprep.subr.mxu0 0.0
      %4801 = vmatpush1.msra.mxu0 %v4788
      %4802 = vmatprep.subr.mxu0 0.0
      %4803 = vmatpush1.msra.mxu0 %v4789
      %4804 = vmatprep.subr.mxu0 0.0
      %4805 = vmatpush1.msra.mxu0 %v4790
      %4806 = vmatprep.subr.mxu0 0.0
      %4807 = vmatpush1.msra.mxu0 %v4791
      %4808 = vmatprep.subr.mxu0 0.0
      %4809 = vmatpush1.msra.mxu0 0.0
      %4810 = vmatprep.subr.mxu0 0.0
      %4811 = vmatpush1.msra.mxu0 0.0
      %4812 = vmatprep.subr.mxu0 0.0
      %4813 = vmatpush1.msra.mxu0 0.0
      %4814 = vmatprep.subr.mxu0 0.0
      %4815 = vmatpush1.msra.mxu0 0.0
      %4816 = vmatprep.subr.mxu0 0.0
      %4817 = vmatpush1.msra.mxu0 0.0
      %4818 = vmatprep.subr.mxu0 0.0
      %4819 = vmatpush1.msra.mxu0 0.0
      %4820 = vmatprep.subr.mxu0 0.0
      %4821 = vmatpush1.msra.mxu0 0.0
      %4822 = vmatprep.subr.mxu0 0.0
      %4823 = vmatpush1.msra.mxu0 0.0
      %4824 = vmatprep.subr.mxu0 0.0
      %4825 = vmatpush1.msra.mxu0 0.0
      %4826 = vmatprep.subr.mxu0 0.0
      %4827 = vmatpush1.msra.mxu0 0.0
      %4828 = vmatprep.subr.mxu0 0.0
      %4829 = vmatpush1.msra.mxu0 0.0
      %4830 = vmatprep.subr.mxu0 0.0
      %4831 = vmatpush1.msra.mxu0 0.0
      %4832 = vmatprep.subr.mxu0 0.0
      %4833 = vmatpush1.msra.mxu0 0.0
      %4834 = vmatprep.subr.mxu0 0.0
      %4835 = vmatpush1.msra.mxu0 0.0
      %4836 = vmatprep.subr.mxu0 0.0
      %4837 = vmatpush1.msra.mxu0 0.0
      %4838 = vmatprep.subr.mxu0 0.0
      %4839 = vmatpush1.msra.mxu0 0.0
      %4840 = vmatprep.subr.mxu0 0.0
      %4841 = vmatpush1.msra.mxu0 0.0
      %4842 = vmatprep.subr.mxu0 0.0
      %4843 = vmatpush1.msra.mxu0 0.0
      %4844 = vmatprep.subr.mxu0 0.0
      %4845 = vmatpush1.msra.mxu0 0.0
      %4846 = vmatprep.subr.mxu0 0.0
      %4847 = vmatpush1.msra.mxu0 0.0
      %4848 = vmatprep.subr.mxu0 0.0
      %4849 = vmatpush1.msra.mxu0 0.0
      %4850 = vmatprep.subr.mxu0 0.0
      %4851 = vmatpush1.msra.mxu0 0.0
      %4852 = vmatprep.subr.mxu0 0.0
      %4853 = vmatpush1.msra.mxu0 0.0
      %4854 = vmatprep.subr.mxu0 0.0
      %4855 = vmatpush1.msra.mxu0 0.0
      %4856 = vmatprep.subr.mxu0 0.0
      %4857 = vmatpush1.msra.mxu0 0.0
      %4858 = vmatprep.subr.mxu0 0.0
      %4859 = vmatpush1.msra.mxu0 0.0
      %4860 = vmatprep.subr.mxu0 0.0
      %4861 = vmatpush1.msra.mxu0 0.0
      %4862 = vmatprep.subr.mxu0 0.0
      %4863 = vmatpush1.msra.mxu0 0.0
      %4864 = vmatprep.mubr.f32.mxu0 0.0
      %4865 = vmatmul.mubr.f32.gmra.mrb[0].mxu0 %v3301
      %v4866 = vpop.f32.mrb[0].mxu0
      %v4867 = vadd.f32 %v4798, %v4866
      %v4868 = vpop.f32.mrb[0].mxu0
      %4869 = vdwg.mxu0
      %s4870 = scalar_lea.vmem %s1255, 96
      %v4871 = vld [vmem:[%s4870] sm:$0xff]
      %v4872 = vld [vmem:[%s4870 + $0x8] sm:$0xff]
      %v4873 = vld [vmem:[%s4870 + $0x10] sm:$0xff]
      %v4874 = vld [vmem:[%s4870 + $0x18] sm:$0xff]
      %s4875 = scalar_lea.vmem %s1268, 3
      %v4876 = vld [vmem:[%s4875] sm:$0x1]
      %v4878 = vlaneseq
      %v4879 = vshrl.u32 %v4878, 7
      %v4880 = vsub.s32 0, %v4879
      %v4881 = vrot.slane %v4876, %v4880
      %4883 = vmatprep.subr.mxu0 0.0
      %4884 = vmatpush1.msra.mxu0 %v4871
      %4885 = vmatprep.subr.mxu0 0.0
      %4886 = vmatpush1.msra.mxu0 %v4872
      %4887 = vmatprep.subr.mxu0 0.0
      %4888 = vmatpush1.msra.mxu0 %v4873
      %4889 = vmatprep.subr.mxu0 0.0
      %4890 = vmatpush1.msra.mxu0 %v4874
      %4891 = vmatprep.subr.mxu0 0.0
      %4892 = vmatpush1.msra.mxu0 0.0
      %4893 = vmatprep.subr.mxu0 0.0
      %4894 = vmatpush1.msra.mxu0 0.0
      %4895 = vmatprep.subr.mxu0 0.0
      %4896 = vmatpush1.msra.mxu0 0.0
      %4897 = vmatprep.subr.mxu0 0.0
      %4898 = vmatpush1.msra.mxu0 0.0
      %4899 = vmatprep.subr.mxu0 0.0
      %4900 = vmatpush1.msra.mxu0 0.0
      %4901 = vmatprep.subr.mxu0 0.0
      %4902 = vmatpush1.msra.mxu0 0.0
      %4903 = vmatprep.subr.mxu0 0.0
      %4904 = vmatpush1.msra.mxu0 0.0
      %4905 = vmatprep.subr.mxu0 0.0
      %4906 = vmatpush1.msra.mxu0 0.0
      %4907 = vmatprep.subr.mxu0 0.0
      %4908 = vmatpush1.msra.mxu0 0.0
      %4909 = vmatprep.subr.mxu0 0.0
      %4910 = vmatpush1.msra.mxu0 0.0
      %4911 = vmatprep.subr.mxu0 0.0
      %4912 = vmatpush1.msra.mxu0 0.0
      %4913 = vmatprep.subr.mxu0 0.0
      %4914 = vmatpush1.msra.mxu0 0.0
      %4915 = vmatprep.subr.mxu0 0.0
      %4916 = vmatpush1.msra.mxu0 0.0
      %4917 = vmatprep.subr.mxu0 0.0
      %4918 = vmatpush1.msra.mxu0 0.0
      %4919 = vmatprep.subr.mxu0 0.0
      %4920 = vmatpush1.msra.mxu0 0.0
      %4921 = vmatprep.subr.mxu0 0.0
      %4922 = vmatpush1.msra.mxu0 0.0
      %4923 = vmatprep.subr.mxu0 0.0
      %4924 = vmatpush1.msra.mxu0 0.0
      %4925 = vmatprep.subr.mxu0 0.0
      %4926 = vmatpush1.msra.mxu0 0.0
      %4927 = vmatprep.subr.mxu0 0.0
      %4928 = vmatpush1.msra.mxu0 0.0
      %4929 = vmatprep.subr.mxu0 0.0
      %4930 = vmatpush1.msra.mxu0 0.0
      %4931 = vmatprep.subr.mxu0 0.0
      %4932 = vmatpush1.msra.mxu0 0.0
      %4933 = vmatprep.subr.mxu0 0.0
      %4934 = vmatpush1.msra.mxu0 0.0
      %4935 = vmatprep.subr.mxu0 0.0
      %4936 = vmatpush1.msra.mxu0 0.0
      %4937 = vmatprep.subr.mxu0 0.0
      %4938 = vmatpush1.msra.mxu0 0.0
      %4939 = vmatprep.subr.mxu0 0.0
      %4940 = vmatpush1.msra.mxu0 0.0
      %4941 = vmatprep.subr.mxu0 0.0
      %4942 = vmatpush1.msra.mxu0 0.0
      %4943 = vmatprep.subr.mxu0 0.0
      %4944 = vmatpush1.msra.mxu0 0.0
      %4945 = vmatprep.subr.mxu0 0.0
      %4946 = vmatpush1.msra.mxu0 0.0
      %4947 = vmatprep.mubr.f32.mxu0 0.0
      %4948 = vmatmul.mubr.f32.gmra.mrb[0].mxu0 %v3385
      %v4949 = vpop.f32.mrb[0].mxu0
      %v4950 = vadd.f32 %v4881, %v4949
      %v4951 = vpop.f32.mrb[0].mxu0
      %4952 = vmatprep.mubr.f32.mxu0 0.0
      %4953 = vmatmul.mubr.f32.gmra.mrb[0].mxu0 %v3388
      %v4954 = vpop.f32.mrb[0].mxu0
      %v4955 = vadd.f32 %v4881, %v4954
      %v4956 = vpop.f32.mrb[0].mxu0
      %4957 = vdwg.mxu0
      %s4958 = scalar_lea.vmem %s1260, 96
      %v4959 = vld [vmem:[%s4958] sm:$0xff]
      %v4960 = vld [vmem:[%s4958 + $0x8] sm:$0xff]
      %v4961 = vld [vmem:[%s4958 + $0x10] sm:$0xff]
      %v4962 = vld [vmem:[%s4958 + $0x18] sm:$0xff]
      %s4963 = scalar_lea.vmem %s1272, 3
      %v4964 = vld [vmem:[%s4963] sm:$0x1]
      %v4966 = vlaneseq
      %v4967 = vshrl.u32 %v4966, 7
      %v4968 = vsub.s32 0, %v4967
      %v4969 = vrot.slane %v4964, %v4968
      %4971 = vmatprep.subr.mxu0 0.0
      %4972 = vmatpush1.msra.mxu0 %v4959
      %4973 = vmatprep.subr.mxu0 0.0
      %4974 = vmatpush1.msra.mxu0 %v4960
      %4975 = vmatprep.subr.mxu0 0.0
      %4976 = vmatpush1.msra.mxu0 %v4961
      %4977 = vmatprep.subr.mxu0 0.0
      %4978 = vmatpush1.msra.mxu0 %v4962
      %4979 = vmatprep.subr.mxu0 0.0
      %4980 = vmatpush1.msra.mxu0 0.0
      %4981 = vmatprep.subr.mxu0 0.0
      %4982 = vmatpush1.msra.mxu0 0.0
      %4983 = vmatprep.subr.mxu0 0.0
      %4984 = vmatpush1.msra.mxu0 0.0
      %4985 = vmatprep.subr.mxu0 0.0
      %4986 = vmatpush1.msra.mxu0 0.0
      %4987 = vmatprep.subr.mxu0 0.0
      %4988 = vmatpush1.msra.mxu0 0.0
      %4989 = vmatprep.subr.mxu0 0.0
      %4990 = vmatpush1.msra.mxu0 0.0
      %4991 = vmatprep.subr.mxu0 0.0
      %4992 = vmatpush1.msra.mxu0 0.0
      %4993 = vmatprep.subr.mxu0 0.0
      %4994 = vmatpush1.msra.mxu0 0.0
      %4995 = vmatprep.subr.mxu0 0.0
      %4996 = vmatpush1.msra.mxu0 0.0
      %4997 = vmatprep.subr.mxu0 0.0
      %4998 = vmatpush1.msra.mxu0 0.0
      %4999 = vmatprep.subr.mxu0 0.0
      %5000 = vmatpush1.msra.mxu0 0.0
      %5001 = vmatprep.subr.mxu0 0.0
      %5002 = vmatpush1.msra.mxu0 0.0
      %5003 = vmatprep.subr.mxu0 0.0
      %5004 = vmatpush1.msra.mxu0 0.0
      %5005 = vmatprep.subr.mxu0 0.0
      %5006 = vmatpush1.msra.mxu0 0.0
      %5007 = vmatprep.subr.mxu0 0.0
      %5008 = vmatpush1.msra.mxu0 0.0
      %5009 = vmatprep.subr.mxu0 0.0
      %5010 = vmatpush1.msra.mxu0 0.0
      %5011 = vmatprep.subr.mxu0 0.0
      %5012 = vmatpush1.msra.mxu0 0.0
      %5013 = vmatprep.subr.mxu0 0.0
      %5014 = vmatpush1.msra.mxu0 0.0
      %5015 = vmatprep.subr.mxu0 0.0
      %5016 = vmatpush1.msra.mxu0 0.0
      %5017 = vmatprep.subr.mxu0 0.0
      %5018 = vmatpush1.msra.mxu0 0.0
      %5019 = vmatprep.subr.mxu0 0.0
      %5020 = vmatpush1.msra.mxu0 0.0
      %5021 = vmatprep.subr.mxu0 0.0
      %5022 = vmatpush1.msra.mxu0 0.0
      %5023 = vmatprep.subr.mxu0 0.0
      %5024 = vmatpush1.msra.mxu0 0.0
      %5025 = vmatprep.subr.mxu0 0.0
      %5026 = vmatpush1.msra.mxu0 0.0
      %5027 = vmatprep.subr.mxu0 0.0
      %5028 = vmatpush1.msra.mxu0 0.0
      %5029 = vmatprep.subr.mxu0 0.0
      %5030 = vmatpush1.msra.mxu0 0.0
      %5031 = vmatprep.subr.mxu0 0.0
      %5032 = vmatpush1.msra.mxu0 0.0
      %5033 = vmatprep.subr.mxu0 0.0
      %5034 = vmatpush1.msra.mxu0 0.0
      %5035 = vmatprep.mubr.f32.mxu0 0.0
      %5036 = vmatmul.mubr.f32.gmra.mrb[0].mxu0 %v3385
      %v5037 = vpop.f32.mrb[0].mxu0
      %v5038 = vadd.f32 %v4969, %v5037
      %v5039 = vpop.f32.mrb[0].mxu0
      %5040 = vmatprep.mubr.f32.mxu0 0.0
      %5041 = vmatmul.mubr.f32.gmra.mrb[0].mxu0 %v3388
      %v5042 = vpop.f32.mrb[0].mxu0
      %v5043 = vadd.f32 %v4969, %v5042
      %v5044 = vpop.f32.mrb[0].mxu0
      %5045 = vdwg.mxu0
      %v5046 = vmul.f32 %v4867, 0.35355338
      %v5048 = vsel %vm1563, %v5046, 0
      %v5051 = vsel %vm1563, %v4950, 0
      %v5054 = vsel %vm1563, %v4955, 0
      %5056 = vmatprep.subr.mxu0 0.0
      %5057 = vmatpush1.xpose.msra.mxu0 %v5051
      %5058 = vmatprep.subr.mxu0 0.0
      %5059 = vmatpush1.xpose.msra.mxu0 %v5054
      %5060 = vmatprep.subr.mxu0 0.0
      %5061 = vmatpush1.xpose.msra.mxu0 0.0
      %5062 = vmatprep.subr.mxu0 0.0
      %5063 = vmatpush1.xpose.msra.mxu0 0.0
      %5064 = vmatprep.subr.mxu0 0.0
      %5065 = vmatpush1.xpose.msra.mxu0 0.0
      %5066 = vmatprep.subr.mxu0 0.0
      %5067 = vmatpush1.xpose.msra.mxu0 0.0
      %5068 = vmatprep.subr.mxu0 0.0
      %5069 = vmatpush1.xpose.msra.mxu0 0.0
      %5070 = vmatprep.subr.mxu0 0.0
      %5071 = vmatpush1.xpose.msra.mxu0 0.0
      %5072 = vmatprep.subr.mxu0 0.0
      %5073 = vmatpush1.xpose.msra.mxu0 0.0
      %5074 = vmatprep.subr.mxu0 0.0
      %5075 = vmatpush1.xpose.msra.mxu0 0.0
      %5076 = vmatprep.subr.mxu0 0.0
      %5077 = vmatpush1.xpose.msra.mxu0 0.0
      %5078 = vmatprep.subr.mxu0 0.0
      %5079 = vmatpush1.xpose.msra.mxu0 0.0
      %5080 = vmatprep.subr.mxu0 0.0
      %5081 = vmatpush1.xpose.msra.mxu0 0.0
      %5082 = vmatprep.subr.mxu0 0.0
      %5083 = vmatpush1.xpose.msra.mxu0 0.0
      %5084 = vmatprep.subr.mxu0 0.0
      %5085 = vmatpush1.xpose.msra.mxu0 0.0
      %5086 = vmatprep.subr.mxu0 0.0
      %5087 = vmatpush1.xpose.msra.mxu0 0.0
      %5088 = vmatprep.subr.mxu0 0.0
      %5089 = vmatpush1.xpose.msra.mxu0 0.0
      %5090 = vmatprep.subr.mxu0 0.0
      %5091 = vmatpush1.xpose.msra.mxu0 0.0
      %5092 = vmatprep.subr.mxu0 0.0
      %5093 = vmatpush1.xpose.msra.mxu0 0.0
      %5094 = vmatprep.subr.mxu0 0.0
      %5095 = vmatpush1.xpose.msra.mxu0 0.0
      %5096 = vmatprep.subr.mxu0 0.0
      %5097 = vmatpush1.xpose.msra.mxu0 0.0
      %5098 = vmatprep.subr.mxu0 0.0
      %5099 = vmatpush1.xpose.msra.mxu0 0.0
      %5100 = vmatprep.subr.mxu0 0.0
      %5101 = vmatpush1.xpose.msra.mxu0 0.0
      %5102 = vmatprep.subr.mxu0 0.0
      %5103 = vmatpush1.xpose.msra.mxu0 0.0
      %5104 = vmatprep.subr.mxu0 0.0
      %5105 = vmatpush1.xpose.msra.mxu0 0.0
      %5106 = vmatprep.subr.mxu0 0.0
      %5107 = vmatpush1.xpose.msra.mxu0 0.0
      %5108 = vmatprep.subr.mxu0 0.0
      %5109 = vmatpush1.xpose.msra.mxu0 0.0
      %5110 = vmatprep.subr.mxu0 0.0
      %5111 = vmatpush1.xpose.msra.mxu0 0.0
      %5112 = vmatprep.subr.mxu0 0.0
      %5113 = vmatpush1.xpose.msra.mxu0 0.0
      %5114 = vmatprep.subr.mxu0 0.0
      %5115 = vmatpush1.xpose.msra.mxu0 0.0
      %5116 = vmatprep.subr.mxu0 0.0
      %5117 = vmatpush1.xpose.msra.mxu0 0.0
      %5118 = vmatprep.subr.mxu0 0.0
      %5119 = vmatpush1.xpose.msra.mxu0 0.0
      %5120 = vmatprep.mubr.f32.mxu0 0.0
      %5121 = vmatmul.mubr.f32.gmra.mrb[0].mxu0 %v5048
      %v5122 = vpop.f32.mrb[0].mxu0
      %v5123 = vadd.f32 0.0, %v5122
      %v5124 = vpop.f32.mrb[0].mxu0
      %5125 = vdwg.mxu0
      %v5126 = vsel %vm3631, %v5123, -inf
      %5127 = vmax.xlane.f32.xlu0 %v5126
      %v5128 = vpop.xlane.xlu0 %5127
      %v5129 = vsub.f32 %v5123, %v5128
      %v5130 = vmul.f32 %v5129, 1.442695
      %v5131 = vpow.pop %v5130
      %v5132 = vsel %vm3631, %v5131, 0.0
      %5133 = vadd.xlane.f32.xlu0 %v5132
      %v5134 = vpop.xlane.xlu0 %5133
      %v5135 = vrcp.pop %v5134
      %v5136 = vmul.f32 %v5131, %v5135
      %v5138 = vsel %vm3631, %v5136, 0
      %5140 = vmatprep.subr.mxu0 0.0
      %5141 = vmatpush1.msra.mxu0 %v5038
      %5142 = vmatprep.subr.mxu0 0.0
      %5143 = vmatpush1.msra.mxu0 %v5043
      %5144 = vmatprep.subr.mxu0 0.0
      %5145 = vmatpush1.msra.mxu0 0.0
      %5146 = vmatprep.subr.mxu0 0.0
      %5147 = vmatpush1.msra.mxu0 0.0
      %5148 = vmatprep.subr.mxu0 0.0
      %5149 = vmatpush1.msra.mxu0 0.0
      %5150 = vmatprep.subr.mxu0 0.0
      %5151 = vmatpush1.msra.mxu0 0.0
      %5152 = vmatprep.subr.mxu0 0.0
      %5153 = vmatpush1.msra.mxu0 0.0
      %5154 = vmatprep.subr.mxu0 0.0
      %5155 = vmatpush1.msra.mxu0 0.0
      %5156 = vmatprep.subr.mxu0 0.0
      %5157 = vmatpush1.msra.mxu0 0.0
      %5158 = vmatprep.subr.mxu0 0.0
      %5159 = vmatpush1.msra.mxu0 0.0
      %5160 = vmatprep.subr.mxu0 0.0
      %5161 = vmatpush1.msra.mxu0 0.0
      %5162 = vmatprep.subr.mxu0 0.0
      %5163 = vmatpush1.msra.mxu0 0.0
      %5164 = vmatprep.subr.mxu0 0.0
      %5165 = vmatpush1.msra.mxu0 0.0
      %5166 = vmatprep.subr.mxu0 0.0
      %5167 = vmatpush1.msra.mxu0 0.0
      %5168 = vmatprep.subr.mxu0 0.0
      %5169 = vmatpush1.msra.mxu0 0.0
      %5170 = vmatprep.subr.mxu0 0.0
      %5171 = vmatpush1.msra.mxu0 0.0
      %5172 = vmatprep.subr.mxu0 0.0
      %5173 = vmatpush1.msra.mxu0 0.0
      %5174 = vmatprep.subr.mxu0 0.0
      %5175 = vmatpush1.msra.mxu0 0.0
      %5176 = vmatprep.subr.mxu0 0.0
      %5177 = vmatpush1.msra.mxu0 0.0
      %5178 = vmatprep.subr.mxu0 0.0
      %5179 = vmatpush1.msra.mxu0 0.0
      %5180 = vmatprep.subr.mxu0 0.0
      %5181 = vmatpush1.msra.mxu0 0.0
      %5182 = vmatprep.subr.mxu0 0.0
      %5183 = vmatpush1.msra.mxu0 0.0
      %5184 = vmatprep.subr.mxu0 0.0
      %5185 = vmatpush1.msra.mxu0 0.0
      %5186 = vmatprep.subr.mxu0 0.0
      %5187 = vmatpush1.msra.mxu0 0.0
      %5188 = vmatprep.subr.mxu0 0.0
      %5189 = vmatpush1.msra.mxu0 0.0
      %5190 = vmatprep.subr.mxu0 0.0
      %5191 = vmatpush1.msra.mxu0 0.0
      %5192 = vmatprep.subr.mxu0 0.0
      %5193 = vmatpush1.msra.mxu0 0.0
      %5194 = vmatprep.subr.mxu0 0.0
      %5195 = vmatpush1.msra.mxu0 0.0
      %5196 = vmatprep.subr.mxu0 0.0
      %5197 = vmatpush1.msra.mxu0 0.0
      %5198 = vmatprep.subr.mxu0 0.0
      %5199 = vmatpush1.msra.mxu0 0.0
      %5200 = vmatprep.subr.mxu0 0.0
      %5201 = vmatpush1.msra.mxu0 0.0
      %5202 = vmatprep.subr.mxu0 0.0
      %5203 = vmatpush1.msra.mxu0 0.0
      %5204 = vmatprep.mubr.f32.mxu0 0.0
      %5205 = vmatmul.mubr.f32.gmra.mrb[0].mxu0 %v5138
      %v5206 = vpop.f32.mrb[0].mxu0
      %v5207 = vadd.f32 0.0, %v5206
      %v5208 = vpop.f32.mrb[0].mxu0
      %5209 = vdwg.mxu0
      %s5210 = scalar_lea.vmem %s1277, 24
      %v5211 = vld [vmem:[%s5210] sm:$0xff]
      %v5213 = vsel %vm1563, %v5207, 0
      %5215 = vmatprep.subr.mxu0 0.0
      %5216 = vmatpush1.msra.mxu0 %v5211
      %5217 = vmatprep.subr.mxu0 0.0
      %5218 = vmatpush1.msra.mxu0 0.0
      %5219 = vmatprep.subr.mxu0 0.0
      %5220 = vmatpush1.msra.mxu0 0.0
      %5221 = vmatprep.subr.mxu0 0.0
      %5222 = vmatpush1.msra.mxu0 0.0
      %5223 = vmatprep.subr.mxu0 0.0
      %5224 = vmatpush1.msra.mxu0 0.0
      %5225 = vmatprep.subr.mxu0 0.0
      %5226 = vmatpush1.msra.mxu0 0.0
      %5227 = vmatprep.subr.mxu0 0.0
      %5228 = vmatpush1.msra.mxu0 0.0
      %5229 = vmatprep.subr.mxu0 0.0
      %5230 = vmatpush1.msra.mxu0 0.0
      %5231 = vmatprep.subr.mxu0 0.0
      %5232 = vmatpush1.msra.mxu0 0.0
      %5233 = vmatprep.subr.mxu0 0.0
      %5234 = vmatpush1.msra.mxu0 0.0
      %5235 = vmatprep.subr.mxu0 0.0
      %5236 = vmatpush1.msra.mxu0 0.0
      %5237 = vmatprep.subr.mxu0 0.0
      %5238 = vmatpush1.msra.mxu0 0.0
      %5239 = vmatprep.subr.mxu0 0.0
      %5240 = vmatpush1.msra.mxu0 0.0
      %5241 = vmatprep.subr.mxu0 0.0
      %5242 = vmatpush1.msra.mxu0 0.0
      %5243 = vmatprep.subr.mxu0 0.0
      %5244 = vmatpush1.msra.mxu0 0.0
      %5245 = vmatprep.subr.mxu0 0.0
      %5246 = vmatpush1.msra.mxu0 0.0
      %5247 = vmatprep.subr.mxu0 0.0
      %5248 = vmatpush1.msra.mxu0 0.0
      %5249 = vmatprep.subr.mxu0 0.0
      %5250 = vmatpush1.msra.mxu0 0.0
      %5251 = vmatprep.subr.mxu0 0.0
      %5252 = vmatpush1.msra.mxu0 0.0
      %5253 = vmatprep.subr.mxu0 0.0
      %5254 = vmatpush1.msra.mxu0 0.0
      %5255 = vmatprep.subr.mxu0 0.0
      %5256 = vmatpush1.msra.mxu0 0.0
      %5257 = vmatprep.subr.mxu0 0.0
      %5258 = vmatpush1.msra.mxu0 0.0
      %5259 = vmatprep.subr.mxu0 0.0
      %5260 = vmatpush1.msra.mxu0 0.0
      %5261 = vmatprep.subr.mxu0 0.0
      %5262 = vmatpush1.msra.mxu0 0.0
      %5263 = vmatprep.subr.mxu0 0.0
      %5264 = vmatpush1.msra.mxu0 0.0
      %5265 = vmatprep.subr.mxu0 0.0
      %5266 = vmatpush1.msra.mxu0 0.0
      %5267 = vmatprep.subr.mxu0 0.0
      %5268 = vmatpush1.msra.mxu0 0.0
      %5269 = vmatprep.subr.mxu0 0.0
      %5270 = vmatpush1.msra.mxu0 0.0
      %5271 = vmatprep.subr.mxu0 0.0
      %5272 = vmatpush1.msra.mxu0 0.0
      %5273 = vmatprep.subr.mxu0 0.0
      %5274 = vmatpush1.msra.mxu0 0.0
      %5275 = vmatprep.subr.mxu0 0.0
      %5276 = vmatpush1.msra.mxu0 0.0
      %5277 = vmatprep.subr.mxu0 0.0
      %5278 = vmatpush1.msra.mxu0 0.0
      %5279 = vmatprep.mubr.f32.mxu0 0.0
      %5280 = vmatmul.mubr.f32.gmra.mrb[0].mxu0 %v5213
      %v5281 = vpop.f32.mrb[0].mxu0
      %v5282 = vadd.f32 0.0, %v5281
      %v5283 = vpop.f32.mrb[0].mxu0
      %5284 = vdwg.mxu0
      %v5285 = vadd.f32 %v4786, %v5282
      %v5286 = vld [vmem:[%s1280] sm:$0x1]
      %v5288 = vlaneseq
      %v5289 = vshrl.u32 %v5288, 7
      %v5290 = vsub.s32 0, %v5289
      %v5291 = vrot.slane %v5286, %v5290
      %v5293 = vadd.f32 %v5285, %v5291
      %v5294 = vld [vmem:[%s1284] sm:$0x3]
      %v5295 = vadd.f32 %v5293, %v3288
      %v5296 = vsel %vm1326, %v5295, 0.0
      %5297 = vadd.xlane.f32.xlu0 %v5296
      %v5298 = vpop.xlane.xlu0 %5297
      %v5299 = vmul.f32 %v5298, %v3268
      %v5300 = vsub.f32 %v5295, %v5299
      %v5301 = vmul.f32 %v5300, %v5300
      %v5302 = vsel %vm1326, %v5301, 0.0
      %5303 = vadd.xlane.f32.xlu0 %v5302
      %v5304 = vpop.xlane.xlu0 %5303
      %v5305 = vmul.f32 %v5304, %v3268
      %v5306 = vadd.f32 %v5305, 1e-05
      %v5307 = vrsqrt.pop %v5306
      %v5308 = vmul.f32 %v5300, %v5307
      %v5309 = vlaneseq
      %v5310 = vshrl.u32 %v5309, 7
      %v5311 = vsub.s32 0, %v5310
      %v5312 = vrot.slane %v5294, %v5311
      %v5313 = vmul.f32 %v5308, %v5312
      %v5314 = vlaneseq
      %v5315 = vshrl.u32 %v5314, 7
      %v5316 = vsub.s32 1, %v5315
      %v5317 = vrot.slane %v5294, %v5316
      %v5318 = vadd.f32 %v5313, %v5317
      %v5319 = vld [vmem:[%s1289] sm:$0xff]
      %v5320 = vld [vmem:[%s1289 + $0x8] sm:$0xff]
      %v5321 = vld [vmem:[%s1289 + $0x10] sm:$0xff]
      %v5322 = vld [vmem:[%s1289 + $0x18] sm:$0xff]
      %v5323 = vld [vmem:[%s1292] sm:$0x1]
      %v5325 = vlaneseq
      %v5326 = vshrl.u32 %v5325, 7
      %v5327 = vsub.s32 0, %v5326
      %v5328 = vrot.slane %v5323, %v5327
      %v5331 = vsel %vm1326, %v5318, 0
      %5333 = vmatprep.subr.mxu0 0.0
      %5334 = vmatpush1.msra.mxu0 %v5319
      %5335 = vmatprep.subr.mxu0 0.0
      %5336 = vmatpush1.msra.mxu0 %v5320
      %5337 = vmatprep.subr.mxu0 0.0
      %5338 = vmatpush1.msra.mxu0 %v5321
      %5339 = vmatprep.subr.mxu0 0.0
      %5340 = vmatpush1.msra.mxu0 %v5322
      %5341 = vmatprep.subr.mxu0 0.0
      %5342 = vmatpush1.msra.mxu0 0.0
      %5343 = vmatprep.subr.mxu0 0.0
      %5344 = vmatpush1.msra.mxu0 0.0
      %5345 = vmatprep.subr.mxu0 0.0
      %5346 = vmatpush1.msra.mxu0 0.0
      %5347 = vmatprep.subr.mxu0 0.0
      %5348 = vmatpush1.msra.mxu0 0.0
      %5349 = vmatprep.subr.mxu0 0.0
      %5350 = vmatpush1.msra.mxu0 0.0
      %5351 = vmatprep.subr.mxu0 0.0
      %5352 = vmatpush1.msra.mxu0 0.0
      %5353 = vmatprep.subr.mxu0 0.0
      %5354 = vmatpush1.msra.mxu0 0.0
      %5355 = vmatprep.subr.mxu0 0.0
      %5356 = vmatpush1.msra.mxu0 0.0
      %5357 = vmatprep.subr.mxu0 0.0
      %5358 = vmatpush1.msra.mxu0 0.0
      %5359 = vmatprep.subr.mxu0 0.0
      %5360 = vmatpush1.msra.mxu0 0.0
      %5361 = vmatprep.subr.mxu0 0.0
      %5362 = vmatpush1.msra.mxu0 0.0
      %5363 = vmatprep.subr.mxu0 0.0
      %5364 = vmatpush1.msra.mxu0 0.0
      %5365 = vmatprep.subr.mxu0 0.0
      %5366 = vmatpush1.msra.mxu0 0.0
      %5367 = vmatprep.subr.mxu0 0.0
      %5368 = vmatpush1.msra.mxu0 0.0
      %5369 = vmatprep.subr.mxu0 0.0
      %5370 = vmatpush1.msra.mxu0 0.0
      %5371 = vmatprep.subr.mxu0 0.0
      %5372 = vmatpush1.msra.mxu0 0.0
      %5373 = vmatprep.subr.mxu0 0.0
      %5374 = vmatpush1.msra.mxu0 0.0
      %5375 = vmatprep.subr.mxu0 0.0
      %5376 = vmatpush1.msra.mxu0 0.0
      %5377 = vmatprep.subr.mxu0 0.0
      %5378 = vmatpush1.msra.mxu0 0.0
      %5379 = vmatprep.subr.mxu0 0.0
      %5380 = vmatpush1.msra.mxu0 0.0
      %5381 = vmatprep.subr.mxu0 0.0
      %5382 = vmatpush1.msra.mxu0 0.0
      %5383 = vmatprep.subr.mxu0 0.0
      %5384 = vmatpush1.msra.mxu0 0.0
      %5385 = vmatprep.subr.mxu0 0.0
      %5386 = vmatpush1.msra.mxu0 0.0
      %5387 = vmatprep.subr.mxu0 0.0
      %5388 = vmatpush1.msra.mxu0 0.0
      %5389 = vmatprep.subr.mxu0 0.0
      %5390 = vmatpush1.msra.mxu0 0.0
      %5391 = vmatprep.subr.mxu0 0.0
      %5392 = vmatpush1.msra.mxu0 0.0
      %5393 = vmatprep.subr.mxu0 0.0
      %5394 = vmatpush1.msra.mxu0 0.0
      %5395 = vmatprep.subr.mxu0 0.0
      %5396 = vmatpush1.msra.mxu0 0.0
      %5397 = vmatprep.mubr.f32.mxu0 0.0
      %5398 = vmatmul.mubr.f32.gmra.mrb[0].mxu0 %v5331
      %v5399 = vpop.f32.mrb[0].mxu0
      %v5400 = vadd.f32 %v5328, %v5399
      %v5401 = vpop.f32.mrb[0].mxu0
      %5402 = vdwg.mxu0
      %v5403 = vmax.f32 %v5400, 0.0
      %v5404 = vld [vmem:[%s1297] sm:$0xff]
      %v5405 = vld [vmem:[%s1297 + $0x8] sm:$0xff]
      %v5406 = vld [vmem:[%s1297 + $0x10] sm:$0xff]
      %v5407 = vld [vmem:[%s1297 + $0x18] sm:$0xff]
      %v5408 = vld [vmem:[%s1297 + $0x20] sm:$0xff]
      %v5409 = vld [vmem:[%s1297 + $0x28] sm:$0xff]
      %v5410 = vld [vmem:[%s1297 + $0x30] sm:$0xff]
      %v5411 = vld [vmem:[%s1297 + $0x38] sm:$0xff]
      %v5412 = vld [vmem:[%s1300] sm:$0x1]
      %v5414 = vlaneseq
      %v5415 = vshrl.u32 %v5414, 7
      %v5416 = vsub.s32 0, %v5415
      %v5417 = vrot.slane %v5412, %v5416
      %vm5419 = vcmask 523264
      %v5421 = vsel %vm5419, %v5403, 0
      %5423 = vmatprep.subr.mxu0 0.0
      %5424 = vmatpush1.msra.mxu0 %v5404
      %5425 = vmatprep.subr.mxu0 0.0
      %5426 = vmatpush1.msra.mxu0 %v5405
      %5427 = vmatprep.subr.mxu0 0.0
      %5428 = vmatpush1.msra.mxu0 %v5406
      %5429 = vmatprep.subr.mxu0 0.0
      %5430 = vmatpush1.msra.mxu0 %v5407
      %5431 = vmatprep.subr.mxu0 0.0
      %5432 = vmatpush1.msra.mxu0 %v5408
      %5433 = vmatprep.subr.mxu0 0.0
      %5434 = vmatpush1.msra.mxu0 %v5409
      %5435 = vmatprep.subr.mxu0 0.0
      %5436 = vmatpush1.msra.mxu0 %v5410
      %5437 = vmatprep.subr.mxu0 0.0
      %5438 = vmatpush1.msra.mxu0 %v5411
      %5439 = vmatprep.subr.mxu0 0.0
      %5440 = vmatpush1.msra.mxu0 0.0
      %5441 = vmatprep.subr.mxu0 0.0
      %5442 = vmatpush1.msra.mxu0 0.0
      %5443 = vmatprep.subr.mxu0 0.0
      %5444 = vmatpush1.msra.mxu0 0.0
      %5445 = vmatprep.subr.mxu0 0.0
      %5446 = vmatpush1.msra.mxu0 0.0
      %5447 = vmatprep.subr.mxu0 0.0
      %5448 = vmatpush1.msra.mxu0 0.0
      %5449 = vmatprep.subr.mxu0 0.0
      %5450 = vmatpush1.msra.mxu0 0.0
      %5451 = vmatprep.subr.mxu0 0.0
      %5452 = vmatpush1.msra.mxu0 0.0
      %5453 = vmatprep.subr.mxu0 0.0
      %5454 = vmatpush1.msra.mxu0 0.0
      %5455 = vmatprep.subr.mxu0 0.0
      %5456 = vmatpush1.msra.mxu0 0.0
      %5457 = vmatprep.subr.mxu0 0.0
      %5458 = vmatpush1.msra.mxu0 0.0
      %5459 = vmatprep.subr.mxu0 0.0
      %5460 = vmatpush1.msra.mxu0 0.0
      %5461 = vmatprep.subr.mxu0 0.0
      %5462 = vmatpush1.msra.mxu0 0.0
      %5463 = vmatprep.subr.mxu0 0.0
      %5464 = vmatpush1.msra.mxu0 0.0
      %5465 = vmatprep.subr.mxu0 0.0
      %5466 = vmatpush1.msra.mxu0 0.0
      %5467 = vmatprep.subr.mxu0 0.0
      %5468 = vmatpush1.msra.mxu0 0.0
      %5469 = vmatprep.subr.mxu0 0.0
      %5470 = vmatpush1.msra.mxu0 0.0
      %5471 = vmatprep.subr.mxu0 0.0
      %5472 = vmatpush1.msra.mxu0 0.0
      %5473 = vmatprep.subr.mxu0 0.0
      %5474 = vmatpush1.msra.mxu0 0.0
      %5475 = vmatprep.subr.mxu0 0.0
      %5476 = vmatpush1.msra.mxu0 0.0
      %5477 = vmatprep.subr.mxu0 0.0
      %5478 = vmatpush1.msra.mxu0 0.0
      %5479 = vmatprep.subr.mxu0 0.0
      %5480 = vmatpush1.msra.mxu0 0.0
      %5481 = vmatprep.subr.mxu0 0.0
      %5482 = vmatpush1.msra.mxu0 0.0
      %5483 = vmatprep.subr.mxu0 0.0
      %5484 = vmatpush1.msra.mxu0 0.0
      %5485 = vmatprep.subr.mxu0 0.0
      %5486 = vmatpush1.msra.mxu0 0.0
      %5487 = vmatprep.mubr.f32.mxu0 0.0
      %5488 = vmatmul.mubr.f32.gmra.mrb[0].mxu0 %v5421
      %v5489 = vpop.f32.mrb[0].mxu0
      %v5490 = vadd.f32 %v5417, %v5489
      %v5491 = vpop.f32.mrb[0].mxu0
      %5492 = vdwg.mxu0
      %v5493 = vld [vmem:[%s1304] sm:$0x3]
      %v5494 = vadd.f32 %v5490, %v5318
      %v5495 = vsel %vm1326, %v5494, 0.0
      %5496 = vadd.xlane.f32.xlu0 %v5495
      %v5497 = vpop.xlane.xlu0 %5496
      %v5498 = vmul.f32 %v5497, %v3268
      %v5499 = vsub.f32 %v5494, %v5498
      %v5500 = vmul.f32 %v5499, %v5499
      %v5501 = vsel %vm1326, %v5500, 0.0
      %5502 = vadd.xlane.f32.xlu0 %v5501
      %v5503 = vpop.xlane.xlu0 %5502
      %v5504 = vmul.f32 %v5503, %v3268
      %v5505 = vadd.f32 %v5504, 1e-05
      %v5506 = vrsqrt.pop %v5505
      %v5507 = vmul.f32 %v5499, %v5506
      %v5508 = vlaneseq
      %v5509 = vshrl.u32 %v5508, 7
      %v5510 = vsub.s32 0, %v5509
      %v5511 = vrot.slane %v5493, %v5510
      %v5512 = vmul.f32 %v5507, %v5511
      %v5513 = vlaneseq
      %v5514 = vshrl.u32 %v5513, 7
      %v5515 = vsub.s32 1, %v5514
      %v5516 = vrot.slane %v5493, %v5515
      %v5517 = vadd.f32 %v5512, %v5516
      %5518 = vst.msk [vmem:[#allocation2] sm:$0xff] %vm1326, %v5517
      %p5519 = scmp.eq.s32.totalorder %s72, 5
      // Predicated region
      $region145: #{d3g_pair_transformer_px_forward.3} parent=139 // pred_check
        %p5520 = pneg %p5519
      $region146: #{d3g_pair_transformer_px_forward.3} parent=139 // pred_check_branch
        %5522 = sbr.rel (%p5520) target = $region148
      $region147: #{d3g_pair_transformer_px_forward.3} parent=139 // pred_region
        %v5523 = vld [vmem:[%s51] sm:$0x3]
        %v5524 = vsel %vm1326, %v5517, 0.0
        %5525 = vadd.xlane.f32.xlu0 %v5524
        %v5526 = vpop.xlane.xlu0 %5525
        %v5527 = vmul.f32 %v5526, %v3268
        %v5528 = vsub.f32 %v5517, %v5527
        %v5529 = vmul.f32 %v5528, %v5528
        %v5530 = vsel %vm1326, %v5529, 0.0
        %5531 = vadd.xlane.f32.xlu0 %v5530
        %v5532 = vpop.xlane.xlu0 %5531
        %v5533 = vmul.f32 %v5532, %v3268
        %v5534 = vadd.f32 %v5533, 1e-05
        %v5535 = vrsqrt.pop %v5534
        %v5536 = vmul.f32 %v5528, %v5535
        %v5537 = vlaneseq
        %v5538 = vshrl.u32 %v5537, 7
        %v5539 = vsub.s32 0, %v5538
        %v5540 = vrot.slane %v5523, %v5539
        %v5541 = vmul.f32 %v5536, %v5540
        %v5542 = vlaneseq
        %v5543 = vshrl.u32 %v5542, 7
        %v5544 = vsub.s32 1, %v5543
        %v5545 = vrot.slane %v5523, %v5544
        %v5546 = vadd.f32 %v5541, %v5545
        %v5547 = vld [vmem:[%s53] sm:$0xff]
        %v5548 = vld [vmem:[%s53 + $0x8] sm:$0xff]
        %v5549 = vld [vmem:[%s53 + $0x10] sm:$0xff]
        %v5550 = vld [vmem:[%s53 + $0x18] sm:$0xff]
        %v5551 = vld [vmem:[%s55] sm:$0x1]
        %v5553 = vlaneseq
        %v5554 = vshrl.u32 %v5553, 7
        %v5555 = vsub.s32 0, %v5554
        %v5556 = vrot.slane %v5551, %v5555
        %v5559 = vsel %vm1326, %v5546, 0
        %5561 = vmatprep.subr.mxu0 0.0
        %5562 = vmatpush1.msra.mxu0 %v5547
        %5563 = vmatprep.subr.mxu0 0.0
        %5564 = vmatpush1.msra.mxu0 %v5548
        %5565 = vmatprep.subr.mxu0 0.0
        %5566 = vmatpush1.msra.mxu0 %v5549
        %5567 = vmatprep.subr.mxu0 0.0
        %5568 = vmatpush1.msra.mxu0 %v5550
        %5569 = vmatprep.subr.mxu0 0.0
        %5570 = vmatpush1.msra.mxu0 0.0
        %5571 = vmatprep.subr.mxu0 0.0
        %5572 = vmatpush1.msra.mxu0 0.0
        %5573 = vmatprep.subr.mxu0 0.0
        %5574 = vmatpush1.msra.mxu0 0.0
        %5575 = vmatprep.subr.mxu0 0.0
        %5576 = vmatpush1.msra.mxu0 0.0
        %5577 = vmatprep.subr.mxu0 0.0
        %5578 = vmatpush1.msra.mxu0 0.0
        %5579 = vmatprep.subr.mxu0 0.0
        %5580 = vmatpush1.msra.mxu0 0.0
        %5581 = vmatprep.subr.mxu0 0.0
        %5582 = vmatpush1.msra.mxu0 0.0
        %5583 = vmatprep.subr.mxu0 0.0
        %5584 = vmatpush1.msra.mxu0 0.0
        %5585 = vmatprep.subr.mxu0 0.0
        %5586 = vmatpush1.msra.mxu0 0.0
        %5587 = vmatprep.subr.mxu0 0.0
        %5588 = vmatpush1.msra.mxu0 0.0
        %5589 = vmatprep.subr.mxu0 0.0
        %5590 = vmatpush1.msra.mxu0 0.0
        %5591 = vmatprep.subr.mxu0 0.0
        %5592 = vmatpush1.msra.mxu0 0.0
        %5593 = vmatprep.subr.mxu0 0.0
        %5594 = vmatpush1.msra.mxu0 0.0
        %5595 = vmatprep.subr.mxu0 0.0
        %5596 = vmatpush1.msra.mxu0 0.0
        %5597 = vmatprep.subr.mxu0 0.0
        %5598 = vmatpush1.msra.mxu0 0.0
        %5599 = vmatprep.subr.mxu0 0.0
        %5600 = vmatpush1.msra.mxu0 0.0
        %5601 = vmatprep.subr.mxu0 0.0
        %5602 = vmatpush1.msra.mxu0 0.0
        %5603 = vmatprep.subr.mxu0 0.0
        %5604 = vmatpush1.msra.mxu0 0.0
        %5605 = vmatprep.subr.mxu0 0.0
        %5606 = vmatpush1.msra.mxu0 0.0
        %5607 = vmatprep.subr.mxu0 0.0
        %5608 = vmatpush1.msra.mxu0 0.0
        %5609 = vmatprep.subr.mxu0 0.0
        %5610 = vmatpush1.msra.mxu0 0.0
        %5611 = vmatprep.subr.mxu0 0.0
        %5612 = vmatpush1.msra.mxu0 0.0
        %5613 = vmatprep.subr.mxu0 0.0
        %5614 = vmatpush1.msra.mxu0 0.0
        %5615 = vmatprep.subr.mxu0 0.0
        %5616 = vmatpush1.msra.mxu0 0.0
        %5617 = vmatprep.subr.mxu0 0.0
        %5618 = vmatpush1.msra.mxu0 0.0
        %5619 = vmatprep.subr.mxu0 0.0
        %5620 = vmatpush1.msra.mxu0 0.0
        %5621 = vmatprep.subr.mxu0 0.0
        %5622 = vmatpush1.msra.mxu0 0.0
        %5623 = vmatprep.subr.mxu0 0.0
        %5624 = vmatpush1.msra.mxu0 0.0
        %5625 = vmatprep.mubr.f32.mxu0 0.0
        %5626 = vmatmul.mubr.f32.gmra.mrb[0].mxu0 %v5559
        %v5627 = vpop.f32.mrb[0].mxu0
        %v5628 = vadd.f32 %v5556, %v5627
        %v5629 = vpop.f32.mrb[0].mxu0
        %5630 = vdwg.mxu0
        %vm5631 = vcmp.ge.f32.partialorder %v5628, 0.0
        %v5632 = vmul.f32 %v5628, 0.01
        %v5633 = vsel %vm5631, %v5628, %v5632
        %v5634 = vld [vmem:[%s57] sm:$0xff]
        %v5635 = vld [vmem:[%s57 + $0x8] sm:$0xff]
        %v5636 = vld [vmem:[%s57 + $0x10] sm:$0xff]
        %v5637 = vld [vmem:[%s57 + $0x18] sm:$0xff]
        %v5638 = vld [vmem:[%s57 + $0x20] sm:$0xff]
        %v5639 = vld [vmem:[%s57 + $0x28] sm:$0xff]
        %v5640 = vld [vmem:[%s57 + $0x30] sm:$0xff]
        %v5641 = vld [vmem:[%s57 + $0x38] sm:$0xff]
        %v5642 = vld [vmem:[%s59] sm:$0x1]
        %v5644 = vlaneseq
        %v5645 = vshrl.u32 %v5644, 7
        %v5646 = vsub.s32 0, %v5645
        %v5647 = vrot.slane %v5642, %v5646
        %v5650 = vsel %vm5419, %v5633, 0
        %5652 = vmatprep.subr.mxu0 0.0
        %5653 = vmatpush1.msra.mxu0 %v5634
        %5654 = vmatprep.subr.mxu0 0.0
        %5655 = vmatpush1.msra.mxu0 %v5635
        %5656 = vmatprep.subr.mxu0 0.0
        %5657 = vmatpush1.msra.mxu0 %v5636
        %5658 = vmatprep.subr.mxu0 0.0
        %5659 = vmatpush1.msra.mxu0 %v5637
        %5660 = vmatprep.subr.mxu0 0.0
        %5661 = vmatpush1.msra.mxu0 %v5638
        %5662 = vmatprep.subr.mxu0 0.0
        %5663 = vmatpush1.msra.mxu0 %v5639
        %5664 = vmatprep.subr.mxu0 0.0
        %5665 = vmatpush1.msra.mxu0 %v5640
        %5666 = vmatprep.subr.mxu0 0.0
        %5667 = vmatpush1.msra.mxu0 %v5641
        %5668 = vmatprep.subr.mxu0 0.0
        %5669 = vmatpush1.msra.mxu0 0.0
        %5670 = vmatprep.subr.mxu0 0.0
        %5671 = vmatpush1.msra.mxu0 0.0
        %5672 = vmatprep.subr.mxu0 0.0
        %5673 = vmatpush1.msra.mxu0 0.0
        %5674 = vmatprep.subr.mxu0 0.0
        %5675 = vmatpush1.msra.mxu0 0.0
        %5676 = vmatprep.subr.mxu0 0.0
        %5677 = vmatpush1.msra.mxu0 0.0
        %5678 = vmatprep.subr.mxu0 0.0
        %5679 = vmatpush1.msra.mxu0 0.0
        %5680 = vmatprep.subr.mxu0 0.0
        %5681 = vmatpush1.msra.mxu0 0.0
        %5682 = vmatprep.subr.mxu0 0.0
        %5683 = vmatpush1.msra.mxu0 0.0
        %5684 = vmatprep.subr.mxu0 0.0
        %5685 = vmatpush1.msra.mxu0 0.0
        %5686 = vmatprep.subr.mxu0 0.0
        %5687 = vmatpush1.msra.mxu0 0.0
        %5688 = vmatprep.subr.mxu0 0.0
        %5689 = vmatpush1.msra.mxu0 0.0
        %5690 = vmatprep.subr.mxu0 0.0
        %5691 = vmatpush1.msra.mxu0 0.0
        %5692 = vmatprep.subr.mxu0 0.0
        %5693 = vmatpush1.msra.mxu0 0.0
        %5694 = vmatprep.subr.mxu0 0.0
        %5695 = vmatpush1.msra.mxu0 0.0
        %5696 = vmatprep.subr.mxu0 0.0
        %5697 = vmatpush1.msra.mxu0 0.0
        %5698 = vmatprep.subr.mxu0 0.0
        %5699 = vmatpush1.msra.mxu0 0.0
        %5700 = vmatprep.subr.mxu0 0.0
        %5701 = vmatpush1.msra.mxu0 0.0
        %5702 = vmatprep.subr.mxu0 0.0
        %5703 = vmatpush1.msra.mxu0 0.0
        %5704 = vmatprep.subr.mxu0 0.0
        %5705 = vmatpush1.msra.mxu0 0.0
        %5706 = vmatprep.subr.mxu0 0.0
        %5707 = vmatpush1.msra.mxu0 0.0
        %5708 = vmatprep.subr.mxu0 0.0
        %5709 = vmatpush1.msra.mxu0 0.0
        %5710 = vmatprep.subr.mxu0 0.0
        %5711 = vmatpush1.msra.mxu0 0.0
        %5712 = vmatprep.subr.mxu0 0.0
        %5713 = vmatpush1.msra.mxu0 0.0
        %5714 = vmatprep.subr.mxu0 0.0
        %5715 = vmatpush1.msra.mxu0 0.0
        %5716 = vmatprep.mubr.f32.mxu0 0.0
        %5717 = vmatmul.mubr.f32.gmra.mrb[0].mxu0 %v5650
        %v5718 = vpop.f32.mrb[0].mxu0
        %v5719 = vadd.f32 %v5647, %v5718
        %v5720 = vpop.f32.mrb[0].mxu0
        %5721 = vdwg.mxu0
        %vm5722 = vcmask 23552
        %5723 = vst.msk [vmem:[%s61] sm:$0xff] %vm5722, %v5719
      $region148: #{d3g_pair_transformer_px_forward.3} parent=139 // pred_fallthru
        _
      // Predicated region
      $region149: #{d3g_pair_transformer_px_forward.3} parent=139 // pred_check
        %p5724 = pneg %p830
      $region150: #{d3g_pair_transformer_px_forward.3} parent=139 // pred_check_branch
        %5726 = sbr.rel (%p5724) target = $region152
      $region151: #{d3g_pair_transformer_px_forward.3} parent=139 // pred_region
        _
      $region152: #{d3g_pair_transformer_px_forward.3} parent=139 // pred_fallthru
        _
      // Predicated region
      $region153: #{d3g_pair_transformer_px_forward.3} parent=139 // pred_check
        %p5727 = pneg %p830
      $region154: #{d3g_pair_transformer_px_forward.3} parent=139 // pred_check_branch
        %5729 = sbr.rel (%p5727) target = $region156
      $region155: #{d3g_pair_transformer_px_forward.3} parent=139 // pred_region
        _
      $region156: #{d3g_pair_transformer_px_forward.3} parent=139 // pred_fallthru
        _
    $region140: #{d3g_pair_transformer_px_forward.3} parent=5 // pred_fallthru
      _
    %p5730 = scmp.le.s32.totalorder 2, %s67
    // Predicated region
    $region157: #{d3g_pair_transformer_px_forward.3} parent=5 // pred_check
      %p5731 = pneg %p5730
    $region158: #{d3g_pair_transformer_px_forward.3} parent=5 // pred_check_branch
      %5733 = sbr.rel (%p5731) target = $region160
    $region159: #{d3g_pair_transformer_px_forward.3} parent=5 // pred_region
      %s5734 = ssub.s32 %s67, 2
    $region160: #{d3g_pair_transformer_px_forward.3} parent=5 // pred_fallthru
      _
  $region6: #{d3g_pair_transformer_px_forward.3} parent=0 // loop_footer
    %s71 = sadd.s32 1, %s67
  $region7: #{d3g_pair_transformer_px_forward.3} parent=0 // loop_footer_branch
    %66 = sbr.rel target = $region3
  $region8: #{d3g_pair_transformer_px_forward.3} parent=0 // loop_exit
    _

</llo_original>
